<compile_context>
chip_gen: v6e
topology: v6e:2x2x1
jax: 0.10.0
libtpu: 0.0.40
codegen_flags: <defaults>
</compile_context>

<pallas_src>
import numpy as np
import jax
import jax.numpy as jnp
from jax.experimental import pallas as pl
from jax.experimental.pallas import tpu as pltpu


# ----------------------------------------------------------------------------
# Bilinear-resize-as-matmul (PyTorch F.interpolate, mode='bilinear',
# align_corners=False semantics).
# ----------------------------------------------------------------------------
def _interp_coeffs(n_out, n_in):
    j = np.arange(n_out, dtype=np.float64)
    src = (j + 0.5) * (n_in / n_out) - 0.5
    src = np.maximum(src, 0.0)                      # PyTorch clamps negative src to 0
    i0 = np.floor(src).astype(np.int64)
    i1 = np.minimum(i0 + 1, n_in - 1)
    frac = src - i0
    mat = np.zeros((n_out, n_in), dtype=np.float64)
    mat[np.arange(n_out), i0] += 1.0 - frac
    mat[np.arange(n_out), i1] += frac
    return mat


def make_bilinear_matrix(old_hw, new_hw):
    rh = _interp_coeffs(new_hw[0], old_hw[0])       # (newH, H)
    rw = _interp_coeffs(new_hw[1], old_hw[1])       # (newW, W)
    # out[(i,j),(h,w)] = Rh[i,h]*Rw[j,w]  (separable bilinear == Kronecker product)
    # Stored in bf16 so the resize matmul takes the native-bf16 MXU path
    # (accumulation stays f32 inside the kernel).
    # NOTE: at larger resolutions switch to the separable two-stage resize —
    # this dense Pout x P matrix does not scale (see header).
    return jnp.asarray(np.kron(rh, rw), dtype=jnp.bfloat16)   # (newH*newW, H*W)


# ----------------------------------------------------------------------------
# Pallas kernel: conv1x1 (4 partial MXU contractions, one per backbone token)
#                + BN(scale/shift) + ReLU + bilinear-resize matmul,
#                all per (Cout-tile, batch) grid step.
# ----------------------------------------------------------------------------
def _make_head_kernel(n_tok, c_tok):
    def kernel(*refs):
        x_refs = refs[:n_tok]                                   # bf16 (1, P, c_tok) each
        wt_ref, scale_ref, shift_ref, r_ref, o_ref = refs[n_tok:]
        # 1x1 conv over the (virtually) concatenated channels: torch.cat never
        # materializes — each token contracts against its own K=c_tok slice of
        # W^T, summed into one f32 accumulator (bf16 operands, f32 MXU acc).
        y = jnp.dot(x_refs[0][0], wt_ref[0:c_tok, :],
                    preferred_element_type=jnp.float32)
        for t in range(1, n_tok):
            y += jnp.dot(x_refs[t][0], wt_ref[t * c_tok:(t + 1) * c_tok, :],
                         preferred_element_type=jnp.float32)
        # BatchNorm2d (eval mode, running stats folded to per-channel affine) + ReLU.
        y = jnp.maximum(y * scale_ref[...] + shift_ref[...], 0.0)
        # Bilinear interpolation (align_corners=False) as one bf16 MXU matmul
        # with f32 accumulation.
        out = jnp.dot(r_ref[...], y.astype(jnp.bfloat16),
                      preferred_element_type=jnp.float32)
        o_ref[...] = out[None].astype(o_ref.dtype)
    return kernel


def segmentor_head(tokens, conv_w, bn_scale, bn_shift, *, tc=768):
    """tokens: list of n_tok channels-last backbone feature maps, each
    (B, H, W, c_tok) — the cast to bf16 below is a no-op if the backbone
    already emits bf16.  conv_w: (Cout, Cin, 1, 1) with Cin = n_tok*c_tok.
    Returns (B, Cout, newH, newW) float32 NCHW (PyTorch convention)."""
    n_tok = len(tokens)
    B, H, W, c_tok = tokens[0].shape
    Cin = n_tok * c_tok
    Cout = conv_w.shape[0]
    assert conv_w.shape[1] == Cin
    new_h, new_w = int(H * 14 / 16), int(W * 14 / 16)
    P, Pout = H * W, new_h * new_w
    assert Cout % tc == 0 and c_tok % 128 == 0 and P % 8 == 0

    # Per-token channels-last bf16 operands (no concat, no NCHW->NHWC pass).
    xs = [t.reshape(B, P, c_tok).astype(jnp.bfloat16) for t in tokens]
    wt = conv_w.reshape(Cout, Cin).T.astype(jnp.bfloat16)          # (Cin, Cout)
    scale = bn_scale.reshape(1, Cout).astype(jnp.float32)
    shift = bn_shift.reshape(1, Cout).astype(jnp.float32)
    r = make_bilinear_matrix((H, W), (new_h, new_w))               # (Pout, P) bf16

    # Batch innermost: W^T's block index is constant while b varies, so the
    # full weight matrix is fetched from HBM exactly once.  Both axes are
    # independent ("parallel") -> megacore / v7x gets >=2 parallel grid points
    # even at B=1 (Cout//tc == 2 with tc=768).
    grid = (Cout // tc, B)
    x_spec = pl.BlockSpec((1, P, c_tok), lambda j, b: (b, 0, 0))
    out = pl.pallas_call(
        _make_head_kernel(n_tok, c_tok),
        out_shape=jax.ShapeDtypeStruct((B, Pout, Cout), jnp.bfloat16),
        grid_spec=pltpu.PrefetchScalarGridSpec(
            num_scalar_prefetch=0,
            grid=grid,
            in_specs=[x_spec] * n_tok + [
                pl.BlockSpec((Cin, tc), lambda j, b: (0, j)),      # W^T (bf16)
                pl.BlockSpec((1, tc), lambda j, b: (0, j)),        # bn scale
                pl.BlockSpec((1, tc), lambda j, b: (0, j)),        # bn shift
                pl.BlockSpec((Pout, P), lambda j, b: (0, 0)),      # interp matrix (bf16)
            ],
            out_specs=pl.BlockSpec((1, Pout, tc), lambda j, b: (b, 0, j)),
        ),
        compiler_params=pltpu.CompilerParams(
            dimension_semantics=("parallel", "parallel")),
    )(*xs, wt, scale, shift, r)

    # bf16 NHWC -> f32 NCHW (single fused XLA pass; kernel stores stayed bf16).
    return jnp.transpose(out.reshape(B, new_h, new_w, Cout),
                         (0, 3, 1, 2)).astype(jnp.float32)


# ----------------------------------------------------------------------------
# Pure-JAX reference (for correctness check of the kernel).
# ----------------------------------------------------------------------------
def reference_forward(f16_nchw, w2d, bn_scale, bn_shift):
    B, C, H, W = f16_nchw.shape
    y = jnp.einsum('nchw,oc->nohw', f16_nchw, w2d,
                   precision=jax.lax.Precision.HIGHEST)
    y = y * bn_scale[None, :, None, None] + bn_shift[None, :, None, None]
    y = jnp.maximum(y, 0.0)
    new_h, new_w = int(H * 14 / 16), int(W * 14 / 16)

    def coords(n_out, n_in):
        j = np.arange(n_out)
        src = np.maximum((j + 0.5) * (n_in / n_out) - 0.5, 0.0)
        i0 = np.floor(src).astype(np.int32)
        i1 = np.minimum(i0 + 1, n_in - 1)
        return i0, i1, jnp.asarray(src - i0, jnp.float32)

    h0, h1, fh = coords(new_h, H)
    w0, w1, fw = coords(new_w, W)
    yh = (y[:, :, h0, :] * (1 - fh)[None, None, :, None]
          + y[:, :, h1, :] * fh[None, None, :, None])
    out = (yh[:, :, :, w0] * (1 - fw)[None, None, None, :]
           + yh[:, :, :, w1] * fw[None, None, None, :])
    return out


if __name__ == "__main__":
    key = jax.random.PRNGKey(0)
    B, H, W = 2, 16, 16                 # 16x16 patch grid (224px / patch14)
    n_tok, c_tok = 4, 384               # 4 DINOv2 ViT-S feature maps -> 1536 channels
    Cin = n_tok * c_tok                 # 1536 (fixed by the module)
    Cout = 1536

    keys = jax.random.split(key, 8)
    # Backbone output token feature maps, channels-last (see TODO(synk) above).
    tokens = [jax.random.normal(keys[i], (B, H, W, c_tok), jnp.float32)
              for i in range(n_tok)]

    # Deterministic parameter init (synthetic; shapes from the module __init__).
    conv_w = 0.02 * jax.random.normal(keys[4], (Cout, Cin, 1, 1), jnp.float32)
    gamma = 1.0 + 0.1 * jax.random.normal(keys[5], (Cout,), jnp.float32)
    beta = 0.1 * jax.random.normal(keys[6], (Cout,), jnp.float32)
    running_mean = 0.05 * jax.random.normal(keys[7], (Cout,), jnp.float32)
    running_var = 0.9 * jnp.ones((Cout,), jnp.float32)
    eps = 1e-5
    # NOTE: BatchNorm2d is implemented in eval/inference mode (running stats),
    # folded into a per-channel scale / shift.
    bn_scale = gamma / jnp.sqrt(running_var + eps)
    bn_shift = beta - running_mean * bn_scale

    out = segmentor_head(tokens, conv_w, bn_scale, bn_shift)
    out = jax.block_until_ready(out)

    new_h, new_w = int(H * 14 / 16), int(W * 14 / 16)
    assert out.shape == (B, Cout, new_h, new_w), out.shape

    # torch.cat(tokens, dim=1) in NCHW — materialized for the reference only.
    f16 = jnp.concatenate([jnp.transpose(t, (0, 3, 1, 2)) for t in tokens], axis=1)

    # 1) Kernel-math check: reference fed the same bf16-rounded inputs the
    #    kernel consumes.  The kernel additionally runs the resize matmul and
    #    output store in bf16, hence the ~1e-2-level tolerance.
    f16_q = f16.astype(jnp.bfloat16).astype(jnp.float32)
    w_q = conv_w.reshape(Cout, Cin).astype(jnp.bfloat16).astype(jnp.float32)
    ref_q = jax.block_until_ready(reference_forward(f16_q, w_q, bn_scale, bn_shift))
    np.testing.assert_allclose(np.asarray(out), np.asarray(ref_q),
                               rtol=2e-2, atol=2e-2)

    # 2) End-to-end check against the full-f32 reference (looser tolerance,
    #    accounting for the bf16 input / resize / output quantization).
    ref = jax.block_until_ready(
        reference_forward(f16, conv_w.reshape(Cout, Cin), bn_scale, bn_shift))
    np.testing.assert_allclose(np.asarray(out), np.asarray(ref),
                               rtol=4e-2, atol=4e-2)

    print("KERNEL_OK")
</pallas_src>

<mosaic_0001>
module attributes {stable_mosaic.version = 11 : i64} {
  func.func @kernel(%arg0: i32, %arg1: i32, %arg2: memref<1x256x384xbf16, #tpu.memory_space<vmem>>, %arg3: memref<1x256x384xbf16, #tpu.memory_space<vmem>>, %arg4: memref<1x256x384xbf16, #tpu.memory_space<vmem>>, %arg5: memref<1x256x384xbf16, #tpu.memory_space<vmem>>, %arg6: memref<1536x768xbf16, #tpu.memory_space<vmem>>, %arg7: memref<1x768xf32, #tpu.memory_space<vmem>>, %arg8: memref<1x768xf32, #tpu.memory_space<vmem>>, %arg9: memref<196x256xbf16, #tpu.memory_space<vmem>>, %arg10: memref<1x196x768xbf16, #tpu.memory_space<vmem>>) attributes {dimension_semantics = [#tpu.dimension_semantics<parallel>, #tpu.dimension_semantics<parallel>], iteration_bounds = array<i64: 2, 2>, scalar_prefetch = 0 : i64, scratch_operands = 0 : i64, tpu.core_type = #tpu.core_type<tc>, window_params = [{transform_indices = @transform_0, window_bounds = array<i64: 1, 256, 384>}, {transform_indices = @transform_1, window_bounds = array<i64: 1, 256, 384>}, {transform_indices = @transform_2, window_bounds = array<i64: 1, 256, 384>}, {transform_indices = @transform_3, window_bounds = array<i64: 1, 256, 384>}, {transform_indices = @transform_4, window_bounds = array<i64: 1536, 768>}, {transform_indices = @transform_5, window_bounds = array<i64: 1, 768>}, {transform_indices = @transform_6, window_bounds = array<i64: 1, 768>}, {pipeline_mode = #tpu.pipeline_mode<synchronous>, transform_indices = @transform_7, window_bounds = array<i64: 196, 256>}, {transform_indices = @transform_8, window_bounds = array<i64: 1, 196, 768>}]} {
    %c0 = arith.constant 0 : index
    %c0_0 = arith.constant 0 : index
    %c0_1 = arith.constant 0 : index
    %0 = vector.load %arg2[%c0, %c0_0, %c0_1] : memref<1x256x384xbf16, #tpu.memory_space<vmem>>, vector<1x256x384xbf16>
    %1 = vector.shape_cast %0 : vector<1x256x384xbf16> to vector<256x384xbf16>
    %c0_2 = arith.constant 0 : index
    %c0_3 = arith.constant 0 : index
    %2 = vector.load %arg6[%c0_2, %c0_3] : memref<1536x768xbf16, #tpu.memory_space<vmem>>, vector<384x768xbf16>
    %cst = arith.constant dense<0.000000e+00> : vector<256x768xf32>
    %3 = tpu.matmul %1, %2, %cst {dimension_numbers = #tpu.dot_dimension_numbers<[1], [0], [0], [1], [0, 0, 1, 1], [], []>} : vector<256x384xbf16>, vector<384x768xbf16>, vector<256x768xf32> -> vector<256x768xf32>
    %c0_4 = arith.constant 0 : index
    %c0_5 = arith.constant 0 : index
    %c0_6 = arith.constant 0 : index
    %4 = vector.load %arg3[%c0_4, %c0_5, %c0_6] : memref<1x256x384xbf16, #tpu.memory_space<vmem>>, vector<1x256x384xbf16>
    %5 = vector.shape_cast %4 : vector<1x256x384xbf16> to vector<256x384xbf16>
    %c384 = arith.constant 384 : index
    %c0_7 = arith.constant 0 : index
    %6 = vector.load %arg6[%c384, %c0_7] : memref<1536x768xbf16, #tpu.memory_space<vmem>>, vector<384x768xbf16>
    %cst_8 = arith.constant dense<0.000000e+00> : vector<256x768xf32>
    %7 = tpu.matmul %5, %6, %cst_8 {dimension_numbers = #tpu.dot_dimension_numbers<[1], [0], [0], [1], [0, 0, 1, 1], [], []>} : vector<256x384xbf16>, vector<384x768xbf16>, vector<256x768xf32> -> vector<256x768xf32>
    %8 = arith.addf %3, %7 : vector<256x768xf32>
    %c0_9 = arith.constant 0 : index
    %c0_10 = arith.constant 0 : index
    %c0_11 = arith.constant 0 : index
    %9 = vector.load %arg4[%c0_9, %c0_10, %c0_11] : memref<1x256x384xbf16, #tpu.memory_space<vmem>>, vector<1x256x384xbf16>
    %10 = vector.shape_cast %9 : vector<1x256x384xbf16> to vector<256x384xbf16>
    %c768 = arith.constant 768 : index
    %c0_12 = arith.constant 0 : index
    %11 = vector.load %arg6[%c768, %c0_12] : memref<1536x768xbf16, #tpu.memory_space<vmem>>, vector<384x768xbf16>
    %cst_13 = arith.constant dense<0.000000e+00> : vector<256x768xf32>
    %12 = tpu.matmul %10, %11, %cst_13 {dimension_numbers = #tpu.dot_dimension_numbers<[1], [0], [0], [1], [0, 0, 1, 1], [], []>} : vector<256x384xbf16>, vector<384x768xbf16>, vector<256x768xf32> -> vector<256x768xf32>
    %13 = arith.addf %8, %12 : vector<256x768xf32>
    %c0_14 = arith.constant 0 : index
    %c0_15 = arith.constant 0 : index
    %c0_16 = arith.constant 0 : index
    %14 = vector.load %arg5[%c0_14, %c0_15, %c0_16] : memref<1x256x384xbf16, #tpu.memory_space<vmem>>, vector<1x256x384xbf16>
    %15 = vector.shape_cast %14 : vector<1x256x384xbf16> to vector<256x384xbf16>
    %c1152 = arith.constant 1152 : index
    %c0_17 = arith.constant 0 : index
    %16 = vector.load %arg6[%c1152, %c0_17] : memref<1536x768xbf16, #tpu.memory_space<vmem>>, vector<384x768xbf16>
    %cst_18 = arith.constant dense<0.000000e+00> : vector<256x768xf32>
    %17 = tpu.matmul %15, %16, %cst_18 {dimension_numbers = #tpu.dot_dimension_numbers<[1], [0], [0], [1], [0, 0, 1, 1], [], []>} : vector<256x384xbf16>, vector<384x768xbf16>, vector<256x768xf32> -> vector<256x768xf32>
    %18 = arith.addf %13, %17 : vector<256x768xf32>
    %c0_19 = arith.constant 0 : index
    %c0_20 = arith.constant 0 : index
    %19 = vector.load %arg7[%c0_19, %c0_20] : memref<1x768xf32, #tpu.memory_space<vmem>>, vector<1x768xf32>
    %20 = vector.broadcast %19 : vector<1x768xf32> to vector<256x768xf32>
    %21 = arith.mulf %18, %20 : vector<256x768xf32>
    %c0_21 = arith.constant 0 : index
    %c0_22 = arith.constant 0 : index
    %22 = vector.load %arg8[%c0_21, %c0_22] : memref<1x768xf32, #tpu.memory_space<vmem>>, vector<1x768xf32>
    %23 = vector.broadcast %22 : vector<1x768xf32> to vector<256x768xf32>
    %24 = arith.addf %21, %23 : vector<256x768xf32>
    %cst_23 = arith.constant 0.000000e+00 : f32
    %25 = vector.broadcast %cst_23 : f32 to vector<256x768xf32>
    %26 = arith.maximumf %24, %25 : vector<256x768xf32>
    %c0_24 = arith.constant 0 : index
    %c0_25 = arith.constant 0 : index
    %27 = vector.load %arg9[%c0_24, %c0_25] : memref<196x256xbf16, #tpu.memory_space<vmem>>, vector<196x256xbf16>
    %28 = arith.truncf %26 : vector<256x768xf32> to vector<256x768xbf16>
    %cst_26 = arith.constant dense<0.000000e+00> : vector<196x768xf32>
    %29 = tpu.matmul %27, %28, %cst_26 {dimension_numbers = #tpu.dot_dimension_numbers<[1], [0], [0], [1], [0, 0, 1, 1], [], []>} : vector<196x256xbf16>, vector<256x768xbf16>, vector<196x768xf32> -> vector<196x768xf32>
    %30 = vector.shape_cast %29 : vector<196x768xf32> to vector<1x196x768xf32>
    %31 = arith.truncf %30 : vector<1x196x768xf32> to vector<1x196x768xbf16>
    %c0_27 = arith.constant 0 : index
    %c0_28 = arith.constant 0 : index
    %c0_29 = arith.constant 0 : index
    %32 = vector.load %arg10[%c0_27, %c0_28, %c0_29] : memref<1x196x768xbf16, #tpu.memory_space<vmem>>, vector<1x196x768xbf16>
    tpu.vector_store %arg10[%c0_27, %c0_28, %c0_29], %31 {strides = array<i32>} : memref<1x196x768xbf16, #tpu.memory_space<vmem>>, vector<1x196x768xbf16>,
    return
  }
  func.func @transform_0(%arg0: i32, %arg1: i32) -> (i32, i32, i32) {
    %c0_i32 = arith.constant 0 : i32
    %c0_i32_0 = arith.constant 0 : i32
    %c0_i32_1 = arith.constant 0 : i32
    return %arg1, %c0_i32, %c0_i32_0 : i32, i32, i32
  }
  func.func @transform_1(%arg0: i32, %arg1: i32) -> (i32, i32, i32) {
    %c0_i32 = arith.constant 0 : i32
    %c0_i32_0 = arith.constant 0 : i32
    %c0_i32_1 = arith.constant 0 : i32
    return %arg1, %c0_i32, %c0_i32_0 : i32, i32, i32
  }
  func.func @transform_2(%arg0: i32, %arg1: i32) -> (i32, i32, i32) {
    %c0_i32 = arith.constant 0 : i32
    %c0_i32_0 = arith.constant 0 : i32
    %c0_i32_1 = arith.constant 0 : i32
    return %arg1, %c0_i32, %c0_i32_0 : i32, i32, i32
  }
  func.func @transform_3(%arg0: i32, %arg1: i32) -> (i32, i32, i32) {
    %c0_i32 = arith.constant 0 : i32
    %c0_i32_0 = arith.constant 0 : i32
    %c0_i32_1 = arith.constant 0 : i32
    return %arg1, %c0_i32, %c0_i32_0 : i32, i32, i32
  }
  func.func @transform_4(%arg0: i32, %arg1: i32) -> (i32, i32) {
    %c0_i32 = arith.constant 0 : i32
    %c0_i32_0 = arith.constant 0 : i32
    return %c0_i32, %arg0 : i32, i32
  }
  func.func @transform_5(%arg0: i32, %arg1: i32) -> (i32, i32) {
    %c0_i32 = arith.constant 0 : i32
    %c0_i32_0 = arith.constant 0 : i32
    return %c0_i32, %arg0 : i32, i32
  }
  func.func @transform_6(%arg0: i32, %arg1: i32) -> (i32, i32) {
    %c0_i32 = arith.constant 0 : i32
    %c0_i32_0 = arith.constant 0 : i32
    return %c0_i32, %arg0 : i32, i32
  }
  func.func @transform_7(%arg0: i32, %arg1: i32) -> (i32, i32) {
    %c0_i32 = arith.constant 0 : i32
    %c0_i32_0 = arith.constant 0 : i32
    %c0_i32_1 = arith.constant 0 : i32
    return %c0_i32, %c0_i32_0 : i32, i32
  }
  func.func @transform_8(%arg0: i32, %arg1: i32) -> (i32, i32, i32) {
    %c0_i32 = arith.constant 0 : i32
    %c0_i32_0 = arith.constant 0 : i32
    return %arg1, %c0_i32, %arg0 : i32, i32, i32
  }
}

</mosaic_0001>

<llo_original>
// kernel: tpu_custom_call.1
$region0: #{tpu_custom_call.1}
  #allocation0 [shape = 'u32[]', space=smem, size = 0x4, offset = 0x4, fixed_abs, tag = 'smem constant byte address 0x4 - core index']
  #allocation1 [shape = 'u32[144,128]{1,0:T(1,128)}', space=vmem, size = 0x12000, scoped, tag = 'internal scratch']
  %s0 = inlined_call_operand.hbm [shape: bf16[2,256,384], index: 0, kind: input, shape index: {}]
  %s1 = inlined_call_operand.hbm [shape: bf16[2,256,384], index: 1, kind: input, shape index: {}]
  %s2 = inlined_call_operand.hbm [shape: bf16[2,256,384], index: 2, kind: input, shape index: {}]
  %s3 = inlined_call_operand.hbm [shape: bf16[2,256,384], index: 3, kind: input, shape index: {}]
  %s4 = inlined_call_operand.hbm [shape: bf16[1536,1536], index: 4, kind: input, shape index: {}]
  %s5 = inlined_call_operand.hbm [shape: f32[1,1536], index: 5, kind: input, shape index: {}]
  %s6 = inlined_call_operand.hbm [shape: f32[1,1536], index: 6, kind: input, shape index: {}]
  %s7 = inlined_call_operand.hbm [shape: bf16[196,256], index: 7, kind: input, shape index: {}]
  %s8 = inlined_call_operand.vmem [shape: bf16[2,196,1536], index: 8, kind: output, shape index: {}]
  %s9 = sld [smem:[#allocation0]]
  $region116: #{tpu_custom_call.1} parent=0
    _
  %s11 = ssub.s32 1, %s9
  %s12 = scalar_select 0, %s11, %s9
  $region1: #{tpu_custom_call.1} parent=0
    #allocation2 [shape = 'u8[393216]{0}', space=vmem, size = 0x60000, scoped, tag = 'input window, operand 0']
    #allocation3 [shape = 's32[2]{0}', space=sflag, size = 0x8, scoped, tag = 'scoped memory for tpu_custom_call.1']
    #allocation4 [shape = 'u8[393216]{0}', space=vmem, size = 0x60000, scoped, tag = 'input window, operand 1']
    #allocation5 [shape = 's32[2]{0}', space=sflag, size = 0x8, scoped, tag = 'scoped memory for tpu_custom_call.1']
    #allocation6 [shape = 'u8[393216]{0}', space=vmem, size = 0x60000, scoped, tag = 'input window, operand 2']
    #allocation7 [shape = 'u8[393216]{0}', space=vmem, size = 0x60000, scoped, tag = 'input window, operand 3']
    #allocation8 [shape = 's32[2]{0}', space=sflag, size = 0x8, scoped, tag = 'scoped memory for tpu_custom_call.1']
    #allocation9 [shape = 'u8[4718592]{0}', space=vmem, size = 0x480000, scoped, tag = 'input window, operand 4']
    #allocation10 [shape = 'u8[6144]{0}', space=vmem, size = 0x1800, scoped, tag = 'input window, operand 5']
    #allocation11 [shape = 's32[2]{0}', space=sflag, size = 0x8, scoped, tag = 'scoped memory for tpu_custom_call.1']
    #allocation12 [shape = 'u8[6144]{0}', space=vmem, size = 0x1800, scoped, tag = 'input window, operand 6']
    #allocation13 [shape = 'u8[102400]{0}', space=vmem, size = 0x19000, scoped, tag = 'input window, operand 7, single buffered']
    #allocation14 [shape = 's32[1]{0}', space=sflag, size = 0x4, scoped, tag = 'scoped memory for tpu_custom_call.1']
    #allocation15 [shape = 'u8[614400]{0}', space=vmem, size = 0x96000, scoped, tag = 'output window, operand 0']
    %13 = vsyncpa [#allocation3], 0
    %s14 = scalar_lea.sflag [#allocation3], 1
    %15 = vsyncpa %s14, 0
    %16 = vsyncpa [#allocation5], 0
    %s17 = scalar_lea.sflag [#allocation5], 1
    %18 = vsyncpa %s17, 0
    %19 = vsyncpa [#allocation8], 0
    %s20 = scalar_lea.sflag [#allocation8], 1
    %21 = vsyncpa %s20, 0
    %22 = vsyncpa [#allocation11], 0
    %s23 = scalar_lea.sflag [#allocation11], 1
    %24 = vsyncpa %s23, 0
    %25 = vsyncpa [#allocation14], 0
    loop: start=0, step=1, limit=6
    $region2: #{tpu_custom_call.1} parent=1 // loop_pre_header
      _
    $region3: #{tpu_custom_call.1} parent=1 // loop_header
      %s27 = sphi 0, %s31
      %p28 = scmp.ge.s32.totalorder %s27, 6
      %s34 = sphi 0, %s46
      %s35 = sphi 0, %s42
      %s36 = sphi 0, %s34
      %s37 = sphi 0, %s35
      %s38 = sphi 0, %s36
      %s39 = sphi 0, %s37
      %s49 = sphi 0, %s51
      %s52 = sphi 0, %s49
      %s53 = sphi 0, %s52
      %s69 = sphi 0, %s53
      %s75 = sphi 0, %s77
      %s78 = sphi 0, %s75
      %s79 = sphi 0, %s78
      %s95 = sphi 0, %s79
      %s101 = sphi 0, %s103
      %s104 = sphi 0, %s101
      %s105 = sphi 0, %s104
      %s121 = sphi 0, %s105
      %s127 = sphi 0, %s129
      %s130 = sphi 0, %s127
      %s131 = sphi 0, %s130
      %s147 = sphi 0, %s131
      %s153 = sphi 0, %s155
      %s156 = sphi 0, %s153
      %s157 = sphi 0, %s156
      %s173 = sphi 0, %s157
      %s179 = sphi 0, %s181
      %s182 = sphi 0, %s179
      %s183 = sphi 0, %s182
      %s199 = sphi 0, %s183
      %s205 = sphi 0, %s207
      %s208 = sphi 0, %s205
      %s209 = sphi 0, %s208
      %s225 = sphi 0, %s209
      %s229 = sphi 0, %s229
      %s231 = sphi 0, %s229
      %s232 = sphi 0, %s231
      %s246 = sphi 0, %s232
      %s254 = sphi 0, %s256
      %s257 = sphi 0, %s254
      %s258 = sphi 0, %s257
      %s274 = sphi 0, %s258
    $region4: #{tpu_custom_call.1} parent=1 // loop_header_branch
      %30 = sbr.rel (%p28) target = $region8
    $region5: #{tpu_custom_call.1} parent=1 // loop_body
      %s32 = ssub.s32 %s27, 1
      %s33 = ssub.s32 %s27, 2
      %s40 = sadd.s32 1, %s35
      %p41 = scmp.ge.s32.totalorder %s40, 2
      %s42 = scalar_select %p41, 0, %s40
      %s43 = sadd.s32 1, %s34
      %s44 = scalar_select %p41, %s43, %s34
      %p45 = scmp.ge.s32.totalorder %s44, 2
      %s46 = scalar_select %p45, 0, %s44
      %s47 = ssub.s32 %s35, %s42
      %p48 = scmp.eq.s32.totalorder %s47, 0
      %s50 = sadd.s32 %s49, 1
      %s51 = scalar_select %p48, %s49, %s50
      %p54 = pneg %p48
      %p55 = scmp.eq.s32.totalorder %s27, 3
      %p56 = por %p54, %p55
      %p57 = scmp.ne.s32.totalorder %s49, %s52
      %p58 = scmp.eq.s32.totalorder %s27, 0
      %p59 = por %p57, %p58
      %p60 = scmp.ne.s32.totalorder %s49, %s52
      %p61 = scmp.eq.s32.totalorder %s32, 3
      %p62 = por %p60, %p61
      %p63 = scmp.ne.s32.totalorder %s52, %s53
      %p64 = scmp.eq.s32.totalorder %s32, 0
      %p65 = por %p63, %p64
      %p66 = scmp.ne.s32.totalorder %s52, %s53
      %p67 = scmp.eq.s32.totalorder %s33, 3
      %p68 = por %p66, %p67
      %p70 = scmp.ne.s32.totalorder %s53, %s69
      %p71 = scmp.eq.s32.totalorder %s33, 0
      %p72 = por %p70, %p71
      %s73 = ssub.s32 %s35, %s42
      %p74 = scmp.eq.s32.totalorder %s73, 0
      %s76 = sadd.s32 %s75, 1
      %s77 = scalar_select %p74, %s75, %s76
      %p80 = pneg %p74
      %p81 = scmp.eq.s32.totalorder %s27, 3
      %p82 = por %p80, %p81
      %p83 = scmp.ne.s32.totalorder %s75, %s78
      %p84 = scmp.eq.s32.totalorder %s27, 0
      %p85 = por %p83, %p84
      %p86 = scmp.ne.s32.totalorder %s75, %s78
      %p87 = scmp.eq.s32.totalorder %s32, 3
      %p88 = por %p86, %p87
      %p89 = scmp.ne.s32.totalorder %s78, %s79
      %p90 = scmp.eq.s32.totalorder %s32, 0
      %p91 = por %p89, %p90
      %p92 = scmp.ne.s32.totalorder %s78, %s79
      %p93 = scmp.eq.s32.totalorder %s33, 3
      %p94 = por %p92, %p93
      %p96 = scmp.ne.s32.totalorder %s79, %s95
      %p97 = scmp.eq.s32.totalorder %s33, 0
      %p98 = por %p96, %p97
      %s99 = ssub.s32 %s35, %s42
      %p100 = scmp.eq.s32.totalorder %s99, 0
      %s102 = sadd.s32 %s101, 1
      %s103 = scalar_select %p100, %s101, %s102
      %p106 = pneg %p100
      %p107 = scmp.eq.s32.totalorder %s27, 3
      %p108 = por %p106, %p107
      %p109 = scmp.ne.s32.totalorder %s101, %s104
      %p110 = scmp.eq.s32.totalorder %s27, 0
      %p111 = por %p109, %p110
      %p112 = scmp.ne.s32.totalorder %s101, %s104
      %p113 = scmp.eq.s32.totalorder %s32, 3
      %p114 = por %p112, %p113
      %p115 = scmp.ne.s32.totalorder %s104, %s105
      %p116 = scmp.eq.s32.totalorder %s32, 0
      %p117 = por %p115, %p116
      %p118 = scmp.ne.s32.totalorder %s104, %s105
      %p119 = scmp.eq.s32.totalorder %s33, 3
      %p120 = por %p118, %p119
      %p122 = scmp.ne.s32.totalorder %s105, %s121
      %p123 = scmp.eq.s32.totalorder %s33, 0
      %p124 = por %p122, %p123
      %s125 = ssub.s32 %s35, %s42
      %p126 = scmp.eq.s32.totalorder %s125, 0
      %s128 = sadd.s32 %s127, 1
      %s129 = scalar_select %p126, %s127, %s128
      %p132 = pneg %p126
      %p133 = scmp.eq.s32.totalorder %s27, 3
      %p134 = por %p132, %p133
      %p135 = scmp.ne.s32.totalorder %s127, %s130
      %p136 = scmp.eq.s32.totalorder %s27, 0
      %p137 = por %p135, %p136
      %p138 = scmp.ne.s32.totalorder %s127, %s130
      %p139 = scmp.eq.s32.totalorder %s32, 3
      %p140 = por %p138, %p139
      %p141 = scmp.ne.s32.totalorder %s130, %s131
      %p142 = scmp.eq.s32.totalorder %s32, 0
      %p143 = por %p141, %p142
      %p144 = scmp.ne.s32.totalorder %s130, %s131
      %p145 = scmp.eq.s32.totalorder %s33, 3
      %p146 = por %p144, %p145
      %p148 = scmp.ne.s32.totalorder %s131, %s147
      %p149 = scmp.eq.s32.totalorder %s33, 0
      %p150 = por %p148, %p149
      %s151 = ssub.s32 %s34, %s46
      %p152 = scmp.eq.s32.totalorder %s151, 0
      %s154 = sadd.s32 %s153, 1
      %s155 = scalar_select %p152, %s153, %s154
      %p158 = pneg %p152
      %p159 = scmp.eq.s32.totalorder %s27, 3
      %p160 = por %p158, %p159
      %p161 = scmp.ne.s32.totalorder %s153, %s156
      %p162 = scmp.eq.s32.totalorder %s27, 0
      %p163 = por %p161, %p162
      %p164 = scmp.ne.s32.totalorder %s153, %s156
      %p165 = scmp.eq.s32.totalorder %s32, 3
      %p166 = por %p164, %p165
      %p167 = scmp.ne.s32.totalorder %s156, %s157
      %p168 = scmp.eq.s32.totalorder %s32, 0
      %p169 = por %p167, %p168
      %p170 = scmp.ne.s32.totalorder %s156, %s157
      %p171 = scmp.eq.s32.totalorder %s33, 3
      %p172 = por %p170, %p171
      %p174 = scmp.ne.s32.totalorder %s157, %s173
      %p175 = scmp.eq.s32.totalorder %s33, 0
      %p176 = por %p174, %p175
      %s177 = ssub.s32 %s34, %s46
      %p178 = scmp.eq.s32.totalorder %s177, 0
      %s180 = sadd.s32 %s179, 1
      %s181 = scalar_select %p178, %s179, %s180
      %p184 = pneg %p178
      %p185 = scmp.eq.s32.totalorder %s27, 3
      %p186 = por %p184, %p185
      %p187 = scmp.ne.s32.totalorder %s179, %s182
      %p188 = scmp.eq.s32.totalorder %s27, 0
      %p189 = por %p187, %p188
      %p190 = scmp.ne.s32.totalorder %s179, %s182
      %p191 = scmp.eq.s32.totalorder %s32, 3
      %p192 = por %p190, %p191
      %p193 = scmp.ne.s32.totalorder %s182, %s183
      %p194 = scmp.eq.s32.totalorder %s32, 0
      %p195 = por %p193, %p194
      %p196 = scmp.ne.s32.totalorder %s182, %s183
      %p197 = scmp.eq.s32.totalorder %s33, 3
      %p198 = por %p196, %p197
      %p200 = scmp.ne.s32.totalorder %s183, %s199
      %p201 = scmp.eq.s32.totalorder %s33, 0
      %p202 = por %p200, %p201
      %s203 = ssub.s32 %s34, %s46
      %p204 = scmp.eq.s32.totalorder %s203, 0
      %s206 = sadd.s32 %s205, 1
      %s207 = scalar_select %p204, %s205, %s206
      %p210 = pneg %p204
      %p211 = scmp.eq.s32.totalorder %s27, 3
      %p212 = por %p210, %p211
      %p213 = scmp.ne.s32.totalorder %s205, %s208
      %p214 = scmp.eq.s32.totalorder %s27, 0
      %p215 = por %p213, %p214
      %p216 = scmp.ne.s32.totalorder %s205, %s208
      %p217 = scmp.eq.s32.totalorder %s32, 3
      %p218 = por %p216, %p217
      %p219 = scmp.ne.s32.totalorder %s208, %s209
      %p220 = scmp.eq.s32.totalorder %s32, 0
      %p221 = por %p219, %p220
      %p222 = scmp.ne.s32.totalorder %s208, %s209
      %p223 = scmp.eq.s32.totalorder %s33, 3
      %p224 = por %p222, %p223
      %p226 = scmp.ne.s32.totalorder %s209, %s225
      %p227 = scmp.eq.s32.totalorder %s33, 0
      %p228 = por %p226, %p227
      %s230 = sadd.s32 %s229, 1
      %p233 = scmp.eq.s32.totalorder %s27, 3
      %p234 = scmp.ne.s32.totalorder %s229, %s231
      %p235 = scmp.eq.s32.totalorder %s27, 0
      %p236 = por %p234, %p235
      %p237 = scmp.ne.s32.totalorder %s229, %s231
      %p238 = scmp.eq.s32.totalorder %s32, 3
      %p239 = por %p237, %p238
      %p240 = scmp.ne.s32.totalorder %s231, %s232
      %p241 = scmp.eq.s32.totalorder %s32, 0
      %p242 = por %p240, %p241
      %p243 = scmp.ne.s32.totalorder %s231, %s232
      %p244 = scmp.eq.s32.totalorder %s33, 3
      %p245 = por %p243, %p244
      %p247 = scmp.ne.s32.totalorder %s232, %s246
      %p248 = scmp.eq.s32.totalorder %s33, 0
      %p249 = por %p247, %p248
      %s250 = ssub.s32 %s35, %s42
      %s251 = ssub.s32 %s34, %s46
      %s252 = sor.u32 %s250, %s251
      %p253 = scmp.eq.s32.totalorder %s252, 0
      %s255 = sadd.s32 %s254, 1
      %s256 = scalar_select %p253, %s254, %s255
      %p259 = pneg %p253
      %p260 = scmp.eq.s32.totalorder %s27, 3
      %p261 = por %p259, %p260
      %p262 = scmp.ne.s32.totalorder %s254, %s257
      %p263 = scmp.eq.s32.totalorder %s27, 0
      %p264 = por %p262, %p263
      %p265 = scmp.ne.s32.totalorder %s254, %s257
      %p266 = scmp.eq.s32.totalorder %s32, 3
      %p267 = por %p265, %p266
      %p268 = scmp.ne.s32.totalorder %s257, %s258
      %p269 = scmp.eq.s32.totalorder %s32, 0
      %p270 = por %p268, %p269
      %p271 = scmp.ne.s32.totalorder %s257, %s258
      %p272 = scmp.eq.s32.totalorder %s33, 3
      %p273 = por %p271, %p272
      %p275 = scmp.ne.s32.totalorder %s258, %s274
      %p276 = scmp.eq.s32.totalorder %s33, 0
      %p277 = por %p275, %p276
      %p278 = scmp.le.s32.totalorder 1, %s27
      %p279 = scmp.lt.s32.totalorder %s27, 5
      %p280 = pnand %p278, %p279
      %p281 = pneg %p280
      // Predicated region
      $region9: #{tpu_custom_call.1} parent=5 // pred_check
        _
      $region10: #{tpu_custom_call.1} parent=5 // pred_check_branch
        %283 = sbr.rel (%p280) target = $region12
      $region11: #{tpu_custom_call.1} parent=5 // pred_region
        %s284 = ssub.s32 %s27, 1
        // Predicated region
        $region13: #{tpu_custom_call.1} parent=11 // pred_check
          %p285 = pneg %p242
        $region14: #{tpu_custom_call.1} parent=11 // pred_check_branch
          %287 = sbr.rel (%p285) target = $region16
        $region15: #{tpu_custom_call.1} parent=11 // pred_region
          %s289 = ssub.s32 3200, 3200
          %290 = vsyncadd [#allocation14], %s289
          %s291 = sshll.u32 [#allocation13], 4
          %s292 = int_to_ptr.vmem [resolvable:$true] %s291
          %297 = dma.hbm_to_vmem [thread:$0]  %s7, 3200, %s292, [#allocation14], 128, 128, 8
        $region16: #{tpu_custom_call.1} parent=11 // pred_fallthru
          _
      $region12: #{tpu_custom_call.1} parent=5 // pred_fallthru
        _
      %p298 = scmp.lt.s32.totalorder %s27, 4
      // Predicated region
      $region17: #{tpu_custom_call.1} parent=5 // pred_check
        %p299 = pneg %p298
      $region18: #{tpu_custom_call.1} parent=5 // pred_check_branch
        %301 = sbr.rel (%p299) target = $region20
      $region19: #{tpu_custom_call.1} parent=5 // pred_region
        // Predicated region
        $region21: #{tpu_custom_call.1} parent=19 // pred_check
          %p302 = pneg %p59
        $region22: #{tpu_custom_call.1} parent=19 // pred_check_branch
          %304 = sbr.rel (%p302) target = $region24
        $region23: #{tpu_custom_call.1} parent=19 // pred_region
          %s305 = sand.u32 %s49, 1
          %s306 = scalar_lea.sflag [#allocation3], %s305
          %s307 = sand.u32 %s49, 1
          %s308 = smul.addr %s307, 384
          %s309 = scalar_lea.vmem [#allocation2], %s308
          %s311 = ssub.s32 6144, 6144
          %312 = vsyncadd %s306, %s311
          %s313 = smul.addr %s35, 96
          %s314 = smul.addr %s313, 64
          %s315 = scalar_lea.hbm %s0, %s314
          %s316 = sshll.u32 %s309, 4
          %s317 = int_to_ptr.vmem [resolvable:$true] %s316
          %322 = dma.hbm_to_vmem [thread:$0]  %s315, 6144, %s317, %s306, 192, 192, 12
        $region24: #{tpu_custom_call.1} parent=19 // pred_fallthru
          _
        // Predicated region
        $region25: #{tpu_custom_call.1} parent=19 // pred_check
          %p323 = pneg %p85
        $region26: #{tpu_custom_call.1} parent=19 // pred_check_branch
          %325 = sbr.rel (%p323) target = $region28
        $region27: #{tpu_custom_call.1} parent=19 // pred_region
          %s326 = sand.u32 %s27, 1
          %s327 = scalar_lea.sflag [#allocation5], %s326
          %s328 = sand.u32 %s75, 1
          %s329 = smul.addr %s328, 384
          %s330 = scalar_lea.vmem [#allocation4], %s329
          %s332 = ssub.s32 6144, 6144
          %333 = vsyncadd %s327, %s332
          %s334 = smul.addr %s35, 96
          %s335 = smul.addr %s334, 64
          %s336 = scalar_lea.hbm %s1, %s335
          %s337 = sshll.u32 %s330, 4
          %s338 = int_to_ptr.vmem [resolvable:$true] %s337
          %343 = dma.hbm_to_vmem [thread:$0]  %s336, 6144, %s338, %s327, 192, 192, 12
        $region28: #{tpu_custom_call.1} parent=19 // pred_fallthru
          _
        // Predicated region
        $region29: #{tpu_custom_call.1} parent=19 // pred_check
          %p344 = pneg %p111
        $region30: #{tpu_custom_call.1} parent=19 // pred_check_branch
          %346 = sbr.rel (%p344) target = $region32
        $region31: #{tpu_custom_call.1} parent=19 // pred_region
          %s347 = sand.u32 %s27, 1
          %s348 = scalar_lea.sflag [#allocation5], %s347
          %s349 = sand.u32 %s101, 1
          %s350 = smul.addr %s349, 384
          %s351 = scalar_lea.vmem [#allocation6], %s350
          %s353 = ssub.s32 6144, 6144
          %354 = vsyncadd %s348, %s353
          %s355 = smul.addr %s35, 96
          %s356 = smul.addr %s355, 64
          %s357 = scalar_lea.hbm %s2, %s356
          %s358 = sshll.u32 %s351, 4
          %s359 = int_to_ptr.vmem [resolvable:$true] %s358
          %364 = dma.hbm_to_vmem [thread:$0]  %s357, 6144, %s359, %s348, 192, 192, 12
        $region32: #{tpu_custom_call.1} parent=19 // pred_fallthru
          _
        // Predicated region
        $region33: #{tpu_custom_call.1} parent=19 // pred_check
          %p365 = pneg %p137
        $region34: #{tpu_custom_call.1} parent=19 // pred_check_branch
          %367 = sbr.rel (%p365) target = $region36
        $region35: #{tpu_custom_call.1} parent=19 // pred_region
          %s368 = sand.u32 %s27, 1
          %s369 = scalar_lea.sflag [#allocation8], %s368
          %s370 = sand.u32 %s127, 1
          %s371 = smul.addr %s370, 384
          %s372 = scalar_lea.vmem [#allocation7], %s371
          %s374 = ssub.s32 6144, 6144
          %375 = vsyncadd %s369, %s374
          %s376 = smul.addr %s35, 96
          %s377 = smul.addr %s376, 64
          %s378 = scalar_lea.hbm %s3, %s377
          %s379 = sshll.u32 %s372, 4
          %s380 = int_to_ptr.vmem [resolvable:$true] %s379
          %385 = dma.hbm_to_vmem [thread:$0]  %s378, 6144, %s380, %s369, 192, 192, 12
        $region36: #{tpu_custom_call.1} parent=19 // pred_fallthru
          _
        // Predicated region
        $region37: #{tpu_custom_call.1} parent=19 // pred_check
          %p386 = pneg %p163
        $region38: #{tpu_custom_call.1} parent=19 // pred_check_branch
          %388 = sbr.rel (%p386) target = $region40
        $region39: #{tpu_custom_call.1} parent=19 // pred_region
          %s389 = sand.u32 %s27, 1
          %s390 = scalar_lea.sflag [#allocation8], %s389
          %s391 = sand.u32 %s153, 1
          %s392 = smul.addr %s391, 4608
          %s393 = scalar_lea.vmem [#allocation9], %s392
          %s394 = smul.u32 6, %s34
          %s396 = ssub.s32 73728, 73728
          %397 = vsyncadd %s390, %s396
          %s398 = smul.addr %s394, 64
          %s399 = scalar_lea.hbm %s4, %s398
          %s400 = sshll.u32 %s393, 4
          %s401 = int_to_ptr.vmem [resolvable:$true] %s400
          %406 = dma.hbm_to_vmem [thread:$0]  %s399, 73728, %s401, %s390, 768, 384, 24
        $region40: #{tpu_custom_call.1} parent=19 // pred_fallthru
          _
        // Predicated region
        $region41: #{tpu_custom_call.1} parent=19 // pred_check
          %p407 = pneg %p189
        $region42: #{tpu_custom_call.1} parent=19 // pred_check_branch
          %409 = sbr.rel (%p407) target = $region44
        $region43: #{tpu_custom_call.1} parent=19 // pred_region
          %s410 = sand.u32 %s27, 1
          %s411 = scalar_lea.sflag [#allocation11], %s410
          %s412 = sand.u32 %s179, 1
          %s413 = smul.addr %s412, 6
          %s414 = scalar_lea.vmem [#allocation10], %s413
          %s415 = smul.u32 6, %s34
          %s417 = ssub.s32 96, 96
          %418 = vsyncadd %s411, %s417
          %s419 = smul.addr %s415, 16
          %s420 = scalar_lea.hbm %s5, %s419
          %s422 = sshll.u32 %s414, 4
          %s423 = int_to_ptr.vmem [resolvable:$true] %s422
          %425 = dma.hbm_to_vmem [thread:$0]  %s420, 96, %s423, %s411
        $region44: #{tpu_custom_call.1} parent=19 // pred_fallthru
          _
        // Predicated region
        $region45: #{tpu_custom_call.1} parent=19 // pred_check
          %p426 = pneg %p215
        $region46: #{tpu_custom_call.1} parent=19 // pred_check_branch
          %428 = sbr.rel (%p426) target = $region48
        $region47: #{tpu_custom_call.1} parent=19 // pred_region
          %s429 = sand.u32 %s27, 1
          %s430 = scalar_lea.sflag [#allocation11], %s429
          %s431 = sand.u32 %s205, 1
          %s432 = smul.addr %s431, 6
          %s433 = scalar_lea.vmem [#allocation12], %s432
          %s434 = smul.u32 6, %s34
          %s436 = ssub.s32 96, 96
          %437 = vsyncadd %s430, %s436
          %s438 = smul.addr %s434, 16
          %s439 = scalar_lea.hbm %s6, %s438
          %s441 = sshll.u32 %s433, 4
          %s442 = int_to_ptr.vmem [resolvable:$true] %s441
          %444 = dma.hbm_to_vmem [thread:$0]  %s439, 96, %s442, %s430
        $region48: #{tpu_custom_call.1} parent=19 // pred_fallthru
          _
      $region20: #{tpu_custom_call.1} parent=5 // pred_fallthru
        _
      %p445 = scmp.le.s32.totalorder 1, %s27
      %p446 = scmp.lt.s32.totalorder %s27, 5
      %p447 = pnand %p445, %p446
      %p448 = pneg %p447
      // Predicated region
      $region49: #{tpu_custom_call.1} parent=5 // pred_check
        _
      $region50: #{tpu_custom_call.1} parent=5 // pred_check_branch
        %450 = sbr.rel (%p447) target = $region52
      $region51: #{tpu_custom_call.1} parent=5 // pred_region
        %s451 = ssub.s32 %s27, 1
        %s452 = sand.u32 %s52, 1
        %s453 = scalar_lea.sflag [#allocation3], %s452
        %s454 = sand.u32 %s52, 1
        %s455 = smul.addr %s454, 384
        %s456 = scalar_lea.vmem [#allocation2], %s455
        // Predicated region
        $region53: #{tpu_custom_call.1} parent=51 // pred_check
          %p457 = pneg %p65
        $region54: #{tpu_custom_call.1} parent=51 // pred_check_branch
          %459 = sbr.rel (%p457) target = $region56
        $region55: #{tpu_custom_call.1} parent=51 // pred_region
          %460 = dma.done %s453, 6144
        $region56: #{tpu_custom_call.1} parent=51 // pred_fallthru
          _
        %s461 = sand.u32 %s32, 1
        %s462 = scalar_lea.sflag [#allocation5], %s461
        %s463 = sand.u32 %s78, 1
        %s464 = smul.addr %s463, 384
        %s465 = scalar_lea.vmem [#allocation4], %s464
        // Predicated region
        $region57: #{tpu_custom_call.1} parent=51 // pred_check
          %p466 = pneg %p91
        $region58: #{tpu_custom_call.1} parent=51 // pred_check_branch
          %468 = sbr.rel (%p466) target = $region60
        $region59: #{tpu_custom_call.1} parent=51 // pred_region
          %469 = dma.done %s462, 6144
        $region60: #{tpu_custom_call.1} parent=51 // pred_fallthru
          _
        %s470 = sand.u32 %s32, 1
        %s471 = scalar_lea.sflag [#allocation5], %s470
        %s472 = sand.u32 %s104, 1
        %s473 = smul.addr %s472, 384
        %s474 = scalar_lea.vmem [#allocation6], %s473
        // Predicated region
        $region61: #{tpu_custom_call.1} parent=51 // pred_check
          %p475 = pneg %p117
        $region62: #{tpu_custom_call.1} parent=51 // pred_check_branch
          %477 = sbr.rel (%p475) target = $region64
        $region63: #{tpu_custom_call.1} parent=51 // pred_region
          %478 = dma.done %s471, 6144
        $region64: #{tpu_custom_call.1} parent=51 // pred_fallthru
          _
        %s479 = sand.u32 %s32, 1
        %s480 = scalar_lea.sflag [#allocation8], %s479
        %s481 = sand.u32 %s130, 1
        %s482 = smul.addr %s481, 384
        %s483 = scalar_lea.vmem [#allocation7], %s482
        // Predicated region
        $region65: #{tpu_custom_call.1} parent=51 // pred_check
          %p484 = pneg %p143
        $region66: #{tpu_custom_call.1} parent=51 // pred_check_branch
          %486 = sbr.rel (%p484) target = $region68
        $region67: #{tpu_custom_call.1} parent=51 // pred_region
          %487 = dma.done %s480, 6144
        $region68: #{tpu_custom_call.1} parent=51 // pred_fallthru
          _
        %s488 = sand.u32 %s32, 1
        %s489 = scalar_lea.sflag [#allocation8], %s488
        %s490 = sand.u32 %s156, 1
        %s491 = smul.addr %s490, 4608
        %s492 = scalar_lea.vmem [#allocation9], %s491
        // Predicated region
        $region69: #{tpu_custom_call.1} parent=51 // pred_check
          %p493 = pneg %p169
        $region70: #{tpu_custom_call.1} parent=51 // pred_check_branch
          %495 = sbr.rel (%p493) target = $region72
        $region71: #{tpu_custom_call.1} parent=51 // pred_region
          %496 = dma.done %s489, 73728
        $region72: #{tpu_custom_call.1} parent=51 // pred_fallthru
          _
        %s497 = sand.u32 %s32, 1
        %s498 = scalar_lea.sflag [#allocation11], %s497
        %s499 = sand.u32 %s182, 1
        %s500 = smul.addr %s499, 6
        %s501 = scalar_lea.vmem [#allocation10], %s500
        // Predicated region
        $region73: #{tpu_custom_call.1} parent=51 // pred_check
          %p502 = pneg %p195
        $region74: #{tpu_custom_call.1} parent=51 // pred_check_branch
          %504 = sbr.rel (%p502) target = $region76
        $region75: #{tpu_custom_call.1} parent=51 // pred_region
          %505 = dma.done %s498, 96
        $region76: #{tpu_custom_call.1} parent=51 // pred_fallthru
          _
        %s506 = sand.u32 %s32, 1
        %s507 = scalar_lea.sflag [#allocation11], %s506
        %s508 = sand.u32 %s208, 1
        %s509 = smul.addr %s508, 6
        %s510 = scalar_lea.vmem [#allocation12], %s509
        // Predicated region
        $region77: #{tpu_custom_call.1} parent=51 // pred_check
          %p511 = pneg %p221
        $region78: #{tpu_custom_call.1} parent=51 // pred_check_branch
          %513 = sbr.rel (%p511) target = $region80
        $region79: #{tpu_custom_call.1} parent=51 // pred_region
          %514 = dma.done %s507, 96
        $region80: #{tpu_custom_call.1} parent=51 // pred_fallthru
          _
        // Predicated region
        $region81: #{tpu_custom_call.1} parent=51 // pred_check
          %p515 = pneg %p242
        $region82: #{tpu_custom_call.1} parent=51 // pred_check_branch
          %517 = sbr.rel (%p515) target = $region84
        $region83: #{tpu_custom_call.1} parent=51 // pred_region
          %518 = dma.done [#allocation14], 3200
        $region84: #{tpu_custom_call.1} parent=51 // pred_fallthru
          _
        %s519 = sand.u32 %s52, 1
        %s520 = scalar_lea.sflag [#allocation3], %s519
        %s521 = sand.u32 %s52, 1
        %s522 = smul.addr %s521, 384
        %s523 = scalar_lea.vmem [#allocation2], %s522
        %p524 = pneg %p65
        %p525 = pneg %p62
        %s526 = sand.u32 %s32, 1
        %s527 = scalar_lea.sflag [#allocation5], %s526
        %s528 = sand.u32 %s78, 1
        %s529 = smul.addr %s528, 384
        %s530 = scalar_lea.vmem [#allocation4], %s529
        %p531 = pneg %p91
        %p532 = pneg %p88
        %s533 = sand.u32 %s32, 1
        %s534 = scalar_lea.sflag [#allocation5], %s533
        %s535 = sand.u32 %s104, 1
        %s536 = smul.addr %s535, 384
        %s537 = scalar_lea.vmem [#allocation6], %s536
        %p538 = pneg %p117
        %p539 = pneg %p114
        %s540 = sand.u32 %s32, 1
        %s541 = scalar_lea.sflag [#allocation8], %s540
        %s542 = sand.u32 %s130, 1
        %s543 = smul.addr %s542, 384
        %s544 = scalar_lea.vmem [#allocation7], %s543
        %p545 = pneg %p143
        %p546 = pneg %p140
        %s547 = sand.u32 %s32, 1
        %s548 = scalar_lea.sflag [#allocation8], %s547
        %s549 = sand.u32 %s156, 1
        %s550 = smul.addr %s549, 4608
        %s551 = scalar_lea.vmem [#allocation9], %s550
        %p552 = pneg %p169
        %p553 = pneg %p166
        %s554 = sand.u32 %s32, 1
        %s555 = scalar_lea.sflag [#allocation11], %s554
        %s556 = sand.u32 %s182, 1
        %s557 = smul.addr %s556, 6
        %s558 = scalar_lea.vmem [#allocation10], %s557
        %p559 = pneg %p195
        %p560 = pneg %p192
        %s561 = sand.u32 %s32, 1
        %s562 = scalar_lea.sflag [#allocation11], %s561
        %s563 = sand.u32 %s208, 1
        %s564 = smul.addr %s563, 6
        %s565 = scalar_lea.vmem [#allocation12], %s564
        %p566 = pneg %p221
        %p567 = pneg %p218
        %p568 = pneg %p242
        %p569 = pneg %p239
        %p570 = pneg %p270
        %p571 = pneg %p267
        %s572 = sand.u32 %s257, 1
        %s573 = sand.u32 %s257, 1
        %s574 = smul.addr %s573, 600
        %s575 = scalar_lea.vmem [#allocation15], %s574
        %s576 = smul.u32 6, %s36
        %s577 = smul.u32 6, %s36
        %s578 = smul.u32 6, %s36
        %s579 = smul.u32 6, %s36
        %v581 = vld [vmem:[%s456] sm:$0xff]
        %v582 = vld [vmem:[%s456 + $0x8] sm:$0xf]
        %v583 = vld [vmem:[%s456 + $0xc] sm:$0xff]
        %v584 = vld [vmem:[%s456 + $0x14] sm:$0xf]
        %v585 = vld [vmem:[%s456 + $0x18] sm:$0xff]
        %v586 = vld [vmem:[%s456 + $0x20] sm:$0xf]
        %v587 = vld [vmem:[%s456 + $0x24] sm:$0xff]
        %v588 = vld [vmem:[%s456 + $0x2c] sm:$0xf]
        %v589 = vld [vmem:[%s456 + $0x30] sm:$0xff]
        %v590 = vld [vmem:[%s456 + $0x38] sm:$0xf]
        %v591 = vld [vmem:[%s456 + $0x3c] sm:$0xff]
        %v592 = vld [vmem:[%s456 + $0x44] sm:$0xf]
        %v593 = vld [vmem:[%s456 + $0x48] sm:$0xff]
        %v594 = vld [vmem:[%s456 + $0x50] sm:$0xf]
        %v595 = vld [vmem:[%s456 + $0x54] sm:$0xff]
        %v596 = vld [vmem:[%s456 + $0x5c] sm:$0xf]
        %v597 = vld [vmem:[%s456 + $0x60] sm:$0xff]
        %v598 = vld [vmem:[%s456 + $0x68] sm:$0xf]
        %v599 = vld [vmem:[%s456 + $0x6c] sm:$0xff]
        %v600 = vld [vmem:[%s456 + $0x74] sm:$0xf]
        %v601 = vld [vmem:[%s456 + $0x78] sm:$0xff]
        %v602 = vld [vmem:[%s456 + $0x80] sm:$0xf]
        %v603 = vld [vmem:[%s456 + $0x84] sm:$0xff]
        %v604 = vld [vmem:[%s456 + $0x8c] sm:$0xf]
        %v605 = vld [vmem:[%s456 + $0x90] sm:$0xff]
        %v606 = vld [vmem:[%s456 + $0x98] sm:$0xf]
        %v607 = vld [vmem:[%s456 + $0x9c] sm:$0xff]
        %v608 = vld [vmem:[%s456 + $0xa4] sm:$0xf]
        %v609 = vld [vmem:[%s456 + $0xa8] sm:$0xff]
        %v610 = vld [vmem:[%s456 + $0xb0] sm:$0xf]
        %v611 = vld [vmem:[%s456 + $0xb4] sm:$0xff]
        %v612 = vld [vmem:[%s456 + $0xbc] sm:$0xf]
        %v613 = vld [vmem:[%s456 + $0xc0] sm:$0xff]
        %v614 = vld [vmem:[%s456 + $0xc8] sm:$0xf]
        %v615 = vld [vmem:[%s456 + $0xcc] sm:$0xff]
        %v616 = vld [vmem:[%s456 + $0xd4] sm:$0xf]
        %v617 = vld [vmem:[%s456 + $0xd8] sm:$0xff]
        %v618 = vld [vmem:[%s456 + $0xe0] sm:$0xf]
        %v619 = vld [vmem:[%s456 + $0xe4] sm:$0xff]
        %v620 = vld [vmem:[%s456 + $0xec] sm:$0xf]
        %v621 = vld [vmem:[%s456 + $0xf0] sm:$0xff]
        %v622 = vld [vmem:[%s456 + $0xf8] sm:$0xf]
        %v623 = vld [vmem:[%s456 + $0xfc] sm:$0xff]
        %v624 = vld [vmem:[%s456 + $0x104] sm:$0xf]
        %v625 = vld [vmem:[%s456 + $0x108] sm:$0xff]
        %v626 = vld [vmem:[%s456 + $0x110] sm:$0xf]
        %v627 = vld [vmem:[%s456 + $0x114] sm:$0xff]
        %v628 = vld [vmem:[%s456 + $0x11c] sm:$0xf]
        %v629 = vld [vmem:[%s456 + $0x120] sm:$0xff]
        %v630 = vld [vmem:[%s456 + $0x128] sm:$0xf]
        %v631 = vld [vmem:[%s456 + $0x12c] sm:$0xff]
        %v632 = vld [vmem:[%s456 + $0x134] sm:$0xf]
        %v633 = vld [vmem:[%s456 + $0x138] sm:$0xff]
        %v634 = vld [vmem:[%s456 + $0x140] sm:$0xf]
        %v635 = vld [vmem:[%s456 + $0x144] sm:$0xff]
        %v636 = vld [vmem:[%s456 + $0x14c] sm:$0xf]
        %v637 = vld [vmem:[%s456 + $0x150] sm:$0xff]
        %v638 = vld [vmem:[%s456 + $0x158] sm:$0xf]
        %v639 = vld [vmem:[%s456 + $0x15c] sm:$0xff]
        %v640 = vld [vmem:[%s456 + $0x164] sm:$0xf]
        %v641 = vld [vmem:[%s456 + $0x168] sm:$0xff]
        %v642 = vld [vmem:[%s456 + $0x170] sm:$0xf]
        %v643 = vld [vmem:[%s456 + $0x174] sm:$0xff]
        %v644 = vld [vmem:[%s456 + $0x17c] sm:$0xf]
        %v645 = vld [vmem:[%s492] sm:$0xff]
        %v646 = vld [vmem:[%s492 + $0x8] sm:$0xff]
        %v647 = vld [vmem:[%s492 + $0x10] sm:$0xff]
        %v648 = vld [vmem:[%s492 + $0x18] sm:$0xff]
        %v649 = vld [vmem:[%s492 + $0x20] sm:$0xff]
        %v650 = vld [vmem:[%s492 + $0x28] sm:$0xff]
        %v651 = vld [vmem:[%s492 + $0x30] sm:$0xff]
        %v652 = vld [vmem:[%s492 + $0x38] sm:$0xff]
        %v653 = vld [vmem:[%s492 + $0x40] sm:$0xff]
        %v654 = vld [vmem:[%s492 + $0x48] sm:$0xff]
        %v655 = vld [vmem:[%s492 + $0x50] sm:$0xff]
        %v656 = vld [vmem:[%s492 + $0x58] sm:$0xff]
        %v657 = vld [vmem:[%s492 + $0x60] sm:$0xff]
        %v658 = vld [vmem:[%s492 + $0x68] sm:$0xff]
        %v659 = vld [vmem:[%s492 + $0x70] sm:$0xff]
        %v660 = vld [vmem:[%s492 + $0x78] sm:$0xff]
        %v661 = vld [vmem:[%s492 + $0x80] sm:$0xff]
        %v662 = vld [vmem:[%s492 + $0x88] sm:$0xff]
        %v663 = vld [vmem:[%s492 + $0x90] sm:$0xff]
        %v664 = vld [vmem:[%s492 + $0x98] sm:$0xff]
        %v665 = vld [vmem:[%s492 + $0xa0] sm:$0xff]
        %v666 = vld [vmem:[%s492 + $0xa8] sm:$0xff]
        %v667 = vld [vmem:[%s492 + $0xb0] sm:$0xff]
        %v668 = vld [vmem:[%s492 + $0xb8] sm:$0xff]
        %v669 = vld [vmem:[%s492 + $0xc0] sm:$0xff]
        %v670 = vld [vmem:[%s492 + $0xc8] sm:$0xff]
        %v671 = vld [vmem:[%s492 + $0xd0] sm:$0xff]
        %v672 = vld [vmem:[%s492 + $0xd8] sm:$0xff]
        %v673 = vld [vmem:[%s492 + $0xe0] sm:$0xff]
        %v674 = vld [vmem:[%s492 + $0xe8] sm:$0xff]
        %v675 = vld [vmem:[%s492 + $0xf0] sm:$0xff]
        %v676 = vld [vmem:[%s492 + $0xf8] sm:$0xff]
        %v677 = vld [vmem:[%s492 + $0x100] sm:$0xff]
        %v678 = vld [vmem:[%s492 + $0x108] sm:$0xff]
        %v679 = vld [vmem:[%s492 + $0x110] sm:$0xff]
        %v680 = vld [vmem:[%s492 + $0x118] sm:$0xff]
        %v681 = vld [vmem:[%s492 + $0x120] sm:$0xff]
        %v682 = vld [vmem:[%s492 + $0x128] sm:$0xff]
        %v683 = vld [vmem:[%s492 + $0x130] sm:$0xff]
        %v684 = vld [vmem:[%s492 + $0x138] sm:$0xff]
        %v685 = vld [vmem:[%s492 + $0x140] sm:$0xff]
        %v686 = vld [vmem:[%s492 + $0x148] sm:$0xff]
        %v687 = vld [vmem:[%s492 + $0x150] sm:$0xff]
        %v688 = vld [vmem:[%s492 + $0x158] sm:$0xff]
        %v689 = vld [vmem:[%s492 + $0x160] sm:$0xff]
        %v690 = vld [vmem:[%s492 + $0x168] sm:$0xff]
        %v691 = vld [vmem:[%s492 + $0x170] sm:$0xff]
        %v692 = vld [vmem:[%s492 + $0x178] sm:$0xff]
        %v693 = vld [vmem:[%s492 + $0x180] sm:$0xff]
        %v694 = vld [vmem:[%s492 + $0x188] sm:$0xff]
        %v695 = vld [vmem:[%s492 + $0x190] sm:$0xff]
        %v696 = vld [vmem:[%s492 + $0x198] sm:$0xff]
        %v697 = vld [vmem:[%s492 + $0x1a0] sm:$0xff]
        %v698 = vld [vmem:[%s492 + $0x1a8] sm:$0xff]
        %v699 = vld [vmem:[%s492 + $0x1b0] sm:$0xff]
        %v700 = vld [vmem:[%s492 + $0x1b8] sm:$0xff]
        %v701 = vld [vmem:[%s492 + $0x1c0] sm:$0xff]
        %v702 = vld [vmem:[%s492 + $0x1c8] sm:$0xff]
        %v703 = vld [vmem:[%s492 + $0x1d0] sm:$0xff]
        %v704 = vld [vmem:[%s492 + $0x1d8] sm:$0xff]
        %v705 = vld [vmem:[%s492 + $0x1e0] sm:$0xff]
        %v706 = vld [vmem:[%s492 + $0x1e8] sm:$0xff]
        %v707 = vld [vmem:[%s492 + $0x1f0] sm:$0xff]
        %v708 = vld [vmem:[%s492 + $0x1f8] sm:$0xff]
        %v709 = vld [vmem:[%s492 + $0x200] sm:$0xff]
        %v710 = vld [vmem:[%s492 + $0x208] sm:$0xff]
        %v711 = vld [vmem:[%s492 + $0x210] sm:$0xff]
        %v712 = vld [vmem:[%s492 + $0x218] sm:$0xff]
        %v713 = vld [vmem:[%s492 + $0x220] sm:$0xff]
        %v714 = vld [vmem:[%s492 + $0x228] sm:$0xff]
        %v715 = vld [vmem:[%s492 + $0x230] sm:$0xff]
        %v716 = vld [vmem:[%s492 + $0x238] sm:$0xff]
        %v717 = vld [vmem:[%s492 + $0x240] sm:$0xff]
        %v718 = vld [vmem:[%s492 + $0x248] sm:$0xff]
        %v719 = vld [vmem:[%s492 + $0x250] sm:$0xff]
        %v720 = vld [vmem:[%s492 + $0x258] sm:$0xff]
        %v721 = vld [vmem:[%s492 + $0x260] sm:$0xff]
        %v722 = vld [vmem:[%s492 + $0x268] sm:$0xff]
        %v723 = vld [vmem:[%s492 + $0x270] sm:$0xff]
        %v724 = vld [vmem:[%s492 + $0x278] sm:$0xff]
        %v725 = vld [vmem:[%s492 + $0x280] sm:$0xff]
        %v726 = vld [vmem:[%s492 + $0x288] sm:$0xff]
        %v727 = vld [vmem:[%s492 + $0x290] sm:$0xff]
        %v728 = vld [vmem:[%s492 + $0x298] sm:$0xff]
        %v729 = vld [vmem:[%s492 + $0x2a0] sm:$0xff]
        %v730 = vld [vmem:[%s492 + $0x2a8] sm:$0xff]
        %v731 = vld [vmem:[%s492 + $0x2b0] sm:$0xff]
        %v732 = vld [vmem:[%s492 + $0x2b8] sm:$0xff]
        %v733 = vld [vmem:[%s492 + $0x2c0] sm:$0xff]
        %v734 = vld [vmem:[%s492 + $0x2c8] sm:$0xff]
        %v735 = vld [vmem:[%s492 + $0x2d0] sm:$0xff]
        %v736 = vld [vmem:[%s492 + $0x2d8] sm:$0xff]
        %v737 = vld [vmem:[%s492 + $0x2e0] sm:$0xff]
        %v738 = vld [vmem:[%s492 + $0x2e8] sm:$0xff]
        %v739 = vld [vmem:[%s492 + $0x2f0] sm:$0xff]
        %v740 = vld [vmem:[%s492 + $0x2f8] sm:$0xff]
        %v741 = vld [vmem:[%s492 + $0x300] sm:$0xff]
        %v742 = vld [vmem:[%s492 + $0x308] sm:$0xff]
        %v743 = vld [vmem:[%s492 + $0x310] sm:$0xff]
        %v744 = vld [vmem:[%s492 + $0x318] sm:$0xff]
        %v745 = vld [vmem:[%s492 + $0x320] sm:$0xff]
        %v746 = vld [vmem:[%s492 + $0x328] sm:$0xff]
        %v747 = vld [vmem:[%s492 + $0x330] sm:$0xff]
        %v748 = vld [vmem:[%s492 + $0x338] sm:$0xff]
        %v749 = vld [vmem:[%s492 + $0x340] sm:$0xff]
        %v750 = vld [vmem:[%s492 + $0x348] sm:$0xff]
        %v751 = vld [vmem:[%s492 + $0x350] sm:$0xff]
        %v752 = vld [vmem:[%s492 + $0x358] sm:$0xff]
        %v753 = vld [vmem:[%s492 + $0x360] sm:$0xff]
        %v754 = vld [vmem:[%s492 + $0x368] sm:$0xff]
        %v755 = vld [vmem:[%s492 + $0x370] sm:$0xff]
        %v756 = vld [vmem:[%s492 + $0x378] sm:$0xff]
        %v757 = vld [vmem:[%s492 + $0x380] sm:$0xff]
        %v758 = vld [vmem:[%s492 + $0x388] sm:$0xff]
        %v759 = vld [vmem:[%s492 + $0x390] sm:$0xff]
        %v760 = vld [vmem:[%s492 + $0x398] sm:$0xff]
        %v761 = vld [vmem:[%s492 + $0x3a0] sm:$0xff]
        %v762 = vld [vmem:[%s492 + $0x3a8] sm:$0xff]
        %v763 = vld [vmem:[%s492 + $0x3b0] sm:$0xff]
        %v764 = vld [vmem:[%s492 + $0x3b8] sm:$0xff]
        %v765 = vld [vmem:[%s492 + $0x3c0] sm:$0xff]
        %v766 = vld [vmem:[%s492 + $0x3c8] sm:$0xff]
        %v767 = vld [vmem:[%s492 + $0x3d0] sm:$0xff]
        %v768 = vld [vmem:[%s492 + $0x3d8] sm:$0xff]
        %v769 = vld [vmem:[%s492 + $0x3e0] sm:$0xff]
        %v770 = vld [vmem:[%s492 + $0x3e8] sm:$0xff]
        %v771 = vld [vmem:[%s492 + $0x3f0] sm:$0xff]
        %v772 = vld [vmem:[%s492 + $0x3f8] sm:$0xff]
        %v773 = vld [vmem:[%s492 + $0x400] sm:$0xff]
        %v774 = vld [vmem:[%s492 + $0x408] sm:$0xff]
        %v775 = vld [vmem:[%s492 + $0x410] sm:$0xff]
        %v776 = vld [vmem:[%s492 + $0x418] sm:$0xff]
        %v777 = vld [vmem:[%s492 + $0x420] sm:$0xff]
        %v778 = vld [vmem:[%s492 + $0x428] sm:$0xff]
        %v779 = vld [vmem:[%s492 + $0x430] sm:$0xff]
        %v780 = vld [vmem:[%s492 + $0x438] sm:$0xff]
        %v781 = vld [vmem:[%s492 + $0x440] sm:$0xff]
        %v782 = vld [vmem:[%s492 + $0x448] sm:$0xff]
        %v783 = vld [vmem:[%s492 + $0x450] sm:$0xff]
        %v784 = vld [vmem:[%s492 + $0x458] sm:$0xff]
        %v785 = vld [vmem:[%s492 + $0x460] sm:$0xff]
        %v786 = vld [vmem:[%s492 + $0x468] sm:$0xff]
        %v787 = vld [vmem:[%s492 + $0x470] sm:$0xff]
        %v788 = vld [vmem:[%s492 + $0x478] sm:$0xff]
        %v789 = vld [vmem:[%s465] sm:$0xff]
        %v790 = vld [vmem:[%s465 + $0x8] sm:$0xf]
        %v791 = vld [vmem:[%s465 + $0xc] sm:$0xff]
        %v792 = vld [vmem:[%s465 + $0x14] sm:$0xf]
        %v793 = vld [vmem:[%s465 + $0x18] sm:$0xff]
        %v794 = vld [vmem:[%s465 + $0x20] sm:$0xf]
        %v795 = vld [vmem:[%s465 + $0x24] sm:$0xff]
        %v796 = vld [vmem:[%s465 + $0x2c] sm:$0xf]
        %v797 = vld [vmem:[%s465 + $0x30] sm:$0xff]
        %v798 = vld [vmem:[%s465 + $0x38] sm:$0xf]
        %v799 = vld [vmem:[%s465 + $0x3c] sm:$0xff]
        %v800 = vld [vmem:[%s465 + $0x44] sm:$0xf]
        %v801 = vld [vmem:[%s465 + $0x48] sm:$0xff]
        %v802 = vld [vmem:[%s465 + $0x50] sm:$0xf]
        %v803 = vld [vmem:[%s465 + $0x54] sm:$0xff]
        %v804 = vld [vmem:[%s465 + $0x5c] sm:$0xf]
        %v805 = vld [vmem:[%s465 + $0x60] sm:$0xff]
        %v806 = vld [vmem:[%s465 + $0x68] sm:$0xf]
        %v807 = vld [vmem:[%s465 + $0x6c] sm:$0xff]
        %v808 = vld [vmem:[%s465 + $0x74] sm:$0xf]
        %v809 = vld [vmem:[%s465 + $0x78] sm:$0xff]
        %v810 = vld [vmem:[%s465 + $0x80] sm:$0xf]
        %v811 = vld [vmem:[%s465 + $0x84] sm:$0xff]
        %v812 = vld [vmem:[%s465 + $0x8c] sm:$0xf]
        %v813 = vld [vmem:[%s465 + $0x90] sm:$0xff]
        %v814 = vld [vmem:[%s465 + $0x98] sm:$0xf]
        %v815 = vld [vmem:[%s465 + $0x9c] sm:$0xff]
        %v816 = vld [vmem:[%s465 + $0xa4] sm:$0xf]
        %v817 = vld [vmem:[%s465 + $0xa8] sm:$0xff]
        %v818 = vld [vmem:[%s465 + $0xb0] sm:$0xf]
        %v819 = vld [vmem:[%s465 + $0xb4] sm:$0xff]
        %v820 = vld [vmem:[%s465 + $0xbc] sm:$0xf]
        %v821 = vld [vmem:[%s465 + $0xc0] sm:$0xff]
        %v822 = vld [vmem:[%s465 + $0xc8] sm:$0xf]
        %v823 = vld [vmem:[%s465 + $0xcc] sm:$0xff]
        %v824 = vld [vmem:[%s465 + $0xd4] sm:$0xf]
        %v825 = vld [vmem:[%s465 + $0xd8] sm:$0xff]
        %v826 = vld [vmem:[%s465 + $0xe0] sm:$0xf]
        %v827 = vld [vmem:[%s465 + $0xe4] sm:$0xff]
        %v828 = vld [vmem:[%s465 + $0xec] sm:$0xf]
        %v829 = vld [vmem:[%s465 + $0xf0] sm:$0xff]
        %v830 = vld [vmem:[%s465 + $0xf8] sm:$0xf]
        %v831 = vld [vmem:[%s465 + $0xfc] sm:$0xff]
        %v832 = vld [vmem:[%s465 + $0x104] sm:$0xf]
        %v833 = vld [vmem:[%s465 + $0x108] sm:$0xff]
        %v834 = vld [vmem:[%s465 + $0x110] sm:$0xf]
        %v835 = vld [vmem:[%s465 + $0x114] sm:$0xff]
        %v836 = vld [vmem:[%s465 + $0x11c] sm:$0xf]
        %v837 = vld [vmem:[%s465 + $0x120] sm:$0xff]
        %v838 = vld [vmem:[%s465 + $0x128] sm:$0xf]
        %v839 = vld [vmem:[%s465 + $0x12c] sm:$0xff]
        %v840 = vld [vmem:[%s465 + $0x134] sm:$0xf]
        %v841 = vld [vmem:[%s465 + $0x138] sm:$0xff]
        %v842 = vld [vmem:[%s465 + $0x140] sm:$0xf]
        %v843 = vld [vmem:[%s465 + $0x144] sm:$0xff]
        %v844 = vld [vmem:[%s465 + $0x14c] sm:$0xf]
        %v845 = vld [vmem:[%s465 + $0x150] sm:$0xff]
        %v846 = vld [vmem:[%s465 + $0x158] sm:$0xf]
        %v847 = vld [vmem:[%s465 + $0x15c] sm:$0xff]
        %v848 = vld [vmem:[%s465 + $0x164] sm:$0xf]
        %v849 = vld [vmem:[%s465 + $0x168] sm:$0xff]
        %v850 = vld [vmem:[%s465 + $0x170] sm:$0xf]
        %v851 = vld [vmem:[%s465 + $0x174] sm:$0xff]
        %v852 = vld [vmem:[%s465 + $0x17c] sm:$0xf]
        %v853 = vld [vmem:[%s492 + $0x480] sm:$0xff]
        %v854 = vld [vmem:[%s492 + $0x488] sm:$0xff]
        %v855 = vld [vmem:[%s492 + $0x490] sm:$0xff]
        %v856 = vld [vmem:[%s492 + $0x498] sm:$0xff]
        %v857 = vld [vmem:[%s492 + $0x4a0] sm:$0xff]
        %v858 = vld [vmem:[%s492 + $0x4a8] sm:$0xff]
        %v859 = vld [vmem:[%s492 + $0x4b0] sm:$0xff]
        %v860 = vld [vmem:[%s492 + $0x4b8] sm:$0xff]
        %v861 = vld [vmem:[%s492 + $0x4c0] sm:$0xff]
        %v862 = vld [vmem:[%s492 + $0x4c8] sm:$0xff]
        %v863 = vld [vmem:[%s492 + $0x4d0] sm:$0xff]
        %v864 = vld [vmem:[%s492 + $0x4d8] sm:$0xff]
        %v865 = vld [vmem:[%s492 + $0x4e0] sm:$0xff]
        %v866 = vld [vmem:[%s492 + $0x4e8] sm:$0xff]
        %v867 = vld [vmem:[%s492 + $0x4f0] sm:$0xff]
        %v868 = vld [vmem:[%s492 + $0x4f8] sm:$0xff]
        %v869 = vld [vmem:[%s492 + $0x500] sm:$0xff]
        %v870 = vld [vmem:[%s492 + $0x508] sm:$0xff]
        %v871 = vld [vmem:[%s492 + $0x510] sm:$0xff]
        %v872 = vld [vmem:[%s492 + $0x518] sm:$0xff]
        %v873 = vld [vmem:[%s492 + $0x520] sm:$0xff]
        %v874 = vld [vmem:[%s492 + $0x528] sm:$0xff]
        %v875 = vld [vmem:[%s492 + $0x530] sm:$0xff]
        %v876 = vld [vmem:[%s492 + $0x538] sm:$0xff]
        %v877 = vld [vmem:[%s492 + $0x540] sm:$0xff]
        %v878 = vld [vmem:[%s492 + $0x548] sm:$0xff]
        %v879 = vld [vmem:[%s492 + $0x550] sm:$0xff]
        %v880 = vld [vmem:[%s492 + $0x558] sm:$0xff]
        %v881 = vld [vmem:[%s492 + $0x560] sm:$0xff]
        %v882 = vld [vmem:[%s492 + $0x568] sm:$0xff]
        %v883 = vld [vmem:[%s492 + $0x570] sm:$0xff]
        %v884 = vld [vmem:[%s492 + $0x578] sm:$0xff]
        %v885 = vld [vmem:[%s492 + $0x580] sm:$0xff]
        %v886 = vld [vmem:[%s492 + $0x588] sm:$0xff]
        %v887 = vld [vmem:[%s492 + $0x590] sm:$0xff]
        %v888 = vld [vmem:[%s492 + $0x598] sm:$0xff]
        %v889 = vld [vmem:[%s492 + $0x5a0] sm:$0xff]
        %v890 = vld [vmem:[%s492 + $0x5a8] sm:$0xff]
        %v891 = vld [vmem:[%s492 + $0x5b0] sm:$0xff]
        %v892 = vld [vmem:[%s492 + $0x5b8] sm:$0xff]
        %v893 = vld [vmem:[%s492 + $0x5c0] sm:$0xff]
        %v894 = vld [vmem:[%s492 + $0x5c8] sm:$0xff]
        %v895 = vld [vmem:[%s492 + $0x5d0] sm:$0xff]
        %v896 = vld [vmem:[%s492 + $0x5d8] sm:$0xff]
        %v897 = vld [vmem:[%s492 + $0x5e0] sm:$0xff]
        %v898 = vld [vmem:[%s492 + $0x5e8] sm:$0xff]
        %v899 = vld [vmem:[%s492 + $0x5f0] sm:$0xff]
        %v900 = vld [vmem:[%s492 + $0x5f8] sm:$0xff]
        %v901 = vld [vmem:[%s492 + $0x600] sm:$0xff]
        %v902 = vld [vmem:[%s492 + $0x608] sm:$0xff]
        %v903 = vld [vmem:[%s492 + $0x610] sm:$0xff]
        %v904 = vld [vmem:[%s492 + $0x618] sm:$0xff]
        %v905 = vld [vmem:[%s492 + $0x620] sm:$0xff]
        %v906 = vld [vmem:[%s492 + $0x628] sm:$0xff]
        %v907 = vld [vmem:[%s492 + $0x630] sm:$0xff]
        %v908 = vld [vmem:[%s492 + $0x638] sm:$0xff]
        %v909 = vld [vmem:[%s492 + $0x640] sm:$0xff]
        %v910 = vld [vmem:[%s492 + $0x648] sm:$0xff]
        %v911 = vld [vmem:[%s492 + $0x650] sm:$0xff]
        %v912 = vld [vmem:[%s492 + $0x658] sm:$0xff]
        %v913 = vld [vmem:[%s492 + $0x660] sm:$0xff]
        %v914 = vld [vmem:[%s492 + $0x668] sm:$0xff]
        %v915 = vld [vmem:[%s492 + $0x670] sm:$0xff]
        %v916 = vld [vmem:[%s492 + $0x678] sm:$0xff]
        %v917 = vld [vmem:[%s492 + $0x680] sm:$0xff]
        %v918 = vld [vmem:[%s492 + $0x688] sm:$0xff]
        %v919 = vld [vmem:[%s492 + $0x690] sm:$0xff]
        %v920 = vld [vmem:[%s492 + $0x698] sm:$0xff]
        %v921 = vld [vmem:[%s492 + $0x6a0] sm:$0xff]
        %v922 = vld [vmem:[%s492 + $0x6a8] sm:$0xff]
        %v923 = vld [vmem:[%s492 + $0x6b0] sm:$0xff]
        %v924 = vld [vmem:[%s492 + $0x6b8] sm:$0xff]
        %v925 = vld [vmem:[%s492 + $0x6c0] sm:$0xff]
        %v926 = vld [vmem:[%s492 + $0x6c8] sm:$0xff]
        %v927 = vld [vmem:[%s492 + $0x6d0] sm:$0xff]
        %v928 = vld [vmem:[%s492 + $0x6d8] sm:$0xff]
        %v929 = vld [vmem:[%s492 + $0x6e0] sm:$0xff]
        %v930 = vld [vmem:[%s492 + $0x6e8] sm:$0xff]
        %v931 = vld [vmem:[%s492 + $0x6f0] sm:$0xff]
        %v932 = vld [vmem:[%s492 + $0x6f8] sm:$0xff]
        %v933 = vld [vmem:[%s492 + $0x700] sm:$0xff]
        %v934 = vld [vmem:[%s492 + $0x708] sm:$0xff]
        %v935 = vld [vmem:[%s492 + $0x710] sm:$0xff]
        %v936 = vld [vmem:[%s492 + $0x718] sm:$0xff]
        %v937 = vld [vmem:[%s492 + $0x720] sm:$0xff]
        %v938 = vld [vmem:[%s492 + $0x728] sm:$0xff]
        %v939 = vld [vmem:[%s492 + $0x730] sm:$0xff]
        %v940 = vld [vmem:[%s492 + $0x738] sm:$0xff]
        %v941 = vld [vmem:[%s492 + $0x740] sm:$0xff]
        %v942 = vld [vmem:[%s492 + $0x748] sm:$0xff]
        %v943 = vld [vmem:[%s492 + $0x750] sm:$0xff]
        %v944 = vld [vmem:[%s492 + $0x758] sm:$0xff]
        %v945 = vld [vmem:[%s492 + $0x760] sm:$0xff]
        %v946 = vld [vmem:[%s492 + $0x768] sm:$0xff]
        %v947 = vld [vmem:[%s492 + $0x770] sm:$0xff]
        %v948 = vld [vmem:[%s492 + $0x778] sm:$0xff]
        %v949 = vld [vmem:[%s492 + $0x780] sm:$0xff]
        %v950 = vld [vmem:[%s492 + $0x788] sm:$0xff]
        %v951 = vld [vmem:[%s492 + $0x790] sm:$0xff]
        %v952 = vld [vmem:[%s492 + $0x798] sm:$0xff]
        %v953 = vld [vmem:[%s492 + $0x7a0] sm:$0xff]
        %v954 = vld [vmem:[%s492 + $0x7a8] sm:$0xff]
        %v955 = vld [vmem:[%s492 + $0x7b0] sm:$0xff]
        %v956 = vld [vmem:[%s492 + $0x7b8] sm:$0xff]
        %v957 = vld [vmem:[%s492 + $0x7c0] sm:$0xff]
        %v958 = vld [vmem:[%s492 + $0x7c8] sm:$0xff]
        %v959 = vld [vmem:[%s492 + $0x7d0] sm:$0xff]
        %v960 = vld [vmem:[%s492 + $0x7d8] sm:$0xff]
        %v961 = vld [vmem:[%s492 + $0x7e0] sm:$0xff]
        %v962 = vld [vmem:[%s492 + $0x7e8] sm:$0xff]
        %v963 = vld [vmem:[%s492 + $0x7f0] sm:$0xff]
        %v964 = vld [vmem:[%s492 + $0x7f8] sm:$0xff]
        %v965 = vld [vmem:[%s492 + $0x800] sm:$0xff]
        %v966 = vld [vmem:[%s492 + $0x808] sm:$0xff]
        %v967 = vld [vmem:[%s492 + $0x810] sm:$0xff]
        %v968 = vld [vmem:[%s492 + $0x818] sm:$0xff]
        %v969 = vld [vmem:[%s492 + $0x820] sm:$0xff]
        %v970 = vld [vmem:[%s492 + $0x828] sm:$0xff]
        %v971 = vld [vmem:[%s492 + $0x830] sm:$0xff]
        %v972 = vld [vmem:[%s492 + $0x838] sm:$0xff]
        %v973 = vld [vmem:[%s492 + $0x840] sm:$0xff]
        %v974 = vld [vmem:[%s492 + $0x848] sm:$0xff]
        %v975 = vld [vmem:[%s492 + $0x850] sm:$0xff]
        %v976 = vld [vmem:[%s492 + $0x858] sm:$0xff]
        %v977 = vld [vmem:[%s492 + $0x860] sm:$0xff]
        %v978 = vld [vmem:[%s492 + $0x868] sm:$0xff]
        %v979 = vld [vmem:[%s492 + $0x870] sm:$0xff]
        %v980 = vld [vmem:[%s492 + $0x878] sm:$0xff]
        %v981 = vld [vmem:[%s492 + $0x880] sm:$0xff]
        %v982 = vld [vmem:[%s492 + $0x888] sm:$0xff]
        %v983 = vld [vmem:[%s492 + $0x890] sm:$0xff]
        %v984 = vld [vmem:[%s492 + $0x898] sm:$0xff]
        %v985 = vld [vmem:[%s492 + $0x8a0] sm:$0xff]
        %v986 = vld [vmem:[%s492 + $0x8a8] sm:$0xff]
        %v987 = vld [vmem:[%s492 + $0x8b0] sm:$0xff]
        %v988 = vld [vmem:[%s492 + $0x8b8] sm:$0xff]
        %v989 = vld [vmem:[%s492 + $0x8c0] sm:$0xff]
        %v990 = vld [vmem:[%s492 + $0x8c8] sm:$0xff]
        %v991 = vld [vmem:[%s492 + $0x8d0] sm:$0xff]
        %v992 = vld [vmem:[%s492 + $0x8d8] sm:$0xff]
        %v993 = vld [vmem:[%s492 + $0x8e0] sm:$0xff]
        %v994 = vld [vmem:[%s492 + $0x8e8] sm:$0xff]
        %v995 = vld [vmem:[%s492 + $0x8f0] sm:$0xff]
        %v996 = vld [vmem:[%s492 + $0x8f8] sm:$0xff]
        %v1061 = vunpack.c.l.b16 %v789
        %v1062 = vunpack.c.h.b16 %v789
        %v1063 = vunpack.c.l.b16 %v790
        %v1064 = vunpack.c.l.b16 %v791
        %v1065 = vunpack.c.h.b16 %v791
        %v1066 = vunpack.c.l.b16 %v792
        %v1067 = vunpack.c.l.b16 %v793
        %v1068 = vunpack.c.h.b16 %v793
        %v1069 = vunpack.c.l.b16 %v794
        %v1070 = vunpack.c.l.b16 %v795
        %v1071 = vunpack.c.h.b16 %v795
        %v1072 = vunpack.c.l.b16 %v796
        %v1073 = vunpack.c.l.b16 %v797
        %v1074 = vunpack.c.h.b16 %v797
        %v1075 = vunpack.c.l.b16 %v798
        %v1076 = vunpack.c.l.b16 %v799
        %v1077 = vunpack.c.h.b16 %v799
        %v1078 = vunpack.c.l.b16 %v800
        %v1079 = vunpack.c.l.b16 %v801
        %v1080 = vunpack.c.h.b16 %v801
        %v1081 = vunpack.c.l.b16 %v802
        %v1082 = vunpack.c.l.b16 %v803
        %v1083 = vunpack.c.h.b16 %v803
        %v1084 = vunpack.c.l.b16 %v804
        %v1085 = vunpack.c.l.b16 %v805
        %v1086 = vunpack.c.h.b16 %v805
        %v1087 = vunpack.c.l.b16 %v806
        %v1088 = vunpack.c.l.b16 %v807
        %v1089 = vunpack.c.h.b16 %v807
        %v1090 = vunpack.c.l.b16 %v808
        %v1091 = vunpack.c.l.b16 %v809
        %v1092 = vunpack.c.h.b16 %v809
        %v1093 = vunpack.c.l.b16 %v810
        %v1094 = vunpack.c.l.b16 %v811
        %v1095 = vunpack.c.h.b16 %v811
        %v1096 = vunpack.c.l.b16 %v812
        %v1097 = vunpack.c.l.b16 %v813
        %v1098 = vunpack.c.h.b16 %v813
        %v1099 = vunpack.c.l.b16 %v814
        %v1100 = vunpack.c.l.b16 %v815
        %v1101 = vunpack.c.h.b16 %v815
        %v1102 = vunpack.c.l.b16 %v816
        %v1103 = vunpack.c.l.b16 %v817
        %v1104 = vunpack.c.h.b16 %v817
        %v1105 = vunpack.c.l.b16 %v818
        %v1106 = vunpack.c.l.b16 %v819
        %v1107 = vunpack.c.h.b16 %v819
        %v1108 = vunpack.c.l.b16 %v820
        %v1109 = vunpack.c.l.b16 %v821
        %v1110 = vunpack.c.h.b16 %v821
        %v1111 = vunpack.c.l.b16 %v822
        %v1112 = vunpack.c.l.b16 %v823
        %v1113 = vunpack.c.h.b16 %v823
        %v1114 = vunpack.c.l.b16 %v824
        %v1115 = vunpack.c.l.b16 %v825
        %v1116 = vunpack.c.h.b16 %v825
        %v1117 = vunpack.c.l.b16 %v826
        %v1118 = vunpack.c.l.b16 %v827
        %v1119 = vunpack.c.h.b16 %v827
        %v1120 = vunpack.c.l.b16 %v828
        %v1121 = vunpack.c.l.b16 %v829
        %v1122 = vunpack.c.h.b16 %v829
        %v1123 = vunpack.c.l.b16 %v830
        %v1124 = vunpack.c.l.b16 %v831
        %v1125 = vunpack.c.h.b16 %v831
        %v1126 = vunpack.c.l.b16 %v832
        %v1127 = vunpack.c.l.b16 %v833
        %v1128 = vunpack.c.h.b16 %v833
        %v1129 = vunpack.c.l.b16 %v834
        %v1130 = vunpack.c.l.b16 %v835
        %v1131 = vunpack.c.h.b16 %v835
        %v1132 = vunpack.c.l.b16 %v836
        %v1133 = vunpack.c.l.b16 %v837
        %v1134 = vunpack.c.h.b16 %v837
        %v1135 = vunpack.c.l.b16 %v838
        %v1136 = vunpack.c.l.b16 %v839
        %v1137 = vunpack.c.h.b16 %v839
        %v1138 = vunpack.c.l.b16 %v840
        %v1139 = vunpack.c.l.b16 %v841
        %v1140 = vunpack.c.h.b16 %v841
        %v1141 = vunpack.c.l.b16 %v842
        %v1142 = vunpack.c.l.b16 %v843
        %v1143 = vunpack.c.h.b16 %v843
        %v1144 = vunpack.c.l.b16 %v844
        %v1145 = vunpack.c.l.b16 %v845
        %v1146 = vunpack.c.h.b16 %v845
        %v1147 = vunpack.c.l.b16 %v846
        %v1148 = vunpack.c.l.b16 %v847
        %v1149 = vunpack.c.h.b16 %v847
        %v1150 = vunpack.c.l.b16 %v848
        %v1151 = vunpack.c.l.b16 %v849
        %v1152 = vunpack.c.h.b16 %v849
        %v1153 = vunpack.c.l.b16 %v850
        %v1154 = vunpack.c.l.b16 %v851
        %v1155 = vunpack.c.h.b16 %v851
        %v1156 = vunpack.c.l.b16 %v852
        %v1157 = vpack.c.b16 %v1064, %v1061
        %v1158 = vpack.c.b16 %v1065, %v1062
        %v1159 = vpack.c.b16 %v1066, %v1063
        %v1160 = vpack.c.b16 %v1070, %v1067
        %v1161 = vpack.c.b16 %v1071, %v1068
        %v1162 = vpack.c.b16 %v1072, %v1069
        %v1163 = vpack.c.b16 %v1076, %v1073
        %v1164 = vpack.c.b16 %v1077, %v1074
        %v1165 = vpack.c.b16 %v1078, %v1075
        %v1166 = vpack.c.b16 %v1082, %v1079
        %v1167 = vpack.c.b16 %v1083, %v1080
        %v1168 = vpack.c.b16 %v1084, %v1081
        %v1169 = vpack.c.b16 %v1088, %v1085
        %v1170 = vpack.c.b16 %v1089, %v1086
        %v1171 = vpack.c.b16 %v1090, %v1087
        %v1172 = vpack.c.b16 %v1094, %v1091
        %v1173 = vpack.c.b16 %v1095, %v1092
        %v1174 = vpack.c.b16 %v1096, %v1093
        %v1175 = vpack.c.b16 %v1100, %v1097
        %v1176 = vpack.c.b16 %v1101, %v1098
        %v1177 = vpack.c.b16 %v1102, %v1099
        %v1178 = vpack.c.b16 %v1106, %v1103
        %v1179 = vpack.c.b16 %v1107, %v1104
        %v1180 = vpack.c.b16 %v1108, %v1105
        %v1181 = vpack.c.b16 %v1112, %v1109
        %v1182 = vpack.c.b16 %v1113, %v1110
        %v1183 = vpack.c.b16 %v1114, %v1111
        %v1184 = vpack.c.b16 %v1118, %v1115
        %v1185 = vpack.c.b16 %v1119, %v1116
        %v1186 = vpack.c.b16 %v1120, %v1117
        %v1187 = vpack.c.b16 %v1124, %v1121
        %v1188 = vpack.c.b16 %v1125, %v1122
        %v1189 = vpack.c.b16 %v1126, %v1123
        %v1190 = vpack.c.b16 %v1130, %v1127
        %v1191 = vpack.c.b16 %v1131, %v1128
        %v1192 = vpack.c.b16 %v1132, %v1129
        %v1193 = vpack.c.b16 %v1136, %v1133
        %v1194 = vpack.c.b16 %v1137, %v1134
        %v1195 = vpack.c.b16 %v1138, %v1135
        %v1196 = vpack.c.b16 %v1142, %v1139
        %v1197 = vpack.c.b16 %v1143, %v1140
        %v1198 = vpack.c.b16 %v1144, %v1141
        %v1199 = vpack.c.b16 %v1148, %v1145
        %v1200 = vpack.c.b16 %v1149, %v1146
        %v1201 = vpack.c.b16 %v1150, %v1147
        %v1202 = vpack.c.b16 %v1154, %v1151
        %v1203 = vpack.c.b16 %v1155, %v1152
        %v1204 = vpack.c.b16 %v1156, %v1153
        %v1397 = vunpack.c.l.b16 %v853
        %v1398 = vunpack.c.h.b16 %v853
        %v1399 = vunpack.c.l.b16 %v854
        %v1400 = vunpack.c.h.b16 %v854
        %v1401 = vunpack.c.l.b16 %v855
        %v1402 = vunpack.c.h.b16 %v855
        %v1403 = vunpack.c.l.b16 %v856
        %v1404 = vunpack.c.h.b16 %v856
        %v1405 = vunpack.c.l.b16 %v857
        %v1406 = vunpack.c.h.b16 %v857
        %v1407 = vunpack.c.l.b16 %v858
        %v1408 = vunpack.c.h.b16 %v858
        %v1409 = vunpack.c.l.b16 %v859
        %v1410 = vunpack.c.h.b16 %v859
        %v1411 = vunpack.c.l.b16 %v860
        %v1412 = vunpack.c.h.b16 %v860
        %v1413 = vunpack.c.l.b16 %v861
        %v1414 = vunpack.c.h.b16 %v861
        %v1415 = vunpack.c.l.b16 %v862
        %v1416 = vunpack.c.h.b16 %v862
        %v1417 = vunpack.c.l.b16 %v863
        %v1418 = vunpack.c.h.b16 %v863
        %v1419 = vunpack.c.l.b16 %v864
        %v1420 = vunpack.c.h.b16 %v864
        %v1421 = vunpack.c.l.b16 %v865
        %v1422 = vunpack.c.h.b16 %v865
        %v1423 = vunpack.c.l.b16 %v866
        %v1424 = vunpack.c.h.b16 %v866
        %v1425 = vunpack.c.l.b16 %v867
        %v1426 = vunpack.c.h.b16 %v867
        %v1427 = vunpack.c.l.b16 %v868
        %v1428 = vunpack.c.h.b16 %v868
        %v1429 = vunpack.c.l.b16 %v869
        %v1430 = vunpack.c.h.b16 %v869
        %v1431 = vunpack.c.l.b16 %v870
        %v1432 = vunpack.c.h.b16 %v870
        %v1433 = vunpack.c.l.b16 %v871
        %v1434 = vunpack.c.h.b16 %v871
        %v1435 = vunpack.c.l.b16 %v872
        %v1436 = vunpack.c.h.b16 %v872
        %v1437 = vunpack.c.l.b16 %v873
        %v1438 = vunpack.c.h.b16 %v873
        %v1439 = vunpack.c.l.b16 %v874
        %v1440 = vunpack.c.h.b16 %v874
        %v1441 = vunpack.c.l.b16 %v875
        %v1442 = vunpack.c.h.b16 %v875
        %v1443 = vunpack.c.l.b16 %v876
        %v1444 = vunpack.c.h.b16 %v876
        %v1445 = vunpack.c.l.b16 %v877
        %v1446 = vunpack.c.h.b16 %v877
        %v1447 = vunpack.c.l.b16 %v878
        %v1448 = vunpack.c.h.b16 %v878
        %v1449 = vunpack.c.l.b16 %v879
        %v1450 = vunpack.c.h.b16 %v879
        %v1451 = vunpack.c.l.b16 %v880
        %v1452 = vunpack.c.h.b16 %v880
        %v1453 = vunpack.c.l.b16 %v881
        %v1454 = vunpack.c.h.b16 %v881
        %v1455 = vunpack.c.l.b16 %v882
        %v1456 = vunpack.c.h.b16 %v882
        %v1457 = vunpack.c.l.b16 %v883
        %v1458 = vunpack.c.h.b16 %v883
        %v1459 = vunpack.c.l.b16 %v884
        %v1460 = vunpack.c.h.b16 %v884
        %v1461 = vunpack.c.l.b16 %v885
        %v1462 = vunpack.c.h.b16 %v885
        %v1463 = vunpack.c.l.b16 %v886
        %v1464 = vunpack.c.h.b16 %v886
        %v1465 = vunpack.c.l.b16 %v887
        %v1466 = vunpack.c.h.b16 %v887
        %v1467 = vunpack.c.l.b16 %v888
        %v1468 = vunpack.c.h.b16 %v888
        %v1469 = vunpack.c.l.b16 %v889
        %v1470 = vunpack.c.h.b16 %v889
        %v1471 = vunpack.c.l.b16 %v890
        %v1472 = vunpack.c.h.b16 %v890
        %v1473 = vunpack.c.l.b16 %v891
        %v1474 = vunpack.c.h.b16 %v891
        %v1475 = vunpack.c.l.b16 %v892
        %v1476 = vunpack.c.h.b16 %v892
        %v1477 = vunpack.c.l.b16 %v893
        %v1478 = vunpack.c.h.b16 %v893
        %v1479 = vunpack.c.l.b16 %v894
        %v1480 = vunpack.c.h.b16 %v894
        %v1481 = vunpack.c.l.b16 %v895
        %v1482 = vunpack.c.h.b16 %v895
        %v1483 = vunpack.c.l.b16 %v896
        %v1484 = vunpack.c.h.b16 %v896
        %v1485 = vunpack.c.l.b16 %v897
        %v1486 = vunpack.c.h.b16 %v897
        %v1487 = vunpack.c.l.b16 %v898
        %v1488 = vunpack.c.h.b16 %v898
        %v1489 = vunpack.c.l.b16 %v899
        %v1490 = vunpack.c.h.b16 %v899
        %v1491 = vunpack.c.l.b16 %v900
        %v1492 = vunpack.c.h.b16 %v900
        %v1493 = vunpack.c.l.b16 %v901
        %v1494 = vunpack.c.h.b16 %v901
        %v1495 = vunpack.c.l.b16 %v902
        %v1496 = vunpack.c.h.b16 %v902
        %v1497 = vunpack.c.l.b16 %v903
        %v1498 = vunpack.c.h.b16 %v903
        %v1499 = vunpack.c.l.b16 %v904
        %v1500 = vunpack.c.h.b16 %v904
        %v1501 = vunpack.c.l.b16 %v905
        %v1502 = vunpack.c.h.b16 %v905
        %v1503 = vunpack.c.l.b16 %v906
        %v1504 = vunpack.c.h.b16 %v906
        %v1505 = vunpack.c.l.b16 %v907
        %v1506 = vunpack.c.h.b16 %v907
        %v1507 = vunpack.c.l.b16 %v908
        %v1508 = vunpack.c.h.b16 %v908
        %v1509 = vunpack.c.l.b16 %v909
        %v1510 = vunpack.c.h.b16 %v909
        %v1511 = vunpack.c.l.b16 %v910
        %v1512 = vunpack.c.h.b16 %v910
        %v1513 = vunpack.c.l.b16 %v911
        %v1514 = vunpack.c.h.b16 %v911
        %v1515 = vunpack.c.l.b16 %v912
        %v1516 = vunpack.c.h.b16 %v912
        %v1517 = vunpack.c.l.b16 %v913
        %v1518 = vunpack.c.h.b16 %v913
        %v1519 = vunpack.c.l.b16 %v914
        %v1520 = vunpack.c.h.b16 %v914
        %v1521 = vunpack.c.l.b16 %v915
        %v1522 = vunpack.c.h.b16 %v915
        %v1523 = vunpack.c.l.b16 %v916
        %v1524 = vunpack.c.h.b16 %v916
        %v1525 = vunpack.c.l.b16 %v917
        %v1526 = vunpack.c.h.b16 %v917
        %v1527 = vunpack.c.l.b16 %v918
        %v1528 = vunpack.c.h.b16 %v918
        %v1529 = vunpack.c.l.b16 %v919
        %v1530 = vunpack.c.h.b16 %v919
        %v1531 = vunpack.c.l.b16 %v920
        %v1532 = vunpack.c.h.b16 %v920
        %v1533 = vunpack.c.l.b16 %v921
        %v1534 = vunpack.c.h.b16 %v921
        %v1535 = vunpack.c.l.b16 %v922
        %v1536 = vunpack.c.h.b16 %v922
        %v1537 = vunpack.c.l.b16 %v923
        %v1538 = vunpack.c.h.b16 %v923
        %v1539 = vunpack.c.l.b16 %v924
        %v1540 = vunpack.c.h.b16 %v924
        %v1541 = vunpack.c.l.b16 %v925
        %v1542 = vunpack.c.h.b16 %v925
        %v1543 = vunpack.c.l.b16 %v926
        %v1544 = vunpack.c.h.b16 %v926
        %v1545 = vunpack.c.l.b16 %v927
        %v1546 = vunpack.c.h.b16 %v927
        %v1547 = vunpack.c.l.b16 %v928
        %v1548 = vunpack.c.h.b16 %v928
        %v1549 = vunpack.c.l.b16 %v929
        %v1550 = vunpack.c.h.b16 %v929
        %v1551 = vunpack.c.l.b16 %v930
        %v1552 = vunpack.c.h.b16 %v930
        %v1553 = vunpack.c.l.b16 %v931
        %v1554 = vunpack.c.h.b16 %v931
        %v1555 = vunpack.c.l.b16 %v932
        %v1556 = vunpack.c.h.b16 %v932
        %v1557 = vunpack.c.l.b16 %v933
        %v1558 = vunpack.c.h.b16 %v933
        %v1559 = vunpack.c.l.b16 %v934
        %v1560 = vunpack.c.h.b16 %v934
        %v1561 = vunpack.c.l.b16 %v935
        %v1562 = vunpack.c.h.b16 %v935
        %v1563 = vunpack.c.l.b16 %v936
        %v1564 = vunpack.c.h.b16 %v936
        %v1565 = vunpack.c.l.b16 %v937
        %v1566 = vunpack.c.h.b16 %v937
        %v1567 = vunpack.c.l.b16 %v938
        %v1568 = vunpack.c.h.b16 %v938
        %v1569 = vunpack.c.l.b16 %v939
        %v1570 = vunpack.c.h.b16 %v939
        %v1571 = vunpack.c.l.b16 %v940
        %v1572 = vunpack.c.h.b16 %v940
        %v1573 = vunpack.c.l.b16 %v941
        %v1574 = vunpack.c.h.b16 %v941
        %v1575 = vunpack.c.l.b16 %v942
        %v1576 = vunpack.c.h.b16 %v942
        %v1577 = vunpack.c.l.b16 %v943
        %v1578 = vunpack.c.h.b16 %v943
        %v1579 = vunpack.c.l.b16 %v944
        %v1580 = vunpack.c.h.b16 %v944
        %v1581 = vunpack.c.l.b16 %v945
        %v1582 = vunpack.c.h.b16 %v945
        %v1583 = vunpack.c.l.b16 %v946
        %v1584 = vunpack.c.h.b16 %v946
        %v1585 = vunpack.c.l.b16 %v947
        %v1586 = vunpack.c.h.b16 %v947
        %v1587 = vunpack.c.l.b16 %v948
        %v1588 = vunpack.c.h.b16 %v948
        %v1589 = vunpack.c.l.b16 %v949
        %v1590 = vunpack.c.h.b16 %v949
        %v1591 = vunpack.c.l.b16 %v950
        %v1592 = vunpack.c.h.b16 %v950
        %v1593 = vunpack.c.l.b16 %v951
        %v1594 = vunpack.c.h.b16 %v951
        %v1595 = vunpack.c.l.b16 %v952
        %v1596 = vunpack.c.h.b16 %v952
        %v1597 = vunpack.c.l.b16 %v953
        %v1598 = vunpack.c.h.b16 %v953
        %v1599 = vunpack.c.l.b16 %v954
        %v1600 = vunpack.c.h.b16 %v954
        %v1601 = vunpack.c.l.b16 %v955
        %v1602 = vunpack.c.h.b16 %v955
        %v1603 = vunpack.c.l.b16 %v956
        %v1604 = vunpack.c.h.b16 %v956
        %v1605 = vunpack.c.l.b16 %v957
        %v1606 = vunpack.c.h.b16 %v957
        %v1607 = vunpack.c.l.b16 %v958
        %v1608 = vunpack.c.h.b16 %v958
        %v1609 = vunpack.c.l.b16 %v959
        %v1610 = vunpack.c.h.b16 %v959
        %v1611 = vunpack.c.l.b16 %v960
        %v1612 = vunpack.c.h.b16 %v960
        %v1613 = vunpack.c.l.b16 %v961
        %v1614 = vunpack.c.h.b16 %v961
        %v1615 = vunpack.c.l.b16 %v962
        %v1616 = vunpack.c.h.b16 %v962
        %v1617 = vunpack.c.l.b16 %v963
        %v1618 = vunpack.c.h.b16 %v963
        %v1619 = vunpack.c.l.b16 %v964
        %v1620 = vunpack.c.h.b16 %v964
        %v1621 = vunpack.c.l.b16 %v965
        %v1622 = vunpack.c.h.b16 %v965
        %v1623 = vunpack.c.l.b16 %v966
        %v1624 = vunpack.c.h.b16 %v966
        %v1625 = vunpack.c.l.b16 %v967
        %v1626 = vunpack.c.h.b16 %v967
        %v1627 = vunpack.c.l.b16 %v968
        %v1628 = vunpack.c.h.b16 %v968
        %v1629 = vunpack.c.l.b16 %v969
        %v1630 = vunpack.c.h.b16 %v969
        %v1631 = vunpack.c.l.b16 %v970
        %v1632 = vunpack.c.h.b16 %v970
        %v1633 = vunpack.c.l.b16 %v971
        %v1634 = vunpack.c.h.b16 %v971
        %v1635 = vunpack.c.l.b16 %v972
        %v1636 = vunpack.c.h.b16 %v972
        %v1637 = vunpack.c.l.b16 %v973
        %v1638 = vunpack.c.h.b16 %v973
        %v1639 = vunpack.c.l.b16 %v974
        %v1640 = vunpack.c.h.b16 %v974
        %v1641 = vunpack.c.l.b16 %v975
        %v1642 = vunpack.c.h.b16 %v975
        %v1643 = vunpack.c.l.b16 %v976
        %v1644 = vunpack.c.h.b16 %v976
        %v1645 = vunpack.c.l.b16 %v977
        %v1646 = vunpack.c.h.b16 %v977
        %v1647 = vunpack.c.l.b16 %v978
        %v1648 = vunpack.c.h.b16 %v978
        %v1649 = vunpack.c.l.b16 %v979
        %v1650 = vunpack.c.h.b16 %v979
        %v1651 = vunpack.c.l.b16 %v980
        %v1652 = vunpack.c.h.b16 %v980
        %v1653 = vunpack.c.l.b16 %v981
        %v1654 = vunpack.c.h.b16 %v981
        %v1655 = vunpack.c.l.b16 %v982
        %v1656 = vunpack.c.h.b16 %v982
        %v1657 = vunpack.c.l.b16 %v983
        %v1658 = vunpack.c.h.b16 %v983
        %v1659 = vunpack.c.l.b16 %v984
        %v1660 = vunpack.c.h.b16 %v984
        %v1661 = vunpack.c.l.b16 %v985
        %v1662 = vunpack.c.h.b16 %v985
        %v1663 = vunpack.c.l.b16 %v986
        %v1664 = vunpack.c.h.b16 %v986
        %v1665 = vunpack.c.l.b16 %v987
        %v1666 = vunpack.c.h.b16 %v987
        %v1667 = vunpack.c.l.b16 %v988
        %v1668 = vunpack.c.h.b16 %v988
        %v1669 = vunpack.c.l.b16 %v989
        %v1670 = vunpack.c.h.b16 %v989
        %v1671 = vunpack.c.l.b16 %v990
        %v1672 = vunpack.c.h.b16 %v990
        %v1673 = vunpack.c.l.b16 %v991
        %v1674 = vunpack.c.h.b16 %v991
        %v1675 = vunpack.c.l.b16 %v992
        %v1676 = vunpack.c.h.b16 %v992
        %v1677 = vunpack.c.l.b16 %v993
        %v1678 = vunpack.c.h.b16 %v993
        %v1679 = vunpack.c.l.b16 %v994
        %v1680 = vunpack.c.h.b16 %v994
        %v1681 = vunpack.c.l.b16 %v995
        %v1682 = vunpack.c.h.b16 %v995
        %v1683 = vunpack.c.l.b16 %v996
        %v1684 = vunpack.c.h.b16 %v996
        %v1685 = vpack.c.b16 %v1403, %v1397
        %v1686 = vpack.c.b16 %v1404, %v1398
        %v1687 = vpack.c.b16 %v1405, %v1399
        %v1688 = vpack.c.b16 %v1406, %v1400
        %v1689 = vpack.c.b16 %v1407, %v1401
        %v1690 = vpack.c.b16 %v1408, %v1402
        %v1691 = vpack.c.b16 %v1415, %v1409
        %v1692 = vpack.c.b16 %v1416, %v1410
        %v1693 = vpack.c.b16 %v1417, %v1411
        %v1694 = vpack.c.b16 %v1418, %v1412
        %v1695 = vpack.c.b16 %v1419, %v1413
        %v1696 = vpack.c.b16 %v1420, %v1414
        %v1697 = vpack.c.b16 %v1427, %v1421
        %v1698 = vpack.c.b16 %v1428, %v1422
        %v1699 = vpack.c.b16 %v1429, %v1423
        %v1700 = vpack.c.b16 %v1430, %v1424
        %v1701 = vpack.c.b16 %v1431, %v1425
        %v1702 = vpack.c.b16 %v1432, %v1426
        %v1703 = vpack.c.b16 %v1439, %v1433
        %v1704 = vpack.c.b16 %v1440, %v1434
        %v1705 = vpack.c.b16 %v1441, %v1435
        %v1706 = vpack.c.b16 %v1442, %v1436
        %v1707 = vpack.c.b16 %v1443, %v1437
        %v1708 = vpack.c.b16 %v1444, %v1438
        %v1709 = vpack.c.b16 %v1451, %v1445
        %v1710 = vpack.c.b16 %v1452, %v1446
        %v1711 = vpack.c.b16 %v1453, %v1447
        %v1712 = vpack.c.b16 %v1454, %v1448
        %v1713 = vpack.c.b16 %v1455, %v1449
        %v1714 = vpack.c.b16 %v1456, %v1450
        %v1715 = vpack.c.b16 %v1463, %v1457
        %v1716 = vpack.c.b16 %v1464, %v1458
        %v1717 = vpack.c.b16 %v1465, %v1459
        %v1718 = vpack.c.b16 %v1466, %v1460
        %v1719 = vpack.c.b16 %v1467, %v1461
        %v1720 = vpack.c.b16 %v1468, %v1462
        %v1721 = vpack.c.b16 %v1475, %v1469
        %v1722 = vpack.c.b16 %v1476, %v1470
        %v1723 = vpack.c.b16 %v1477, %v1471
        %v1724 = vpack.c.b16 %v1478, %v1472
        %v1725 = vpack.c.b16 %v1479, %v1473
        %v1726 = vpack.c.b16 %v1480, %v1474
        %v1727 = vpack.c.b16 %v1487, %v1481
        %v1728 = vpack.c.b16 %v1488, %v1482
        %v1729 = vpack.c.b16 %v1489, %v1483
        %v1730 = vpack.c.b16 %v1490, %v1484
        %v1731 = vpack.c.b16 %v1491, %v1485
        %v1732 = vpack.c.b16 %v1492, %v1486
        %v1733 = vpack.c.b16 %v1499, %v1493
        %v1734 = vpack.c.b16 %v1500, %v1494
        %v1735 = vpack.c.b16 %v1501, %v1495
        %v1736 = vpack.c.b16 %v1502, %v1496
        %v1737 = vpack.c.b16 %v1503, %v1497
        %v1738 = vpack.c.b16 %v1504, %v1498
        %v1739 = vpack.c.b16 %v1511, %v1505
        %v1740 = vpack.c.b16 %v1512, %v1506
        %v1741 = vpack.c.b16 %v1513, %v1507
        %v1742 = vpack.c.b16 %v1514, %v1508
        %v1743 = vpack.c.b16 %v1515, %v1509
        %v1744 = vpack.c.b16 %v1516, %v1510
        %v1745 = vpack.c.b16 %v1523, %v1517
        %v1746 = vpack.c.b16 %v1524, %v1518
        %v1747 = vpack.c.b16 %v1525, %v1519
        %v1748 = vpack.c.b16 %v1526, %v1520
        %v1749 = vpack.c.b16 %v1527, %v1521
        %v1750 = vpack.c.b16 %v1528, %v1522
        %v1751 = vpack.c.b16 %v1535, %v1529
        %v1752 = vpack.c.b16 %v1536, %v1530
        %v1753 = vpack.c.b16 %v1537, %v1531
        %v1754 = vpack.c.b16 %v1538, %v1532
        %v1755 = vpack.c.b16 %v1539, %v1533
        %v1756 = vpack.c.b16 %v1540, %v1534
        %v1757 = vpack.c.b16 %v1547, %v1541
        %v1758 = vpack.c.b16 %v1548, %v1542
        %v1759 = vpack.c.b16 %v1549, %v1543
        %v1760 = vpack.c.b16 %v1550, %v1544
        %v1761 = vpack.c.b16 %v1551, %v1545
        %v1762 = vpack.c.b16 %v1552, %v1546
        %v1763 = vpack.c.b16 %v1559, %v1553
        %v1764 = vpack.c.b16 %v1560, %v1554
        %v1765 = vpack.c.b16 %v1561, %v1555
        %v1766 = vpack.c.b16 %v1562, %v1556
        %v1767 = vpack.c.b16 %v1563, %v1557
        %v1768 = vpack.c.b16 %v1564, %v1558
        %v1769 = vpack.c.b16 %v1571, %v1565
        %v1770 = vpack.c.b16 %v1572, %v1566
        %v1771 = vpack.c.b16 %v1573, %v1567
        %v1772 = vpack.c.b16 %v1574, %v1568
        %v1773 = vpack.c.b16 %v1575, %v1569
        %v1774 = vpack.c.b16 %v1576, %v1570
        %v1775 = vpack.c.b16 %v1583, %v1577
        %v1776 = vpack.c.b16 %v1584, %v1578
        %v1777 = vpack.c.b16 %v1585, %v1579
        %v1778 = vpack.c.b16 %v1586, %v1580
        %v1779 = vpack.c.b16 %v1587, %v1581
        %v1780 = vpack.c.b16 %v1588, %v1582
        %v1781 = vpack.c.b16 %v1595, %v1589
        %v1782 = vpack.c.b16 %v1596, %v1590
        %v1783 = vpack.c.b16 %v1597, %v1591
        %v1784 = vpack.c.b16 %v1598, %v1592
        %v1785 = vpack.c.b16 %v1599, %v1593
        %v1786 = vpack.c.b16 %v1600, %v1594
        %v1787 = vpack.c.b16 %v1607, %v1601
        %v1788 = vpack.c.b16 %v1608, %v1602
        %v1789 = vpack.c.b16 %v1609, %v1603
        %v1790 = vpack.c.b16 %v1610, %v1604
        %v1791 = vpack.c.b16 %v1611, %v1605
        %v1792 = vpack.c.b16 %v1612, %v1606
        %v1793 = vpack.c.b16 %v1619, %v1613
        %v1794 = vpack.c.b16 %v1620, %v1614
        %v1795 = vpack.c.b16 %v1621, %v1615
        %v1796 = vpack.c.b16 %v1622, %v1616
        %v1797 = vpack.c.b16 %v1623, %v1617
        %v1798 = vpack.c.b16 %v1624, %v1618
        %v1799 = vpack.c.b16 %v1631, %v1625
        %v1800 = vpack.c.b16 %v1632, %v1626
        %v1801 = vpack.c.b16 %v1633, %v1627
        %v1802 = vpack.c.b16 %v1634, %v1628
        %v1803 = vpack.c.b16 %v1635, %v1629
        %v1804 = vpack.c.b16 %v1636, %v1630
        %v1805 = vpack.c.b16 %v1643, %v1637
        %v1806 = vpack.c.b16 %v1644, %v1638
        %v1807 = vpack.c.b16 %v1645, %v1639
        %v1808 = vpack.c.b16 %v1646, %v1640
        %v1809 = vpack.c.b16 %v1647, %v1641
        %v1810 = vpack.c.b16 %v1648, %v1642
        %v1811 = vpack.c.b16 %v1655, %v1649
        %v1812 = vpack.c.b16 %v1656, %v1650
        %v1813 = vpack.c.b16 %v1657, %v1651
        %v1814 = vpack.c.b16 %v1658, %v1652
        %v1815 = vpack.c.b16 %v1659, %v1653
        %v1816 = vpack.c.b16 %v1660, %v1654
        %v1817 = vpack.c.b16 %v1667, %v1661
        %v1818 = vpack.c.b16 %v1668, %v1662
        %v1819 = vpack.c.b16 %v1669, %v1663
        %v1820 = vpack.c.b16 %v1670, %v1664
        %v1821 = vpack.c.b16 %v1671, %v1665
        %v1822 = vpack.c.b16 %v1672, %v1666
        %v1823 = vpack.c.b16 %v1679, %v1673
        %v1824 = vpack.c.b16 %v1680, %v1674
        %v1825 = vpack.c.b16 %v1681, %v1675
        %v1826 = vpack.c.b16 %v1682, %v1676
        %v1827 = vpack.c.b16 %v1683, %v1677
        %v1828 = vpack.c.b16 %v1684, %v1678
        %1973 = vmatprep.subr.bf16.mxu0 %v1728
        %1974 = vmatpush1.bf16.msra.mxu0 %v1727
        %1975 = vmatprep.subr.bf16.mxu0 %v1722
        %1976 = vmatpush1.bf16.msra.mxu0 %v1721
        %1977 = vmatprep.subr.bf16.mxu0 %v1716
        %1978 = vmatpush1.bf16.msra.mxu0 %v1715
        %1979 = vmatprep.subr.bf16.mxu0 %v1710
        %1980 = vmatpush1.bf16.msra.mxu0 %v1709
        %1981 = vmatprep.subr.bf16.mxu0 %v1704
        %1982 = vmatpush1.bf16.msra.mxu0 %v1703
        %1983 = vmatprep.subr.bf16.mxu0 %v1698
        %1984 = vmatpush1.bf16.msra.mxu0 %v1697
        %1985 = vmatprep.subr.bf16.mxu0 %v1692
        %1986 = vmatpush1.bf16.msra.mxu0 %v1691
        %1987 = vmatprep.subr.bf16.mxu0 %v1686
        %1988 = vmatpush1.bf16.msra.mxu0 %v1685
        %1989 = vmatprep.subr.bf16.mxu0 %v1776
        %1990 = vmatpush2.bf16.msra.mxu0 %v1775
        %1991 = vmatprep.subr.bf16.mxu0 %v1770
        %1992 = vmatpush2.bf16.msra.mxu0 %v1769
        %1993 = vmatprep.subr.bf16.mxu0 %v1764
        %1994 = vmatpush2.bf16.msra.mxu0 %v1763
        %1995 = vmatprep.subr.bf16.mxu0 %v1758
        %1996 = vmatpush2.bf16.msra.mxu0 %v1757
        %1997 = vmatprep.subr.bf16.mxu0 %v1752
        %1998 = vmatpush2.bf16.msra.mxu0 %v1751
        %1999 = vmatprep.subr.bf16.mxu0 %v1746
        %2000 = vmatpush2.bf16.msra.mxu0 %v1745
        %2001 = vmatprep.subr.bf16.mxu0 %v1740
        %2002 = vmatpush2.bf16.msra.mxu0 %v1739
        %2003 = vmatprep.subr.bf16.mxu0 %v1734
        %2004 = vmatpush2.bf16.msra.mxu0 %v1733
        %2005 = vmatprep.mubr.bf16.mxu0 %v1158
        %2006 = vmatmul.mubr.bf16.gmra.mxu0 %v1157
        %v2007 = vpop.f32.mrf.mxu0
        %v2008 = vadd.f32 0.0, %v2007
        %v2009 = vpop.f32.mrf.mxu0
        %v2010 = vadd.f32 0.0, %v2009
        %v2011 = vpop.f32.mrf.mxu0
        %v2012 = vadd.f32 0.0, %v2011
        %v2013 = vpop.f32.mrf.mxu0
        %v2014 = vadd.f32 0.0, %v2013
        %2015 = vmatprep.mubr.bf16.mxu0 %v1161
        %2016 = vmatmul.mubr.bf16.gmra.mxu0 %v1160
        %v2017 = vpop.f32.mrf.mxu0
        %v2018 = vadd.f32 0.0, %v2017
        %v2019 = vpop.f32.mrf.mxu0
        %v2020 = vadd.f32 0.0, %v2019
        %v2021 = vpop.f32.mrf.mxu0
        %v2022 = vadd.f32 0.0, %v2021
        %v2023 = vpop.f32.mrf.mxu0
        %v2024 = vadd.f32 0.0, %v2023
        %2025 = vmatprep.mubr.bf16.mxu0 %v1164
        %2026 = vmatmul.mubr.bf16.gmra.mxu0 %v1163
        %v2027 = vpop.f32.mrf.mxu0
        %v2028 = vadd.f32 0.0, %v2027
        %v2029 = vpop.f32.mrf.mxu0
        %v2030 = vadd.f32 0.0, %v2029
        %v2031 = vpop.f32.mrf.mxu0
        %v2032 = vadd.f32 0.0, %v2031
        %v2033 = vpop.f32.mrf.mxu0
        %v2034 = vadd.f32 0.0, %v2033
        %2035 = vmatprep.mubr.bf16.mxu0 %v1167
        %2036 = vmatmul.mubr.bf16.gmra.mxu0 %v1166
        %v2037 = vpop.f32.mrf.mxu0
        %v2038 = vadd.f32 0.0, %v2037
        %v2039 = vpop.f32.mrf.mxu0
        %v2040 = vadd.f32 0.0, %v2039
        %v2041 = vpop.f32.mrf.mxu0
        %v2042 = vadd.f32 0.0, %v2041
        %v2043 = vpop.f32.mrf.mxu0
        %v2044 = vadd.f32 0.0, %v2043
        %2045 = vmatprep.mubr.bf16.mxu0 %v1170
        %2046 = vmatmul.mubr.bf16.gmra.mxu0 %v1169
        %v2047 = vpop.f32.mrf.mxu0
        %v2048 = vadd.f32 0.0, %v2047
        %v2049 = vpop.f32.mrf.mxu0
        %v2050 = vadd.f32 0.0, %v2049
        %v2051 = vpop.f32.mrf.mxu0
        %v2052 = vadd.f32 0.0, %v2051
        %v2053 = vpop.f32.mrf.mxu0
        %v2054 = vadd.f32 0.0, %v2053
        %2055 = vmatprep.mubr.bf16.mxu0 %v1173
        %2056 = vmatmul.mubr.bf16.gmra.mxu0 %v1172
        %v2057 = vpop.f32.mrf.mxu0
        %v2058 = vadd.f32 0.0, %v2057
        %v2059 = vpop.f32.mrf.mxu0
        %v2060 = vadd.f32 0.0, %v2059
        %v2061 = vpop.f32.mrf.mxu0
        %v2062 = vadd.f32 0.0, %v2061
        %v2063 = vpop.f32.mrf.mxu0
        %v2064 = vadd.f32 0.0, %v2063
        %2065 = vmatprep.mubr.bf16.mxu0 %v1176
        %2066 = vmatmul.mubr.bf16.gmra.mxu0 %v1175
        %v2067 = vpop.f32.mrf.mxu0
        %v2068 = vadd.f32 0.0, %v2067
        %v2069 = vpop.f32.mrf.mxu0
        %v2070 = vadd.f32 0.0, %v2069
        %v2071 = vpop.f32.mrf.mxu0
        %v2072 = vadd.f32 0.0, %v2071
        %v2073 = vpop.f32.mrf.mxu0
        %v2074 = vadd.f32 0.0, %v2073
        %2075 = vmatprep.mubr.bf16.mxu0 %v1179
        %2076 = vmatmul.mubr.bf16.gmra.mxu0 %v1178
        %v2077 = vpop.f32.mrf.mxu0
        %v2078 = vadd.f32 0.0, %v2077
        %v2079 = vpop.f32.mrf.mxu0
        %v2080 = vadd.f32 0.0, %v2079
        %v2081 = vpop.f32.mrf.mxu0
        %v2082 = vadd.f32 0.0, %v2081
        %v2083 = vpop.f32.mrf.mxu0
        %v2084 = vadd.f32 0.0, %v2083
        %2085 = vmatprep.mubr.bf16.mxu0 %v1182
        %2086 = vmatmul.mubr.bf16.gmra.mxu0 %v1181
        %v2087 = vpop.f32.mrf.mxu0
        %v2088 = vadd.f32 0.0, %v2087
        %v2089 = vpop.f32.mrf.mxu0
        %v2090 = vadd.f32 0.0, %v2089
        %v2091 = vpop.f32.mrf.mxu0
        %v2092 = vadd.f32 0.0, %v2091
        %v2093 = vpop.f32.mrf.mxu0
        %v2094 = vadd.f32 0.0, %v2093
        %2095 = vmatprep.mubr.bf16.mxu0 %v1185
        %2096 = vmatmul.mubr.bf16.gmra.mxu0 %v1184
        %v2097 = vpop.f32.mrf.mxu0
        %v2098 = vadd.f32 0.0, %v2097
        %v2099 = vpop.f32.mrf.mxu0
        %v2100 = vadd.f32 0.0, %v2099
        %v2101 = vpop.f32.mrf.mxu0
        %v2102 = vadd.f32 0.0, %v2101
        %v2103 = vpop.f32.mrf.mxu0
        %v2104 = vadd.f32 0.0, %v2103
        %2105 = vmatprep.mubr.bf16.mxu0 %v1188
        %2106 = vmatmul.mubr.bf16.gmra.mxu0 %v1187
        %v2107 = vpop.f32.mrf.mxu0
        %v2108 = vadd.f32 0.0, %v2107
        %v2109 = vpop.f32.mrf.mxu0
        %v2110 = vadd.f32 0.0, %v2109
        %v2111 = vpop.f32.mrf.mxu0
        %v2112 = vadd.f32 0.0, %v2111
        %v2113 = vpop.f32.mrf.mxu0
        %v2114 = vadd.f32 0.0, %v2113
        %2115 = vmatprep.mubr.bf16.mxu0 %v1191
        %2116 = vmatmul.mubr.bf16.gmra.mxu0 %v1190
        %v2117 = vpop.f32.mrf.mxu0
        %v2118 = vadd.f32 0.0, %v2117
        %v2119 = vpop.f32.mrf.mxu0
        %v2120 = vadd.f32 0.0, %v2119
        %v2121 = vpop.f32.mrf.mxu0
        %v2122 = vadd.f32 0.0, %v2121
        %v2123 = vpop.f32.mrf.mxu0
        %v2124 = vadd.f32 0.0, %v2123
        %2125 = vmatprep.mubr.bf16.mxu0 %v1194
        %2126 = vmatmul.mubr.bf16.gmra.mxu0 %v1193
        %v2127 = vpop.f32.mrf.mxu0
        %v2128 = vadd.f32 0.0, %v2127
        %v2129 = vpop.f32.mrf.mxu0
        %v2130 = vadd.f32 0.0, %v2129
        %v2131 = vpop.f32.mrf.mxu0
        %v2132 = vadd.f32 0.0, %v2131
        %v2133 = vpop.f32.mrf.mxu0
        %v2134 = vadd.f32 0.0, %v2133
        %2135 = vmatprep.mubr.bf16.mxu0 %v1197
        %2136 = vmatmul.mubr.bf16.gmra.mxu0 %v1196
        %v2137 = vpop.f32.mrf.mxu0
        %v2138 = vadd.f32 0.0, %v2137
        %v2139 = vpop.f32.mrf.mxu0
        %v2140 = vadd.f32 0.0, %v2139
        %v2141 = vpop.f32.mrf.mxu0
        %v2142 = vadd.f32 0.0, %v2141
        %v2143 = vpop.f32.mrf.mxu0
        %v2144 = vadd.f32 0.0, %v2143
        %2145 = vmatprep.mubr.bf16.mxu0 %v1200
        %2146 = vmatmul.mubr.bf16.gmra.mxu0 %v1199
        %v2147 = vpop.f32.mrf.mxu0
        %v2148 = vadd.f32 0.0, %v2147
        %v2149 = vpop.f32.mrf.mxu0
        %v2150 = vadd.f32 0.0, %v2149
        %v2151 = vpop.f32.mrf.mxu0
        %v2152 = vadd.f32 0.0, %v2151
        %v2153 = vpop.f32.mrf.mxu0
        %v2154 = vadd.f32 0.0, %v2153
        %2155 = vmatprep.mubr.bf16.mxu0 %v1203
        %2156 = vmatmul.mubr.bf16.gmra.mxu0 %v1202
        %v2157 = vpop.f32.mrf.mxu0
        %v2158 = vadd.f32 0.0, %v2157
        %v2159 = vpop.f32.mrf.mxu0
        %v2160 = vadd.f32 0.0, %v2159
        %v2161 = vpop.f32.mrf.mxu0
        %v2162 = vadd.f32 0.0, %v2161
        %v2163 = vpop.f32.mrf.mxu0
        %v2164 = vadd.f32 0.0, %v2163
        %2165 = vdwg.mxu0
        %2166 = vmatprep.subr.bf16.mxu0 %v1824
        %2167 = vmatpush1.bf16.msra.mxu0 %v1823
        %2168 = vmatprep.subr.bf16.mxu0 %v1818
        %2169 = vmatpush1.bf16.msra.mxu0 %v1817
        %2170 = vmatprep.subr.bf16.mxu0 %v1812
        %2171 = vmatpush1.bf16.msra.mxu0 %v1811
        %2172 = vmatprep.subr.bf16.mxu0 %v1806
        %2173 = vmatpush1.bf16.msra.mxu0 %v1805
        %2174 = vmatprep.subr.bf16.mxu0 %v1800
        %2175 = vmatpush1.bf16.msra.mxu0 %v1799
        %2176 = vmatprep.subr.bf16.mxu0 %v1794
        %2177 = vmatpush1.bf16.msra.mxu0 %v1793
        %2178 = vmatprep.subr.bf16.mxu0 %v1788
        %2179 = vmatpush1.bf16.msra.mxu0 %v1787
        %2180 = vmatprep.subr.bf16.mxu0 %v1782
        %2181 = vmatpush1.bf16.msra.mxu0 %v1781
        %2182 = vmatprep.subr.bf16.mxu0 0
        %2183 = vmatpush2.bf16.msra.mxu0 0
        %2184 = vmatprep.subr.bf16.mxu0 0
        %2185 = vmatpush2.bf16.msra.mxu0 0
        %2186 = vmatprep.subr.bf16.mxu0 0
        %2187 = vmatpush2.bf16.msra.mxu0 0
        %2188 = vmatprep.subr.bf16.mxu0 0
        %2189 = vmatpush2.bf16.msra.mxu0 0
        %2190 = vmatprep.subr.bf16.mxu0 0
        %2191 = vmatpush2.bf16.msra.mxu0 0
        %2192 = vmatprep.subr.bf16.mxu0 0
        %2193 = vmatpush2.bf16.msra.mxu0 0
        %2194 = vmatprep.subr.bf16.mxu0 0
        %2195 = vmatpush2.bf16.msra.mxu0 0
        %2196 = vmatprep.subr.bf16.mxu0 0
        %2197 = vmatpush2.bf16.msra.mxu0 0
        %2198 = vmatprep.mubr.bf16.mxu0 0
        %2199 = vmatmul.mubr.bf16.gmra.mxu0 %v1159
        %v2200 = vpop.f32.mrf.mxu0
        %v2201 = vadd.f32 %v2008, %v2200
        %v2202 = vpop.f32.mrf.mxu0
        %v2203 = vadd.f32 %v2010, %v2202
        %v2204 = vpop.f32.mrf.mxu0
        %v2205 = vadd.f32 %v2012, %v2204
        %v2206 = vpop.f32.mrf.mxu0
        %v2207 = vadd.f32 %v2014, %v2206
        %2208 = vmatprep.mubr.bf16.mxu0 0
        %2209 = vmatmul.mubr.bf16.gmra.mxu0 %v1162
        %v2210 = vpop.f32.mrf.mxu0
        %v2211 = vadd.f32 %v2018, %v2210
        %v2212 = vpop.f32.mrf.mxu0
        %v2213 = vadd.f32 %v2020, %v2212
        %v2214 = vpop.f32.mrf.mxu0
        %v2215 = vadd.f32 %v2022, %v2214
        %v2216 = vpop.f32.mrf.mxu0
        %v2217 = vadd.f32 %v2024, %v2216
        %2218 = vmatprep.mubr.bf16.mxu0 0
        %2219 = vmatmul.mubr.bf16.gmra.mxu0 %v1165
        %v2220 = vpop.f32.mrf.mxu0
        %v2221 = vadd.f32 %v2028, %v2220
        %v2222 = vpop.f32.mrf.mxu0
        %v2223 = vadd.f32 %v2030, %v2222
        %v2224 = vpop.f32.mrf.mxu0
        %v2225 = vadd.f32 %v2032, %v2224
        %v2226 = vpop.f32.mrf.mxu0
        %v2227 = vadd.f32 %v2034, %v2226
        %2228 = vmatprep.mubr.bf16.mxu0 0
        %2229 = vmatmul.mubr.bf16.gmra.mxu0 %v1168
        %v2230 = vpop.f32.mrf.mxu0
        %v2231 = vadd.f32 %v2038, %v2230
        %v2232 = vpop.f32.mrf.mxu0
        %v2233 = vadd.f32 %v2040, %v2232
        %v2234 = vpop.f32.mrf.mxu0
        %v2235 = vadd.f32 %v2042, %v2234
        %v2236 = vpop.f32.mrf.mxu0
        %v2237 = vadd.f32 %v2044, %v2236
        %2238 = vmatprep.mubr.bf16.mxu0 0
        %2239 = vmatmul.mubr.bf16.gmra.mxu0 %v1171
        %v2240 = vpop.f32.mrf.mxu0
        %v2241 = vadd.f32 %v2048, %v2240
        %v2242 = vpop.f32.mrf.mxu0
        %v2243 = vadd.f32 %v2050, %v2242
        %v2244 = vpop.f32.mrf.mxu0
        %v2245 = vadd.f32 %v2052, %v2244
        %v2246 = vpop.f32.mrf.mxu0
        %v2247 = vadd.f32 %v2054, %v2246
        %2248 = vmatprep.mubr.bf16.mxu0 0
        %2249 = vmatmul.mubr.bf16.gmra.mxu0 %v1174
        %v2250 = vpop.f32.mrf.mxu0
        %v2251 = vadd.f32 %v2058, %v2250
        %v2252 = vpop.f32.mrf.mxu0
        %v2253 = vadd.f32 %v2060, %v2252
        %v2254 = vpop.f32.mrf.mxu0
        %v2255 = vadd.f32 %v2062, %v2254
        %v2256 = vpop.f32.mrf.mxu0
        %v2257 = vadd.f32 %v2064, %v2256
        %2258 = vmatprep.mubr.bf16.mxu0 0
        %2259 = vmatmul.mubr.bf16.gmra.mxu0 %v1177
        %v2260 = vpop.f32.mrf.mxu0
        %v2261 = vadd.f32 %v2068, %v2260
        %v2262 = vpop.f32.mrf.mxu0
        %v2263 = vadd.f32 %v2070, %v2262
        %v2264 = vpop.f32.mrf.mxu0
        %v2265 = vadd.f32 %v2072, %v2264
        %v2266 = vpop.f32.mrf.mxu0
        %v2267 = vadd.f32 %v2074, %v2266
        %2268 = vmatprep.mubr.bf16.mxu0 0
        %2269 = vmatmul.mubr.bf16.gmra.mxu0 %v1180
        %v2270 = vpop.f32.mrf.mxu0
        %v2271 = vadd.f32 %v2078, %v2270
        %v2272 = vpop.f32.mrf.mxu0
        %v2273 = vadd.f32 %v2080, %v2272
        %v2274 = vpop.f32.mrf.mxu0
        %v2275 = vadd.f32 %v2082, %v2274
        %v2276 = vpop.f32.mrf.mxu0
        %v2277 = vadd.f32 %v2084, %v2276
        %2278 = vmatprep.mubr.bf16.mxu0 0
        %2279 = vmatmul.mubr.bf16.gmra.mxu0 %v1183
        %v2280 = vpop.f32.mrf.mxu0
        %v2281 = vadd.f32 %v2088, %v2280
        %v2282 = vpop.f32.mrf.mxu0
        %v2283 = vadd.f32 %v2090, %v2282
        %v2284 = vpop.f32.mrf.mxu0
        %v2285 = vadd.f32 %v2092, %v2284
        %v2286 = vpop.f32.mrf.mxu0
        %v2287 = vadd.f32 %v2094, %v2286
        %2288 = vmatprep.mubr.bf16.mxu0 0
        %2289 = vmatmul.mubr.bf16.gmra.mxu0 %v1186
        %v2290 = vpop.f32.mrf.mxu0
        %v2291 = vadd.f32 %v2098, %v2290
        %v2292 = vpop.f32.mrf.mxu0
        %v2293 = vadd.f32 %v2100, %v2292
        %v2294 = vpop.f32.mrf.mxu0
        %v2295 = vadd.f32 %v2102, %v2294
        %v2296 = vpop.f32.mrf.mxu0
        %v2297 = vadd.f32 %v2104, %v2296
        %2298 = vmatprep.mubr.bf16.mxu0 0
        %2299 = vmatmul.mubr.bf16.gmra.mxu0 %v1189
        %v2300 = vpop.f32.mrf.mxu0
        %v2301 = vadd.f32 %v2108, %v2300
        %v2302 = vpop.f32.mrf.mxu0
        %v2303 = vadd.f32 %v2110, %v2302
        %v2304 = vpop.f32.mrf.mxu0
        %v2305 = vadd.f32 %v2112, %v2304
        %v2306 = vpop.f32.mrf.mxu0
        %v2307 = vadd.f32 %v2114, %v2306
        %2308 = vmatprep.mubr.bf16.mxu0 0
        %2309 = vmatmul.mubr.bf16.gmra.mxu0 %v1192
        %v2310 = vpop.f32.mrf.mxu0
        %v2311 = vadd.f32 %v2118, %v2310
        %v2312 = vpop.f32.mrf.mxu0
        %v2313 = vadd.f32 %v2120, %v2312
        %v2314 = vpop.f32.mrf.mxu0
        %v2315 = vadd.f32 %v2122, %v2314
        %v2316 = vpop.f32.mrf.mxu0
        %v2317 = vadd.f32 %v2124, %v2316
        %2318 = vmatprep.mubr.bf16.mxu0 0
        %2319 = vmatmul.mubr.bf16.gmra.mxu0 %v1195
        %v2320 = vpop.f32.mrf.mxu0
        %v2321 = vadd.f32 %v2128, %v2320
        %v2322 = vpop.f32.mrf.mxu0
        %v2323 = vadd.f32 %v2130, %v2322
        %v2324 = vpop.f32.mrf.mxu0
        %v2325 = vadd.f32 %v2132, %v2324
        %v2326 = vpop.f32.mrf.mxu0
        %v2327 = vadd.f32 %v2134, %v2326
        %2328 = vmatprep.mubr.bf16.mxu0 0
        %2329 = vmatmul.mubr.bf16.gmra.mxu0 %v1198
        %v2330 = vpop.f32.mrf.mxu0
        %v2331 = vadd.f32 %v2138, %v2330
        %v2332 = vpop.f32.mrf.mxu0
        %v2333 = vadd.f32 %v2140, %v2332
        %v2334 = vpop.f32.mrf.mxu0
        %v2335 = vadd.f32 %v2142, %v2334
        %v2336 = vpop.f32.mrf.mxu0
        %v2337 = vadd.f32 %v2144, %v2336
        %2338 = vmatprep.mubr.bf16.mxu0 0
        %2339 = vmatmul.mubr.bf16.gmra.mxu0 %v1201
        %v2340 = vpop.f32.mrf.mxu0
        %v2341 = vadd.f32 %v2148, %v2340
        %v2342 = vpop.f32.mrf.mxu0
        %v2343 = vadd.f32 %v2150, %v2342
        %v2344 = vpop.f32.mrf.mxu0
        %v2345 = vadd.f32 %v2152, %v2344
        %v2346 = vpop.f32.mrf.mxu0
        %v2347 = vadd.f32 %v2154, %v2346
        %2348 = vmatprep.mubr.bf16.mxu0 0
        %2349 = vmatmul.mubr.bf16.gmra.mxu0 %v1204
        %v2350 = vpop.f32.mrf.mxu0
        %v2351 = vadd.f32 %v2158, %v2350
        %v2352 = vpop.f32.mrf.mxu0
        %v2353 = vadd.f32 %v2160, %v2352
        %v2354 = vpop.f32.mrf.mxu0
        %v2355 = vadd.f32 %v2162, %v2354
        %v2356 = vpop.f32.mrf.mxu0
        %v2357 = vadd.f32 %v2164, %v2356
        %2358 = vdwg.mxu0
        %2359 = vmatprep.subr.bf16.mxu0 %v1730
        %2360 = vmatpush1.bf16.msra.mxu0 %v1729
        %2361 = vmatprep.subr.bf16.mxu0 %v1724
        %2362 = vmatpush1.bf16.msra.mxu0 %v1723
        %2363 = vmatprep.subr.bf16.mxu0 %v1718
        %2364 = vmatpush1.bf16.msra.mxu0 %v1717
        %2365 = vmatprep.subr.bf16.mxu0 %v1712
        %2366 = vmatpush1.bf16.msra.mxu0 %v1711
        %2367 = vmatprep.subr.bf16.mxu0 %v1706
        %2368 = vmatpush1.bf16.msra.mxu0 %v1705
        %2369 = vmatprep.subr.bf16.mxu0 %v1700
        %2370 = vmatpush1.bf16.msra.mxu0 %v1699
        %2371 = vmatprep.subr.bf16.mxu0 %v1694
        %2372 = vmatpush1.bf16.msra.mxu0 %v1693
        %2373 = vmatprep.subr.bf16.mxu0 %v1688
        %2374 = vmatpush1.bf16.msra.mxu0 %v1687
        %2375 = vmatprep.subr.bf16.mxu0 %v1778
        %2376 = vmatpush2.bf16.msra.mxu0 %v1777
        %2377 = vmatprep.subr.bf16.mxu0 %v1772
        %2378 = vmatpush2.bf16.msra.mxu0 %v1771
        %2379 = vmatprep.subr.bf16.mxu0 %v1766
        %2380 = vmatpush2.bf16.msra.mxu0 %v1765
        %2381 = vmatprep.subr.bf16.mxu0 %v1760
        %2382 = vmatpush2.bf16.msra.mxu0 %v1759
        %2383 = vmatprep.subr.bf16.mxu0 %v1754
        %2384 = vmatpush2.bf16.msra.mxu0 %v1753
        %2385 = vmatprep.subr.bf16.mxu0 %v1748
        %2386 = vmatpush2.bf16.msra.mxu0 %v1747
        %2387 = vmatprep.subr.bf16.mxu0 %v1742
        %2388 = vmatpush2.bf16.msra.mxu0 %v1741
        %2389 = vmatprep.subr.bf16.mxu0 %v1736
        %2390 = vmatpush2.bf16.msra.mxu0 %v1735
        %2391 = vmatprep.mubr.bf16.mxu0 %v1158
        %2392 = vmatmul.mubr.bf16.gmra.mxu0 %v1157
        %v2393 = vpop.f32.mrf.mxu0
        %v2394 = vadd.f32 0.0, %v2393
        %v2395 = vpop.f32.mrf.mxu0
        %v2396 = vadd.f32 0.0, %v2395
        %v2397 = vpop.f32.mrf.mxu0
        %v2398 = vadd.f32 0.0, %v2397
        %v2399 = vpop.f32.mrf.mxu0
        %v2400 = vadd.f32 0.0, %v2399
        %2401 = vmatprep.mubr.bf16.mxu0 %v1161
        %2402 = vmatmul.mubr.bf16.gmra.mxu0 %v1160
        %v2403 = vpop.f32.mrf.mxu0
        %v2404 = vadd.f32 0.0, %v2403
        %v2405 = vpop.f32.mrf.mxu0
        %v2406 = vadd.f32 0.0, %v2405
        %v2407 = vpop.f32.mrf.mxu0
        %v2408 = vadd.f32 0.0, %v2407
        %v2409 = vpop.f32.mrf.mxu0
        %v2410 = vadd.f32 0.0, %v2409
        %2411 = vmatprep.mubr.bf16.mxu0 %v1164
        %2412 = vmatmul.mubr.bf16.gmra.mxu0 %v1163
        %v2413 = vpop.f32.mrf.mxu0
        %v2414 = vadd.f32 0.0, %v2413
        %v2415 = vpop.f32.mrf.mxu0
        %v2416 = vadd.f32 0.0, %v2415
        %v2417 = vpop.f32.mrf.mxu0
        %v2418 = vadd.f32 0.0, %v2417
        %v2419 = vpop.f32.mrf.mxu0
        %v2420 = vadd.f32 0.0, %v2419
        %2421 = vmatprep.mubr.bf16.mxu0 %v1167
        %2422 = vmatmul.mubr.bf16.gmra.mxu0 %v1166
        %v2423 = vpop.f32.mrf.mxu0
        %v2424 = vadd.f32 0.0, %v2423
        %v2425 = vpop.f32.mrf.mxu0
        %v2426 = vadd.f32 0.0, %v2425
        %v2427 = vpop.f32.mrf.mxu0
        %v2428 = vadd.f32 0.0, %v2427
        %v2429 = vpop.f32.mrf.mxu0
        %v2430 = vadd.f32 0.0, %v2429
        %2431 = vmatprep.mubr.bf16.mxu0 %v1170
        %2432 = vmatmul.mubr.bf16.gmra.mxu0 %v1169
        %v2433 = vpop.f32.mrf.mxu0
        %v2434 = vadd.f32 0.0, %v2433
        %v2435 = vpop.f32.mrf.mxu0
        %v2436 = vadd.f32 0.0, %v2435
        %v2437 = vpop.f32.mrf.mxu0
        %v2438 = vadd.f32 0.0, %v2437
        %v2439 = vpop.f32.mrf.mxu0
        %v2440 = vadd.f32 0.0, %v2439
        %2441 = vmatprep.mubr.bf16.mxu0 %v1173
        %2442 = vmatmul.mubr.bf16.gmra.mxu0 %v1172
        %v2443 = vpop.f32.mrf.mxu0
        %v2444 = vadd.f32 0.0, %v2443
        %v2445 = vpop.f32.mrf.mxu0
        %v2446 = vadd.f32 0.0, %v2445
        %v2447 = vpop.f32.mrf.mxu0
        %v2448 = vadd.f32 0.0, %v2447
        %v2449 = vpop.f32.mrf.mxu0
        %v2450 = vadd.f32 0.0, %v2449
        %2451 = vmatprep.mubr.bf16.mxu0 %v1176
        %2452 = vmatmul.mubr.bf16.gmra.mxu0 %v1175
        %v2453 = vpop.f32.mrf.mxu0
        %v2454 = vadd.f32 0.0, %v2453
        %v2455 = vpop.f32.mrf.mxu0
        %v2456 = vadd.f32 0.0, %v2455
        %v2457 = vpop.f32.mrf.mxu0
        %v2458 = vadd.f32 0.0, %v2457
        %v2459 = vpop.f32.mrf.mxu0
        %v2460 = vadd.f32 0.0, %v2459
        %2461 = vmatprep.mubr.bf16.mxu0 %v1179
        %2462 = vmatmul.mubr.bf16.gmra.mxu0 %v1178
        %v2463 = vpop.f32.mrf.mxu0
        %v2464 = vadd.f32 0.0, %v2463
        %v2465 = vpop.f32.mrf.mxu0
        %v2466 = vadd.f32 0.0, %v2465
        %v2467 = vpop.f32.mrf.mxu0
        %v2468 = vadd.f32 0.0, %v2467
        %v2469 = vpop.f32.mrf.mxu0
        %v2470 = vadd.f32 0.0, %v2469
        %2471 = vmatprep.mubr.bf16.mxu0 %v1182
        %2472 = vmatmul.mubr.bf16.gmra.mxu0 %v1181
        %v2473 = vpop.f32.mrf.mxu0
        %v2474 = vadd.f32 0.0, %v2473
        %v2475 = vpop.f32.mrf.mxu0
        %v2476 = vadd.f32 0.0, %v2475
        %v2477 = vpop.f32.mrf.mxu0
        %v2478 = vadd.f32 0.0, %v2477
        %v2479 = vpop.f32.mrf.mxu0
        %v2480 = vadd.f32 0.0, %v2479
        %2481 = vmatprep.mubr.bf16.mxu0 %v1185
        %2482 = vmatmul.mubr.bf16.gmra.mxu0 %v1184
        %v2483 = vpop.f32.mrf.mxu0
        %v2484 = vadd.f32 0.0, %v2483
        %v2485 = vpop.f32.mrf.mxu0
        %v2486 = vadd.f32 0.0, %v2485
        %v2487 = vpop.f32.mrf.mxu0
        %v2488 = vadd.f32 0.0, %v2487
        %v2489 = vpop.f32.mrf.mxu0
        %v2490 = vadd.f32 0.0, %v2489
        %2491 = vmatprep.mubr.bf16.mxu0 %v1188
        %2492 = vmatmul.mubr.bf16.gmra.mxu0 %v1187
        %v2493 = vpop.f32.mrf.mxu0
        %v2494 = vadd.f32 0.0, %v2493
        %v2495 = vpop.f32.mrf.mxu0
        %v2496 = vadd.f32 0.0, %v2495
        %v2497 = vpop.f32.mrf.mxu0
        %v2498 = vadd.f32 0.0, %v2497
        %v2499 = vpop.f32.mrf.mxu0
        %v2500 = vadd.f32 0.0, %v2499
        %2501 = vmatprep.mubr.bf16.mxu0 %v1191
        %2502 = vmatmul.mubr.bf16.gmra.mxu0 %v1190
        %v2503 = vpop.f32.mrf.mxu0
        %v2504 = vadd.f32 0.0, %v2503
        %v2505 = vpop.f32.mrf.mxu0
        %v2506 = vadd.f32 0.0, %v2505
        %v2507 = vpop.f32.mrf.mxu0
        %v2508 = vadd.f32 0.0, %v2507
        %v2509 = vpop.f32.mrf.mxu0
        %v2510 = vadd.f32 0.0, %v2509
        %2511 = vmatprep.mubr.bf16.mxu0 %v1194
        %2512 = vmatmul.mubr.bf16.gmra.mxu0 %v1193
        %v2513 = vpop.f32.mrf.mxu0
        %v2514 = vadd.f32 0.0, %v2513
        %v2515 = vpop.f32.mrf.mxu0
        %v2516 = vadd.f32 0.0, %v2515
        %v2517 = vpop.f32.mrf.mxu0
        %v2518 = vadd.f32 0.0, %v2517
        %v2519 = vpop.f32.mrf.mxu0
        %v2520 = vadd.f32 0.0, %v2519
        %2521 = vmatprep.mubr.bf16.mxu0 %v1197
        %2522 = vmatmul.mubr.bf16.gmra.mxu0 %v1196
        %v2523 = vpop.f32.mrf.mxu0
        %v2524 = vadd.f32 0.0, %v2523
        %v2525 = vpop.f32.mrf.mxu0
        %v2526 = vadd.f32 0.0, %v2525
        %v2527 = vpop.f32.mrf.mxu0
        %v2528 = vadd.f32 0.0, %v2527
        %v2529 = vpop.f32.mrf.mxu0
        %v2530 = vadd.f32 0.0, %v2529
        %2531 = vmatprep.mubr.bf16.mxu0 %v1200
        %2532 = vmatmul.mubr.bf16.gmra.mxu0 %v1199
        %v2533 = vpop.f32.mrf.mxu0
        %v2534 = vadd.f32 0.0, %v2533
        %v2535 = vpop.f32.mrf.mxu0
        %v2536 = vadd.f32 0.0, %v2535
        %v2537 = vpop.f32.mrf.mxu0
        %v2538 = vadd.f32 0.0, %v2537
        %v2539 = vpop.f32.mrf.mxu0
        %v2540 = vadd.f32 0.0, %v2539
        %2541 = vmatprep.mubr.bf16.mxu0 %v1203
        %2542 = vmatmul.mubr.bf16.gmra.mxu0 %v1202
        %v2543 = vpop.f32.mrf.mxu0
        %v2544 = vadd.f32 0.0, %v2543
        %v2545 = vpop.f32.mrf.mxu0
        %v2546 = vadd.f32 0.0, %v2545
        %v2547 = vpop.f32.mrf.mxu0
        %v2548 = vadd.f32 0.0, %v2547
        %v2549 = vpop.f32.mrf.mxu0
        %v2550 = vadd.f32 0.0, %v2549
        %2551 = vdwg.mxu0
        %2552 = vmatprep.subr.bf16.mxu0 %v1826
        %2553 = vmatpush1.bf16.msra.mxu0 %v1825
        %2554 = vmatprep.subr.bf16.mxu0 %v1820
        %2555 = vmatpush1.bf16.msra.mxu0 %v1819
        %2556 = vmatprep.subr.bf16.mxu0 %v1814
        %2557 = vmatpush1.bf16.msra.mxu0 %v1813
        %2558 = vmatprep.subr.bf16.mxu0 %v1808
        %2559 = vmatpush1.bf16.msra.mxu0 %v1807
        %2560 = vmatprep.subr.bf16.mxu0 %v1802
        %2561 = vmatpush1.bf16.msra.mxu0 %v1801
        %2562 = vmatprep.subr.bf16.mxu0 %v1796
        %2563 = vmatpush1.bf16.msra.mxu0 %v1795
        %2564 = vmatprep.subr.bf16.mxu0 %v1790
        %2565 = vmatpush1.bf16.msra.mxu0 %v1789
        %2566 = vmatprep.subr.bf16.mxu0 %v1784
        %2567 = vmatpush1.bf16.msra.mxu0 %v1783
        %2568 = vmatprep.subr.bf16.mxu0 0
        %2569 = vmatpush2.bf16.msra.mxu0 0
        %2570 = vmatprep.subr.bf16.mxu0 0
        %2571 = vmatpush2.bf16.msra.mxu0 0
        %2572 = vmatprep.subr.bf16.mxu0 0
        %2573 = vmatpush2.bf16.msra.mxu0 0
        %2574 = vmatprep.subr.bf16.mxu0 0
        %2575 = vmatpush2.bf16.msra.mxu0 0
        %2576 = vmatprep.subr.bf16.mxu0 0
        %2577 = vmatpush2.bf16.msra.mxu0 0
        %2578 = vmatprep.subr.bf16.mxu0 0
        %2579 = vmatpush2.bf16.msra.mxu0 0
        %2580 = vmatprep.subr.bf16.mxu0 0
        %2581 = vmatpush2.bf16.msra.mxu0 0
        %2582 = vmatprep.subr.bf16.mxu0 0
        %2583 = vmatpush2.bf16.msra.mxu0 0
        %2584 = vmatprep.mubr.bf16.mxu0 0
        %2585 = vmatmul.mubr.bf16.gmra.mxu0 %v1159
        %v2586 = vpop.f32.mrf.mxu0
        %v2587 = vadd.f32 %v2394, %v2586
        %v2588 = vpop.f32.mrf.mxu0
        %v2589 = vadd.f32 %v2396, %v2588
        %v2590 = vpop.f32.mrf.mxu0
        %v2591 = vadd.f32 %v2398, %v2590
        %v2592 = vpop.f32.mrf.mxu0
        %v2593 = vadd.f32 %v2400, %v2592
        %2594 = vmatprep.mubr.bf16.mxu0 0
        %2595 = vmatmul.mubr.bf16.gmra.mxu0 %v1162
        %v2596 = vpop.f32.mrf.mxu0
        %v2597 = vadd.f32 %v2404, %v2596
        %v2598 = vpop.f32.mrf.mxu0
        %v2599 = vadd.f32 %v2406, %v2598
        %v2600 = vpop.f32.mrf.mxu0
        %v2601 = vadd.f32 %v2408, %v2600
        %v2602 = vpop.f32.mrf.mxu0
        %v2603 = vadd.f32 %v2410, %v2602
        %2604 = vmatprep.mubr.bf16.mxu0 0
        %2605 = vmatmul.mubr.bf16.gmra.mxu0 %v1165
        %v2606 = vpop.f32.mrf.mxu0
        %v2607 = vadd.f32 %v2414, %v2606
        %v2608 = vpop.f32.mrf.mxu0
        %v2609 = vadd.f32 %v2416, %v2608
        %v2610 = vpop.f32.mrf.mxu0
        %v2611 = vadd.f32 %v2418, %v2610
        %v2612 = vpop.f32.mrf.mxu0
        %v2613 = vadd.f32 %v2420, %v2612
        %2614 = vmatprep.mubr.bf16.mxu0 0
        %2615 = vmatmul.mubr.bf16.gmra.mxu0 %v1168
        %v2616 = vpop.f32.mrf.mxu0
        %v2617 = vadd.f32 %v2424, %v2616
        %v2618 = vpop.f32.mrf.mxu0
        %v2619 = vadd.f32 %v2426, %v2618
        %v2620 = vpop.f32.mrf.mxu0
        %v2621 = vadd.f32 %v2428, %v2620
        %v2622 = vpop.f32.mrf.mxu0
        %v2623 = vadd.f32 %v2430, %v2622
        %2624 = vmatprep.mubr.bf16.mxu0 0
        %2625 = vmatmul.mubr.bf16.gmra.mxu0 %v1171
        %v2626 = vpop.f32.mrf.mxu0
        %v2627 = vadd.f32 %v2434, %v2626
        %v2628 = vpop.f32.mrf.mxu0
        %v2629 = vadd.f32 %v2436, %v2628
        %v2630 = vpop.f32.mrf.mxu0
        %v2631 = vadd.f32 %v2438, %v2630
        %v2632 = vpop.f32.mrf.mxu0
        %v2633 = vadd.f32 %v2440, %v2632
        %2634 = vmatprep.mubr.bf16.mxu0 0
        %2635 = vmatmul.mubr.bf16.gmra.mxu0 %v1174
        %v2636 = vpop.f32.mrf.mxu0
        %v2637 = vadd.f32 %v2444, %v2636
        %v2638 = vpop.f32.mrf.mxu0
        %v2639 = vadd.f32 %v2446, %v2638
        %v2640 = vpop.f32.mrf.mxu0
        %v2641 = vadd.f32 %v2448, %v2640
        %v2642 = vpop.f32.mrf.mxu0
        %v2643 = vadd.f32 %v2450, %v2642
        %2644 = vmatprep.mubr.bf16.mxu0 0
        %2645 = vmatmul.mubr.bf16.gmra.mxu0 %v1177
        %v2646 = vpop.f32.mrf.mxu0
        %v2647 = vadd.f32 %v2454, %v2646
        %v2648 = vpop.f32.mrf.mxu0
        %v2649 = vadd.f32 %v2456, %v2648
        %v2650 = vpop.f32.mrf.mxu0
        %v2651 = vadd.f32 %v2458, %v2650
        %v2652 = vpop.f32.mrf.mxu0
        %v2653 = vadd.f32 %v2460, %v2652
        %2654 = vmatprep.mubr.bf16.mxu0 0
        %2655 = vmatmul.mubr.bf16.gmra.mxu0 %v1180
        %v2656 = vpop.f32.mrf.mxu0
        %v2657 = vadd.f32 %v2464, %v2656
        %v2658 = vpop.f32.mrf.mxu0
        %v2659 = vadd.f32 %v2466, %v2658
        %v2660 = vpop.f32.mrf.mxu0
        %v2661 = vadd.f32 %v2468, %v2660
        %v2662 = vpop.f32.mrf.mxu0
        %v2663 = vadd.f32 %v2470, %v2662
        %2664 = vmatprep.mubr.bf16.mxu0 0
        %2665 = vmatmul.mubr.bf16.gmra.mxu0 %v1183
        %v2666 = vpop.f32.mrf.mxu0
        %v2667 = vadd.f32 %v2474, %v2666
        %v2668 = vpop.f32.mrf.mxu0
        %v2669 = vadd.f32 %v2476, %v2668
        %v2670 = vpop.f32.mrf.mxu0
        %v2671 = vadd.f32 %v2478, %v2670
        %v2672 = vpop.f32.mrf.mxu0
        %v2673 = vadd.f32 %v2480, %v2672
        %2674 = vmatprep.mubr.bf16.mxu0 0
        %2675 = vmatmul.mubr.bf16.gmra.mxu0 %v1186
        %v2676 = vpop.f32.mrf.mxu0
        %v2677 = vadd.f32 %v2484, %v2676
        %v2678 = vpop.f32.mrf.mxu0
        %v2679 = vadd.f32 %v2486, %v2678
        %v2680 = vpop.f32.mrf.mxu0
        %v2681 = vadd.f32 %v2488, %v2680
        %v2682 = vpop.f32.mrf.mxu0
        %v2683 = vadd.f32 %v2490, %v2682
        %2684 = vmatprep.mubr.bf16.mxu0 0
        %2685 = vmatmul.mubr.bf16.gmra.mxu0 %v1189
        %v2686 = vpop.f32.mrf.mxu0
        %v2687 = vadd.f32 %v2494, %v2686
        %v2688 = vpop.f32.mrf.mxu0
        %v2689 = vadd.f32 %v2496, %v2688
        %v2690 = vpop.f32.mrf.mxu0
        %v2691 = vadd.f32 %v2498, %v2690
        %v2692 = vpop.f32.mrf.mxu0
        %v2693 = vadd.f32 %v2500, %v2692
        %2694 = vmatprep.mubr.bf16.mxu0 0
        %2695 = vmatmul.mubr.bf16.gmra.mxu0 %v1192
        %v2696 = vpop.f32.mrf.mxu0
        %v2697 = vadd.f32 %v2504, %v2696
        %v2698 = vpop.f32.mrf.mxu0
        %v2699 = vadd.f32 %v2506, %v2698
        %v2700 = vpop.f32.mrf.mxu0
        %v2701 = vadd.f32 %v2508, %v2700
        %v2702 = vpop.f32.mrf.mxu0
        %v2703 = vadd.f32 %v2510, %v2702
        %2704 = vmatprep.mubr.bf16.mxu0 0
        %2705 = vmatmul.mubr.bf16.gmra.mxu0 %v1195
        %v2706 = vpop.f32.mrf.mxu0
        %v2707 = vadd.f32 %v2514, %v2706
        %v2708 = vpop.f32.mrf.mxu0
        %v2709 = vadd.f32 %v2516, %v2708
        %v2710 = vpop.f32.mrf.mxu0
        %v2711 = vadd.f32 %v2518, %v2710
        %v2712 = vpop.f32.mrf.mxu0
        %v2713 = vadd.f32 %v2520, %v2712
        %2714 = vmatprep.mubr.bf16.mxu0 0
        %2715 = vmatmul.mubr.bf16.gmra.mxu0 %v1198
        %v2716 = vpop.f32.mrf.mxu0
        %v2717 = vadd.f32 %v2524, %v2716
        %v2718 = vpop.f32.mrf.mxu0
        %v2719 = vadd.f32 %v2526, %v2718
        %v2720 = vpop.f32.mrf.mxu0
        %v2721 = vadd.f32 %v2528, %v2720
        %v2722 = vpop.f32.mrf.mxu0
        %v2723 = vadd.f32 %v2530, %v2722
        %2724 = vmatprep.mubr.bf16.mxu0 0
        %2725 = vmatmul.mubr.bf16.gmra.mxu0 %v1201
        %v2726 = vpop.f32.mrf.mxu0
        %v2727 = vadd.f32 %v2534, %v2726
        %v2728 = vpop.f32.mrf.mxu0
        %v2729 = vadd.f32 %v2536, %v2728
        %v2730 = vpop.f32.mrf.mxu0
        %v2731 = vadd.f32 %v2538, %v2730
        %v2732 = vpop.f32.mrf.mxu0
        %v2733 = vadd.f32 %v2540, %v2732
        %2734 = vmatprep.mubr.bf16.mxu0 0
        %2735 = vmatmul.mubr.bf16.gmra.mxu0 %v1204
        %v2736 = vpop.f32.mrf.mxu0
        %v2737 = vadd.f32 %v2544, %v2736
        %v2738 = vpop.f32.mrf.mxu0
        %v2739 = vadd.f32 %v2546, %v2738
        %v2740 = vpop.f32.mrf.mxu0
        %v2741 = vadd.f32 %v2548, %v2740
        %v2742 = vpop.f32.mrf.mxu0
        %v2743 = vadd.f32 %v2550, %v2742
        %2744 = vdwg.mxu0
        %2745 = vmatprep.subr.bf16.mxu0 %v1732
        %2746 = vmatpush1.bf16.msra.mxu0 %v1731
        %2747 = vmatprep.subr.bf16.mxu0 %v1726
        %2748 = vmatpush1.bf16.msra.mxu0 %v1725
        %2749 = vmatprep.subr.bf16.mxu0 %v1720
        %2750 = vmatpush1.bf16.msra.mxu0 %v1719
        %2751 = vmatprep.subr.bf16.mxu0 %v1714
        %2752 = vmatpush1.bf16.msra.mxu0 %v1713
        %2753 = vmatprep.subr.bf16.mxu0 %v1708
        %2754 = vmatpush1.bf16.msra.mxu0 %v1707
        %2755 = vmatprep.subr.bf16.mxu0 %v1702
        %2756 = vmatpush1.bf16.msra.mxu0 %v1701
        %2757 = vmatprep.subr.bf16.mxu0 %v1696
        %2758 = vmatpush1.bf16.msra.mxu0 %v1695
        %2759 = vmatprep.subr.bf16.mxu0 %v1690
        %2760 = vmatpush1.bf16.msra.mxu0 %v1689
        %2761 = vmatprep.subr.bf16.mxu0 %v1780
        %2762 = vmatpush2.bf16.msra.mxu0 %v1779
        %2763 = vmatprep.subr.bf16.mxu0 %v1774
        %2764 = vmatpush2.bf16.msra.mxu0 %v1773
        %2765 = vmatprep.subr.bf16.mxu0 %v1768
        %2766 = vmatpush2.bf16.msra.mxu0 %v1767
        %2767 = vmatprep.subr.bf16.mxu0 %v1762
        %2768 = vmatpush2.bf16.msra.mxu0 %v1761
        %2769 = vmatprep.subr.bf16.mxu0 %v1756
        %2770 = vmatpush2.bf16.msra.mxu0 %v1755
        %2771 = vmatprep.subr.bf16.mxu0 %v1750
        %2772 = vmatpush2.bf16.msra.mxu0 %v1749
        %2773 = vmatprep.subr.bf16.mxu0 %v1744
        %2774 = vmatpush2.bf16.msra.mxu0 %v1743
        %2775 = vmatprep.subr.bf16.mxu0 %v1738
        %2776 = vmatpush2.bf16.msra.mxu0 %v1737
        %2777 = vmatprep.mubr.bf16.mxu0 %v1158
        %2778 = vmatmul.mubr.bf16.gmra.mxu0 %v1157
        %v2779 = vpop.f32.mrf.mxu0
        %v2780 = vadd.f32 0.0, %v2779
        %v2781 = vpop.f32.mrf.mxu0
        %v2782 = vadd.f32 0.0, %v2781
        %v2783 = vpop.f32.mrf.mxu0
        %v2784 = vadd.f32 0.0, %v2783
        %v2785 = vpop.f32.mrf.mxu0
        %v2786 = vadd.f32 0.0, %v2785
        %2787 = vmatprep.mubr.bf16.mxu0 %v1161
        %2788 = vmatmul.mubr.bf16.gmra.mxu0 %v1160
        %v2789 = vpop.f32.mrf.mxu0
        %v2790 = vadd.f32 0.0, %v2789
        %v2791 = vpop.f32.mrf.mxu0
        %v2792 = vadd.f32 0.0, %v2791
        %v2793 = vpop.f32.mrf.mxu0
        %v2794 = vadd.f32 0.0, %v2793
        %v2795 = vpop.f32.mrf.mxu0
        %v2796 = vadd.f32 0.0, %v2795
        %2797 = vmatprep.mubr.bf16.mxu0 %v1164
        %2798 = vmatmul.mubr.bf16.gmra.mxu0 %v1163
        %v2799 = vpop.f32.mrf.mxu0
        %v2800 = vadd.f32 0.0, %v2799
        %v2801 = vpop.f32.mrf.mxu0
        %v2802 = vadd.f32 0.0, %v2801
        %v2803 = vpop.f32.mrf.mxu0
        %v2804 = vadd.f32 0.0, %v2803
        %v2805 = vpop.f32.mrf.mxu0
        %v2806 = vadd.f32 0.0, %v2805
        %2807 = vmatprep.mubr.bf16.mxu0 %v1167
        %2808 = vmatmul.mubr.bf16.gmra.mxu0 %v1166
        %v2809 = vpop.f32.mrf.mxu0
        %v2810 = vadd.f32 0.0, %v2809
        %v2811 = vpop.f32.mrf.mxu0
        %v2812 = vadd.f32 0.0, %v2811
        %v2813 = vpop.f32.mrf.mxu0
        %v2814 = vadd.f32 0.0, %v2813
        %v2815 = vpop.f32.mrf.mxu0
        %v2816 = vadd.f32 0.0, %v2815
        %2817 = vmatprep.mubr.bf16.mxu0 %v1170
        %2818 = vmatmul.mubr.bf16.gmra.mxu0 %v1169
        %v2819 = vpop.f32.mrf.mxu0
        %v2820 = vadd.f32 0.0, %v2819
        %v2821 = vpop.f32.mrf.mxu0
        %v2822 = vadd.f32 0.0, %v2821
        %v2823 = vpop.f32.mrf.mxu0
        %v2824 = vadd.f32 0.0, %v2823
        %v2825 = vpop.f32.mrf.mxu0
        %v2826 = vadd.f32 0.0, %v2825
        %2827 = vmatprep.mubr.bf16.mxu0 %v1173
        %2828 = vmatmul.mubr.bf16.gmra.mxu0 %v1172
        %v2829 = vpop.f32.mrf.mxu0
        %v2830 = vadd.f32 0.0, %v2829
        %v2831 = vpop.f32.mrf.mxu0
        %v2832 = vadd.f32 0.0, %v2831
        %v2833 = vpop.f32.mrf.mxu0
        %v2834 = vadd.f32 0.0, %v2833
        %v2835 = vpop.f32.mrf.mxu0
        %v2836 = vadd.f32 0.0, %v2835
        %2837 = vmatprep.mubr.bf16.mxu0 %v1176
        %2838 = vmatmul.mubr.bf16.gmra.mxu0 %v1175
        %v2839 = vpop.f32.mrf.mxu0
        %v2840 = vadd.f32 0.0, %v2839
        %v2841 = vpop.f32.mrf.mxu0
        %v2842 = vadd.f32 0.0, %v2841
        %v2843 = vpop.f32.mrf.mxu0
        %v2844 = vadd.f32 0.0, %v2843
        %v2845 = vpop.f32.mrf.mxu0
        %v2846 = vadd.f32 0.0, %v2845
        %2847 = vmatprep.mubr.bf16.mxu0 %v1179
        %2848 = vmatmul.mubr.bf16.gmra.mxu0 %v1178
        %v2849 = vpop.f32.mrf.mxu0
        %v2850 = vadd.f32 0.0, %v2849
        %v2851 = vpop.f32.mrf.mxu0
        %v2852 = vadd.f32 0.0, %v2851
        %v2853 = vpop.f32.mrf.mxu0
        %v2854 = vadd.f32 0.0, %v2853
        %v2855 = vpop.f32.mrf.mxu0
        %v2856 = vadd.f32 0.0, %v2855
        %2857 = vmatprep.mubr.bf16.mxu0 %v1182
        %2858 = vmatmul.mubr.bf16.gmra.mxu0 %v1181
        %v2859 = vpop.f32.mrf.mxu0
        %v2860 = vadd.f32 0.0, %v2859
        %v2861 = vpop.f32.mrf.mxu0
        %v2862 = vadd.f32 0.0, %v2861
        %v2863 = vpop.f32.mrf.mxu0
        %v2864 = vadd.f32 0.0, %v2863
        %v2865 = vpop.f32.mrf.mxu0
        %v2866 = vadd.f32 0.0, %v2865
        %2867 = vmatprep.mubr.bf16.mxu0 %v1185
        %2868 = vmatmul.mubr.bf16.gmra.mxu0 %v1184
        %v2869 = vpop.f32.mrf.mxu0
        %v2870 = vadd.f32 0.0, %v2869
        %v2871 = vpop.f32.mrf.mxu0
        %v2872 = vadd.f32 0.0, %v2871
        %v2873 = vpop.f32.mrf.mxu0
        %v2874 = vadd.f32 0.0, %v2873
        %v2875 = vpop.f32.mrf.mxu0
        %v2876 = vadd.f32 0.0, %v2875
        %2877 = vmatprep.mubr.bf16.mxu0 %v1188
        %2878 = vmatmul.mubr.bf16.gmra.mxu0 %v1187
        %v2879 = vpop.f32.mrf.mxu0
        %v2880 = vadd.f32 0.0, %v2879
        %v2881 = vpop.f32.mrf.mxu0
        %v2882 = vadd.f32 0.0, %v2881
        %v2883 = vpop.f32.mrf.mxu0
        %v2884 = vadd.f32 0.0, %v2883
        %v2885 = vpop.f32.mrf.mxu0
        %v2886 = vadd.f32 0.0, %v2885
        %2887 = vmatprep.mubr.bf16.mxu0 %v1191
        %2888 = vmatmul.mubr.bf16.gmra.mxu0 %v1190
        %v2889 = vpop.f32.mrf.mxu0
        %v2890 = vadd.f32 0.0, %v2889
        %v2891 = vpop.f32.mrf.mxu0
        %v2892 = vadd.f32 0.0, %v2891
        %v2893 = vpop.f32.mrf.mxu0
        %v2894 = vadd.f32 0.0, %v2893
        %v2895 = vpop.f32.mrf.mxu0
        %v2896 = vadd.f32 0.0, %v2895
        %2897 = vmatprep.mubr.bf16.mxu0 %v1194
        %2898 = vmatmul.mubr.bf16.gmra.mxu0 %v1193
        %v2899 = vpop.f32.mrf.mxu0
        %v2900 = vadd.f32 0.0, %v2899
        %v2901 = vpop.f32.mrf.mxu0
        %v2902 = vadd.f32 0.0, %v2901
        %v2903 = vpop.f32.mrf.mxu0
        %v2904 = vadd.f32 0.0, %v2903
        %v2905 = vpop.f32.mrf.mxu0
        %v2906 = vadd.f32 0.0, %v2905
        %2907 = vmatprep.mubr.bf16.mxu0 %v1197
        %2908 = vmatmul.mubr.bf16.gmra.mxu0 %v1196
        %v2909 = vpop.f32.mrf.mxu0
        %v2910 = vadd.f32 0.0, %v2909
        %v2911 = vpop.f32.mrf.mxu0
        %v2912 = vadd.f32 0.0, %v2911
        %v2913 = vpop.f32.mrf.mxu0
        %v2914 = vadd.f32 0.0, %v2913
        %v2915 = vpop.f32.mrf.mxu0
        %v2916 = vadd.f32 0.0, %v2915
        %2917 = vmatprep.mubr.bf16.mxu0 %v1200
        %2918 = vmatmul.mubr.bf16.gmra.mxu0 %v1199
        %v2919 = vpop.f32.mrf.mxu0
        %v2920 = vadd.f32 0.0, %v2919
        %v2921 = vpop.f32.mrf.mxu0
        %v2922 = vadd.f32 0.0, %v2921
        %v2923 = vpop.f32.mrf.mxu0
        %v2924 = vadd.f32 0.0, %v2923
        %v2925 = vpop.f32.mrf.mxu0
        %v2926 = vadd.f32 0.0, %v2925
        %2927 = vmatprep.mubr.bf16.mxu0 %v1203
        %2928 = vmatmul.mubr.bf16.gmra.mxu0 %v1202
        %v2929 = vpop.f32.mrf.mxu0
        %v2930 = vadd.f32 0.0, %v2929
        %v2931 = vpop.f32.mrf.mxu0
        %v2932 = vadd.f32 0.0, %v2931
        %v2933 = vpop.f32.mrf.mxu0
        %v2934 = vadd.f32 0.0, %v2933
        %v2935 = vpop.f32.mrf.mxu0
        %v2936 = vadd.f32 0.0, %v2935
        %2937 = vdwg.mxu0
        %2938 = vmatprep.subr.bf16.mxu0 %v1828
        %2939 = vmatpush1.bf16.msra.mxu0 %v1827
        %2940 = vmatprep.subr.bf16.mxu0 %v1822
        %2941 = vmatpush1.bf16.msra.mxu0 %v1821
        %2942 = vmatprep.subr.bf16.mxu0 %v1816
        %2943 = vmatpush1.bf16.msra.mxu0 %v1815
        %2944 = vmatprep.subr.bf16.mxu0 %v1810
        %2945 = vmatpush1.bf16.msra.mxu0 %v1809
        %2946 = vmatprep.subr.bf16.mxu0 %v1804
        %2947 = vmatpush1.bf16.msra.mxu0 %v1803
        %2948 = vmatprep.subr.bf16.mxu0 %v1798
        %2949 = vmatpush1.bf16.msra.mxu0 %v1797
        %2950 = vmatprep.subr.bf16.mxu0 %v1792
        %2951 = vmatpush1.bf16.msra.mxu0 %v1791
        %2952 = vmatprep.subr.bf16.mxu0 %v1786
        %2953 = vmatpush1.bf16.msra.mxu0 %v1785
        %2954 = vmatprep.subr.bf16.mxu0 0
        %2955 = vmatpush2.bf16.msra.mxu0 0
        %2956 = vmatprep.subr.bf16.mxu0 0
        %2957 = vmatpush2.bf16.msra.mxu0 0
        %2958 = vmatprep.subr.bf16.mxu0 0
        %2959 = vmatpush2.bf16.msra.mxu0 0
        %2960 = vmatprep.subr.bf16.mxu0 0
        %2961 = vmatpush2.bf16.msra.mxu0 0
        %2962 = vmatprep.subr.bf16.mxu0 0
        %2963 = vmatpush2.bf16.msra.mxu0 0
        %2964 = vmatprep.subr.bf16.mxu0 0
        %2965 = vmatpush2.bf16.msra.mxu0 0
        %2966 = vmatprep.subr.bf16.mxu0 0
        %2967 = vmatpush2.bf16.msra.mxu0 0
        %2968 = vmatprep.subr.bf16.mxu0 0
        %2969 = vmatpush2.bf16.msra.mxu0 0
        %2970 = vmatprep.mubr.bf16.mxu0 0
        %2971 = vmatmul.mubr.bf16.gmra.mxu0 %v1159
        %v2972 = vpop.f32.mrf.mxu0
        %v2973 = vadd.f32 %v2780, %v2972
        %v2974 = vpop.f32.mrf.mxu0
        %v2975 = vadd.f32 %v2782, %v2974
        %v2976 = vpop.f32.mrf.mxu0
        %v2977 = vadd.f32 %v2784, %v2976
        %v2978 = vpop.f32.mrf.mxu0
        %v2979 = vadd.f32 %v2786, %v2978
        %2980 = vmatprep.mubr.bf16.mxu0 0
        %2981 = vmatmul.mubr.bf16.gmra.mxu0 %v1162
        %v2982 = vpop.f32.mrf.mxu0
        %v2983 = vadd.f32 %v2790, %v2982
        %v2984 = vpop.f32.mrf.mxu0
        %v2985 = vadd.f32 %v2792, %v2984
        %v2986 = vpop.f32.mrf.mxu0
        %v2987 = vadd.f32 %v2794, %v2986
        %v2988 = vpop.f32.mrf.mxu0
        %v2989 = vadd.f32 %v2796, %v2988
        %2990 = vmatprep.mubr.bf16.mxu0 0
        %2991 = vmatmul.mubr.bf16.gmra.mxu0 %v1165
        %v2992 = vpop.f32.mrf.mxu0
        %v2993 = vadd.f32 %v2800, %v2992
        %v2994 = vpop.f32.mrf.mxu0
        %v2995 = vadd.f32 %v2802, %v2994
        %v2996 = vpop.f32.mrf.mxu0
        %v2997 = vadd.f32 %v2804, %v2996
        %v2998 = vpop.f32.mrf.mxu0
        %v2999 = vadd.f32 %v2806, %v2998
        %3000 = vmatprep.mubr.bf16.mxu0 0
        %3001 = vmatmul.mubr.bf16.gmra.mxu0 %v1168
        %v3002 = vpop.f32.mrf.mxu0
        %v3003 = vadd.f32 %v2810, %v3002
        %v3004 = vpop.f32.mrf.mxu0
        %v3005 = vadd.f32 %v2812, %v3004
        %v3006 = vpop.f32.mrf.mxu0
        %v3007 = vadd.f32 %v2814, %v3006
        %v3008 = vpop.f32.mrf.mxu0
        %v3009 = vadd.f32 %v2816, %v3008
        %3010 = vmatprep.mubr.bf16.mxu0 0
        %3011 = vmatmul.mubr.bf16.gmra.mxu0 %v1171
        %v3012 = vpop.f32.mrf.mxu0
        %v3013 = vadd.f32 %v2820, %v3012
        %v3014 = vpop.f32.mrf.mxu0
        %v3015 = vadd.f32 %v2822, %v3014
        %v3016 = vpop.f32.mrf.mxu0
        %v3017 = vadd.f32 %v2824, %v3016
        %v3018 = vpop.f32.mrf.mxu0
        %v3019 = vadd.f32 %v2826, %v3018
        %3020 = vmatprep.mubr.bf16.mxu0 0
        %3021 = vmatmul.mubr.bf16.gmra.mxu0 %v1174
        %v3022 = vpop.f32.mrf.mxu0
        %v3023 = vadd.f32 %v2830, %v3022
        %v3024 = vpop.f32.mrf.mxu0
        %v3025 = vadd.f32 %v2832, %v3024
        %v3026 = vpop.f32.mrf.mxu0
        %v3027 = vadd.f32 %v2834, %v3026
        %v3028 = vpop.f32.mrf.mxu0
        %v3029 = vadd.f32 %v2836, %v3028
        %3030 = vmatprep.mubr.bf16.mxu0 0
        %3031 = vmatmul.mubr.bf16.gmra.mxu0 %v1177
        %v3032 = vpop.f32.mrf.mxu0
        %v3033 = vadd.f32 %v2840, %v3032
        %v3034 = vpop.f32.mrf.mxu0
        %v3035 = vadd.f32 %v2842, %v3034
        %v3036 = vpop.f32.mrf.mxu0
        %v3037 = vadd.f32 %v2844, %v3036
        %v3038 = vpop.f32.mrf.mxu0
        %v3039 = vadd.f32 %v2846, %v3038
        %3040 = vmatprep.mubr.bf16.mxu0 0
        %3041 = vmatmul.mubr.bf16.gmra.mxu0 %v1180
        %v3042 = vpop.f32.mrf.mxu0
        %v3043 = vadd.f32 %v2850, %v3042
        %v3044 = vpop.f32.mrf.mxu0
        %v3045 = vadd.f32 %v2852, %v3044
        %v3046 = vpop.f32.mrf.mxu0
        %v3047 = vadd.f32 %v2854, %v3046
        %v3048 = vpop.f32.mrf.mxu0
        %v3049 = vadd.f32 %v2856, %v3048
        %3050 = vmatprep.mubr.bf16.mxu0 0
        %3051 = vmatmul.mubr.bf16.gmra.mxu0 %v1183
        %v3052 = vpop.f32.mrf.mxu0
        %v3053 = vadd.f32 %v2860, %v3052
        %v3054 = vpop.f32.mrf.mxu0
        %v3055 = vadd.f32 %v2862, %v3054
        %v3056 = vpop.f32.mrf.mxu0
        %v3057 = vadd.f32 %v2864, %v3056
        %v3058 = vpop.f32.mrf.mxu0
        %v3059 = vadd.f32 %v2866, %v3058
        %3060 = vmatprep.mubr.bf16.mxu0 0
        %3061 = vmatmul.mubr.bf16.gmra.mxu0 %v1186
        %v3062 = vpop.f32.mrf.mxu0
        %v3063 = vadd.f32 %v2870, %v3062
        %v3064 = vpop.f32.mrf.mxu0
        %v3065 = vadd.f32 %v2872, %v3064
        %v3066 = vpop.f32.mrf.mxu0
        %v3067 = vadd.f32 %v2874, %v3066
        %v3068 = vpop.f32.mrf.mxu0
        %v3069 = vadd.f32 %v2876, %v3068
        %3070 = vmatprep.mubr.bf16.mxu0 0
        %3071 = vmatmul.mubr.bf16.gmra.mxu0 %v1189
        %v3072 = vpop.f32.mrf.mxu0
        %v3073 = vadd.f32 %v2880, %v3072
        %v3074 = vpop.f32.mrf.mxu0
        %v3075 = vadd.f32 %v2882, %v3074
        %v3076 = vpop.f32.mrf.mxu0
        %v3077 = vadd.f32 %v2884, %v3076
        %v3078 = vpop.f32.mrf.mxu0
        %v3079 = vadd.f32 %v2886, %v3078
        %3080 = vmatprep.mubr.bf16.mxu0 0
        %3081 = vmatmul.mubr.bf16.gmra.mxu0 %v1192
        %v3082 = vpop.f32.mrf.mxu0
        %v3083 = vadd.f32 %v2890, %v3082
        %v3084 = vpop.f32.mrf.mxu0
        %v3085 = vadd.f32 %v2892, %v3084
        %v3086 = vpop.f32.mrf.mxu0
        %v3087 = vadd.f32 %v2894, %v3086
        %v3088 = vpop.f32.mrf.mxu0
        %v3089 = vadd.f32 %v2896, %v3088
        %3090 = vmatprep.mubr.bf16.mxu0 0
        %3091 = vmatmul.mubr.bf16.gmra.mxu0 %v1195
        %v3092 = vpop.f32.mrf.mxu0
        %v3093 = vadd.f32 %v2900, %v3092
        %v3094 = vpop.f32.mrf.mxu0
        %v3095 = vadd.f32 %v2902, %v3094
        %v3096 = vpop.f32.mrf.mxu0
        %v3097 = vadd.f32 %v2904, %v3096
        %v3098 = vpop.f32.mrf.mxu0
        %v3099 = vadd.f32 %v2906, %v3098
        %3100 = vmatprep.mubr.bf16.mxu0 0
        %3101 = vmatmul.mubr.bf16.gmra.mxu0 %v1198
        %v3102 = vpop.f32.mrf.mxu0
        %v3103 = vadd.f32 %v2910, %v3102
        %v3104 = vpop.f32.mrf.mxu0
        %v3105 = vadd.f32 %v2912, %v3104
        %v3106 = vpop.f32.mrf.mxu0
        %v3107 = vadd.f32 %v2914, %v3106
        %v3108 = vpop.f32.mrf.mxu0
        %v3109 = vadd.f32 %v2916, %v3108
        %3110 = vmatprep.mubr.bf16.mxu0 0
        %3111 = vmatmul.mubr.bf16.gmra.mxu0 %v1201
        %v3112 = vpop.f32.mrf.mxu0
        %v3113 = vadd.f32 %v2920, %v3112
        %v3114 = vpop.f32.mrf.mxu0
        %v3115 = vadd.f32 %v2922, %v3114
        %v3116 = vpop.f32.mrf.mxu0
        %v3117 = vadd.f32 %v2924, %v3116
        %v3118 = vpop.f32.mrf.mxu0
        %v3119 = vadd.f32 %v2926, %v3118
        %3120 = vmatprep.mubr.bf16.mxu0 0
        %3121 = vmatmul.mubr.bf16.gmra.mxu0 %v1204
        %v3122 = vpop.f32.mrf.mxu0
        %v3123 = vadd.f32 %v2930, %v3122
        %v3124 = vpop.f32.mrf.mxu0
        %v3125 = vadd.f32 %v2932, %v3124
        %v3126 = vpop.f32.mrf.mxu0
        %v3127 = vadd.f32 %v2934, %v3126
        %v3128 = vpop.f32.mrf.mxu0
        %v3129 = vadd.f32 %v2936, %v3128
        %3130 = vdwg.mxu0
        %v3195 = vunpack.c.l.b16 %v581
        %v3196 = vunpack.c.h.b16 %v581
        %v3197 = vunpack.c.l.b16 %v582
        %v3198 = vunpack.c.l.b16 %v583
        %v3199 = vunpack.c.h.b16 %v583
        %v3200 = vunpack.c.l.b16 %v584
        %v3201 = vunpack.c.l.b16 %v585
        %v3202 = vunpack.c.h.b16 %v585
        %v3203 = vunpack.c.l.b16 %v586
        %v3204 = vunpack.c.l.b16 %v587
        %v3205 = vunpack.c.h.b16 %v587
        %v3206 = vunpack.c.l.b16 %v588
        %v3207 = vunpack.c.l.b16 %v589
        %v3208 = vunpack.c.h.b16 %v589
        %v3209 = vunpack.c.l.b16 %v590
        %v3210 = vunpack.c.l.b16 %v591
        %v3211 = vunpack.c.h.b16 %v591
        %v3212 = vunpack.c.l.b16 %v592
        %v3213 = vunpack.c.l.b16 %v593
        %v3214 = vunpack.c.h.b16 %v593
        %v3215 = vunpack.c.l.b16 %v594
        %v3216 = vunpack.c.l.b16 %v595
        %v3217 = vunpack.c.h.b16 %v595
        %v3218 = vunpack.c.l.b16 %v596
        %v3219 = vunpack.c.l.b16 %v597
        %v3220 = vunpack.c.h.b16 %v597
        %v3221 = vunpack.c.l.b16 %v598
        %v3222 = vunpack.c.l.b16 %v599
        %v3223 = vunpack.c.h.b16 %v599
        %v3224 = vunpack.c.l.b16 %v600
        %v3225 = vunpack.c.l.b16 %v601
        %v3226 = vunpack.c.h.b16 %v601
        %v3227 = vunpack.c.l.b16 %v602
        %v3228 = vunpack.c.l.b16 %v603
        %v3229 = vunpack.c.h.b16 %v603
        %v3230 = vunpack.c.l.b16 %v604
        %v3231 = vunpack.c.l.b16 %v605
        %v3232 = vunpack.c.h.b16 %v605
        %v3233 = vunpack.c.l.b16 %v606
        %v3234 = vunpack.c.l.b16 %v607
        %v3235 = vunpack.c.h.b16 %v607
        %v3236 = vunpack.c.l.b16 %v608
        %v3237 = vunpack.c.l.b16 %v609
        %v3238 = vunpack.c.h.b16 %v609
        %v3239 = vunpack.c.l.b16 %v610
        %v3240 = vunpack.c.l.b16 %v611
        %v3241 = vunpack.c.h.b16 %v611
        %v3242 = vunpack.c.l.b16 %v612
        %v3243 = vunpack.c.l.b16 %v613
        %v3244 = vunpack.c.h.b16 %v613
        %v3245 = vunpack.c.l.b16 %v614
        %v3246 = vunpack.c.l.b16 %v615
        %v3247 = vunpack.c.h.b16 %v615
        %v3248 = vunpack.c.l.b16 %v616
        %v3249 = vunpack.c.l.b16 %v617
        %v3250 = vunpack.c.h.b16 %v617
        %v3251 = vunpack.c.l.b16 %v618
        %v3252 = vunpack.c.l.b16 %v619
        %v3253 = vunpack.c.h.b16 %v619
        %v3254 = vunpack.c.l.b16 %v620
        %v3255 = vunpack.c.l.b16 %v621
        %v3256 = vunpack.c.h.b16 %v621
        %v3257 = vunpack.c.l.b16 %v622
        %v3258 = vunpack.c.l.b16 %v623
        %v3259 = vunpack.c.h.b16 %v623
        %v3260 = vunpack.c.l.b16 %v624
        %v3261 = vunpack.c.l.b16 %v625
        %v3262 = vunpack.c.h.b16 %v625
        %v3263 = vunpack.c.l.b16 %v626
        %v3264 = vunpack.c.l.b16 %v627
        %v3265 = vunpack.c.h.b16 %v627
        %v3266 = vunpack.c.l.b16 %v628
        %v3267 = vunpack.c.l.b16 %v629
        %v3268 = vunpack.c.h.b16 %v629
        %v3269 = vunpack.c.l.b16 %v630
        %v3270 = vunpack.c.l.b16 %v631
        %v3271 = vunpack.c.h.b16 %v631
        %v3272 = vunpack.c.l.b16 %v632
        %v3273 = vunpack.c.l.b16 %v633
        %v3274 = vunpack.c.h.b16 %v633
        %v3275 = vunpack.c.l.b16 %v634
        %v3276 = vunpack.c.l.b16 %v635
        %v3277 = vunpack.c.h.b16 %v635
        %v3278 = vunpack.c.l.b16 %v636
        %v3279 = vunpack.c.l.b16 %v637
        %v3280 = vunpack.c.h.b16 %v637
        %v3281 = vunpack.c.l.b16 %v638
        %v3282 = vunpack.c.l.b16 %v639
        %v3283 = vunpack.c.h.b16 %v639
        %v3284 = vunpack.c.l.b16 %v640
        %v3285 = vunpack.c.l.b16 %v641
        %v3286 = vunpack.c.h.b16 %v641
        %v3287 = vunpack.c.l.b16 %v642
        %v3288 = vunpack.c.l.b16 %v643
        %v3289 = vunpack.c.h.b16 %v643
        %v3290 = vunpack.c.l.b16 %v644
        %v3291 = vpack.c.b16 %v3198, %v3195
        %v3292 = vpack.c.b16 %v3199, %v3196
        %v3293 = vpack.c.b16 %v3200, %v3197
        %v3294 = vpack.c.b16 %v3204, %v3201
        %v3295 = vpack.c.b16 %v3205, %v3202
        %v3296 = vpack.c.b16 %v3206, %v3203
        %v3297 = vpack.c.b16 %v3210, %v3207
        %v3298 = vpack.c.b16 %v3211, %v3208
        %v3299 = vpack.c.b16 %v3212, %v3209
        %v3300 = vpack.c.b16 %v3216, %v3213
        %v3301 = vpack.c.b16 %v3217, %v3214
        %v3302 = vpack.c.b16 %v3218, %v3215
        %v3303 = vpack.c.b16 %v3222, %v3219
        %v3304 = vpack.c.b16 %v3223, %v3220
        %v3305 = vpack.c.b16 %v3224, %v3221
        %v3306 = vpack.c.b16 %v3228, %v3225
        %v3307 = vpack.c.b16 %v3229, %v3226
        %v3308 = vpack.c.b16 %v3230, %v3227
        %v3309 = vpack.c.b16 %v3234, %v3231
        %v3310 = vpack.c.b16 %v3235, %v3232
        %v3311 = vpack.c.b16 %v3236, %v3233
        %v3312 = vpack.c.b16 %v3240, %v3237
        %v3313 = vpack.c.b16 %v3241, %v3238
        %v3314 = vpack.c.b16 %v3242, %v3239
        %v3315 = vpack.c.b16 %v3246, %v3243
        %v3316 = vpack.c.b16 %v3247, %v3244
        %v3317 = vpack.c.b16 %v3248, %v3245
        %v3318 = vpack.c.b16 %v3252, %v3249
        %v3319 = vpack.c.b16 %v3253, %v3250
        %v3320 = vpack.c.b16 %v3254, %v3251
        %v3321 = vpack.c.b16 %v3258, %v3255
        %v3322 = vpack.c.b16 %v3259, %v3256
        %v3323 = vpack.c.b16 %v3260, %v3257
        %v3324 = vpack.c.b16 %v3264, %v3261
        %v3325 = vpack.c.b16 %v3265, %v3262
        %v3326 = vpack.c.b16 %v3266, %v3263
        %v3327 = vpack.c.b16 %v3270, %v3267
        %v3328 = vpack.c.b16 %v3271, %v3268
        %v3329 = vpack.c.b16 %v3272, %v3269
        %v3330 = vpack.c.b16 %v3276, %v3273
        %v3331 = vpack.c.b16 %v3277, %v3274
        %v3332 = vpack.c.b16 %v3278, %v3275
        %v3333 = vpack.c.b16 %v3282, %v3279
        %v3334 = vpack.c.b16 %v3283, %v3280
        %v3335 = vpack.c.b16 %v3284, %v3281
        %v3336 = vpack.c.b16 %v3288, %v3285
        %v3337 = vpack.c.b16 %v3289, %v3286
        %v3338 = vpack.c.b16 %v3290, %v3287
        %v3531 = vunpack.c.l.b16 %v645
        %v3532 = vunpack.c.h.b16 %v645
        %v3533 = vunpack.c.l.b16 %v646
        %v3534 = vunpack.c.h.b16 %v646
        %v3535 = vunpack.c.l.b16 %v647
        %v3536 = vunpack.c.h.b16 %v647
        %v3537 = vunpack.c.l.b16 %v648
        %v3538 = vunpack.c.h.b16 %v648
        %v3539 = vunpack.c.l.b16 %v649
        %v3540 = vunpack.c.h.b16 %v649
        %v3541 = vunpack.c.l.b16 %v650
        %v3542 = vunpack.c.h.b16 %v650
        %v3543 = vunpack.c.l.b16 %v651
        %v3544 = vunpack.c.h.b16 %v651
        %v3545 = vunpack.c.l.b16 %v652
        %v3546 = vunpack.c.h.b16 %v652
        %v3547 = vunpack.c.l.b16 %v653
        %v3548 = vunpack.c.h.b16 %v653
        %v3549 = vunpack.c.l.b16 %v654
        %v3550 = vunpack.c.h.b16 %v654
        %v3551 = vunpack.c.l.b16 %v655
        %v3552 = vunpack.c.h.b16 %v655
        %v3553 = vunpack.c.l.b16 %v656
        %v3554 = vunpack.c.h.b16 %v656
        %v3555 = vunpack.c.l.b16 %v657
        %v3556 = vunpack.c.h.b16 %v657
        %v3557 = vunpack.c.l.b16 %v658
        %v3558 = vunpack.c.h.b16 %v658
        %v3559 = vunpack.c.l.b16 %v659
        %v3560 = vunpack.c.h.b16 %v659
        %v3561 = vunpack.c.l.b16 %v660
        %v3562 = vunpack.c.h.b16 %v660
        %v3563 = vunpack.c.l.b16 %v661
        %v3564 = vunpack.c.h.b16 %v661
        %v3565 = vunpack.c.l.b16 %v662
        %v3566 = vunpack.c.h.b16 %v662
        %v3567 = vunpack.c.l.b16 %v663
        %v3568 = vunpack.c.h.b16 %v663
        %v3569 = vunpack.c.l.b16 %v664
        %v3570 = vunpack.c.h.b16 %v664
        %v3571 = vunpack.c.l.b16 %v665
        %v3572 = vunpack.c.h.b16 %v665
        %v3573 = vunpack.c.l.b16 %v666
        %v3574 = vunpack.c.h.b16 %v666
        %v3575 = vunpack.c.l.b16 %v667
        %v3576 = vunpack.c.h.b16 %v667
        %v3577 = vunpack.c.l.b16 %v668
        %v3578 = vunpack.c.h.b16 %v668
        %v3579 = vunpack.c.l.b16 %v669
        %v3580 = vunpack.c.h.b16 %v669
        %v3581 = vunpack.c.l.b16 %v670
        %v3582 = vunpack.c.h.b16 %v670
        %v3583 = vunpack.c.l.b16 %v671
        %v3584 = vunpack.c.h.b16 %v671
        %v3585 = vunpack.c.l.b16 %v672
        %v3586 = vunpack.c.h.b16 %v672
        %v3587 = vunpack.c.l.b16 %v673
        %v3588 = vunpack.c.h.b16 %v673
        %v3589 = vunpack.c.l.b16 %v674
        %v3590 = vunpack.c.h.b16 %v674
        %v3591 = vunpack.c.l.b16 %v675
        %v3592 = vunpack.c.h.b16 %v675
        %v3593 = vunpack.c.l.b16 %v676
        %v3594 = vunpack.c.h.b16 %v676
        %v3595 = vunpack.c.l.b16 %v677
        %v3596 = vunpack.c.h.b16 %v677
        %v3597 = vunpack.c.l.b16 %v678
        %v3598 = vunpack.c.h.b16 %v678
        %v3599 = vunpack.c.l.b16 %v679
        %v3600 = vunpack.c.h.b16 %v679
        %v3601 = vunpack.c.l.b16 %v680
        %v3602 = vunpack.c.h.b16 %v680
        %v3603 = vunpack.c.l.b16 %v681
        %v3604 = vunpack.c.h.b16 %v681
        %v3605 = vunpack.c.l.b16 %v682
        %v3606 = vunpack.c.h.b16 %v682
        %v3607 = vunpack.c.l.b16 %v683
        %v3608 = vunpack.c.h.b16 %v683
        %v3609 = vunpack.c.l.b16 %v684
        %v3610 = vunpack.c.h.b16 %v684
        %v3611 = vunpack.c.l.b16 %v685
        %v3612 = vunpack.c.h.b16 %v685
        %v3613 = vunpack.c.l.b16 %v686
        %v3614 = vunpack.c.h.b16 %v686
        %v3615 = vunpack.c.l.b16 %v687
        %v3616 = vunpack.c.h.b16 %v687
        %v3617 = vunpack.c.l.b16 %v688
        %v3618 = vunpack.c.h.b16 %v688
        %v3619 = vunpack.c.l.b16 %v689
        %v3620 = vunpack.c.h.b16 %v689
        %v3621 = vunpack.c.l.b16 %v690
        %v3622 = vunpack.c.h.b16 %v690
        %v3623 = vunpack.c.l.b16 %v691
        %v3624 = vunpack.c.h.b16 %v691
        %v3625 = vunpack.c.l.b16 %v692
        %v3626 = vunpack.c.h.b16 %v692
        %v3627 = vunpack.c.l.b16 %v693
        %v3628 = vunpack.c.h.b16 %v693
        %v3629 = vunpack.c.l.b16 %v694
        %v3630 = vunpack.c.h.b16 %v694
        %v3631 = vunpack.c.l.b16 %v695
        %v3632 = vunpack.c.h.b16 %v695
        %v3633 = vunpack.c.l.b16 %v696
        %v3634 = vunpack.c.h.b16 %v696
        %v3635 = vunpack.c.l.b16 %v697
        %v3636 = vunpack.c.h.b16 %v697
        %v3637 = vunpack.c.l.b16 %v698
        %v3638 = vunpack.c.h.b16 %v698
        %v3639 = vunpack.c.l.b16 %v699
        %v3640 = vunpack.c.h.b16 %v699
        %v3641 = vunpack.c.l.b16 %v700
        %v3642 = vunpack.c.h.b16 %v700
        %v3643 = vunpack.c.l.b16 %v701
        %v3644 = vunpack.c.h.b16 %v701
        %v3645 = vunpack.c.l.b16 %v702
        %v3646 = vunpack.c.h.b16 %v702
        %v3647 = vunpack.c.l.b16 %v703
        %v3648 = vunpack.c.h.b16 %v703
        %v3649 = vunpack.c.l.b16 %v704
        %v3650 = vunpack.c.h.b16 %v704
        %v3651 = vunpack.c.l.b16 %v705
        %v3652 = vunpack.c.h.b16 %v705
        %v3653 = vunpack.c.l.b16 %v706
        %v3654 = vunpack.c.h.b16 %v706
        %v3655 = vunpack.c.l.b16 %v707
        %v3656 = vunpack.c.h.b16 %v707
        %v3657 = vunpack.c.l.b16 %v708
        %v3658 = vunpack.c.h.b16 %v708
        %v3659 = vunpack.c.l.b16 %v709
        %v3660 = vunpack.c.h.b16 %v709
        %v3661 = vunpack.c.l.b16 %v710
        %v3662 = vunpack.c.h.b16 %v710
        %v3663 = vunpack.c.l.b16 %v711
        %v3664 = vunpack.c.h.b16 %v711
        %v3665 = vunpack.c.l.b16 %v712
        %v3666 = vunpack.c.h.b16 %v712
        %v3667 = vunpack.c.l.b16 %v713
        %v3668 = vunpack.c.h.b16 %v713
        %v3669 = vunpack.c.l.b16 %v714
        %v3670 = vunpack.c.h.b16 %v714
        %v3671 = vunpack.c.l.b16 %v715
        %v3672 = vunpack.c.h.b16 %v715
        %v3673 = vunpack.c.l.b16 %v716
        %v3674 = vunpack.c.h.b16 %v716
        %v3675 = vunpack.c.l.b16 %v717
        %v3676 = vunpack.c.h.b16 %v717
        %v3677 = vunpack.c.l.b16 %v718
        %v3678 = vunpack.c.h.b16 %v718
        %v3679 = vunpack.c.l.b16 %v719
        %v3680 = vunpack.c.h.b16 %v719
        %v3681 = vunpack.c.l.b16 %v720
        %v3682 = vunpack.c.h.b16 %v720
        %v3683 = vunpack.c.l.b16 %v721
        %v3684 = vunpack.c.h.b16 %v721
        %v3685 = vunpack.c.l.b16 %v722
        %v3686 = vunpack.c.h.b16 %v722
        %v3687 = vunpack.c.l.b16 %v723
        %v3688 = vunpack.c.h.b16 %v723
        %v3689 = vunpack.c.l.b16 %v724
        %v3690 = vunpack.c.h.b16 %v724
        %v3691 = vunpack.c.l.b16 %v725
        %v3692 = vunpack.c.h.b16 %v725
        %v3693 = vunpack.c.l.b16 %v726
        %v3694 = vunpack.c.h.b16 %v726
        %v3695 = vunpack.c.l.b16 %v727
        %v3696 = vunpack.c.h.b16 %v727
        %v3697 = vunpack.c.l.b16 %v728
        %v3698 = vunpack.c.h.b16 %v728
        %v3699 = vunpack.c.l.b16 %v729
        %v3700 = vunpack.c.h.b16 %v729
        %v3701 = vunpack.c.l.b16 %v730
        %v3702 = vunpack.c.h.b16 %v730
        %v3703 = vunpack.c.l.b16 %v731
        %v3704 = vunpack.c.h.b16 %v731
        %v3705 = vunpack.c.l.b16 %v732
        %v3706 = vunpack.c.h.b16 %v732
        %v3707 = vunpack.c.l.b16 %v733
        %v3708 = vunpack.c.h.b16 %v733
        %v3709 = vunpack.c.l.b16 %v734
        %v3710 = vunpack.c.h.b16 %v734
        %v3711 = vunpack.c.l.b16 %v735
        %v3712 = vunpack.c.h.b16 %v735
        %v3713 = vunpack.c.l.b16 %v736
        %v3714 = vunpack.c.h.b16 %v736
        %v3715 = vunpack.c.l.b16 %v737
        %v3716 = vunpack.c.h.b16 %v737
        %v3717 = vunpack.c.l.b16 %v738
        %v3718 = vunpack.c.h.b16 %v738
        %v3719 = vunpack.c.l.b16 %v739
        %v3720 = vunpack.c.h.b16 %v739
        %v3721 = vunpack.c.l.b16 %v740
        %v3722 = vunpack.c.h.b16 %v740
        %v3723 = vunpack.c.l.b16 %v741
        %v3724 = vunpack.c.h.b16 %v741
        %v3725 = vunpack.c.l.b16 %v742
        %v3726 = vunpack.c.h.b16 %v742
        %v3727 = vunpack.c.l.b16 %v743
        %v3728 = vunpack.c.h.b16 %v743
        %v3729 = vunpack.c.l.b16 %v744
        %v3730 = vunpack.c.h.b16 %v744
        %v3731 = vunpack.c.l.b16 %v745
        %v3732 = vunpack.c.h.b16 %v745
        %v3733 = vunpack.c.l.b16 %v746
        %v3734 = vunpack.c.h.b16 %v746
        %v3735 = vunpack.c.l.b16 %v747
        %v3736 = vunpack.c.h.b16 %v747
        %v3737 = vunpack.c.l.b16 %v748
        %v3738 = vunpack.c.h.b16 %v748
        %v3739 = vunpack.c.l.b16 %v749
        %v3740 = vunpack.c.h.b16 %v749
        %v3741 = vunpack.c.l.b16 %v750
        %v3742 = vunpack.c.h.b16 %v750
        %v3743 = vunpack.c.l.b16 %v751
        %v3744 = vunpack.c.h.b16 %v751
        %v3745 = vunpack.c.l.b16 %v752
        %v3746 = vunpack.c.h.b16 %v752
        %v3747 = vunpack.c.l.b16 %v753
        %v3748 = vunpack.c.h.b16 %v753
        %v3749 = vunpack.c.l.b16 %v754
        %v3750 = vunpack.c.h.b16 %v754
        %v3751 = vunpack.c.l.b16 %v755
        %v3752 = vunpack.c.h.b16 %v755
        %v3753 = vunpack.c.l.b16 %v756
        %v3754 = vunpack.c.h.b16 %v756
        %v3755 = vunpack.c.l.b16 %v757
        %v3756 = vunpack.c.h.b16 %v757
        %v3757 = vunpack.c.l.b16 %v758
        %v3758 = vunpack.c.h.b16 %v758
        %v3759 = vunpack.c.l.b16 %v759
        %v3760 = vunpack.c.h.b16 %v759
        %v3761 = vunpack.c.l.b16 %v760
        %v3762 = vunpack.c.h.b16 %v760
        %v3763 = vunpack.c.l.b16 %v761
        %v3764 = vunpack.c.h.b16 %v761
        %v3765 = vunpack.c.l.b16 %v762
        %v3766 = vunpack.c.h.b16 %v762
        %v3767 = vunpack.c.l.b16 %v763
        %v3768 = vunpack.c.h.b16 %v763
        %v3769 = vunpack.c.l.b16 %v764
        %v3770 = vunpack.c.h.b16 %v764
        %v3771 = vunpack.c.l.b16 %v765
        %v3772 = vunpack.c.h.b16 %v765
        %v3773 = vunpack.c.l.b16 %v766
        %v3774 = vunpack.c.h.b16 %v766
        %v3775 = vunpack.c.l.b16 %v767
        %v3776 = vunpack.c.h.b16 %v767
        %v3777 = vunpack.c.l.b16 %v768
        %v3778 = vunpack.c.h.b16 %v768
        %v3779 = vunpack.c.l.b16 %v769
        %v3780 = vunpack.c.h.b16 %v769
        %v3781 = vunpack.c.l.b16 %v770
        %v3782 = vunpack.c.h.b16 %v770
        %v3783 = vunpack.c.l.b16 %v771
        %v3784 = vunpack.c.h.b16 %v771
        %v3785 = vunpack.c.l.b16 %v772
        %v3786 = vunpack.c.h.b16 %v772
        %v3787 = vunpack.c.l.b16 %v773
        %v3788 = vunpack.c.h.b16 %v773
        %v3789 = vunpack.c.l.b16 %v774
        %v3790 = vunpack.c.h.b16 %v774
        %v3791 = vunpack.c.l.b16 %v775
        %v3792 = vunpack.c.h.b16 %v775
        %v3793 = vunpack.c.l.b16 %v776
        %v3794 = vunpack.c.h.b16 %v776
        %v3795 = vunpack.c.l.b16 %v777
        %v3796 = vunpack.c.h.b16 %v777
        %v3797 = vunpack.c.l.b16 %v778
        %v3798 = vunpack.c.h.b16 %v778
        %v3799 = vunpack.c.l.b16 %v779
        %v3800 = vunpack.c.h.b16 %v779
        %v3801 = vunpack.c.l.b16 %v780
        %v3802 = vunpack.c.h.b16 %v780
        %v3803 = vunpack.c.l.b16 %v781
        %v3804 = vunpack.c.h.b16 %v781
        %v3805 = vunpack.c.l.b16 %v782
        %v3806 = vunpack.c.h.b16 %v782
        %v3807 = vunpack.c.l.b16 %v783
        %v3808 = vunpack.c.h.b16 %v783
        %v3809 = vunpack.c.l.b16 %v784
        %v3810 = vunpack.c.h.b16 %v784
        %v3811 = vunpack.c.l.b16 %v785
        %v3812 = vunpack.c.h.b16 %v785
        %v3813 = vunpack.c.l.b16 %v786
        %v3814 = vunpack.c.h.b16 %v786
        %v3815 = vunpack.c.l.b16 %v787
        %v3816 = vunpack.c.h.b16 %v787
        %v3817 = vunpack.c.l.b16 %v788
        %v3818 = vunpack.c.h.b16 %v788
        %v3819 = vpack.c.b16 %v3537, %v3531
        %v3820 = vpack.c.b16 %v3538, %v3532
        %v3821 = vpack.c.b16 %v3539, %v3533
        %v3822 = vpack.c.b16 %v3540, %v3534
        %v3823 = vpack.c.b16 %v3541, %v3535
        %v3824 = vpack.c.b16 %v3542, %v3536
        %v3825 = vpack.c.b16 %v3549, %v3543
        %v3826 = vpack.c.b16 %v3550, %v3544
        %v3827 = vpack.c.b16 %v3551, %v3545
        %v3828 = vpack.c.b16 %v3552, %v3546
        %v3829 = vpack.c.b16 %v3553, %v3547
        %v3830 = vpack.c.b16 %v3554, %v3548
        %v3831 = vpack.c.b16 %v3561, %v3555
        %v3832 = vpack.c.b16 %v3562, %v3556
        %v3833 = vpack.c.b16 %v3563, %v3557
        %v3834 = vpack.c.b16 %v3564, %v3558
        %v3835 = vpack.c.b16 %v3565, %v3559
        %v3836 = vpack.c.b16 %v3566, %v3560
        %v3837 = vpack.c.b16 %v3573, %v3567
        %v3838 = vpack.c.b16 %v3574, %v3568
        %v3839 = vpack.c.b16 %v3575, %v3569
        %v3840 = vpack.c.b16 %v3576, %v3570
        %v3841 = vpack.c.b16 %v3577, %v3571
        %v3842 = vpack.c.b16 %v3578, %v3572
        %v3843 = vpack.c.b16 %v3585, %v3579
        %v3844 = vpack.c.b16 %v3586, %v3580
        %v3845 = vpack.c.b16 %v3587, %v3581
        %v3846 = vpack.c.b16 %v3588, %v3582
        %v3847 = vpack.c.b16 %v3589, %v3583
        %v3848 = vpack.c.b16 %v3590, %v3584
        %v3849 = vpack.c.b16 %v3597, %v3591
        %v3850 = vpack.c.b16 %v3598, %v3592
        %v3851 = vpack.c.b16 %v3599, %v3593
        %v3852 = vpack.c.b16 %v3600, %v3594
        %v3853 = vpack.c.b16 %v3601, %v3595
        %v3854 = vpack.c.b16 %v3602, %v3596
        %v3855 = vpack.c.b16 %v3609, %v3603
        %v3856 = vpack.c.b16 %v3610, %v3604
        %v3857 = vpack.c.b16 %v3611, %v3605
        %v3858 = vpack.c.b16 %v3612, %v3606
        %v3859 = vpack.c.b16 %v3613, %v3607
        %v3860 = vpack.c.b16 %v3614, %v3608
        %v3861 = vpack.c.b16 %v3621, %v3615
        %v3862 = vpack.c.b16 %v3622, %v3616
        %v3863 = vpack.c.b16 %v3623, %v3617
        %v3864 = vpack.c.b16 %v3624, %v3618
        %v3865 = vpack.c.b16 %v3625, %v3619
        %v3866 = vpack.c.b16 %v3626, %v3620
        %v3867 = vpack.c.b16 %v3633, %v3627
        %v3868 = vpack.c.b16 %v3634, %v3628
        %v3869 = vpack.c.b16 %v3635, %v3629
        %v3870 = vpack.c.b16 %v3636, %v3630
        %v3871 = vpack.c.b16 %v3637, %v3631
        %v3872 = vpack.c.b16 %v3638, %v3632
        %v3873 = vpack.c.b16 %v3645, %v3639
        %v3874 = vpack.c.b16 %v3646, %v3640
        %v3875 = vpack.c.b16 %v3647, %v3641
        %v3876 = vpack.c.b16 %v3648, %v3642
        %v3877 = vpack.c.b16 %v3649, %v3643
        %v3878 = vpack.c.b16 %v3650, %v3644
        %v3879 = vpack.c.b16 %v3657, %v3651
        %v3880 = vpack.c.b16 %v3658, %v3652
        %v3881 = vpack.c.b16 %v3659, %v3653
        %v3882 = vpack.c.b16 %v3660, %v3654
        %v3883 = vpack.c.b16 %v3661, %v3655
        %v3884 = vpack.c.b16 %v3662, %v3656
        %v3885 = vpack.c.b16 %v3669, %v3663
        %v3886 = vpack.c.b16 %v3670, %v3664
        %v3887 = vpack.c.b16 %v3671, %v3665
        %v3888 = vpack.c.b16 %v3672, %v3666
        %v3889 = vpack.c.b16 %v3673, %v3667
        %v3890 = vpack.c.b16 %v3674, %v3668
        %v3891 = vpack.c.b16 %v3681, %v3675
        %v3892 = vpack.c.b16 %v3682, %v3676
        %v3893 = vpack.c.b16 %v3683, %v3677
        %v3894 = vpack.c.b16 %v3684, %v3678
        %v3895 = vpack.c.b16 %v3685, %v3679
        %v3896 = vpack.c.b16 %v3686, %v3680
        %v3897 = vpack.c.b16 %v3693, %v3687
        %v3898 = vpack.c.b16 %v3694, %v3688
        %v3899 = vpack.c.b16 %v3695, %v3689
        %v3900 = vpack.c.b16 %v3696, %v3690
        %v3901 = vpack.c.b16 %v3697, %v3691
        %v3902 = vpack.c.b16 %v3698, %v3692
        %v3903 = vpack.c.b16 %v3705, %v3699
        %v3904 = vpack.c.b16 %v3706, %v3700
        %v3905 = vpack.c.b16 %v3707, %v3701
        %v3906 = vpack.c.b16 %v3708, %v3702
        %v3907 = vpack.c.b16 %v3709, %v3703
        %v3908 = vpack.c.b16 %v3710, %v3704
        %v3909 = vpack.c.b16 %v3717, %v3711
        %v3910 = vpack.c.b16 %v3718, %v3712
        %v3911 = vpack.c.b16 %v3719, %v3713
        %v3912 = vpack.c.b16 %v3720, %v3714
        %v3913 = vpack.c.b16 %v3721, %v3715
        %v3914 = vpack.c.b16 %v3722, %v3716
        %v3915 = vpack.c.b16 %v3729, %v3723
        %v3916 = vpack.c.b16 %v3730, %v3724
        %v3917 = vpack.c.b16 %v3731, %v3725
        %v3918 = vpack.c.b16 %v3732, %v3726
        %v3919 = vpack.c.b16 %v3733, %v3727
        %v3920 = vpack.c.b16 %v3734, %v3728
        %v3921 = vpack.c.b16 %v3741, %v3735
        %v3922 = vpack.c.b16 %v3742, %v3736
        %v3923 = vpack.c.b16 %v3743, %v3737
        %v3924 = vpack.c.b16 %v3744, %v3738
        %v3925 = vpack.c.b16 %v3745, %v3739
        %v3926 = vpack.c.b16 %v3746, %v3740
        %v3927 = vpack.c.b16 %v3753, %v3747
        %v3928 = vpack.c.b16 %v3754, %v3748
        %v3929 = vpack.c.b16 %v3755, %v3749
        %v3930 = vpack.c.b16 %v3756, %v3750
        %v3931 = vpack.c.b16 %v3757, %v3751
        %v3932 = vpack.c.b16 %v3758, %v3752
        %v3933 = vpack.c.b16 %v3765, %v3759
        %v3934 = vpack.c.b16 %v3766, %v3760
        %v3935 = vpack.c.b16 %v3767, %v3761
        %v3936 = vpack.c.b16 %v3768, %v3762
        %v3937 = vpack.c.b16 %v3769, %v3763
        %v3938 = vpack.c.b16 %v3770, %v3764
        %v3939 = vpack.c.b16 %v3777, %v3771
        %v3940 = vpack.c.b16 %v3778, %v3772
        %v3941 = vpack.c.b16 %v3779, %v3773
        %v3942 = vpack.c.b16 %v3780, %v3774
        %v3943 = vpack.c.b16 %v3781, %v3775
        %v3944 = vpack.c.b16 %v3782, %v3776
        %v3945 = vpack.c.b16 %v3789, %v3783
        %v3946 = vpack.c.b16 %v3790, %v3784
        %v3947 = vpack.c.b16 %v3791, %v3785
        %v3948 = vpack.c.b16 %v3792, %v3786
        %v3949 = vpack.c.b16 %v3793, %v3787
        %v3950 = vpack.c.b16 %v3794, %v3788
        %v3951 = vpack.c.b16 %v3801, %v3795
        %v3952 = vpack.c.b16 %v3802, %v3796
        %v3953 = vpack.c.b16 %v3803, %v3797
        %v3954 = vpack.c.b16 %v3804, %v3798
        %v3955 = vpack.c.b16 %v3805, %v3799
        %v3956 = vpack.c.b16 %v3806, %v3800
        %v3957 = vpack.c.b16 %v3813, %v3807
        %v3958 = vpack.c.b16 %v3814, %v3808
        %v3959 = vpack.c.b16 %v3815, %v3809
        %v3960 = vpack.c.b16 %v3816, %v3810
        %v3961 = vpack.c.b16 %v3817, %v3811
        %v3962 = vpack.c.b16 %v3818, %v3812
        %4107 = vmatprep.subr.bf16.mxu0 %v3862
        %4108 = vmatpush1.bf16.msra.mxu0 %v3861
        %4109 = vmatprep.subr.bf16.mxu0 %v3856
        %4110 = vmatpush1.bf16.msra.mxu0 %v3855
        %4111 = vmatprep.subr.bf16.mxu0 %v3850
        %4112 = vmatpush1.bf16.msra.mxu0 %v3849
        %4113 = vmatprep.subr.bf16.mxu0 %v3844
        %4114 = vmatpush1.bf16.msra.mxu0 %v3843
        %4115 = vmatprep.subr.bf16.mxu0 %v3838
        %4116 = vmatpush1.bf16.msra.mxu0 %v3837
        %4117 = vmatprep.subr.bf16.mxu0 %v3832
        %4118 = vmatpush1.bf16.msra.mxu0 %v3831
        %4119 = vmatprep.subr.bf16.mxu0 %v3826
        %4120 = vmatpush1.bf16.msra.mxu0 %v3825
        %4121 = vmatprep.subr.bf16.mxu0 %v3820
        %4122 = vmatpush1.bf16.msra.mxu0 %v3819
        %4123 = vmatprep.subr.bf16.mxu0 %v3910
        %4124 = vmatpush2.bf16.msra.mxu0 %v3909
        %4125 = vmatprep.subr.bf16.mxu0 %v3904
        %4126 = vmatpush2.bf16.msra.mxu0 %v3903
        %4127 = vmatprep.subr.bf16.mxu0 %v3898
        %4128 = vmatpush2.bf16.msra.mxu0 %v3897
        %4129 = vmatprep.subr.bf16.mxu0 %v3892
        %4130 = vmatpush2.bf16.msra.mxu0 %v3891
        %4131 = vmatprep.subr.bf16.mxu0 %v3886
        %4132 = vmatpush2.bf16.msra.mxu0 %v3885
        %4133 = vmatprep.subr.bf16.mxu0 %v3880
        %4134 = vmatpush2.bf16.msra.mxu0 %v3879
        %4135 = vmatprep.subr.bf16.mxu0 %v3874
        %4136 = vmatpush2.bf16.msra.mxu0 %v3873
        %4137 = vmatprep.subr.bf16.mxu0 %v3868
        %4138 = vmatpush2.bf16.msra.mxu0 %v3867
        %4139 = vmatprep.mubr.bf16.mxu0 %v3292
        %4140 = vmatmul.mubr.bf16.gmra.mxu0 %v3291
        %v4141 = vpop.f32.mrf.mxu0
        %v4142 = vadd.f32 %v2201, %v4141
        %v4143 = vpop.f32.mrf.mxu0
        %v4144 = vadd.f32 %v2203, %v4143
        %v4145 = vpop.f32.mrf.mxu0
        %v4146 = vadd.f32 %v2205, %v4145
        %v4147 = vpop.f32.mrf.mxu0
        %v4148 = vadd.f32 %v2207, %v4147
        %4149 = vmatprep.mubr.bf16.mxu0 %v3295
        %4150 = vmatmul.mubr.bf16.gmra.mxu0 %v3294
        %v4151 = vpop.f32.mrf.mxu0
        %v4152 = vadd.f32 %v2211, %v4151
        %v4153 = vpop.f32.mrf.mxu0
        %v4154 = vadd.f32 %v2213, %v4153
        %v4155 = vpop.f32.mrf.mxu0
        %v4156 = vadd.f32 %v2215, %v4155
        %v4157 = vpop.f32.mrf.mxu0
        %v4158 = vadd.f32 %v2217, %v4157
        %4159 = vmatprep.mubr.bf16.mxu0 %v3298
        %4160 = vmatmul.mubr.bf16.gmra.mxu0 %v3297
        %v4161 = vpop.f32.mrf.mxu0
        %v4162 = vadd.f32 %v2221, %v4161
        %v4163 = vpop.f32.mrf.mxu0
        %v4164 = vadd.f32 %v2223, %v4163
        %v4165 = vpop.f32.mrf.mxu0
        %v4166 = vadd.f32 %v2225, %v4165
        %v4167 = vpop.f32.mrf.mxu0
        %v4168 = vadd.f32 %v2227, %v4167
        %4169 = vmatprep.mubr.bf16.mxu0 %v3301
        %4170 = vmatmul.mubr.bf16.gmra.mxu0 %v3300
        %v4171 = vpop.f32.mrf.mxu0
        %v4172 = vadd.f32 %v2231, %v4171
        %v4173 = vpop.f32.mrf.mxu0
        %v4174 = vadd.f32 %v2233, %v4173
        %v4175 = vpop.f32.mrf.mxu0
        %v4176 = vadd.f32 %v2235, %v4175
        %v4177 = vpop.f32.mrf.mxu0
        %v4178 = vadd.f32 %v2237, %v4177
        %4179 = vmatprep.mubr.bf16.mxu0 %v3304
        %4180 = vmatmul.mubr.bf16.gmra.mxu0 %v3303
        %v4181 = vpop.f32.mrf.mxu0
        %v4182 = vadd.f32 %v2241, %v4181
        %v4183 = vpop.f32.mrf.mxu0
        %v4184 = vadd.f32 %v2243, %v4183
        %v4185 = vpop.f32.mrf.mxu0
        %v4186 = vadd.f32 %v2245, %v4185
        %v4187 = vpop.f32.mrf.mxu0
        %v4188 = vadd.f32 %v2247, %v4187
        %4189 = vmatprep.mubr.bf16.mxu0 %v3307
        %4190 = vmatmul.mubr.bf16.gmra.mxu0 %v3306
        %v4191 = vpop.f32.mrf.mxu0
        %v4192 = vadd.f32 %v2251, %v4191
        %v4193 = vpop.f32.mrf.mxu0
        %v4194 = vadd.f32 %v2253, %v4193
        %v4195 = vpop.f32.mrf.mxu0
        %v4196 = vadd.f32 %v2255, %v4195
        %v4197 = vpop.f32.mrf.mxu0
        %v4198 = vadd.f32 %v2257, %v4197
        %4199 = vmatprep.mubr.bf16.mxu0 %v3310
        %4200 = vmatmul.mubr.bf16.gmra.mxu0 %v3309
        %v4201 = vpop.f32.mrf.mxu0
        %v4202 = vadd.f32 %v2261, %v4201
        %v4203 = vpop.f32.mrf.mxu0
        %v4204 = vadd.f32 %v2263, %v4203
        %v4205 = vpop.f32.mrf.mxu0
        %v4206 = vadd.f32 %v2265, %v4205
        %v4207 = vpop.f32.mrf.mxu0
        %v4208 = vadd.f32 %v2267, %v4207
        %4209 = vmatprep.mubr.bf16.mxu0 %v3313
        %4210 = vmatmul.mubr.bf16.gmra.mxu0 %v3312
        %v4211 = vpop.f32.mrf.mxu0
        %v4212 = vadd.f32 %v2271, %v4211
        %v4213 = vpop.f32.mrf.mxu0
        %v4214 = vadd.f32 %v2273, %v4213
        %v4215 = vpop.f32.mrf.mxu0
        %v4216 = vadd.f32 %v2275, %v4215
        %v4217 = vpop.f32.mrf.mxu0
        %v4218 = vadd.f32 %v2277, %v4217
        %4219 = vmatprep.mubr.bf16.mxu0 %v3316
        %4220 = vmatmul.mubr.bf16.gmra.mxu0 %v3315
        %v4221 = vpop.f32.mrf.mxu0
        %v4222 = vadd.f32 %v2281, %v4221
        %v4223 = vpop.f32.mrf.mxu0
        %v4224 = vadd.f32 %v2283, %v4223
        %v4225 = vpop.f32.mrf.mxu0
        %v4226 = vadd.f32 %v2285, %v4225
        %v4227 = vpop.f32.mrf.mxu0
        %v4228 = vadd.f32 %v2287, %v4227
        %4229 = vmatprep.mubr.bf16.mxu0 %v3319
        %4230 = vmatmul.mubr.bf16.gmra.mxu0 %v3318
        %v4231 = vpop.f32.mrf.mxu0
        %v4232 = vadd.f32 %v2291, %v4231
        %v4233 = vpop.f32.mrf.mxu0
        %v4234 = vadd.f32 %v2293, %v4233
        %v4235 = vpop.f32.mrf.mxu0
        %v4236 = vadd.f32 %v2295, %v4235
        %v4237 = vpop.f32.mrf.mxu0
        %v4238 = vadd.f32 %v2297, %v4237
        %4239 = vmatprep.mubr.bf16.mxu0 %v3322
        %4240 = vmatmul.mubr.bf16.gmra.mxu0 %v3321
        %v4241 = vpop.f32.mrf.mxu0
        %v4242 = vadd.f32 %v2301, %v4241
        %v4243 = vpop.f32.mrf.mxu0
        %v4244 = vadd.f32 %v2303, %v4243
        %v4245 = vpop.f32.mrf.mxu0
        %v4246 = vadd.f32 %v2305, %v4245
        %v4247 = vpop.f32.mrf.mxu0
        %v4248 = vadd.f32 %v2307, %v4247
        %4249 = vmatprep.mubr.bf16.mxu0 %v3325
        %4250 = vmatmul.mubr.bf16.gmra.mxu0 %v3324
        %v4251 = vpop.f32.mrf.mxu0
        %v4252 = vadd.f32 %v2311, %v4251
        %v4253 = vpop.f32.mrf.mxu0
        %v4254 = vadd.f32 %v2313, %v4253
        %v4255 = vpop.f32.mrf.mxu0
        %v4256 = vadd.f32 %v2315, %v4255
        %v4257 = vpop.f32.mrf.mxu0
        %v4258 = vadd.f32 %v2317, %v4257
        %4259 = vmatprep.mubr.bf16.mxu0 %v3328
        %4260 = vmatmul.mubr.bf16.gmra.mxu0 %v3327
        %v4261 = vpop.f32.mrf.mxu0
        %v4262 = vadd.f32 %v2321, %v4261
        %v4263 = vpop.f32.mrf.mxu0
        %v4264 = vadd.f32 %v2323, %v4263
        %v4265 = vpop.f32.mrf.mxu0
        %v4266 = vadd.f32 %v2325, %v4265
        %v4267 = vpop.f32.mrf.mxu0
        %v4268 = vadd.f32 %v2327, %v4267
        %4269 = vmatprep.mubr.bf16.mxu0 %v3331
        %4270 = vmatmul.mubr.bf16.gmra.mxu0 %v3330
        %v4271 = vpop.f32.mrf.mxu0
        %v4272 = vadd.f32 %v2331, %v4271
        %v4273 = vpop.f32.mrf.mxu0
        %v4274 = vadd.f32 %v2333, %v4273
        %v4275 = vpop.f32.mrf.mxu0
        %v4276 = vadd.f32 %v2335, %v4275
        %v4277 = vpop.f32.mrf.mxu0
        %v4278 = vadd.f32 %v2337, %v4277
        %4279 = vmatprep.mubr.bf16.mxu0 %v3334
        %4280 = vmatmul.mubr.bf16.gmra.mxu0 %v3333
        %v4281 = vpop.f32.mrf.mxu0
        %v4282 = vadd.f32 %v2341, %v4281
        %v4283 = vpop.f32.mrf.mxu0
        %v4284 = vadd.f32 %v2343, %v4283
        %v4285 = vpop.f32.mrf.mxu0
        %v4286 = vadd.f32 %v2345, %v4285
        %v4287 = vpop.f32.mrf.mxu0
        %v4288 = vadd.f32 %v2347, %v4287
        %4289 = vmatprep.mubr.bf16.mxu0 %v3337
        %4290 = vmatmul.mubr.bf16.gmra.mxu0 %v3336
        %v4291 = vpop.f32.mrf.mxu0
        %v4292 = vadd.f32 %v2351, %v4291
        %v4293 = vpop.f32.mrf.mxu0
        %v4294 = vadd.f32 %v2353, %v4293
        %v4295 = vpop.f32.mrf.mxu0
        %v4296 = vadd.f32 %v2355, %v4295
        %v4297 = vpop.f32.mrf.mxu0
        %v4298 = vadd.f32 %v2357, %v4297
        %4299 = vdwg.mxu0
        %4300 = vmatprep.subr.bf16.mxu0 %v3958
        %4301 = vmatpush1.bf16.msra.mxu0 %v3957
        %4302 = vmatprep.subr.bf16.mxu0 %v3952
        %4303 = vmatpush1.bf16.msra.mxu0 %v3951
        %4304 = vmatprep.subr.bf16.mxu0 %v3946
        %4305 = vmatpush1.bf16.msra.mxu0 %v3945
        %4306 = vmatprep.subr.bf16.mxu0 %v3940
        %4307 = vmatpush1.bf16.msra.mxu0 %v3939
        %4308 = vmatprep.subr.bf16.mxu0 %v3934
        %4309 = vmatpush1.bf16.msra.mxu0 %v3933
        %4310 = vmatprep.subr.bf16.mxu0 %v3928
        %4311 = vmatpush1.bf16.msra.mxu0 %v3927
        %4312 = vmatprep.subr.bf16.mxu0 %v3922
        %4313 = vmatpush1.bf16.msra.mxu0 %v3921
        %4314 = vmatprep.subr.bf16.mxu0 %v3916
        %4315 = vmatpush1.bf16.msra.mxu0 %v3915
        %4316 = vmatprep.subr.bf16.mxu0 0
        %4317 = vmatpush2.bf16.msra.mxu0 0
        %4318 = vmatprep.subr.bf16.mxu0 0
        %4319 = vmatpush2.bf16.msra.mxu0 0
        %4320 = vmatprep.subr.bf16.mxu0 0
        %4321 = vmatpush2.bf16.msra.mxu0 0
        %4322 = vmatprep.subr.bf16.mxu0 0
        %4323 = vmatpush2.bf16.msra.mxu0 0
        %4324 = vmatprep.subr.bf16.mxu0 0
        %4325 = vmatpush2.bf16.msra.mxu0 0
        %4326 = vmatprep.subr.bf16.mxu0 0
        %4327 = vmatpush2.bf16.msra.mxu0 0
        %4328 = vmatprep.subr.bf16.mxu0 0
        %4329 = vmatpush2.bf16.msra.mxu0 0
        %4330 = vmatprep.subr.bf16.mxu0 0
        %4331 = vmatpush2.bf16.msra.mxu0 0
        %4332 = vmatprep.mubr.bf16.mxu0 0
        %4333 = vmatmul.mubr.bf16.gmra.mxu0 %v3293
        %v4334 = vpop.f32.mrf.mxu0
        %v4335 = vadd.f32 %v4142, %v4334
        %v4336 = vpop.f32.mrf.mxu0
        %v4337 = vadd.f32 %v4144, %v4336
        %v4338 = vpop.f32.mrf.mxu0
        %v4339 = vadd.f32 %v4146, %v4338
        %v4340 = vpop.f32.mrf.mxu0
        %v4341 = vadd.f32 %v4148, %v4340
        %4342 = vmatprep.mubr.bf16.mxu0 0
        %4343 = vmatmul.mubr.bf16.gmra.mxu0 %v3296
        %v4344 = vpop.f32.mrf.mxu0
        %v4345 = vadd.f32 %v4152, %v4344
        %v4346 = vpop.f32.mrf.mxu0
        %v4347 = vadd.f32 %v4154, %v4346
        %v4348 = vpop.f32.mrf.mxu0
        %v4349 = vadd.f32 %v4156, %v4348
        %v4350 = vpop.f32.mrf.mxu0
        %v4351 = vadd.f32 %v4158, %v4350
        %4352 = vmatprep.mubr.bf16.mxu0 0
        %4353 = vmatmul.mubr.bf16.gmra.mxu0 %v3299
        %v4354 = vpop.f32.mrf.mxu0
        %v4355 = vadd.f32 %v4162, %v4354
        %v4356 = vpop.f32.mrf.mxu0
        %v4357 = vadd.f32 %v4164, %v4356
        %v4358 = vpop.f32.mrf.mxu0
        %v4359 = vadd.f32 %v4166, %v4358
        %v4360 = vpop.f32.mrf.mxu0
        %v4361 = vadd.f32 %v4168, %v4360
        %4362 = vmatprep.mubr.bf16.mxu0 0
        %4363 = vmatmul.mubr.bf16.gmra.mxu0 %v3302
        %v4364 = vpop.f32.mrf.mxu0
        %v4365 = vadd.f32 %v4172, %v4364
        %v4366 = vpop.f32.mrf.mxu0
        %v4367 = vadd.f32 %v4174, %v4366
        %v4368 = vpop.f32.mrf.mxu0
        %v4369 = vadd.f32 %v4176, %v4368
        %v4370 = vpop.f32.mrf.mxu0
        %v4371 = vadd.f32 %v4178, %v4370
        %4372 = vmatprep.mubr.bf16.mxu0 0
        %4373 = vmatmul.mubr.bf16.gmra.mxu0 %v3305
        %v4374 = vpop.f32.mrf.mxu0
        %v4375 = vadd.f32 %v4182, %v4374
        %v4376 = vpop.f32.mrf.mxu0
        %v4377 = vadd.f32 %v4184, %v4376
        %v4378 = vpop.f32.mrf.mxu0
        %v4379 = vadd.f32 %v4186, %v4378
        %v4380 = vpop.f32.mrf.mxu0
        %v4381 = vadd.f32 %v4188, %v4380
        %4382 = vmatprep.mubr.bf16.mxu0 0
        %4383 = vmatmul.mubr.bf16.gmra.mxu0 %v3308
        %v4384 = vpop.f32.mrf.mxu0
        %v4385 = vadd.f32 %v4192, %v4384
        %v4386 = vpop.f32.mrf.mxu0
        %v4387 = vadd.f32 %v4194, %v4386
        %v4388 = vpop.f32.mrf.mxu0
        %v4389 = vadd.f32 %v4196, %v4388
        %v4390 = vpop.f32.mrf.mxu0
        %v4391 = vadd.f32 %v4198, %v4390
        %4392 = vmatprep.mubr.bf16.mxu0 0
        %4393 = vmatmul.mubr.bf16.gmra.mxu0 %v3311
        %v4394 = vpop.f32.mrf.mxu0
        %v4395 = vadd.f32 %v4202, %v4394
        %v4396 = vpop.f32.mrf.mxu0
        %v4397 = vadd.f32 %v4204, %v4396
        %v4398 = vpop.f32.mrf.mxu0
        %v4399 = vadd.f32 %v4206, %v4398
        %v4400 = vpop.f32.mrf.mxu0
        %v4401 = vadd.f32 %v4208, %v4400
        %4402 = vmatprep.mubr.bf16.mxu0 0
        %4403 = vmatmul.mubr.bf16.gmra.mxu0 %v3314
        %v4404 = vpop.f32.mrf.mxu0
        %v4405 = vadd.f32 %v4212, %v4404
        %v4406 = vpop.f32.mrf.mxu0
        %v4407 = vadd.f32 %v4214, %v4406
        %v4408 = vpop.f32.mrf.mxu0
        %v4409 = vadd.f32 %v4216, %v4408
        %v4410 = vpop.f32.mrf.mxu0
        %v4411 = vadd.f32 %v4218, %v4410
        %4412 = vmatprep.mubr.bf16.mxu0 0
        %4413 = vmatmul.mubr.bf16.gmra.mxu0 %v3317
        %v4414 = vpop.f32.mrf.mxu0
        %v4415 = vadd.f32 %v4222, %v4414
        %v4416 = vpop.f32.mrf.mxu0
        %v4417 = vadd.f32 %v4224, %v4416
        %v4418 = vpop.f32.mrf.mxu0
        %v4419 = vadd.f32 %v4226, %v4418
        %v4420 = vpop.f32.mrf.mxu0
        %v4421 = vadd.f32 %v4228, %v4420
        %4422 = vmatprep.mubr.bf16.mxu0 0
        %4423 = vmatmul.mubr.bf16.gmra.mxu0 %v3320
        %v4424 = vpop.f32.mrf.mxu0
        %v4425 = vadd.f32 %v4232, %v4424
        %v4426 = vpop.f32.mrf.mxu0
        %v4427 = vadd.f32 %v4234, %v4426
        %v4428 = vpop.f32.mrf.mxu0
        %v4429 = vadd.f32 %v4236, %v4428
        %v4430 = vpop.f32.mrf.mxu0
        %v4431 = vadd.f32 %v4238, %v4430
        %4432 = vmatprep.mubr.bf16.mxu0 0
        %4433 = vmatmul.mubr.bf16.gmra.mxu0 %v3323
        %v4434 = vpop.f32.mrf.mxu0
        %v4435 = vadd.f32 %v4242, %v4434
        %v4436 = vpop.f32.mrf.mxu0
        %v4437 = vadd.f32 %v4244, %v4436
        %v4438 = vpop.f32.mrf.mxu0
        %v4439 = vadd.f32 %v4246, %v4438
        %v4440 = vpop.f32.mrf.mxu0
        %v4441 = vadd.f32 %v4248, %v4440
        %4442 = vmatprep.mubr.bf16.mxu0 0
        %4443 = vmatmul.mubr.bf16.gmra.mxu0 %v3326
        %v4444 = vpop.f32.mrf.mxu0
        %v4445 = vadd.f32 %v4252, %v4444
        %v4446 = vpop.f32.mrf.mxu0
        %v4447 = vadd.f32 %v4254, %v4446
        %v4448 = vpop.f32.mrf.mxu0
        %v4449 = vadd.f32 %v4256, %v4448
        %v4450 = vpop.f32.mrf.mxu0
        %v4451 = vadd.f32 %v4258, %v4450
        %4452 = vmatprep.mubr.bf16.mxu0 0
        %4453 = vmatmul.mubr.bf16.gmra.mxu0 %v3329
        %v4454 = vpop.f32.mrf.mxu0
        %v4455 = vadd.f32 %v4262, %v4454
        %v4456 = vpop.f32.mrf.mxu0
        %v4457 = vadd.f32 %v4264, %v4456
        %v4458 = vpop.f32.mrf.mxu0
        %v4459 = vadd.f32 %v4266, %v4458
        %v4460 = vpop.f32.mrf.mxu0
        %v4461 = vadd.f32 %v4268, %v4460
        %4462 = vmatprep.mubr.bf16.mxu0 0
        %4463 = vmatmul.mubr.bf16.gmra.mxu0 %v3332
        %v4464 = vpop.f32.mrf.mxu0
        %v4465 = vadd.f32 %v4272, %v4464
        %v4466 = vpop.f32.mrf.mxu0
        %v4467 = vadd.f32 %v4274, %v4466
        %v4468 = vpop.f32.mrf.mxu0
        %v4469 = vadd.f32 %v4276, %v4468
        %v4470 = vpop.f32.mrf.mxu0
        %v4471 = vadd.f32 %v4278, %v4470
        %4472 = vmatprep.mubr.bf16.mxu0 0
        %4473 = vmatmul.mubr.bf16.gmra.mxu0 %v3335
        %v4474 = vpop.f32.mrf.mxu0
        %v4475 = vadd.f32 %v4282, %v4474
        %v4476 = vpop.f32.mrf.mxu0
        %v4477 = vadd.f32 %v4284, %v4476
        %v4478 = vpop.f32.mrf.mxu0
        %v4479 = vadd.f32 %v4286, %v4478
        %v4480 = vpop.f32.mrf.mxu0
        %v4481 = vadd.f32 %v4288, %v4480
        %4482 = vmatprep.mubr.bf16.mxu0 0
        %4483 = vmatmul.mubr.bf16.gmra.mxu0 %v3338
        %v4484 = vpop.f32.mrf.mxu0
        %v4485 = vadd.f32 %v4292, %v4484
        %v4486 = vpop.f32.mrf.mxu0
        %v4487 = vadd.f32 %v4294, %v4486
        %v4488 = vpop.f32.mrf.mxu0
        %v4489 = vadd.f32 %v4296, %v4488
        %v4490 = vpop.f32.mrf.mxu0
        %v4491 = vadd.f32 %v4298, %v4490
        %4492 = vdwg.mxu0
        %4493 = vmatprep.subr.bf16.mxu0 %v3864
        %4494 = vmatpush1.bf16.msra.mxu0 %v3863
        %4495 = vmatprep.subr.bf16.mxu0 %v3858
        %4496 = vmatpush1.bf16.msra.mxu0 %v3857
        %4497 = vmatprep.subr.bf16.mxu0 %v3852
        %4498 = vmatpush1.bf16.msra.mxu0 %v3851
        %4499 = vmatprep.subr.bf16.mxu0 %v3846
        %4500 = vmatpush1.bf16.msra.mxu0 %v3845
        %4501 = vmatprep.subr.bf16.mxu0 %v3840
        %4502 = vmatpush1.bf16.msra.mxu0 %v3839
        %4503 = vmatprep.subr.bf16.mxu0 %v3834
        %4504 = vmatpush1.bf16.msra.mxu0 %v3833
        %4505 = vmatprep.subr.bf16.mxu0 %v3828
        %4506 = vmatpush1.bf16.msra.mxu0 %v3827
        %4507 = vmatprep.subr.bf16.mxu0 %v3822
        %4508 = vmatpush1.bf16.msra.mxu0 %v3821
        %4509 = vmatprep.subr.bf16.mxu0 %v3912
        %4510 = vmatpush2.bf16.msra.mxu0 %v3911
        %4511 = vmatprep.subr.bf16.mxu0 %v3906
        %4512 = vmatpush2.bf16.msra.mxu0 %v3905
        %4513 = vmatprep.subr.bf16.mxu0 %v3900
        %4514 = vmatpush2.bf16.msra.mxu0 %v3899
        %4515 = vmatprep.subr.bf16.mxu0 %v3894
        %4516 = vmatpush2.bf16.msra.mxu0 %v3893
        %4517 = vmatprep.subr.bf16.mxu0 %v3888
        %4518 = vmatpush2.bf16.msra.mxu0 %v3887
        %4519 = vmatprep.subr.bf16.mxu0 %v3882
        %4520 = vmatpush2.bf16.msra.mxu0 %v3881
        %4521 = vmatprep.subr.bf16.mxu0 %v3876
        %4522 = vmatpush2.bf16.msra.mxu0 %v3875
        %4523 = vmatprep.subr.bf16.mxu0 %v3870
        %4524 = vmatpush2.bf16.msra.mxu0 %v3869
        %4525 = vmatprep.mubr.bf16.mxu0 %v3292
        %4526 = vmatmul.mubr.bf16.gmra.mxu0 %v3291
        %v4527 = vpop.f32.mrf.mxu0
        %v4528 = vadd.f32 %v2587, %v4527
        %v4529 = vpop.f32.mrf.mxu0
        %v4530 = vadd.f32 %v2589, %v4529
        %v4531 = vpop.f32.mrf.mxu0
        %v4532 = vadd.f32 %v2591, %v4531
        %v4533 = vpop.f32.mrf.mxu0
        %v4534 = vadd.f32 %v2593, %v4533
        %4535 = vmatprep.mubr.bf16.mxu0 %v3295
        %4536 = vmatmul.mubr.bf16.gmra.mxu0 %v3294
        %v4537 = vpop.f32.mrf.mxu0
        %v4538 = vadd.f32 %v2597, %v4537
        %v4539 = vpop.f32.mrf.mxu0
        %v4540 = vadd.f32 %v2599, %v4539
        %v4541 = vpop.f32.mrf.mxu0
        %v4542 = vadd.f32 %v2601, %v4541
        %v4543 = vpop.f32.mrf.mxu0
        %v4544 = vadd.f32 %v2603, %v4543
        %4545 = vmatprep.mubr.bf16.mxu0 %v3298
        %4546 = vmatmul.mubr.bf16.gmra.mxu0 %v3297
        %v4547 = vpop.f32.mrf.mxu0
        %v4548 = vadd.f32 %v2607, %v4547
        %v4549 = vpop.f32.mrf.mxu0
        %v4550 = vadd.f32 %v2609, %v4549
        %v4551 = vpop.f32.mrf.mxu0
        %v4552 = vadd.f32 %v2611, %v4551
        %v4553 = vpop.f32.mrf.mxu0
        %v4554 = vadd.f32 %v2613, %v4553
        %4555 = vmatprep.mubr.bf16.mxu0 %v3301
        %4556 = vmatmul.mubr.bf16.gmra.mxu0 %v3300
        %v4557 = vpop.f32.mrf.mxu0
        %v4558 = vadd.f32 %v2617, %v4557
        %v4559 = vpop.f32.mrf.mxu0
        %v4560 = vadd.f32 %v2619, %v4559
        %v4561 = vpop.f32.mrf.mxu0
        %v4562 = vadd.f32 %v2621, %v4561
        %v4563 = vpop.f32.mrf.mxu0
        %v4564 = vadd.f32 %v2623, %v4563
        %4565 = vmatprep.mubr.bf16.mxu0 %v3304
        %4566 = vmatmul.mubr.bf16.gmra.mxu0 %v3303
        %v4567 = vpop.f32.mrf.mxu0
        %v4568 = vadd.f32 %v2627, %v4567
        %v4569 = vpop.f32.mrf.mxu0
        %v4570 = vadd.f32 %v2629, %v4569
        %v4571 = vpop.f32.mrf.mxu0
        %v4572 = vadd.f32 %v2631, %v4571
        %v4573 = vpop.f32.mrf.mxu0
        %v4574 = vadd.f32 %v2633, %v4573
        %4575 = vmatprep.mubr.bf16.mxu0 %v3307
        %4576 = vmatmul.mubr.bf16.gmra.mxu0 %v3306
        %v4577 = vpop.f32.mrf.mxu0
        %v4578 = vadd.f32 %v2637, %v4577
        %v4579 = vpop.f32.mrf.mxu0
        %v4580 = vadd.f32 %v2639, %v4579
        %v4581 = vpop.f32.mrf.mxu0
        %v4582 = vadd.f32 %v2641, %v4581
        %v4583 = vpop.f32.mrf.mxu0
        %v4584 = vadd.f32 %v2643, %v4583
        %4585 = vmatprep.mubr.bf16.mxu0 %v3310
        %4586 = vmatmul.mubr.bf16.gmra.mxu0 %v3309
        %v4587 = vpop.f32.mrf.mxu0
        %v4588 = vadd.f32 %v2647, %v4587
        %v4589 = vpop.f32.mrf.mxu0
        %v4590 = vadd.f32 %v2649, %v4589
        %v4591 = vpop.f32.mrf.mxu0
        %v4592 = vadd.f32 %v2651, %v4591
        %v4593 = vpop.f32.mrf.mxu0
        %v4594 = vadd.f32 %v2653, %v4593
        %4595 = vmatprep.mubr.bf16.mxu0 %v3313
        %4596 = vmatmul.mubr.bf16.gmra.mxu0 %v3312
        %v4597 = vpop.f32.mrf.mxu0
        %v4598 = vadd.f32 %v2657, %v4597
        %v4599 = vpop.f32.mrf.mxu0
        %v4600 = vadd.f32 %v2659, %v4599
        %v4601 = vpop.f32.mrf.mxu0
        %v4602 = vadd.f32 %v2661, %v4601
        %v4603 = vpop.f32.mrf.mxu0
        %v4604 = vadd.f32 %v2663, %v4603
        %4605 = vmatprep.mubr.bf16.mxu0 %v3316
        %4606 = vmatmul.mubr.bf16.gmra.mxu0 %v3315
        %v4607 = vpop.f32.mrf.mxu0
        %v4608 = vadd.f32 %v2667, %v4607
        %v4609 = vpop.f32.mrf.mxu0
        %v4610 = vadd.f32 %v2669, %v4609
        %v4611 = vpop.f32.mrf.mxu0
        %v4612 = vadd.f32 %v2671, %v4611
        %v4613 = vpop.f32.mrf.mxu0
        %v4614 = vadd.f32 %v2673, %v4613
        %4615 = vmatprep.mubr.bf16.mxu0 %v3319
        %4616 = vmatmul.mubr.bf16.gmra.mxu0 %v3318
        %v4617 = vpop.f32.mrf.mxu0
        %v4618 = vadd.f32 %v2677, %v4617
        %v4619 = vpop.f32.mrf.mxu0
        %v4620 = vadd.f32 %v2679, %v4619
        %v4621 = vpop.f32.mrf.mxu0
        %v4622 = vadd.f32 %v2681, %v4621
        %v4623 = vpop.f32.mrf.mxu0
        %v4624 = vadd.f32 %v2683, %v4623
        %4625 = vmatprep.mubr.bf16.mxu0 %v3322
        %4626 = vmatmul.mubr.bf16.gmra.mxu0 %v3321
        %v4627 = vpop.f32.mrf.mxu0
        %v4628 = vadd.f32 %v2687, %v4627
        %v4629 = vpop.f32.mrf.mxu0
        %v4630 = vadd.f32 %v2689, %v4629
        %v4631 = vpop.f32.mrf.mxu0
        %v4632 = vadd.f32 %v2691, %v4631
        %v4633 = vpop.f32.mrf.mxu0
        %v4634 = vadd.f32 %v2693, %v4633
        %4635 = vmatprep.mubr.bf16.mxu0 %v3325
        %4636 = vmatmul.mubr.bf16.gmra.mxu0 %v3324
        %v4637 = vpop.f32.mrf.mxu0
        %v4638 = vadd.f32 %v2697, %v4637
        %v4639 = vpop.f32.mrf.mxu0
        %v4640 = vadd.f32 %v2699, %v4639
        %v4641 = vpop.f32.mrf.mxu0
        %v4642 = vadd.f32 %v2701, %v4641
        %v4643 = vpop.f32.mrf.mxu0
        %v4644 = vadd.f32 %v2703, %v4643
        %4645 = vmatprep.mubr.bf16.mxu0 %v3328
        %4646 = vmatmul.mubr.bf16.gmra.mxu0 %v3327
        %v4647 = vpop.f32.mrf.mxu0
        %v4648 = vadd.f32 %v2707, %v4647
        %v4649 = vpop.f32.mrf.mxu0
        %v4650 = vadd.f32 %v2709, %v4649
        %v4651 = vpop.f32.mrf.mxu0
        %v4652 = vadd.f32 %v2711, %v4651
        %v4653 = vpop.f32.mrf.mxu0
        %v4654 = vadd.f32 %v2713, %v4653
        %4655 = vmatprep.mubr.bf16.mxu0 %v3331
        %4656 = vmatmul.mubr.bf16.gmra.mxu0 %v3330
        %v4657 = vpop.f32.mrf.mxu0
        %v4658 = vadd.f32 %v2717, %v4657
        %v4659 = vpop.f32.mrf.mxu0
        %v4660 = vadd.f32 %v2719, %v4659
        %v4661 = vpop.f32.mrf.mxu0
        %v4662 = vadd.f32 %v2721, %v4661
        %v4663 = vpop.f32.mrf.mxu0
        %v4664 = vadd.f32 %v2723, %v4663
        %4665 = vmatprep.mubr.bf16.mxu0 %v3334
        %4666 = vmatmul.mubr.bf16.gmra.mxu0 %v3333
        %v4667 = vpop.f32.mrf.mxu0
        %v4668 = vadd.f32 %v2727, %v4667
        %v4669 = vpop.f32.mrf.mxu0
        %v4670 = vadd.f32 %v2729, %v4669
        %v4671 = vpop.f32.mrf.mxu0
        %v4672 = vadd.f32 %v2731, %v4671
        %v4673 = vpop.f32.mrf.mxu0
        %v4674 = vadd.f32 %v2733, %v4673
        %4675 = vmatprep.mubr.bf16.mxu0 %v3337
        %4676 = vmatmul.mubr.bf16.gmra.mxu0 %v3336
        %v4677 = vpop.f32.mrf.mxu0
        %v4678 = vadd.f32 %v2737, %v4677
        %v4679 = vpop.f32.mrf.mxu0
        %v4680 = vadd.f32 %v2739, %v4679
        %v4681 = vpop.f32.mrf.mxu0
        %v4682 = vadd.f32 %v2741, %v4681
        %v4683 = vpop.f32.mrf.mxu0
        %v4684 = vadd.f32 %v2743, %v4683
        %4685 = vdwg.mxu0
        %4686 = vmatprep.subr.bf16.mxu0 %v3960
        %4687 = vmatpush1.bf16.msra.mxu0 %v3959
        %4688 = vmatprep.subr.bf16.mxu0 %v3954
        %4689 = vmatpush1.bf16.msra.mxu0 %v3953
        %4690 = vmatprep.subr.bf16.mxu0 %v3948
        %4691 = vmatpush1.bf16.msra.mxu0 %v3947
        %4692 = vmatprep.subr.bf16.mxu0 %v3942
        %4693 = vmatpush1.bf16.msra.mxu0 %v3941
        %4694 = vmatprep.subr.bf16.mxu0 %v3936
        %4695 = vmatpush1.bf16.msra.mxu0 %v3935
        %4696 = vmatprep.subr.bf16.mxu0 %v3930
        %4697 = vmatpush1.bf16.msra.mxu0 %v3929
        %4698 = vmatprep.subr.bf16.mxu0 %v3924
        %4699 = vmatpush1.bf16.msra.mxu0 %v3923
        %4700 = vmatprep.subr.bf16.mxu0 %v3918
        %4701 = vmatpush1.bf16.msra.mxu0 %v3917
        %4702 = vmatprep.subr.bf16.mxu0 0
        %4703 = vmatpush2.bf16.msra.mxu0 0
        %4704 = vmatprep.subr.bf16.mxu0 0
        %4705 = vmatpush2.bf16.msra.mxu0 0
        %4706 = vmatprep.subr.bf16.mxu0 0
        %4707 = vmatpush2.bf16.msra.mxu0 0
        %4708 = vmatprep.subr.bf16.mxu0 0
        %4709 = vmatpush2.bf16.msra.mxu0 0
        %4710 = vmatprep.subr.bf16.mxu0 0
        %4711 = vmatpush2.bf16.msra.mxu0 0
        %4712 = vmatprep.subr.bf16.mxu0 0
        %4713 = vmatpush2.bf16.msra.mxu0 0
        %4714 = vmatprep.subr.bf16.mxu0 0
        %4715 = vmatpush2.bf16.msra.mxu0 0
        %4716 = vmatprep.subr.bf16.mxu0 0
        %4717 = vmatpush2.bf16.msra.mxu0 0
        %4718 = vmatprep.mubr.bf16.mxu0 0
        %4719 = vmatmul.mubr.bf16.gmra.mxu0 %v3293
        %v4720 = vpop.f32.mrf.mxu0
        %v4721 = vadd.f32 %v4528, %v4720
        %v4722 = vpop.f32.mrf.mxu0
        %v4723 = vadd.f32 %v4530, %v4722
        %v4724 = vpop.f32.mrf.mxu0
        %v4725 = vadd.f32 %v4532, %v4724
        %v4726 = vpop.f32.mrf.mxu0
        %v4727 = vadd.f32 %v4534, %v4726
        %4728 = vmatprep.mubr.bf16.mxu0 0
        %4729 = vmatmul.mubr.bf16.gmra.mxu0 %v3296
        %v4730 = vpop.f32.mrf.mxu0
        %v4731 = vadd.f32 %v4538, %v4730
        %v4732 = vpop.f32.mrf.mxu0
        %v4733 = vadd.f32 %v4540, %v4732
        %v4734 = vpop.f32.mrf.mxu0
        %v4735 = vadd.f32 %v4542, %v4734
        %v4736 = vpop.f32.mrf.mxu0
        %v4737 = vadd.f32 %v4544, %v4736
        %4738 = vmatprep.mubr.bf16.mxu0 0
        %4739 = vmatmul.mubr.bf16.gmra.mxu0 %v3299
        %v4740 = vpop.f32.mrf.mxu0
        %v4741 = vadd.f32 %v4548, %v4740
        %v4742 = vpop.f32.mrf.mxu0
        %v4743 = vadd.f32 %v4550, %v4742
        %v4744 = vpop.f32.mrf.mxu0
        %v4745 = vadd.f32 %v4552, %v4744
        %v4746 = vpop.f32.mrf.mxu0
        %v4747 = vadd.f32 %v4554, %v4746
        %4748 = vmatprep.mubr.bf16.mxu0 0
        %4749 = vmatmul.mubr.bf16.gmra.mxu0 %v3302
        %v4750 = vpop.f32.mrf.mxu0
        %v4751 = vadd.f32 %v4558, %v4750
        %v4752 = vpop.f32.mrf.mxu0
        %v4753 = vadd.f32 %v4560, %v4752
        %v4754 = vpop.f32.mrf.mxu0
        %v4755 = vadd.f32 %v4562, %v4754
        %v4756 = vpop.f32.mrf.mxu0
        %v4757 = vadd.f32 %v4564, %v4756
        %4758 = vmatprep.mubr.bf16.mxu0 0
        %4759 = vmatmul.mubr.bf16.gmra.mxu0 %v3305
        %v4760 = vpop.f32.mrf.mxu0
        %v4761 = vadd.f32 %v4568, %v4760
        %v4762 = vpop.f32.mrf.mxu0
        %v4763 = vadd.f32 %v4570, %v4762
        %v4764 = vpop.f32.mrf.mxu0
        %v4765 = vadd.f32 %v4572, %v4764
        %v4766 = vpop.f32.mrf.mxu0
        %v4767 = vadd.f32 %v4574, %v4766
        %4768 = vmatprep.mubr.bf16.mxu0 0
        %4769 = vmatmul.mubr.bf16.gmra.mxu0 %v3308
        %v4770 = vpop.f32.mrf.mxu0
        %v4771 = vadd.f32 %v4578, %v4770
        %v4772 = vpop.f32.mrf.mxu0
        %v4773 = vadd.f32 %v4580, %v4772
        %v4774 = vpop.f32.mrf.mxu0
        %v4775 = vadd.f32 %v4582, %v4774
        %v4776 = vpop.f32.mrf.mxu0
        %v4777 = vadd.f32 %v4584, %v4776
        %4778 = vmatprep.mubr.bf16.mxu0 0
        %4779 = vmatmul.mubr.bf16.gmra.mxu0 %v3311
        %v4780 = vpop.f32.mrf.mxu0
        %v4781 = vadd.f32 %v4588, %v4780
        %v4782 = vpop.f32.mrf.mxu0
        %v4783 = vadd.f32 %v4590, %v4782
        %v4784 = vpop.f32.mrf.mxu0
        %v4785 = vadd.f32 %v4592, %v4784
        %v4786 = vpop.f32.mrf.mxu0
        %v4787 = vadd.f32 %v4594, %v4786
        %4788 = vmatprep.mubr.bf16.mxu0 0
        %4789 = vmatmul.mubr.bf16.gmra.mxu0 %v3314
        %v4790 = vpop.f32.mrf.mxu0
        %v4791 = vadd.f32 %v4598, %v4790
        %v4792 = vpop.f32.mrf.mxu0
        %v4793 = vadd.f32 %v4600, %v4792
        %v4794 = vpop.f32.mrf.mxu0
        %v4795 = vadd.f32 %v4602, %v4794
        %v4796 = vpop.f32.mrf.mxu0
        %v4797 = vadd.f32 %v4604, %v4796
        %4798 = vmatprep.mubr.bf16.mxu0 0
        %4799 = vmatmul.mubr.bf16.gmra.mxu0 %v3317
        %v4800 = vpop.f32.mrf.mxu0
        %v4801 = vadd.f32 %v4608, %v4800
        %v4802 = vpop.f32.mrf.mxu0
        %v4803 = vadd.f32 %v4610, %v4802
        %v4804 = vpop.f32.mrf.mxu0
        %v4805 = vadd.f32 %v4612, %v4804
        %v4806 = vpop.f32.mrf.mxu0
        %v4807 = vadd.f32 %v4614, %v4806
        %4808 = vmatprep.mubr.bf16.mxu0 0
        %4809 = vmatmul.mubr.bf16.gmra.mxu0 %v3320
        %v4810 = vpop.f32.mrf.mxu0
        %v4811 = vadd.f32 %v4618, %v4810
        %v4812 = vpop.f32.mrf.mxu0
        %v4813 = vadd.f32 %v4620, %v4812
        %v4814 = vpop.f32.mrf.mxu0
        %v4815 = vadd.f32 %v4622, %v4814
        %v4816 = vpop.f32.mrf.mxu0
        %v4817 = vadd.f32 %v4624, %v4816
        %4818 = vmatprep.mubr.bf16.mxu0 0
        %4819 = vmatmul.mubr.bf16.gmra.mxu0 %v3323
        %v4820 = vpop.f32.mrf.mxu0
        %v4821 = vadd.f32 %v4628, %v4820
        %v4822 = vpop.f32.mrf.mxu0
        %v4823 = vadd.f32 %v4630, %v4822
        %v4824 = vpop.f32.mrf.mxu0
        %v4825 = vadd.f32 %v4632, %v4824
        %v4826 = vpop.f32.mrf.mxu0
        %v4827 = vadd.f32 %v4634, %v4826
        %4828 = vmatprep.mubr.bf16.mxu0 0
        %4829 = vmatmul.mubr.bf16.gmra.mxu0 %v3326
        %v4830 = vpop.f32.mrf.mxu0
        %v4831 = vadd.f32 %v4638, %v4830
        %v4832 = vpop.f32.mrf.mxu0
        %v4833 = vadd.f32 %v4640, %v4832
        %v4834 = vpop.f32.mrf.mxu0
        %v4835 = vadd.f32 %v4642, %v4834
        %v4836 = vpop.f32.mrf.mxu0
        %v4837 = vadd.f32 %v4644, %v4836
        %4838 = vmatprep.mubr.bf16.mxu0 0
        %4839 = vmatmul.mubr.bf16.gmra.mxu0 %v3329
        %v4840 = vpop.f32.mrf.mxu0
        %v4841 = vadd.f32 %v4648, %v4840
        %v4842 = vpop.f32.mrf.mxu0
        %v4843 = vadd.f32 %v4650, %v4842
        %v4844 = vpop.f32.mrf.mxu0
        %v4845 = vadd.f32 %v4652, %v4844
        %v4846 = vpop.f32.mrf.mxu0
        %v4847 = vadd.f32 %v4654, %v4846
        %4848 = vmatprep.mubr.bf16.mxu0 0
        %4849 = vmatmul.mubr.bf16.gmra.mxu0 %v3332
        %v4850 = vpop.f32.mrf.mxu0
        %v4851 = vadd.f32 %v4658, %v4850
        %v4852 = vpop.f32.mrf.mxu0
        %v4853 = vadd.f32 %v4660, %v4852
        %v4854 = vpop.f32.mrf.mxu0
        %v4855 = vadd.f32 %v4662, %v4854
        %v4856 = vpop.f32.mrf.mxu0
        %v4857 = vadd.f32 %v4664, %v4856
        %4858 = vmatprep.mubr.bf16.mxu0 0
        %4859 = vmatmul.mubr.bf16.gmra.mxu0 %v3335
        %v4860 = vpop.f32.mrf.mxu0
        %v4861 = vadd.f32 %v4668, %v4860
        %v4862 = vpop.f32.mrf.mxu0
        %v4863 = vadd.f32 %v4670, %v4862
        %v4864 = vpop.f32.mrf.mxu0
        %v4865 = vadd.f32 %v4672, %v4864
        %v4866 = vpop.f32.mrf.mxu0
        %v4867 = vadd.f32 %v4674, %v4866
        %4868 = vmatprep.mubr.bf16.mxu0 0
        %4869 = vmatmul.mubr.bf16.gmra.mxu0 %v3338
        %v4870 = vpop.f32.mrf.mxu0
        %v4871 = vadd.f32 %v4678, %v4870
        %v4872 = vpop.f32.mrf.mxu0
        %v4873 = vadd.f32 %v4680, %v4872
        %v4874 = vpop.f32.mrf.mxu0
        %v4875 = vadd.f32 %v4682, %v4874
        %v4876 = vpop.f32.mrf.mxu0
        %v4877 = vadd.f32 %v4684, %v4876
        %4878 = vdwg.mxu0
        %4879 = vmatprep.subr.bf16.mxu0 %v3866
        %4880 = vmatpush1.bf16.msra.mxu0 %v3865
        %4881 = vmatprep.subr.bf16.mxu0 %v3860
        %4882 = vmatpush1.bf16.msra.mxu0 %v3859
        %4883 = vmatprep.subr.bf16.mxu0 %v3854
        %4884 = vmatpush1.bf16.msra.mxu0 %v3853
        %4885 = vmatprep.subr.bf16.mxu0 %v3848
        %4886 = vmatpush1.bf16.msra.mxu0 %v3847
        %4887 = vmatprep.subr.bf16.mxu0 %v3842
        %4888 = vmatpush1.bf16.msra.mxu0 %v3841
        %4889 = vmatprep.subr.bf16.mxu0 %v3836
        %4890 = vmatpush1.bf16.msra.mxu0 %v3835
        %4891 = vmatprep.subr.bf16.mxu0 %v3830
        %4892 = vmatpush1.bf16.msra.mxu0 %v3829
        %4893 = vmatprep.subr.bf16.mxu0 %v3824
        %4894 = vmatpush1.bf16.msra.mxu0 %v3823
        %4895 = vmatprep.subr.bf16.mxu0 %v3914
        %4896 = vmatpush2.bf16.msra.mxu0 %v3913
        %4897 = vmatprep.subr.bf16.mxu0 %v3908
        %4898 = vmatpush2.bf16.msra.mxu0 %v3907
        %4899 = vmatprep.subr.bf16.mxu0 %v3902
        %4900 = vmatpush2.bf16.msra.mxu0 %v3901
        %4901 = vmatprep.subr.bf16.mxu0 %v3896
        %4902 = vmatpush2.bf16.msra.mxu0 %v3895
        %4903 = vmatprep.subr.bf16.mxu0 %v3890
        %4904 = vmatpush2.bf16.msra.mxu0 %v3889
        %4905 = vmatprep.subr.bf16.mxu0 %v3884
        %4906 = vmatpush2.bf16.msra.mxu0 %v3883
        %4907 = vmatprep.subr.bf16.mxu0 %v3878
        %4908 = vmatpush2.bf16.msra.mxu0 %v3877
        %4909 = vmatprep.subr.bf16.mxu0 %v3872
        %4910 = vmatpush2.bf16.msra.mxu0 %v3871
        %4911 = vmatprep.mubr.bf16.mxu0 %v3292
        %4912 = vmatmul.mubr.bf16.gmra.mxu0 %v3291
        %v4913 = vpop.f32.mrf.mxu0
        %v4914 = vadd.f32 %v2973, %v4913
        %v4915 = vpop.f32.mrf.mxu0
        %v4916 = vadd.f32 %v2975, %v4915
        %v4917 = vpop.f32.mrf.mxu0
        %v4918 = vadd.f32 %v2977, %v4917
        %v4919 = vpop.f32.mrf.mxu0
        %v4920 = vadd.f32 %v2979, %v4919
        %4921 = vmatprep.mubr.bf16.mxu0 %v3295
        %4922 = vmatmul.mubr.bf16.gmra.mxu0 %v3294
        %v4923 = vpop.f32.mrf.mxu0
        %v4924 = vadd.f32 %v2983, %v4923
        %v4925 = vpop.f32.mrf.mxu0
        %v4926 = vadd.f32 %v2985, %v4925
        %v4927 = vpop.f32.mrf.mxu0
        %v4928 = vadd.f32 %v2987, %v4927
        %v4929 = vpop.f32.mrf.mxu0
        %v4930 = vadd.f32 %v2989, %v4929
        %4931 = vmatprep.mubr.bf16.mxu0 %v3298
        %4932 = vmatmul.mubr.bf16.gmra.mxu0 %v3297
        %v4933 = vpop.f32.mrf.mxu0
        %v4934 = vadd.f32 %v2993, %v4933
        %v4935 = vpop.f32.mrf.mxu0
        %v4936 = vadd.f32 %v2995, %v4935
        %v4937 = vpop.f32.mrf.mxu0
        %v4938 = vadd.f32 %v2997, %v4937
        %v4939 = vpop.f32.mrf.mxu0
        %v4940 = vadd.f32 %v2999, %v4939
        %4941 = vmatprep.mubr.bf16.mxu0 %v3301
        %4942 = vmatmul.mubr.bf16.gmra.mxu0 %v3300
        %v4943 = vpop.f32.mrf.mxu0
        %v4944 = vadd.f32 %v3003, %v4943
        %v4945 = vpop.f32.mrf.mxu0
        %v4946 = vadd.f32 %v3005, %v4945
        %v4947 = vpop.f32.mrf.mxu0
        %v4948 = vadd.f32 %v3007, %v4947
        %v4949 = vpop.f32.mrf.mxu0
        %v4950 = vadd.f32 %v3009, %v4949
        %4951 = vmatprep.mubr.bf16.mxu0 %v3304
        %4952 = vmatmul.mubr.bf16.gmra.mxu0 %v3303
        %v4953 = vpop.f32.mrf.mxu0
        %v4954 = vadd.f32 %v3013, %v4953
        %v4955 = vpop.f32.mrf.mxu0
        %v4956 = vadd.f32 %v3015, %v4955
        %v4957 = vpop.f32.mrf.mxu0
        %v4958 = vadd.f32 %v3017, %v4957
        %v4959 = vpop.f32.mrf.mxu0
        %v4960 = vadd.f32 %v3019, %v4959
        %4961 = vmatprep.mubr.bf16.mxu0 %v3307
        %4962 = vmatmul.mubr.bf16.gmra.mxu0 %v3306
        %v4963 = vpop.f32.mrf.mxu0
        %v4964 = vadd.f32 %v3023, %v4963
        %v4965 = vpop.f32.mrf.mxu0
        %v4966 = vadd.f32 %v3025, %v4965
        %v4967 = vpop.f32.mrf.mxu0
        %v4968 = vadd.f32 %v3027, %v4967
        %v4969 = vpop.f32.mrf.mxu0
        %v4970 = vadd.f32 %v3029, %v4969
        %4971 = vmatprep.mubr.bf16.mxu0 %v3310
        %4972 = vmatmul.mubr.bf16.gmra.mxu0 %v3309
        %v4973 = vpop.f32.mrf.mxu0
        %v4974 = vadd.f32 %v3033, %v4973
        %v4975 = vpop.f32.mrf.mxu0
        %v4976 = vadd.f32 %v3035, %v4975
        %v4977 = vpop.f32.mrf.mxu0
        %v4978 = vadd.f32 %v3037, %v4977
        %v4979 = vpop.f32.mrf.mxu0
        %v4980 = vadd.f32 %v3039, %v4979
        %4981 = vmatprep.mubr.bf16.mxu0 %v3313
        %4982 = vmatmul.mubr.bf16.gmra.mxu0 %v3312
        %v4983 = vpop.f32.mrf.mxu0
        %v4984 = vadd.f32 %v3043, %v4983
        %v4985 = vpop.f32.mrf.mxu0
        %v4986 = vadd.f32 %v3045, %v4985
        %v4987 = vpop.f32.mrf.mxu0
        %v4988 = vadd.f32 %v3047, %v4987
        %v4989 = vpop.f32.mrf.mxu0
        %v4990 = vadd.f32 %v3049, %v4989
        %4991 = vmatprep.mubr.bf16.mxu0 %v3316
        %4992 = vmatmul.mubr.bf16.gmra.mxu0 %v3315
        %v4993 = vpop.f32.mrf.mxu0
        %v4994 = vadd.f32 %v3053, %v4993
        %v4995 = vpop.f32.mrf.mxu0
        %v4996 = vadd.f32 %v3055, %v4995
        %v4997 = vpop.f32.mrf.mxu0
        %v4998 = vadd.f32 %v3057, %v4997
        %v4999 = vpop.f32.mrf.mxu0
        %v5000 = vadd.f32 %v3059, %v4999
        %5001 = vmatprep.mubr.bf16.mxu0 %v3319
        %5002 = vmatmul.mubr.bf16.gmra.mxu0 %v3318
        %v5003 = vpop.f32.mrf.mxu0
        %v5004 = vadd.f32 %v3063, %v5003
        %v5005 = vpop.f32.mrf.mxu0
        %v5006 = vadd.f32 %v3065, %v5005
        %v5007 = vpop.f32.mrf.mxu0
        %v5008 = vadd.f32 %v3067, %v5007
        %v5009 = vpop.f32.mrf.mxu0
        %v5010 = vadd.f32 %v3069, %v5009
        %5011 = vmatprep.mubr.bf16.mxu0 %v3322
        %5012 = vmatmul.mubr.bf16.gmra.mxu0 %v3321
        %v5013 = vpop.f32.mrf.mxu0
        %v5014 = vadd.f32 %v3073, %v5013
        %v5015 = vpop.f32.mrf.mxu0
        %v5016 = vadd.f32 %v3075, %v5015
        %v5017 = vpop.f32.mrf.mxu0
        %v5018 = vadd.f32 %v3077, %v5017
        %v5019 = vpop.f32.mrf.mxu0
        %v5020 = vadd.f32 %v3079, %v5019
        %5021 = vmatprep.mubr.bf16.mxu0 %v3325
        %5022 = vmatmul.mubr.bf16.gmra.mxu0 %v3324
        %v5023 = vpop.f32.mrf.mxu0
        %v5024 = vadd.f32 %v3083, %v5023
        %v5025 = vpop.f32.mrf.mxu0
        %v5026 = vadd.f32 %v3085, %v5025
        %v5027 = vpop.f32.mrf.mxu0
        %v5028 = vadd.f32 %v3087, %v5027
        %v5029 = vpop.f32.mrf.mxu0
        %v5030 = vadd.f32 %v3089, %v5029
        %5031 = vmatprep.mubr.bf16.mxu0 %v3328
        %5032 = vmatmul.mubr.bf16.gmra.mxu0 %v3327
        %v5033 = vpop.f32.mrf.mxu0
        %v5034 = vadd.f32 %v3093, %v5033
        %v5035 = vpop.f32.mrf.mxu0
        %v5036 = vadd.f32 %v3095, %v5035
        %v5037 = vpop.f32.mrf.mxu0
        %v5038 = vadd.f32 %v3097, %v5037
        %v5039 = vpop.f32.mrf.mxu0
        %v5040 = vadd.f32 %v3099, %v5039
        %5041 = vmatprep.mubr.bf16.mxu0 %v3331
        %5042 = vmatmul.mubr.bf16.gmra.mxu0 %v3330
        %v5043 = vpop.f32.mrf.mxu0
        %v5044 = vadd.f32 %v3103, %v5043
        %v5045 = vpop.f32.mrf.mxu0
        %v5046 = vadd.f32 %v3105, %v5045
        %v5047 = vpop.f32.mrf.mxu0
        %v5048 = vadd.f32 %v3107, %v5047
        %v5049 = vpop.f32.mrf.mxu0
        %v5050 = vadd.f32 %v3109, %v5049
        %5051 = vmatprep.mubr.bf16.mxu0 %v3334
        %5052 = vmatmul.mubr.bf16.gmra.mxu0 %v3333
        %v5053 = vpop.f32.mrf.mxu0
        %v5054 = vadd.f32 %v3113, %v5053
        %v5055 = vpop.f32.mrf.mxu0
        %v5056 = vadd.f32 %v3115, %v5055
        %v5057 = vpop.f32.mrf.mxu0
        %v5058 = vadd.f32 %v3117, %v5057
        %v5059 = vpop.f32.mrf.mxu0
        %v5060 = vadd.f32 %v3119, %v5059
        %5061 = vmatprep.mubr.bf16.mxu0 %v3337
        %5062 = vmatmul.mubr.bf16.gmra.mxu0 %v3336
        %v5063 = vpop.f32.mrf.mxu0
        %v5064 = vadd.f32 %v3123, %v5063
        %v5065 = vpop.f32.mrf.mxu0
        %v5066 = vadd.f32 %v3125, %v5065
        %v5067 = vpop.f32.mrf.mxu0
        %v5068 = vadd.f32 %v3127, %v5067
        %v5069 = vpop.f32.mrf.mxu0
        %v5070 = vadd.f32 %v3129, %v5069
        %5071 = vdwg.mxu0
        %5072 = vmatprep.subr.bf16.mxu0 %v3962
        %5073 = vmatpush1.bf16.msra.mxu0 %v3961
        %5074 = vmatprep.subr.bf16.mxu0 %v3956
        %5075 = vmatpush1.bf16.msra.mxu0 %v3955
        %5076 = vmatprep.subr.bf16.mxu0 %v3950
        %5077 = vmatpush1.bf16.msra.mxu0 %v3949
        %5078 = vmatprep.subr.bf16.mxu0 %v3944
        %5079 = vmatpush1.bf16.msra.mxu0 %v3943
        %5080 = vmatprep.subr.bf16.mxu0 %v3938
        %5081 = vmatpush1.bf16.msra.mxu0 %v3937
        %5082 = vmatprep.subr.bf16.mxu0 %v3932
        %5083 = vmatpush1.bf16.msra.mxu0 %v3931
        %5084 = vmatprep.subr.bf16.mxu0 %v3926
        %5085 = vmatpush1.bf16.msra.mxu0 %v3925
        %5086 = vmatprep.subr.bf16.mxu0 %v3920
        %5087 = vmatpush1.bf16.msra.mxu0 %v3919
        %5088 = vmatprep.subr.bf16.mxu0 0
        %5089 = vmatpush2.bf16.msra.mxu0 0
        %5090 = vmatprep.subr.bf16.mxu0 0
        %5091 = vmatpush2.bf16.msra.mxu0 0
        %5092 = vmatprep.subr.bf16.mxu0 0
        %5093 = vmatpush2.bf16.msra.mxu0 0
        %5094 = vmatprep.subr.bf16.mxu0 0
        %5095 = vmatpush2.bf16.msra.mxu0 0
        %5096 = vmatprep.subr.bf16.mxu0 0
        %5097 = vmatpush2.bf16.msra.mxu0 0
        %5098 = vmatprep.subr.bf16.mxu0 0
        %5099 = vmatpush2.bf16.msra.mxu0 0
        %5100 = vmatprep.subr.bf16.mxu0 0
        %5101 = vmatpush2.bf16.msra.mxu0 0
        %5102 = vmatprep.subr.bf16.mxu0 0
        %5103 = vmatpush2.bf16.msra.mxu0 0
        %5104 = vmatprep.mubr.bf16.mxu0 0
        %5105 = vmatmul.mubr.bf16.gmra.mxu0 %v3293
        %v5106 = vpop.f32.mrf.mxu0
        %v5107 = vadd.f32 %v4914, %v5106
        %v5108 = vpop.f32.mrf.mxu0
        %v5109 = vadd.f32 %v4916, %v5108
        %v5110 = vpop.f32.mrf.mxu0
        %v5111 = vadd.f32 %v4918, %v5110
        %v5112 = vpop.f32.mrf.mxu0
        %v5113 = vadd.f32 %v4920, %v5112
        %5114 = vmatprep.mubr.bf16.mxu0 0
        %5115 = vmatmul.mubr.bf16.gmra.mxu0 %v3296
        %v5116 = vpop.f32.mrf.mxu0
        %v5117 = vadd.f32 %v4924, %v5116
        %v5118 = vpop.f32.mrf.mxu0
        %v5119 = vadd.f32 %v4926, %v5118
        %v5120 = vpop.f32.mrf.mxu0
        %v5121 = vadd.f32 %v4928, %v5120
        %v5122 = vpop.f32.mrf.mxu0
        %v5123 = vadd.f32 %v4930, %v5122
        %5124 = vmatprep.mubr.bf16.mxu0 0
        %5125 = vmatmul.mubr.bf16.gmra.mxu0 %v3299
        %v5126 = vpop.f32.mrf.mxu0
        %v5127 = vadd.f32 %v4934, %v5126
        %v5128 = vpop.f32.mrf.mxu0
        %v5129 = vadd.f32 %v4936, %v5128
        %v5130 = vpop.f32.mrf.mxu0
        %v5131 = vadd.f32 %v4938, %v5130
        %v5132 = vpop.f32.mrf.mxu0
        %v5133 = vadd.f32 %v4940, %v5132
        %5134 = vmatprep.mubr.bf16.mxu0 0
        %5135 = vmatmul.mubr.bf16.gmra.mxu0 %v3302
        %v5136 = vpop.f32.mrf.mxu0
        %v5137 = vadd.f32 %v4944, %v5136
        %v5138 = vpop.f32.mrf.mxu0
        %v5139 = vadd.f32 %v4946, %v5138
        %v5140 = vpop.f32.mrf.mxu0
        %v5141 = vadd.f32 %v4948, %v5140
        %v5142 = vpop.f32.mrf.mxu0
        %v5143 = vadd.f32 %v4950, %v5142
        %5144 = vmatprep.mubr.bf16.mxu0 0
        %5145 = vmatmul.mubr.bf16.gmra.mxu0 %v3305
        %v5146 = vpop.f32.mrf.mxu0
        %v5147 = vadd.f32 %v4954, %v5146
        %v5148 = vpop.f32.mrf.mxu0
        %v5149 = vadd.f32 %v4956, %v5148
        %v5150 = vpop.f32.mrf.mxu0
        %v5151 = vadd.f32 %v4958, %v5150
        %v5152 = vpop.f32.mrf.mxu0
        %v5153 = vadd.f32 %v4960, %v5152
        %5154 = vmatprep.mubr.bf16.mxu0 0
        %5155 = vmatmul.mubr.bf16.gmra.mxu0 %v3308
        %v5156 = vpop.f32.mrf.mxu0
        %v5157 = vadd.f32 %v4964, %v5156
        %v5158 = vpop.f32.mrf.mxu0
        %v5159 = vadd.f32 %v4966, %v5158
        %v5160 = vpop.f32.mrf.mxu0
        %v5161 = vadd.f32 %v4968, %v5160
        %v5162 = vpop.f32.mrf.mxu0
        %v5163 = vadd.f32 %v4970, %v5162
        %5164 = vmatprep.mubr.bf16.mxu0 0
        %5165 = vmatmul.mubr.bf16.gmra.mxu0 %v3311
        %v5166 = vpop.f32.mrf.mxu0
        %v5167 = vadd.f32 %v4974, %v5166
        %v5168 = vpop.f32.mrf.mxu0
        %v5169 = vadd.f32 %v4976, %v5168
        %v5170 = vpop.f32.mrf.mxu0
        %v5171 = vadd.f32 %v4978, %v5170
        %v5172 = vpop.f32.mrf.mxu0
        %v5173 = vadd.f32 %v4980, %v5172
        %5174 = vmatprep.mubr.bf16.mxu0 0
        %5175 = vmatmul.mubr.bf16.gmra.mxu0 %v3314
        %v5176 = vpop.f32.mrf.mxu0
        %v5177 = vadd.f32 %v4984, %v5176
        %v5178 = vpop.f32.mrf.mxu0
        %v5179 = vadd.f32 %v4986, %v5178
        %v5180 = vpop.f32.mrf.mxu0
        %v5181 = vadd.f32 %v4988, %v5180
        %v5182 = vpop.f32.mrf.mxu0
        %v5183 = vadd.f32 %v4990, %v5182
        %5184 = vmatprep.mubr.bf16.mxu0 0
        %5185 = vmatmul.mubr.bf16.gmra.mxu0 %v3317
        %v5186 = vpop.f32.mrf.mxu0
        %v5187 = vadd.f32 %v4994, %v5186
        %v5188 = vpop.f32.mrf.mxu0
        %v5189 = vadd.f32 %v4996, %v5188
        %v5190 = vpop.f32.mrf.mxu0
        %v5191 = vadd.f32 %v4998, %v5190
        %v5192 = vpop.f32.mrf.mxu0
        %v5193 = vadd.f32 %v5000, %v5192
        %5194 = vmatprep.mubr.bf16.mxu0 0
        %5195 = vmatmul.mubr.bf16.gmra.mxu0 %v3320
        %v5196 = vpop.f32.mrf.mxu0
        %v5197 = vadd.f32 %v5004, %v5196
        %v5198 = vpop.f32.mrf.mxu0
        %v5199 = vadd.f32 %v5006, %v5198
        %v5200 = vpop.f32.mrf.mxu0
        %v5201 = vadd.f32 %v5008, %v5200
        %v5202 = vpop.f32.mrf.mxu0
        %v5203 = vadd.f32 %v5010, %v5202
        %5204 = vmatprep.mubr.bf16.mxu0 0
        %5205 = vmatmul.mubr.bf16.gmra.mxu0 %v3323
        %v5206 = vpop.f32.mrf.mxu0
        %v5207 = vadd.f32 %v5014, %v5206
        %v5208 = vpop.f32.mrf.mxu0
        %v5209 = vadd.f32 %v5016, %v5208
        %v5210 = vpop.f32.mrf.mxu0
        %v5211 = vadd.f32 %v5018, %v5210
        %v5212 = vpop.f32.mrf.mxu0
        %v5213 = vadd.f32 %v5020, %v5212
        %5214 = vmatprep.mubr.bf16.mxu0 0
        %5215 = vmatmul.mubr.bf16.gmra.mxu0 %v3326
        %v5216 = vpop.f32.mrf.mxu0
        %v5217 = vadd.f32 %v5024, %v5216
        %v5218 = vpop.f32.mrf.mxu0
        %v5219 = vadd.f32 %v5026, %v5218
        %v5220 = vpop.f32.mrf.mxu0
        %v5221 = vadd.f32 %v5028, %v5220
        %v5222 = vpop.f32.mrf.mxu0
        %v5223 = vadd.f32 %v5030, %v5222
        %5224 = vmatprep.mubr.bf16.mxu0 0
        %5225 = vmatmul.mubr.bf16.gmra.mxu0 %v3329
        %v5226 = vpop.f32.mrf.mxu0
        %v5227 = vadd.f32 %v5034, %v5226
        %v5228 = vpop.f32.mrf.mxu0
        %v5229 = vadd.f32 %v5036, %v5228
        %v5230 = vpop.f32.mrf.mxu0
        %v5231 = vadd.f32 %v5038, %v5230
        %v5232 = vpop.f32.mrf.mxu0
        %v5233 = vadd.f32 %v5040, %v5232
        %5234 = vmatprep.mubr.bf16.mxu0 0
        %5235 = vmatmul.mubr.bf16.gmra.mxu0 %v3332
        %v5236 = vpop.f32.mrf.mxu0
        %v5237 = vadd.f32 %v5044, %v5236
        %v5238 = vpop.f32.mrf.mxu0
        %v5239 = vadd.f32 %v5046, %v5238
        %v5240 = vpop.f32.mrf.mxu0
        %v5241 = vadd.f32 %v5048, %v5240
        %v5242 = vpop.f32.mrf.mxu0
        %v5243 = vadd.f32 %v5050, %v5242
        %5244 = vmatprep.mubr.bf16.mxu0 0
        %5245 = vmatmul.mubr.bf16.gmra.mxu0 %v3335
        %v5246 = vpop.f32.mrf.mxu0
        %v5247 = vadd.f32 %v5054, %v5246
        %v5248 = vpop.f32.mrf.mxu0
        %v5249 = vadd.f32 %v5056, %v5248
        %v5250 = vpop.f32.mrf.mxu0
        %v5251 = vadd.f32 %v5058, %v5250
        %v5252 = vpop.f32.mrf.mxu0
        %v5253 = vadd.f32 %v5060, %v5252
        %5254 = vmatprep.mubr.bf16.mxu0 0
        %5255 = vmatmul.mubr.bf16.gmra.mxu0 %v3338
        %v5256 = vpop.f32.mrf.mxu0
        %v5257 = vadd.f32 %v5064, %v5256
        %v5258 = vpop.f32.mrf.mxu0
        %v5259 = vadd.f32 %v5066, %v5258
        %v5260 = vpop.f32.mrf.mxu0
        %v5261 = vadd.f32 %v5068, %v5260
        %v5262 = vpop.f32.mrf.mxu0
        %v5263 = vadd.f32 %v5070, %v5262
        %5264 = vdwg.mxu0
        %v5265 = vld [vmem:[%s474] sm:$0xff]
        %v5266 = vld [vmem:[%s474 + $0x8] sm:$0xf]
        %v5267 = vld [vmem:[%s474 + $0xc] sm:$0xff]
        %v5268 = vld [vmem:[%s474 + $0x14] sm:$0xf]
        %v5269 = vld [vmem:[%s474 + $0x18] sm:$0xff]
        %v5270 = vld [vmem:[%s474 + $0x20] sm:$0xf]
        %v5271 = vld [vmem:[%s474 + $0x24] sm:$0xff]
        %v5272 = vld [vmem:[%s474 + $0x2c] sm:$0xf]
        %v5273 = vld [vmem:[%s474 + $0x30] sm:$0xff]
        %v5274 = vld [vmem:[%s474 + $0x38] sm:$0xf]
        %v5275 = vld [vmem:[%s474 + $0x3c] sm:$0xff]
        %v5276 = vld [vmem:[%s474 + $0x44] sm:$0xf]
        %v5277 = vld [vmem:[%s474 + $0x48] sm:$0xff]
        %v5278 = vld [vmem:[%s474 + $0x50] sm:$0xf]
        %v5279 = vld [vmem:[%s474 + $0x54] sm:$0xff]
        %v5280 = vld [vmem:[%s474 + $0x5c] sm:$0xf]
        %v5281 = vld [vmem:[%s474 + $0x60] sm:$0xff]
        %v5282 = vld [vmem:[%s474 + $0x68] sm:$0xf]
        %v5283 = vld [vmem:[%s474 + $0x6c] sm:$0xff]
        %v5284 = vld [vmem:[%s474 + $0x74] sm:$0xf]
        %v5285 = vld [vmem:[%s474 + $0x78] sm:$0xff]
        %v5286 = vld [vmem:[%s474 + $0x80] sm:$0xf]
        %v5287 = vld [vmem:[%s474 + $0x84] sm:$0xff]
        %v5288 = vld [vmem:[%s474 + $0x8c] sm:$0xf]
        %v5289 = vld [vmem:[%s474 + $0x90] sm:$0xff]
        %v5290 = vld [vmem:[%s474 + $0x98] sm:$0xf]
        %v5291 = vld [vmem:[%s474 + $0x9c] sm:$0xff]
        %v5292 = vld [vmem:[%s474 + $0xa4] sm:$0xf]
        %v5293 = vld [vmem:[%s474 + $0xa8] sm:$0xff]
        %v5294 = vld [vmem:[%s474 + $0xb0] sm:$0xf]
        %v5295 = vld [vmem:[%s474 + $0xb4] sm:$0xff]
        %v5296 = vld [vmem:[%s474 + $0xbc] sm:$0xf]
        %v5297 = vld [vmem:[%s474 + $0xc0] sm:$0xff]
        %v5298 = vld [vmem:[%s474 + $0xc8] sm:$0xf]
        %v5299 = vld [vmem:[%s474 + $0xcc] sm:$0xff]
        %v5300 = vld [vmem:[%s474 + $0xd4] sm:$0xf]
        %v5301 = vld [vmem:[%s474 + $0xd8] sm:$0xff]
        %v5302 = vld [vmem:[%s474 + $0xe0] sm:$0xf]
        %v5303 = vld [vmem:[%s474 + $0xe4] sm:$0xff]
        %v5304 = vld [vmem:[%s474 + $0xec] sm:$0xf]
        %v5305 = vld [vmem:[%s474 + $0xf0] sm:$0xff]
        %v5306 = vld [vmem:[%s474 + $0xf8] sm:$0xf]
        %v5307 = vld [vmem:[%s474 + $0xfc] sm:$0xff]
        %v5308 = vld [vmem:[%s474 + $0x104] sm:$0xf]
        %v5309 = vld [vmem:[%s474 + $0x108] sm:$0xff]
        %v5310 = vld [vmem:[%s474 + $0x110] sm:$0xf]
        %v5311 = vld [vmem:[%s474 + $0x114] sm:$0xff]
        %v5312 = vld [vmem:[%s474 + $0x11c] sm:$0xf]
        %v5313 = vld [vmem:[%s474 + $0x120] sm:$0xff]
        %v5314 = vld [vmem:[%s474 + $0x128] sm:$0xf]
        %v5315 = vld [vmem:[%s474 + $0x12c] sm:$0xff]
        %v5316 = vld [vmem:[%s474 + $0x134] sm:$0xf]
        %v5317 = vld [vmem:[%s474 + $0x138] sm:$0xff]
        %v5318 = vld [vmem:[%s474 + $0x140] sm:$0xf]
        %v5319 = vld [vmem:[%s474 + $0x144] sm:$0xff]
        %v5320 = vld [vmem:[%s474 + $0x14c] sm:$0xf]
        %v5321 = vld [vmem:[%s474 + $0x150] sm:$0xff]
        %v5322 = vld [vmem:[%s474 + $0x158] sm:$0xf]
        %v5323 = vld [vmem:[%s474 + $0x15c] sm:$0xff]
        %v5324 = vld [vmem:[%s474 + $0x164] sm:$0xf]
        %v5325 = vld [vmem:[%s474 + $0x168] sm:$0xff]
        %v5326 = vld [vmem:[%s474 + $0x170] sm:$0xf]
        %v5327 = vld [vmem:[%s474 + $0x174] sm:$0xff]
        %v5328 = vld [vmem:[%s474 + $0x17c] sm:$0xf]
        %v5329 = vld [vmem:[%s492 + $0x900] sm:$0xff]
        %v5330 = vld [vmem:[%s492 + $0x908] sm:$0xff]
        %v5331 = vld [vmem:[%s492 + $0x910] sm:$0xff]
        %v5332 = vld [vmem:[%s492 + $0x918] sm:$0xff]
        %v5333 = vld [vmem:[%s492 + $0x920] sm:$0xff]
        %v5334 = vld [vmem:[%s492 + $0x928] sm:$0xff]
        %v5335 = vld [vmem:[%s492 + $0x930] sm:$0xff]
        %v5336 = vld [vmem:[%s492 + $0x938] sm:$0xff]
        %v5337 = vld [vmem:[%s492 + $0x940] sm:$0xff]
        %v5338 = vld [vmem:[%s492 + $0x948] sm:$0xff]
        %v5339 = vld [vmem:[%s492 + $0x950] sm:$0xff]
        %v5340 = vld [vmem:[%s492 + $0x958] sm:$0xff]
        %v5341 = vld [vmem:[%s492 + $0x960] sm:$0xff]
        %v5342 = vld [vmem:[%s492 + $0x968] sm:$0xff]
        %v5343 = vld [vmem:[%s492 + $0x970] sm:$0xff]
        %v5344 = vld [vmem:[%s492 + $0x978] sm:$0xff]
        %v5345 = vld [vmem:[%s492 + $0x980] sm:$0xff]
        %v5346 = vld [vmem:[%s492 + $0x988] sm:$0xff]
        %v5347 = vld [vmem:[%s492 + $0x990] sm:$0xff]
        %v5348 = vld [vmem:[%s492 + $0x998] sm:$0xff]
        %v5349 = vld [vmem:[%s492 + $0x9a0] sm:$0xff]
        %v5350 = vld [vmem:[%s492 + $0x9a8] sm:$0xff]
        %v5351 = vld [vmem:[%s492 + $0x9b0] sm:$0xff]
        %v5352 = vld [vmem:[%s492 + $0x9b8] sm:$0xff]
        %v5353 = vld [vmem:[%s492 + $0x9c0] sm:$0xff]
        %v5354 = vld [vmem:[%s492 + $0x9c8] sm:$0xff]
        %v5355 = vld [vmem:[%s492 + $0x9d0] sm:$0xff]
        %v5356 = vld [vmem:[%s492 + $0x9d8] sm:$0xff]
        %v5357 = vld [vmem:[%s492 + $0x9e0] sm:$0xff]
        %v5358 = vld [vmem:[%s492 + $0x9e8] sm:$0xff]
        %v5359 = vld [vmem:[%s492 + $0x9f0] sm:$0xff]
        %v5360 = vld [vmem:[%s492 + $0x9f8] sm:$0xff]
        %v5361 = vld [vmem:[%s492 + $0xa00] sm:$0xff]
        %v5362 = vld [vmem:[%s492 + $0xa08] sm:$0xff]
        %v5363 = vld [vmem:[%s492 + $0xa10] sm:$0xff]
        %v5364 = vld [vmem:[%s492 + $0xa18] sm:$0xff]
        %v5365 = vld [vmem:[%s492 + $0xa20] sm:$0xff]
        %v5366 = vld [vmem:[%s492 + $0xa28] sm:$0xff]
        %v5367 = vld [vmem:[%s492 + $0xa30] sm:$0xff]
        %v5368 = vld [vmem:[%s492 + $0xa38] sm:$0xff]
        %v5369 = vld [vmem:[%s492 + $0xa40] sm:$0xff]
        %v5370 = vld [vmem:[%s492 + $0xa48] sm:$0xff]
        %v5371 = vld [vmem:[%s492 + $0xa50] sm:$0xff]
        %v5372 = vld [vmem:[%s492 + $0xa58] sm:$0xff]
        %v5373 = vld [vmem:[%s492 + $0xa60] sm:$0xff]
        %v5374 = vld [vmem:[%s492 + $0xa68] sm:$0xff]
        %v5375 = vld [vmem:[%s492 + $0xa70] sm:$0xff]
        %v5376 = vld [vmem:[%s492 + $0xa78] sm:$0xff]
        %v5377 = vld [vmem:[%s492 + $0xa80] sm:$0xff]
        %v5378 = vld [vmem:[%s492 + $0xa88] sm:$0xff]
        %v5379 = vld [vmem:[%s492 + $0xa90] sm:$0xff]
        %v5380 = vld [vmem:[%s492 + $0xa98] sm:$0xff]
        %v5381 = vld [vmem:[%s492 + $0xaa0] sm:$0xff]
        %v5382 = vld [vmem:[%s492 + $0xaa8] sm:$0xff]
        %v5383 = vld [vmem:[%s492 + $0xab0] sm:$0xff]
        %v5384 = vld [vmem:[%s492 + $0xab8] sm:$0xff]
        %v5385 = vld [vmem:[%s492 + $0xac0] sm:$0xff]
        %v5386 = vld [vmem:[%s492 + $0xac8] sm:$0xff]
        %v5387 = vld [vmem:[%s492 + $0xad0] sm:$0xff]
        %v5388 = vld [vmem:[%s492 + $0xad8] sm:$0xff]
        %v5389 = vld [vmem:[%s492 + $0xae0] sm:$0xff]
        %v5390 = vld [vmem:[%s492 + $0xae8] sm:$0xff]
        %v5391 = vld [vmem:[%s492 + $0xaf0] sm:$0xff]
        %v5392 = vld [vmem:[%s492 + $0xaf8] sm:$0xff]
        %v5393 = vld [vmem:[%s492 + $0xb00] sm:$0xff]
        %v5394 = vld [vmem:[%s492 + $0xb08] sm:$0xff]
        %v5395 = vld [vmem:[%s492 + $0xb10] sm:$0xff]
        %v5396 = vld [vmem:[%s492 + $0xb18] sm:$0xff]
        %v5397 = vld [vmem:[%s492 + $0xb20] sm:$0xff]
        %v5398 = vld [vmem:[%s492 + $0xb28] sm:$0xff]
        %v5399 = vld [vmem:[%s492 + $0xb30] sm:$0xff]
        %v5400 = vld [vmem:[%s492 + $0xb38] sm:$0xff]
        %v5401 = vld [vmem:[%s492 + $0xb40] sm:$0xff]
        %v5402 = vld [vmem:[%s492 + $0xb48] sm:$0xff]
        %v5403 = vld [vmem:[%s492 + $0xb50] sm:$0xff]
        %v5404 = vld [vmem:[%s492 + $0xb58] sm:$0xff]
        %v5405 = vld [vmem:[%s492 + $0xb60] sm:$0xff]
        %v5406 = vld [vmem:[%s492 + $0xb68] sm:$0xff]
        %v5407 = vld [vmem:[%s492 + $0xb70] sm:$0xff]
        %v5408 = vld [vmem:[%s492 + $0xb78] sm:$0xff]
        %v5409 = vld [vmem:[%s492 + $0xb80] sm:$0xff]
        %v5410 = vld [vmem:[%s492 + $0xb88] sm:$0xff]
        %v5411 = vld [vmem:[%s492 + $0xb90] sm:$0xff]
        %v5412 = vld [vmem:[%s492 + $0xb98] sm:$0xff]
        %v5413 = vld [vmem:[%s492 + $0xba0] sm:$0xff]
        %v5414 = vld [vmem:[%s492 + $0xba8] sm:$0xff]
        %v5415 = vld [vmem:[%s492 + $0xbb0] sm:$0xff]
        %v5416 = vld [vmem:[%s492 + $0xbb8] sm:$0xff]
        %v5417 = vld [vmem:[%s492 + $0xbc0] sm:$0xff]
        %v5418 = vld [vmem:[%s492 + $0xbc8] sm:$0xff]
        %v5419 = vld [vmem:[%s492 + $0xbd0] sm:$0xff]
        %v5420 = vld [vmem:[%s492 + $0xbd8] sm:$0xff]
        %v5421 = vld [vmem:[%s492 + $0xbe0] sm:$0xff]
        %v5422 = vld [vmem:[%s492 + $0xbe8] sm:$0xff]
        %v5423 = vld [vmem:[%s492 + $0xbf0] sm:$0xff]
        %v5424 = vld [vmem:[%s492 + $0xbf8] sm:$0xff]
        %v5425 = vld [vmem:[%s492 + $0xc00] sm:$0xff]
        %v5426 = vld [vmem:[%s492 + $0xc08] sm:$0xff]
        %v5427 = vld [vmem:[%s492 + $0xc10] sm:$0xff]
        %v5428 = vld [vmem:[%s492 + $0xc18] sm:$0xff]
        %v5429 = vld [vmem:[%s492 + $0xc20] sm:$0xff]
        %v5430 = vld [vmem:[%s492 + $0xc28] sm:$0xff]
        %v5431 = vld [vmem:[%s492 + $0xc30] sm:$0xff]
        %v5432 = vld [vmem:[%s492 + $0xc38] sm:$0xff]
        %v5433 = vld [vmem:[%s492 + $0xc40] sm:$0xff]
        %v5434 = vld [vmem:[%s492 + $0xc48] sm:$0xff]
        %v5435 = vld [vmem:[%s492 + $0xc50] sm:$0xff]
        %v5436 = vld [vmem:[%s492 + $0xc58] sm:$0xff]
        %v5437 = vld [vmem:[%s492 + $0xc60] sm:$0xff]
        %v5438 = vld [vmem:[%s492 + $0xc68] sm:$0xff]
        %v5439 = vld [vmem:[%s492 + $0xc70] sm:$0xff]
        %v5440 = vld [vmem:[%s492 + $0xc78] sm:$0xff]
        %v5441 = vld [vmem:[%s492 + $0xc80] sm:$0xff]
        %v5442 = vld [vmem:[%s492 + $0xc88] sm:$0xff]
        %v5443 = vld [vmem:[%s492 + $0xc90] sm:$0xff]
        %v5444 = vld [vmem:[%s492 + $0xc98] sm:$0xff]
        %v5445 = vld [vmem:[%s492 + $0xca0] sm:$0xff]
        %v5446 = vld [vmem:[%s492 + $0xca8] sm:$0xff]
        %v5447 = vld [vmem:[%s492 + $0xcb0] sm:$0xff]
        %v5448 = vld [vmem:[%s492 + $0xcb8] sm:$0xff]
        %v5449 = vld [vmem:[%s492 + $0xcc0] sm:$0xff]
        %v5450 = vld [vmem:[%s492 + $0xcc8] sm:$0xff]
        %v5451 = vld [vmem:[%s492 + $0xcd0] sm:$0xff]
        %v5452 = vld [vmem:[%s492 + $0xcd8] sm:$0xff]
        %v5453 = vld [vmem:[%s492 + $0xce0] sm:$0xff]
        %v5454 = vld [vmem:[%s492 + $0xce8] sm:$0xff]
        %v5455 = vld [vmem:[%s492 + $0xcf0] sm:$0xff]
        %v5456 = vld [vmem:[%s492 + $0xcf8] sm:$0xff]
        %v5457 = vld [vmem:[%s492 + $0xd00] sm:$0xff]
        %v5458 = vld [vmem:[%s492 + $0xd08] sm:$0xff]
        %v5459 = vld [vmem:[%s492 + $0xd10] sm:$0xff]
        %v5460 = vld [vmem:[%s492 + $0xd18] sm:$0xff]
        %v5461 = vld [vmem:[%s492 + $0xd20] sm:$0xff]
        %v5462 = vld [vmem:[%s492 + $0xd28] sm:$0xff]
        %v5463 = vld [vmem:[%s492 + $0xd30] sm:$0xff]
        %v5464 = vld [vmem:[%s492 + $0xd38] sm:$0xff]
        %v5465 = vld [vmem:[%s492 + $0xd40] sm:$0xff]
        %v5466 = vld [vmem:[%s492 + $0xd48] sm:$0xff]
        %v5467 = vld [vmem:[%s492 + $0xd50] sm:$0xff]
        %v5468 = vld [vmem:[%s492 + $0xd58] sm:$0xff]
        %v5469 = vld [vmem:[%s492 + $0xd60] sm:$0xff]
        %v5470 = vld [vmem:[%s492 + $0xd68] sm:$0xff]
        %v5471 = vld [vmem:[%s492 + $0xd70] sm:$0xff]
        %v5472 = vld [vmem:[%s492 + $0xd78] sm:$0xff]
        %v5537 = vunpack.c.l.b16 %v5265
        %v5538 = vunpack.c.h.b16 %v5265
        %v5539 = vunpack.c.l.b16 %v5266
        %v5540 = vunpack.c.l.b16 %v5267
        %v5541 = vunpack.c.h.b16 %v5267
        %v5542 = vunpack.c.l.b16 %v5268
        %v5543 = vunpack.c.l.b16 %v5269
        %v5544 = vunpack.c.h.b16 %v5269
        %v5545 = vunpack.c.l.b16 %v5270
        %v5546 = vunpack.c.l.b16 %v5271
        %v5547 = vunpack.c.h.b16 %v5271
        %v5548 = vunpack.c.l.b16 %v5272
        %v5549 = vunpack.c.l.b16 %v5273
        %v5550 = vunpack.c.h.b16 %v5273
        %v5551 = vunpack.c.l.b16 %v5274
        %v5552 = vunpack.c.l.b16 %v5275
        %v5553 = vunpack.c.h.b16 %v5275
        %v5554 = vunpack.c.l.b16 %v5276
        %v5555 = vunpack.c.l.b16 %v5277
        %v5556 = vunpack.c.h.b16 %v5277
        %v5557 = vunpack.c.l.b16 %v5278
        %v5558 = vunpack.c.l.b16 %v5279
        %v5559 = vunpack.c.h.b16 %v5279
        %v5560 = vunpack.c.l.b16 %v5280
        %v5561 = vunpack.c.l.b16 %v5281
        %v5562 = vunpack.c.h.b16 %v5281
        %v5563 = vunpack.c.l.b16 %v5282
        %v5564 = vunpack.c.l.b16 %v5283
        %v5565 = vunpack.c.h.b16 %v5283
        %v5566 = vunpack.c.l.b16 %v5284
        %v5567 = vunpack.c.l.b16 %v5285
        %v5568 = vunpack.c.h.b16 %v5285
        %v5569 = vunpack.c.l.b16 %v5286
        %v5570 = vunpack.c.l.b16 %v5287
        %v5571 = vunpack.c.h.b16 %v5287
        %v5572 = vunpack.c.l.b16 %v5288
        %v5573 = vunpack.c.l.b16 %v5289
        %v5574 = vunpack.c.h.b16 %v5289
        %v5575 = vunpack.c.l.b16 %v5290
        %v5576 = vunpack.c.l.b16 %v5291
        %v5577 = vunpack.c.h.b16 %v5291
        %v5578 = vunpack.c.l.b16 %v5292
        %v5579 = vunpack.c.l.b16 %v5293
        %v5580 = vunpack.c.h.b16 %v5293
        %v5581 = vunpack.c.l.b16 %v5294
        %v5582 = vunpack.c.l.b16 %v5295
        %v5583 = vunpack.c.h.b16 %v5295
        %v5584 = vunpack.c.l.b16 %v5296
        %v5585 = vunpack.c.l.b16 %v5297
        %v5586 = vunpack.c.h.b16 %v5297
        %v5587 = vunpack.c.l.b16 %v5298
        %v5588 = vunpack.c.l.b16 %v5299
        %v5589 = vunpack.c.h.b16 %v5299
        %v5590 = vunpack.c.l.b16 %v5300
        %v5591 = vunpack.c.l.b16 %v5301
        %v5592 = vunpack.c.h.b16 %v5301
        %v5593 = vunpack.c.l.b16 %v5302
        %v5594 = vunpack.c.l.b16 %v5303
        %v5595 = vunpack.c.h.b16 %v5303
        %v5596 = vunpack.c.l.b16 %v5304
        %v5597 = vunpack.c.l.b16 %v5305
        %v5598 = vunpack.c.h.b16 %v5305
        %v5599 = vunpack.c.l.b16 %v5306
        %v5600 = vunpack.c.l.b16 %v5307
        %v5601 = vunpack.c.h.b16 %v5307
        %v5602 = vunpack.c.l.b16 %v5308
        %v5603 = vunpack.c.l.b16 %v5309
        %v5604 = vunpack.c.h.b16 %v5309
        %v5605 = vunpack.c.l.b16 %v5310
        %v5606 = vunpack.c.l.b16 %v5311
        %v5607 = vunpack.c.h.b16 %v5311
        %v5608 = vunpack.c.l.b16 %v5312
        %v5609 = vunpack.c.l.b16 %v5313
        %v5610 = vunpack.c.h.b16 %v5313
        %v5611 = vunpack.c.l.b16 %v5314
        %v5612 = vunpack.c.l.b16 %v5315
        %v5613 = vunpack.c.h.b16 %v5315
        %v5614 = vunpack.c.l.b16 %v5316
        %v5615 = vunpack.c.l.b16 %v5317
        %v5616 = vunpack.c.h.b16 %v5317
        %v5617 = vunpack.c.l.b16 %v5318
        %v5618 = vunpack.c.l.b16 %v5319
        %v5619 = vunpack.c.h.b16 %v5319
        %v5620 = vunpack.c.l.b16 %v5320
        %v5621 = vunpack.c.l.b16 %v5321
        %v5622 = vunpack.c.h.b16 %v5321
        %v5623 = vunpack.c.l.b16 %v5322
        %v5624 = vunpack.c.l.b16 %v5323
        %v5625 = vunpack.c.h.b16 %v5323
        %v5626 = vunpack.c.l.b16 %v5324
        %v5627 = vunpack.c.l.b16 %v5325
        %v5628 = vunpack.c.h.b16 %v5325
        %v5629 = vunpack.c.l.b16 %v5326
        %v5630 = vunpack.c.l.b16 %v5327
        %v5631 = vunpack.c.h.b16 %v5327
        %v5632 = vunpack.c.l.b16 %v5328
        %v5633 = vpack.c.b16 %v5540, %v5537
        %v5634 = vpack.c.b16 %v5541, %v5538
        %v5635 = vpack.c.b16 %v5542, %v5539
        %v5636 = vpack.c.b16 %v5546, %v5543
        %v5637 = vpack.c.b16 %v5547, %v5544
        %v5638 = vpack.c.b16 %v5548, %v5545
        %v5639 = vpack.c.b16 %v5552, %v5549
        %v5640 = vpack.c.b16 %v5553, %v5550
        %v5641 = vpack.c.b16 %v5554, %v5551
        %v5642 = vpack.c.b16 %v5558, %v5555
        %v5643 = vpack.c.b16 %v5559, %v5556
        %v5644 = vpack.c.b16 %v5560, %v5557
        %v5645 = vpack.c.b16 %v5564, %v5561
        %v5646 = vpack.c.b16 %v5565, %v5562
        %v5647 = vpack.c.b16 %v5566, %v5563
        %v5648 = vpack.c.b16 %v5570, %v5567
        %v5649 = vpack.c.b16 %v5571, %v5568
        %v5650 = vpack.c.b16 %v5572, %v5569
        %v5651 = vpack.c.b16 %v5576, %v5573
        %v5652 = vpack.c.b16 %v5577, %v5574
        %v5653 = vpack.c.b16 %v5578, %v5575
        %v5654 = vpack.c.b16 %v5582, %v5579
        %v5655 = vpack.c.b16 %v5583, %v5580
        %v5656 = vpack.c.b16 %v5584, %v5581
        %v5657 = vpack.c.b16 %v5588, %v5585
        %v5658 = vpack.c.b16 %v5589, %v5586
        %v5659 = vpack.c.b16 %v5590, %v5587
        %v5660 = vpack.c.b16 %v5594, %v5591
        %v5661 = vpack.c.b16 %v5595, %v5592
        %v5662 = vpack.c.b16 %v5596, %v5593
        %v5663 = vpack.c.b16 %v5600, %v5597
        %v5664 = vpack.c.b16 %v5601, %v5598
        %v5665 = vpack.c.b16 %v5602, %v5599
        %v5666 = vpack.c.b16 %v5606, %v5603
        %v5667 = vpack.c.b16 %v5607, %v5604
        %v5668 = vpack.c.b16 %v5608, %v5605
        %v5669 = vpack.c.b16 %v5612, %v5609
        %v5670 = vpack.c.b16 %v5613, %v5610
        %v5671 = vpack.c.b16 %v5614, %v5611
        %v5672 = vpack.c.b16 %v5618, %v5615
        %v5673 = vpack.c.b16 %v5619, %v5616
        %v5674 = vpack.c.b16 %v5620, %v5617
        %v5675 = vpack.c.b16 %v5624, %v5621
        %v5676 = vpack.c.b16 %v5625, %v5622
        %v5677 = vpack.c.b16 %v5626, %v5623
        %v5678 = vpack.c.b16 %v5630, %v5627
        %v5679 = vpack.c.b16 %v5631, %v5628
        %v5680 = vpack.c.b16 %v5632, %v5629
        %v5873 = vunpack.c.l.b16 %v5329
        %v5874 = vunpack.c.h.b16 %v5329
        %v5875 = vunpack.c.l.b16 %v5330
        %v5876 = vunpack.c.h.b16 %v5330
        %v5877 = vunpack.c.l.b16 %v5331
        %v5878 = vunpack.c.h.b16 %v5331
        %v5879 = vunpack.c.l.b16 %v5332
        %v5880 = vunpack.c.h.b16 %v5332
        %v5881 = vunpack.c.l.b16 %v5333
        %v5882 = vunpack.c.h.b16 %v5333
        %v5883 = vunpack.c.l.b16 %v5334
        %v5884 = vunpack.c.h.b16 %v5334
        %v5885 = vunpack.c.l.b16 %v5335
        %v5886 = vunpack.c.h.b16 %v5335
        %v5887 = vunpack.c.l.b16 %v5336
        %v5888 = vunpack.c.h.b16 %v5336
        %v5889 = vunpack.c.l.b16 %v5337
        %v5890 = vunpack.c.h.b16 %v5337
        %v5891 = vunpack.c.l.b16 %v5338
        %v5892 = vunpack.c.h.b16 %v5338
        %v5893 = vunpack.c.l.b16 %v5339
        %v5894 = vunpack.c.h.b16 %v5339
        %v5895 = vunpack.c.l.b16 %v5340
        %v5896 = vunpack.c.h.b16 %v5340
        %v5897 = vunpack.c.l.b16 %v5341
        %v5898 = vunpack.c.h.b16 %v5341
        %v5899 = vunpack.c.l.b16 %v5342
        %v5900 = vunpack.c.h.b16 %v5342
        %v5901 = vunpack.c.l.b16 %v5343
        %v5902 = vunpack.c.h.b16 %v5343
        %v5903 = vunpack.c.l.b16 %v5344
        %v5904 = vunpack.c.h.b16 %v5344
        %v5905 = vunpack.c.l.b16 %v5345
        %v5906 = vunpack.c.h.b16 %v5345
        %v5907 = vunpack.c.l.b16 %v5346
        %v5908 = vunpack.c.h.b16 %v5346
        %v5909 = vunpack.c.l.b16 %v5347
        %v5910 = vunpack.c.h.b16 %v5347
        %v5911 = vunpack.c.l.b16 %v5348
        %v5912 = vunpack.c.h.b16 %v5348
        %v5913 = vunpack.c.l.b16 %v5349
        %v5914 = vunpack.c.h.b16 %v5349
        %v5915 = vunpack.c.l.b16 %v5350
        %v5916 = vunpack.c.h.b16 %v5350
        %v5917 = vunpack.c.l.b16 %v5351
        %v5918 = vunpack.c.h.b16 %v5351
        %v5919 = vunpack.c.l.b16 %v5352
        %v5920 = vunpack.c.h.b16 %v5352
        %v5921 = vunpack.c.l.b16 %v5353
        %v5922 = vunpack.c.h.b16 %v5353
        %v5923 = vunpack.c.l.b16 %v5354
        %v5924 = vunpack.c.h.b16 %v5354
        %v5925 = vunpack.c.l.b16 %v5355
        %v5926 = vunpack.c.h.b16 %v5355
        %v5927 = vunpack.c.l.b16 %v5356
        %v5928 = vunpack.c.h.b16 %v5356
        %v5929 = vunpack.c.l.b16 %v5357
        %v5930 = vunpack.c.h.b16 %v5357
        %v5931 = vunpack.c.l.b16 %v5358
        %v5932 = vunpack.c.h.b16 %v5358
        %v5933 = vunpack.c.l.b16 %v5359
        %v5934 = vunpack.c.h.b16 %v5359
        %v5935 = vunpack.c.l.b16 %v5360
        %v5936 = vunpack.c.h.b16 %v5360
        %v5937 = vunpack.c.l.b16 %v5361
        %v5938 = vunpack.c.h.b16 %v5361
        %v5939 = vunpack.c.l.b16 %v5362
        %v5940 = vunpack.c.h.b16 %v5362
        %v5941 = vunpack.c.l.b16 %v5363
        %v5942 = vunpack.c.h.b16 %v5363
        %v5943 = vunpack.c.l.b16 %v5364
        %v5944 = vunpack.c.h.b16 %v5364
        %v5945 = vunpack.c.l.b16 %v5365
        %v5946 = vunpack.c.h.b16 %v5365
        %v5947 = vunpack.c.l.b16 %v5366
        %v5948 = vunpack.c.h.b16 %v5366
        %v5949 = vunpack.c.l.b16 %v5367
        %v5950 = vunpack.c.h.b16 %v5367
        %v5951 = vunpack.c.l.b16 %v5368
        %v5952 = vunpack.c.h.b16 %v5368
        %v5953 = vunpack.c.l.b16 %v5369
        %v5954 = vunpack.c.h.b16 %v5369
        %v5955 = vunpack.c.l.b16 %v5370
        %v5956 = vunpack.c.h.b16 %v5370
        %v5957 = vunpack.c.l.b16 %v5371
        %v5958 = vunpack.c.h.b16 %v5371
        %v5959 = vunpack.c.l.b16 %v5372
        %v5960 = vunpack.c.h.b16 %v5372
        %v5961 = vunpack.c.l.b16 %v5373
        %v5962 = vunpack.c.h.b16 %v5373
        %v5963 = vunpack.c.l.b16 %v5374
        %v5964 = vunpack.c.h.b16 %v5374
        %v5965 = vunpack.c.l.b16 %v5375
        %v5966 = vunpack.c.h.b16 %v5375
        %v5967 = vunpack.c.l.b16 %v5376
        %v5968 = vunpack.c.h.b16 %v5376
        %v5969 = vunpack.c.l.b16 %v5377
        %v5970 = vunpack.c.h.b16 %v5377
        %v5971 = vunpack.c.l.b16 %v5378
        %v5972 = vunpack.c.h.b16 %v5378
        %v5973 = vunpack.c.l.b16 %v5379
        %v5974 = vunpack.c.h.b16 %v5379
        %v5975 = vunpack.c.l.b16 %v5380
        %v5976 = vunpack.c.h.b16 %v5380
        %v5977 = vunpack.c.l.b16 %v5381
        %v5978 = vunpack.c.h.b16 %v5381
        %v5979 = vunpack.c.l.b16 %v5382
        %v5980 = vunpack.c.h.b16 %v5382
        %v5981 = vunpack.c.l.b16 %v5383
        %v5982 = vunpack.c.h.b16 %v5383
        %v5983 = vunpack.c.l.b16 %v5384
        %v5984 = vunpack.c.h.b16 %v5384
        %v5985 = vunpack.c.l.b16 %v5385
        %v5986 = vunpack.c.h.b16 %v5385
        %v5987 = vunpack.c.l.b16 %v5386
        %v5988 = vunpack.c.h.b16 %v5386
        %v5989 = vunpack.c.l.b16 %v5387
        %v5990 = vunpack.c.h.b16 %v5387
        %v5991 = vunpack.c.l.b16 %v5388
        %v5992 = vunpack.c.h.b16 %v5388
        %v5993 = vunpack.c.l.b16 %v5389
        %v5994 = vunpack.c.h.b16 %v5389
        %v5995 = vunpack.c.l.b16 %v5390
        %v5996 = vunpack.c.h.b16 %v5390
        %v5997 = vunpack.c.l.b16 %v5391
        %v5998 = vunpack.c.h.b16 %v5391
        %v5999 = vunpack.c.l.b16 %v5392
        %v6000 = vunpack.c.h.b16 %v5392
        %v6001 = vunpack.c.l.b16 %v5393
        %v6002 = vunpack.c.h.b16 %v5393
        %v6003 = vunpack.c.l.b16 %v5394
        %v6004 = vunpack.c.h.b16 %v5394
        %v6005 = vunpack.c.l.b16 %v5395
        %v6006 = vunpack.c.h.b16 %v5395
        %v6007 = vunpack.c.l.b16 %v5396
        %v6008 = vunpack.c.h.b16 %v5396
        %v6009 = vunpack.c.l.b16 %v5397
        %v6010 = vunpack.c.h.b16 %v5397
        %v6011 = vunpack.c.l.b16 %v5398
        %v6012 = vunpack.c.h.b16 %v5398
        %v6013 = vunpack.c.l.b16 %v5399
        %v6014 = vunpack.c.h.b16 %v5399
        %v6015 = vunpack.c.l.b16 %v5400
        %v6016 = vunpack.c.h.b16 %v5400
        %v6017 = vunpack.c.l.b16 %v5401
        %v6018 = vunpack.c.h.b16 %v5401
        %v6019 = vunpack.c.l.b16 %v5402
        %v6020 = vunpack.c.h.b16 %v5402
        %v6021 = vunpack.c.l.b16 %v5403
        %v6022 = vunpack.c.h.b16 %v5403
        %v6023 = vunpack.c.l.b16 %v5404
        %v6024 = vunpack.c.h.b16 %v5404
        %v6025 = vunpack.c.l.b16 %v5405
        %v6026 = vunpack.c.h.b16 %v5405
        %v6027 = vunpack.c.l.b16 %v5406
        %v6028 = vunpack.c.h.b16 %v5406
        %v6029 = vunpack.c.l.b16 %v5407
        %v6030 = vunpack.c.h.b16 %v5407
        %v6031 = vunpack.c.l.b16 %v5408
        %v6032 = vunpack.c.h.b16 %v5408
        %v6033 = vunpack.c.l.b16 %v5409
        %v6034 = vunpack.c.h.b16 %v5409
        %v6035 = vunpack.c.l.b16 %v5410
        %v6036 = vunpack.c.h.b16 %v5410
        %v6037 = vunpack.c.l.b16 %v5411
        %v6038 = vunpack.c.h.b16 %v5411
        %v6039 = vunpack.c.l.b16 %v5412
        %v6040 = vunpack.c.h.b16 %v5412
        %v6041 = vunpack.c.l.b16 %v5413
        %v6042 = vunpack.c.h.b16 %v5413
        %v6043 = vunpack.c.l.b16 %v5414
        %v6044 = vunpack.c.h.b16 %v5414
        %v6045 = vunpack.c.l.b16 %v5415
        %v6046 = vunpack.c.h.b16 %v5415
        %v6047 = vunpack.c.l.b16 %v5416
        %v6048 = vunpack.c.h.b16 %v5416
        %v6049 = vunpack.c.l.b16 %v5417
        %v6050 = vunpack.c.h.b16 %v5417
        %v6051 = vunpack.c.l.b16 %v5418
        %v6052 = vunpack.c.h.b16 %v5418
        %v6053 = vunpack.c.l.b16 %v5419
        %v6054 = vunpack.c.h.b16 %v5419
        %v6055 = vunpack.c.l.b16 %v5420
        %v6056 = vunpack.c.h.b16 %v5420
        %v6057 = vunpack.c.l.b16 %v5421
        %v6058 = vunpack.c.h.b16 %v5421
        %v6059 = vunpack.c.l.b16 %v5422
        %v6060 = vunpack.c.h.b16 %v5422
        %v6061 = vunpack.c.l.b16 %v5423
        %v6062 = vunpack.c.h.b16 %v5423
        %v6063 = vunpack.c.l.b16 %v5424
        %v6064 = vunpack.c.h.b16 %v5424
        %v6065 = vunpack.c.l.b16 %v5425
        %v6066 = vunpack.c.h.b16 %v5425
        %v6067 = vunpack.c.l.b16 %v5426
        %v6068 = vunpack.c.h.b16 %v5426
        %v6069 = vunpack.c.l.b16 %v5427
        %v6070 = vunpack.c.h.b16 %v5427
        %v6071 = vunpack.c.l.b16 %v5428
        %v6072 = vunpack.c.h.b16 %v5428
        %v6073 = vunpack.c.l.b16 %v5429
        %v6074 = vunpack.c.h.b16 %v5429
        %v6075 = vunpack.c.l.b16 %v5430
        %v6076 = vunpack.c.h.b16 %v5430
        %v6077 = vunpack.c.l.b16 %v5431
        %v6078 = vunpack.c.h.b16 %v5431
        %v6079 = vunpack.c.l.b16 %v5432
        %v6080 = vunpack.c.h.b16 %v5432
        %v6081 = vunpack.c.l.b16 %v5433
        %v6082 = vunpack.c.h.b16 %v5433
        %v6083 = vunpack.c.l.b16 %v5434
        %v6084 = vunpack.c.h.b16 %v5434
        %v6085 = vunpack.c.l.b16 %v5435
        %v6086 = vunpack.c.h.b16 %v5435
        %v6087 = vunpack.c.l.b16 %v5436
        %v6088 = vunpack.c.h.b16 %v5436
        %v6089 = vunpack.c.l.b16 %v5437
        %v6090 = vunpack.c.h.b16 %v5437
        %v6091 = vunpack.c.l.b16 %v5438
        %v6092 = vunpack.c.h.b16 %v5438
        %v6093 = vunpack.c.l.b16 %v5439
        %v6094 = vunpack.c.h.b16 %v5439
        %v6095 = vunpack.c.l.b16 %v5440
        %v6096 = vunpack.c.h.b16 %v5440
        %v6097 = vunpack.c.l.b16 %v5441
        %v6098 = vunpack.c.h.b16 %v5441
        %v6099 = vunpack.c.l.b16 %v5442
        %v6100 = vunpack.c.h.b16 %v5442
        %v6101 = vunpack.c.l.b16 %v5443
        %v6102 = vunpack.c.h.b16 %v5443
        %v6103 = vunpack.c.l.b16 %v5444
        %v6104 = vunpack.c.h.b16 %v5444
        %v6105 = vunpack.c.l.b16 %v5445
        %v6106 = vunpack.c.h.b16 %v5445
        %v6107 = vunpack.c.l.b16 %v5446
        %v6108 = vunpack.c.h.b16 %v5446
        %v6109 = vunpack.c.l.b16 %v5447
        %v6110 = vunpack.c.h.b16 %v5447
        %v6111 = vunpack.c.l.b16 %v5448
        %v6112 = vunpack.c.h.b16 %v5448
        %v6113 = vunpack.c.l.b16 %v5449
        %v6114 = vunpack.c.h.b16 %v5449
        %v6115 = vunpack.c.l.b16 %v5450
        %v6116 = vunpack.c.h.b16 %v5450
        %v6117 = vunpack.c.l.b16 %v5451
        %v6118 = vunpack.c.h.b16 %v5451
        %v6119 = vunpack.c.l.b16 %v5452
        %v6120 = vunpack.c.h.b16 %v5452
        %v6121 = vunpack.c.l.b16 %v5453
        %v6122 = vunpack.c.h.b16 %v5453
        %v6123 = vunpack.c.l.b16 %v5454
        %v6124 = vunpack.c.h.b16 %v5454
        %v6125 = vunpack.c.l.b16 %v5455
        %v6126 = vunpack.c.h.b16 %v5455
        %v6127 = vunpack.c.l.b16 %v5456
        %v6128 = vunpack.c.h.b16 %v5456
        %v6129 = vunpack.c.l.b16 %v5457
        %v6130 = vunpack.c.h.b16 %v5457
        %v6131 = vunpack.c.l.b16 %v5458
        %v6132 = vunpack.c.h.b16 %v5458
        %v6133 = vunpack.c.l.b16 %v5459
        %v6134 = vunpack.c.h.b16 %v5459
        %v6135 = vunpack.c.l.b16 %v5460
        %v6136 = vunpack.c.h.b16 %v5460
        %v6137 = vunpack.c.l.b16 %v5461
        %v6138 = vunpack.c.h.b16 %v5461
        %v6139 = vunpack.c.l.b16 %v5462
        %v6140 = vunpack.c.h.b16 %v5462
        %v6141 = vunpack.c.l.b16 %v5463
        %v6142 = vunpack.c.h.b16 %v5463
        %v6143 = vunpack.c.l.b16 %v5464
        %v6144 = vunpack.c.h.b16 %v5464
        %v6145 = vunpack.c.l.b16 %v5465
        %v6146 = vunpack.c.h.b16 %v5465
        %v6147 = vunpack.c.l.b16 %v5466
        %v6148 = vunpack.c.h.b16 %v5466
        %v6149 = vunpack.c.l.b16 %v5467
        %v6150 = vunpack.c.h.b16 %v5467
        %v6151 = vunpack.c.l.b16 %v5468
        %v6152 = vunpack.c.h.b16 %v5468
        %v6153 = vunpack.c.l.b16 %v5469
        %v6154 = vunpack.c.h.b16 %v5469
        %v6155 = vunpack.c.l.b16 %v5470
        %v6156 = vunpack.c.h.b16 %v5470
        %v6157 = vunpack.c.l.b16 %v5471
        %v6158 = vunpack.c.h.b16 %v5471
        %v6159 = vunpack.c.l.b16 %v5472
        %v6160 = vunpack.c.h.b16 %v5472
        %v6161 = vpack.c.b16 %v5879, %v5873
        %v6162 = vpack.c.b16 %v5880, %v5874
        %v6163 = vpack.c.b16 %v5881, %v5875
        %v6164 = vpack.c.b16 %v5882, %v5876
        %v6165 = vpack.c.b16 %v5883, %v5877
        %v6166 = vpack.c.b16 %v5884, %v5878
        %v6167 = vpack.c.b16 %v5891, %v5885
        %v6168 = vpack.c.b16 %v5892, %v5886
        %v6169 = vpack.c.b16 %v5893, %v5887
        %v6170 = vpack.c.b16 %v5894, %v5888
        %v6171 = vpack.c.b16 %v5895, %v5889
        %v6172 = vpack.c.b16 %v5896, %v5890
        %v6173 = vpack.c.b16 %v5903, %v5897
        %v6174 = vpack.c.b16 %v5904, %v5898
        %v6175 = vpack.c.b16 %v5905, %v5899
        %v6176 = vpack.c.b16 %v5906, %v5900
        %v6177 = vpack.c.b16 %v5907, %v5901
        %v6178 = vpack.c.b16 %v5908, %v5902
        %v6179 = vpack.c.b16 %v5915, %v5909
        %v6180 = vpack.c.b16 %v5916, %v5910
        %v6181 = vpack.c.b16 %v5917, %v5911
        %v6182 = vpack.c.b16 %v5918, %v5912
        %v6183 = vpack.c.b16 %v5919, %v5913
        %v6184 = vpack.c.b16 %v5920, %v5914
        %v6185 = vpack.c.b16 %v5927, %v5921
        %v6186 = vpack.c.b16 %v5928, %v5922
        %v6187 = vpack.c.b16 %v5929, %v5923
        %v6188 = vpack.c.b16 %v5930, %v5924
        %v6189 = vpack.c.b16 %v5931, %v5925
        %v6190 = vpack.c.b16 %v5932, %v5926
        %v6191 = vpack.c.b16 %v5939, %v5933
        %v6192 = vpack.c.b16 %v5940, %v5934
        %v6193 = vpack.c.b16 %v5941, %v5935
        %v6194 = vpack.c.b16 %v5942, %v5936
        %v6195 = vpack.c.b16 %v5943, %v5937
        %v6196 = vpack.c.b16 %v5944, %v5938
        %v6197 = vpack.c.b16 %v5951, %v5945
        %v6198 = vpack.c.b16 %v5952, %v5946
        %v6199 = vpack.c.b16 %v5953, %v5947
        %v6200 = vpack.c.b16 %v5954, %v5948
        %v6201 = vpack.c.b16 %v5955, %v5949
        %v6202 = vpack.c.b16 %v5956, %v5950
        %v6203 = vpack.c.b16 %v5963, %v5957
        %v6204 = vpack.c.b16 %v5964, %v5958
        %v6205 = vpack.c.b16 %v5965, %v5959
        %v6206 = vpack.c.b16 %v5966, %v5960
        %v6207 = vpack.c.b16 %v5967, %v5961
        %v6208 = vpack.c.b16 %v5968, %v5962
        %v6209 = vpack.c.b16 %v5975, %v5969
        %v6210 = vpack.c.b16 %v5976, %v5970
        %v6211 = vpack.c.b16 %v5977, %v5971
        %v6212 = vpack.c.b16 %v5978, %v5972
        %v6213 = vpack.c.b16 %v5979, %v5973
        %v6214 = vpack.c.b16 %v5980, %v5974
        %v6215 = vpack.c.b16 %v5987, %v5981
        %v6216 = vpack.c.b16 %v5988, %v5982
        %v6217 = vpack.c.b16 %v5989, %v5983
        %v6218 = vpack.c.b16 %v5990, %v5984
        %v6219 = vpack.c.b16 %v5991, %v5985
        %v6220 = vpack.c.b16 %v5992, %v5986
        %v6221 = vpack.c.b16 %v5999, %v5993
        %v6222 = vpack.c.b16 %v6000, %v5994
        %v6223 = vpack.c.b16 %v6001, %v5995
        %v6224 = vpack.c.b16 %v6002, %v5996
        %v6225 = vpack.c.b16 %v6003, %v5997
        %v6226 = vpack.c.b16 %v6004, %v5998
        %v6227 = vpack.c.b16 %v6011, %v6005
        %v6228 = vpack.c.b16 %v6012, %v6006
        %v6229 = vpack.c.b16 %v6013, %v6007
        %v6230 = vpack.c.b16 %v6014, %v6008
        %v6231 = vpack.c.b16 %v6015, %v6009
        %v6232 = vpack.c.b16 %v6016, %v6010
        %v6233 = vpack.c.b16 %v6023, %v6017
        %v6234 = vpack.c.b16 %v6024, %v6018
        %v6235 = vpack.c.b16 %v6025, %v6019
        %v6236 = vpack.c.b16 %v6026, %v6020
        %v6237 = vpack.c.b16 %v6027, %v6021
        %v6238 = vpack.c.b16 %v6028, %v6022
        %v6239 = vpack.c.b16 %v6035, %v6029
        %v6240 = vpack.c.b16 %v6036, %v6030
        %v6241 = vpack.c.b16 %v6037, %v6031
        %v6242 = vpack.c.b16 %v6038, %v6032
        %v6243 = vpack.c.b16 %v6039, %v6033
        %v6244 = vpack.c.b16 %v6040, %v6034
        %v6245 = vpack.c.b16 %v6047, %v6041
        %v6246 = vpack.c.b16 %v6048, %v6042
        %v6247 = vpack.c.b16 %v6049, %v6043
        %v6248 = vpack.c.b16 %v6050, %v6044
        %v6249 = vpack.c.b16 %v6051, %v6045
        %v6250 = vpack.c.b16 %v6052, %v6046
        %v6251 = vpack.c.b16 %v6059, %v6053
        %v6252 = vpack.c.b16 %v6060, %v6054
        %v6253 = vpack.c.b16 %v6061, %v6055
        %v6254 = vpack.c.b16 %v6062, %v6056
        %v6255 = vpack.c.b16 %v6063, %v6057
        %v6256 = vpack.c.b16 %v6064, %v6058
        %v6257 = vpack.c.b16 %v6071, %v6065
        %v6258 = vpack.c.b16 %v6072, %v6066
        %v6259 = vpack.c.b16 %v6073, %v6067
        %v6260 = vpack.c.b16 %v6074, %v6068
        %v6261 = vpack.c.b16 %v6075, %v6069
        %v6262 = vpack.c.b16 %v6076, %v6070
        %v6263 = vpack.c.b16 %v6083, %v6077
        %v6264 = vpack.c.b16 %v6084, %v6078
        %v6265 = vpack.c.b16 %v6085, %v6079
        %v6266 = vpack.c.b16 %v6086, %v6080
        %v6267 = vpack.c.b16 %v6087, %v6081
        %v6268 = vpack.c.b16 %v6088, %v6082
        %v6269 = vpack.c.b16 %v6095, %v6089
        %v6270 = vpack.c.b16 %v6096, %v6090
        %v6271 = vpack.c.b16 %v6097, %v6091
        %v6272 = vpack.c.b16 %v6098, %v6092
        %v6273 = vpack.c.b16 %v6099, %v6093
        %v6274 = vpack.c.b16 %v6100, %v6094
        %v6275 = vpack.c.b16 %v6107, %v6101
        %v6276 = vpack.c.b16 %v6108, %v6102
        %v6277 = vpack.c.b16 %v6109, %v6103
        %v6278 = vpack.c.b16 %v6110, %v6104
        %v6279 = vpack.c.b16 %v6111, %v6105
        %v6280 = vpack.c.b16 %v6112, %v6106
        %v6281 = vpack.c.b16 %v6119, %v6113
        %v6282 = vpack.c.b16 %v6120, %v6114
        %v6283 = vpack.c.b16 %v6121, %v6115
        %v6284 = vpack.c.b16 %v6122, %v6116
        %v6285 = vpack.c.b16 %v6123, %v6117
        %v6286 = vpack.c.b16 %v6124, %v6118
        %v6287 = vpack.c.b16 %v6131, %v6125
        %v6288 = vpack.c.b16 %v6132, %v6126
        %v6289 = vpack.c.b16 %v6133, %v6127
        %v6290 = vpack.c.b16 %v6134, %v6128
        %v6291 = vpack.c.b16 %v6135, %v6129
        %v6292 = vpack.c.b16 %v6136, %v6130
        %v6293 = vpack.c.b16 %v6143, %v6137
        %v6294 = vpack.c.b16 %v6144, %v6138
        %v6295 = vpack.c.b16 %v6145, %v6139
        %v6296 = vpack.c.b16 %v6146, %v6140
        %v6297 = vpack.c.b16 %v6147, %v6141
        %v6298 = vpack.c.b16 %v6148, %v6142
        %v6299 = vpack.c.b16 %v6155, %v6149
        %v6300 = vpack.c.b16 %v6156, %v6150
        %v6301 = vpack.c.b16 %v6157, %v6151
        %v6302 = vpack.c.b16 %v6158, %v6152
        %v6303 = vpack.c.b16 %v6159, %v6153
        %v6304 = vpack.c.b16 %v6160, %v6154
        %6449 = vmatprep.subr.bf16.mxu0 %v6204
        %6450 = vmatpush1.bf16.msra.mxu0 %v6203
        %6451 = vmatprep.subr.bf16.mxu0 %v6198
        %6452 = vmatpush1.bf16.msra.mxu0 %v6197
        %6453 = vmatprep.subr.bf16.mxu0 %v6192
        %6454 = vmatpush1.bf16.msra.mxu0 %v6191
        %6455 = vmatprep.subr.bf16.mxu0 %v6186
        %6456 = vmatpush1.bf16.msra.mxu0 %v6185
        %6457 = vmatprep.subr.bf16.mxu0 %v6180
        %6458 = vmatpush1.bf16.msra.mxu0 %v6179
        %6459 = vmatprep.subr.bf16.mxu0 %v6174
        %6460 = vmatpush1.bf16.msra.mxu0 %v6173
        %6461 = vmatprep.subr.bf16.mxu0 %v6168
        %6462 = vmatpush1.bf16.msra.mxu0 %v6167
        %6463 = vmatprep.subr.bf16.mxu0 %v6162
        %6464 = vmatpush1.bf16.msra.mxu0 %v6161
        %6465 = vmatprep.subr.bf16.mxu0 %v6252
        %6466 = vmatpush2.bf16.msra.mxu0 %v6251
        %6467 = vmatprep.subr.bf16.mxu0 %v6246
        %6468 = vmatpush2.bf16.msra.mxu0 %v6245
        %6469 = vmatprep.subr.bf16.mxu0 %v6240
        %6470 = vmatpush2.bf16.msra.mxu0 %v6239
        %6471 = vmatprep.subr.bf16.mxu0 %v6234
        %6472 = vmatpush2.bf16.msra.mxu0 %v6233
        %6473 = vmatprep.subr.bf16.mxu0 %v6228
        %6474 = vmatpush2.bf16.msra.mxu0 %v6227
        %6475 = vmatprep.subr.bf16.mxu0 %v6222
        %6476 = vmatpush2.bf16.msra.mxu0 %v6221
        %6477 = vmatprep.subr.bf16.mxu0 %v6216
        %6478 = vmatpush2.bf16.msra.mxu0 %v6215
        %6479 = vmatprep.subr.bf16.mxu0 %v6210
        %6480 = vmatpush2.bf16.msra.mxu0 %v6209
        %6481 = vmatprep.mubr.bf16.mxu0 %v5634
        %6482 = vmatmul.mubr.bf16.gmra.mxu0 %v5633
        %v6483 = vpop.f32.mrf.mxu0
        %v6484 = vadd.f32 0.0, %v6483
        %v6485 = vpop.f32.mrf.mxu0
        %v6486 = vadd.f32 0.0, %v6485
        %v6487 = vpop.f32.mrf.mxu0
        %v6488 = vadd.f32 0.0, %v6487
        %v6489 = vpop.f32.mrf.mxu0
        %v6490 = vadd.f32 0.0, %v6489
        %6491 = vmatprep.mubr.bf16.mxu0 %v5637
        %6492 = vmatmul.mubr.bf16.gmra.mxu0 %v5636
        %v6493 = vpop.f32.mrf.mxu0
        %v6494 = vadd.f32 0.0, %v6493
        %v6495 = vpop.f32.mrf.mxu0
        %v6496 = vadd.f32 0.0, %v6495
        %v6497 = vpop.f32.mrf.mxu0
        %v6498 = vadd.f32 0.0, %v6497
        %v6499 = vpop.f32.mrf.mxu0
        %v6500 = vadd.f32 0.0, %v6499
        %6501 = vmatprep.mubr.bf16.mxu0 %v5640
        %6502 = vmatmul.mubr.bf16.gmra.mxu0 %v5639
        %v6503 = vpop.f32.mrf.mxu0
        %v6504 = vadd.f32 0.0, %v6503
        %v6505 = vpop.f32.mrf.mxu0
        %v6506 = vadd.f32 0.0, %v6505
        %v6507 = vpop.f32.mrf.mxu0
        %v6508 = vadd.f32 0.0, %v6507
        %v6509 = vpop.f32.mrf.mxu0
        %v6510 = vadd.f32 0.0, %v6509
        %6511 = vmatprep.mubr.bf16.mxu0 %v5643
        %6512 = vmatmul.mubr.bf16.gmra.mxu0 %v5642
        %v6513 = vpop.f32.mrf.mxu0
        %v6514 = vadd.f32 0.0, %v6513
        %v6515 = vpop.f32.mrf.mxu0
        %v6516 = vadd.f32 0.0, %v6515
        %v6517 = vpop.f32.mrf.mxu0
        %v6518 = vadd.f32 0.0, %v6517
        %v6519 = vpop.f32.mrf.mxu0
        %v6520 = vadd.f32 0.0, %v6519
        %6521 = vmatprep.mubr.bf16.mxu0 %v5646
        %6522 = vmatmul.mubr.bf16.gmra.mxu0 %v5645
        %v6523 = vpop.f32.mrf.mxu0
        %v6524 = vadd.f32 0.0, %v6523
        %v6525 = vpop.f32.mrf.mxu0
        %v6526 = vadd.f32 0.0, %v6525
        %v6527 = vpop.f32.mrf.mxu0
        %v6528 = vadd.f32 0.0, %v6527
        %v6529 = vpop.f32.mrf.mxu0
        %v6530 = vadd.f32 0.0, %v6529
        %6531 = vmatprep.mubr.bf16.mxu0 %v5649
        %6532 = vmatmul.mubr.bf16.gmra.mxu0 %v5648
        %v6533 = vpop.f32.mrf.mxu0
        %v6534 = vadd.f32 0.0, %v6533
        %v6535 = vpop.f32.mrf.mxu0
        %v6536 = vadd.f32 0.0, %v6535
        %v6537 = vpop.f32.mrf.mxu0
        %v6538 = vadd.f32 0.0, %v6537
        %v6539 = vpop.f32.mrf.mxu0
        %v6540 = vadd.f32 0.0, %v6539
        %6541 = vmatprep.mubr.bf16.mxu0 %v5652
        %6542 = vmatmul.mubr.bf16.gmra.mxu0 %v5651
        %v6543 = vpop.f32.mrf.mxu0
        %v6544 = vadd.f32 0.0, %v6543
        %v6545 = vpop.f32.mrf.mxu0
        %v6546 = vadd.f32 0.0, %v6545
        %v6547 = vpop.f32.mrf.mxu0
        %v6548 = vadd.f32 0.0, %v6547
        %v6549 = vpop.f32.mrf.mxu0
        %v6550 = vadd.f32 0.0, %v6549
        %6551 = vmatprep.mubr.bf16.mxu0 %v5655
        %6552 = vmatmul.mubr.bf16.gmra.mxu0 %v5654
        %v6553 = vpop.f32.mrf.mxu0
        %v6554 = vadd.f32 0.0, %v6553
        %v6555 = vpop.f32.mrf.mxu0
        %v6556 = vadd.f32 0.0, %v6555
        %v6557 = vpop.f32.mrf.mxu0
        %v6558 = vadd.f32 0.0, %v6557
        %v6559 = vpop.f32.mrf.mxu0
        %v6560 = vadd.f32 0.0, %v6559
        %6561 = vmatprep.mubr.bf16.mxu0 %v5658
        %6562 = vmatmul.mubr.bf16.gmra.mxu0 %v5657
        %v6563 = vpop.f32.mrf.mxu0
        %v6564 = vadd.f32 0.0, %v6563
        %v6565 = vpop.f32.mrf.mxu0
        %v6566 = vadd.f32 0.0, %v6565
        %v6567 = vpop.f32.mrf.mxu0
        %v6568 = vadd.f32 0.0, %v6567
        %v6569 = vpop.f32.mrf.mxu0
        %v6570 = vadd.f32 0.0, %v6569
        %6571 = vmatprep.mubr.bf16.mxu0 %v5661
        %6572 = vmatmul.mubr.bf16.gmra.mxu0 %v5660
        %v6573 = vpop.f32.mrf.mxu0
        %v6574 = vadd.f32 0.0, %v6573
        %v6575 = vpop.f32.mrf.mxu0
        %v6576 = vadd.f32 0.0, %v6575
        %v6577 = vpop.f32.mrf.mxu0
        %v6578 = vadd.f32 0.0, %v6577
        %v6579 = vpop.f32.mrf.mxu0
        %v6580 = vadd.f32 0.0, %v6579
        %6581 = vmatprep.mubr.bf16.mxu0 %v5664
        %6582 = vmatmul.mubr.bf16.gmra.mxu0 %v5663
        %v6583 = vpop.f32.mrf.mxu0
        %v6584 = vadd.f32 0.0, %v6583
        %v6585 = vpop.f32.mrf.mxu0
        %v6586 = vadd.f32 0.0, %v6585
        %v6587 = vpop.f32.mrf.mxu0
        %v6588 = vadd.f32 0.0, %v6587
        %v6589 = vpop.f32.mrf.mxu0
        %v6590 = vadd.f32 0.0, %v6589
        %6591 = vmatprep.mubr.bf16.mxu0 %v5667
        %6592 = vmatmul.mubr.bf16.gmra.mxu0 %v5666
        %v6593 = vpop.f32.mrf.mxu0
        %v6594 = vadd.f32 0.0, %v6593
        %v6595 = vpop.f32.mrf.mxu0
        %v6596 = vadd.f32 0.0, %v6595
        %v6597 = vpop.f32.mrf.mxu0
        %v6598 = vadd.f32 0.0, %v6597
        %v6599 = vpop.f32.mrf.mxu0
        %v6600 = vadd.f32 0.0, %v6599
        %6601 = vmatprep.mubr.bf16.mxu0 %v5670
        %6602 = vmatmul.mubr.bf16.gmra.mxu0 %v5669
        %v6603 = vpop.f32.mrf.mxu0
        %v6604 = vadd.f32 0.0, %v6603
        %v6605 = vpop.f32.mrf.mxu0
        %v6606 = vadd.f32 0.0, %v6605
        %v6607 = vpop.f32.mrf.mxu0
        %v6608 = vadd.f32 0.0, %v6607
        %v6609 = vpop.f32.mrf.mxu0
        %v6610 = vadd.f32 0.0, %v6609
        %6611 = vmatprep.mubr.bf16.mxu0 %v5673
        %6612 = vmatmul.mubr.bf16.gmra.mxu0 %v5672
        %v6613 = vpop.f32.mrf.mxu0
        %v6614 = vadd.f32 0.0, %v6613
        %v6615 = vpop.f32.mrf.mxu0
        %v6616 = vadd.f32 0.0, %v6615
        %v6617 = vpop.f32.mrf.mxu0
        %v6618 = vadd.f32 0.0, %v6617
        %v6619 = vpop.f32.mrf.mxu0
        %v6620 = vadd.f32 0.0, %v6619
        %6621 = vmatprep.mubr.bf16.mxu0 %v5676
        %6622 = vmatmul.mubr.bf16.gmra.mxu0 %v5675
        %v6623 = vpop.f32.mrf.mxu0
        %v6624 = vadd.f32 0.0, %v6623
        %v6625 = vpop.f32.mrf.mxu0
        %v6626 = vadd.f32 0.0, %v6625
        %v6627 = vpop.f32.mrf.mxu0
        %v6628 = vadd.f32 0.0, %v6627
        %v6629 = vpop.f32.mrf.mxu0
        %v6630 = vadd.f32 0.0, %v6629
        %6631 = vmatprep.mubr.bf16.mxu0 %v5679
        %6632 = vmatmul.mubr.bf16.gmra.mxu0 %v5678
        %v6633 = vpop.f32.mrf.mxu0
        %v6634 = vadd.f32 0.0, %v6633
        %v6635 = vpop.f32.mrf.mxu0
        %v6636 = vadd.f32 0.0, %v6635
        %v6637 = vpop.f32.mrf.mxu0
        %v6638 = vadd.f32 0.0, %v6637
        %v6639 = vpop.f32.mrf.mxu0
        %v6640 = vadd.f32 0.0, %v6639
        %6641 = vdwg.mxu0
        %6642 = vmatprep.subr.bf16.mxu0 %v6300
        %6643 = vmatpush1.bf16.msra.mxu0 %v6299
        %6644 = vmatprep.subr.bf16.mxu0 %v6294
        %6645 = vmatpush1.bf16.msra.mxu0 %v6293
        %6646 = vmatprep.subr.bf16.mxu0 %v6288
        %6647 = vmatpush1.bf16.msra.mxu0 %v6287
        %6648 = vmatprep.subr.bf16.mxu0 %v6282
        %6649 = vmatpush1.bf16.msra.mxu0 %v6281
        %6650 = vmatprep.subr.bf16.mxu0 %v6276
        %6651 = vmatpush1.bf16.msra.mxu0 %v6275
        %6652 = vmatprep.subr.bf16.mxu0 %v6270
        %6653 = vmatpush1.bf16.msra.mxu0 %v6269
        %6654 = vmatprep.subr.bf16.mxu0 %v6264
        %6655 = vmatpush1.bf16.msra.mxu0 %v6263
        %6656 = vmatprep.subr.bf16.mxu0 %v6258
        %6657 = vmatpush1.bf16.msra.mxu0 %v6257
        %6658 = vmatprep.subr.bf16.mxu0 0
        %6659 = vmatpush2.bf16.msra.mxu0 0
        %6660 = vmatprep.subr.bf16.mxu0 0
        %6661 = vmatpush2.bf16.msra.mxu0 0
        %6662 = vmatprep.subr.bf16.mxu0 0
        %6663 = vmatpush2.bf16.msra.mxu0 0
        %6664 = vmatprep.subr.bf16.mxu0 0
        %6665 = vmatpush2.bf16.msra.mxu0 0
        %6666 = vmatprep.subr.bf16.mxu0 0
        %6667 = vmatpush2.bf16.msra.mxu0 0
        %6668 = vmatprep.subr.bf16.mxu0 0
        %6669 = vmatpush2.bf16.msra.mxu0 0
        %6670 = vmatprep.subr.bf16.mxu0 0
        %6671 = vmatpush2.bf16.msra.mxu0 0
        %6672 = vmatprep.subr.bf16.mxu0 0
        %6673 = vmatpush2.bf16.msra.mxu0 0
        %6674 = vmatprep.mubr.bf16.mxu0 0
        %6675 = vmatmul.mubr.bf16.gmra.mxu0 %v5635
        %v6676 = vpop.f32.mrf.mxu0
        %v6677 = vadd.f32 %v6484, %v6676
        %v6678 = vpop.f32.mrf.mxu0
        %v6679 = vadd.f32 %v6486, %v6678
        %v6680 = vpop.f32.mrf.mxu0
        %v6681 = vadd.f32 %v6488, %v6680
        %v6682 = vpop.f32.mrf.mxu0
        %v6683 = vadd.f32 %v6490, %v6682
        %6684 = vmatprep.mubr.bf16.mxu0 0
        %6685 = vmatmul.mubr.bf16.gmra.mxu0 %v5638
        %v6686 = vpop.f32.mrf.mxu0
        %v6687 = vadd.f32 %v6494, %v6686
        %v6688 = vpop.f32.mrf.mxu0
        %v6689 = vadd.f32 %v6496, %v6688
        %v6690 = vpop.f32.mrf.mxu0
        %v6691 = vadd.f32 %v6498, %v6690
        %v6692 = vpop.f32.mrf.mxu0
        %v6693 = vadd.f32 %v6500, %v6692
        %6694 = vmatprep.mubr.bf16.mxu0 0
        %6695 = vmatmul.mubr.bf16.gmra.mxu0 %v5641
        %v6696 = vpop.f32.mrf.mxu0
        %v6697 = vadd.f32 %v6504, %v6696
        %v6698 = vpop.f32.mrf.mxu0
        %v6699 = vadd.f32 %v6506, %v6698
        %v6700 = vpop.f32.mrf.mxu0
        %v6701 = vadd.f32 %v6508, %v6700
        %v6702 = vpop.f32.mrf.mxu0
        %v6703 = vadd.f32 %v6510, %v6702
        %6704 = vmatprep.mubr.bf16.mxu0 0
        %6705 = vmatmul.mubr.bf16.gmra.mxu0 %v5644
        %v6706 = vpop.f32.mrf.mxu0
        %v6707 = vadd.f32 %v6514, %v6706
        %v6708 = vpop.f32.mrf.mxu0
        %v6709 = vadd.f32 %v6516, %v6708
        %v6710 = vpop.f32.mrf.mxu0
        %v6711 = vadd.f32 %v6518, %v6710
        %v6712 = vpop.f32.mrf.mxu0
        %v6713 = vadd.f32 %v6520, %v6712
        %6714 = vmatprep.mubr.bf16.mxu0 0
        %6715 = vmatmul.mubr.bf16.gmra.mxu0 %v5647
        %v6716 = vpop.f32.mrf.mxu0
        %v6717 = vadd.f32 %v6524, %v6716
        %v6718 = vpop.f32.mrf.mxu0
        %v6719 = vadd.f32 %v6526, %v6718
        %v6720 = vpop.f32.mrf.mxu0
        %v6721 = vadd.f32 %v6528, %v6720
        %v6722 = vpop.f32.mrf.mxu0
        %v6723 = vadd.f32 %v6530, %v6722
        %6724 = vmatprep.mubr.bf16.mxu0 0
        %6725 = vmatmul.mubr.bf16.gmra.mxu0 %v5650
        %v6726 = vpop.f32.mrf.mxu0
        %v6727 = vadd.f32 %v6534, %v6726
        %v6728 = vpop.f32.mrf.mxu0
        %v6729 = vadd.f32 %v6536, %v6728
        %v6730 = vpop.f32.mrf.mxu0
        %v6731 = vadd.f32 %v6538, %v6730
        %v6732 = vpop.f32.mrf.mxu0
        %v6733 = vadd.f32 %v6540, %v6732
        %6734 = vmatprep.mubr.bf16.mxu0 0
        %6735 = vmatmul.mubr.bf16.gmra.mxu0 %v5653
        %v6736 = vpop.f32.mrf.mxu0
        %v6737 = vadd.f32 %v6544, %v6736
        %v6738 = vpop.f32.mrf.mxu0
        %v6739 = vadd.f32 %v6546, %v6738
        %v6740 = vpop.f32.mrf.mxu0
        %v6741 = vadd.f32 %v6548, %v6740
        %v6742 = vpop.f32.mrf.mxu0
        %v6743 = vadd.f32 %v6550, %v6742
        %6744 = vmatprep.mubr.bf16.mxu0 0
        %6745 = vmatmul.mubr.bf16.gmra.mxu0 %v5656
        %v6746 = vpop.f32.mrf.mxu0
        %v6747 = vadd.f32 %v6554, %v6746
        %v6748 = vpop.f32.mrf.mxu0
        %v6749 = vadd.f32 %v6556, %v6748
        %v6750 = vpop.f32.mrf.mxu0
        %v6751 = vadd.f32 %v6558, %v6750
        %v6752 = vpop.f32.mrf.mxu0
        %v6753 = vadd.f32 %v6560, %v6752
        %6754 = vmatprep.mubr.bf16.mxu0 0
        %6755 = vmatmul.mubr.bf16.gmra.mxu0 %v5659
        %v6756 = vpop.f32.mrf.mxu0
        %v6757 = vadd.f32 %v6564, %v6756
        %v6758 = vpop.f32.mrf.mxu0
        %v6759 = vadd.f32 %v6566, %v6758
        %v6760 = vpop.f32.mrf.mxu0
        %v6761 = vadd.f32 %v6568, %v6760
        %v6762 = vpop.f32.mrf.mxu0
        %v6763 = vadd.f32 %v6570, %v6762
        %6764 = vmatprep.mubr.bf16.mxu0 0
        %6765 = vmatmul.mubr.bf16.gmra.mxu0 %v5662
        %v6766 = vpop.f32.mrf.mxu0
        %v6767 = vadd.f32 %v6574, %v6766
        %v6768 = vpop.f32.mrf.mxu0
        %v6769 = vadd.f32 %v6576, %v6768
        %v6770 = vpop.f32.mrf.mxu0
        %v6771 = vadd.f32 %v6578, %v6770
        %v6772 = vpop.f32.mrf.mxu0
        %v6773 = vadd.f32 %v6580, %v6772
        %6774 = vmatprep.mubr.bf16.mxu0 0
        %6775 = vmatmul.mubr.bf16.gmra.mxu0 %v5665
        %v6776 = vpop.f32.mrf.mxu0
        %v6777 = vadd.f32 %v6584, %v6776
        %v6778 = vpop.f32.mrf.mxu0
        %v6779 = vadd.f32 %v6586, %v6778
        %v6780 = vpop.f32.mrf.mxu0
        %v6781 = vadd.f32 %v6588, %v6780
        %v6782 = vpop.f32.mrf.mxu0
        %v6783 = vadd.f32 %v6590, %v6782
        %6784 = vmatprep.mubr.bf16.mxu0 0
        %6785 = vmatmul.mubr.bf16.gmra.mxu0 %v5668
        %v6786 = vpop.f32.mrf.mxu0
        %v6787 = vadd.f32 %v6594, %v6786
        %v6788 = vpop.f32.mrf.mxu0
        %v6789 = vadd.f32 %v6596, %v6788
        %v6790 = vpop.f32.mrf.mxu0
        %v6791 = vadd.f32 %v6598, %v6790
        %v6792 = vpop.f32.mrf.mxu0
        %v6793 = vadd.f32 %v6600, %v6792
        %6794 = vmatprep.mubr.bf16.mxu0 0
        %6795 = vmatmul.mubr.bf16.gmra.mxu0 %v5671
        %v6796 = vpop.f32.mrf.mxu0
        %v6797 = vadd.f32 %v6604, %v6796
        %v6798 = vpop.f32.mrf.mxu0
        %v6799 = vadd.f32 %v6606, %v6798
        %v6800 = vpop.f32.mrf.mxu0
        %v6801 = vadd.f32 %v6608, %v6800
        %v6802 = vpop.f32.mrf.mxu0
        %v6803 = vadd.f32 %v6610, %v6802
        %6804 = vmatprep.mubr.bf16.mxu0 0
        %6805 = vmatmul.mubr.bf16.gmra.mxu0 %v5674
        %v6806 = vpop.f32.mrf.mxu0
        %v6807 = vadd.f32 %v6614, %v6806
        %v6808 = vpop.f32.mrf.mxu0
        %v6809 = vadd.f32 %v6616, %v6808
        %v6810 = vpop.f32.mrf.mxu0
        %v6811 = vadd.f32 %v6618, %v6810
        %v6812 = vpop.f32.mrf.mxu0
        %v6813 = vadd.f32 %v6620, %v6812
        %6814 = vmatprep.mubr.bf16.mxu0 0
        %6815 = vmatmul.mubr.bf16.gmra.mxu0 %v5677
        %v6816 = vpop.f32.mrf.mxu0
        %v6817 = vadd.f32 %v6624, %v6816
        %v6818 = vpop.f32.mrf.mxu0
        %v6819 = vadd.f32 %v6626, %v6818
        %v6820 = vpop.f32.mrf.mxu0
        %v6821 = vadd.f32 %v6628, %v6820
        %v6822 = vpop.f32.mrf.mxu0
        %v6823 = vadd.f32 %v6630, %v6822
        %6824 = vmatprep.mubr.bf16.mxu0 0
        %6825 = vmatmul.mubr.bf16.gmra.mxu0 %v5680
        %v6826 = vpop.f32.mrf.mxu0
        %v6827 = vadd.f32 %v6634, %v6826
        %v6828 = vpop.f32.mrf.mxu0
        %v6829 = vadd.f32 %v6636, %v6828
        %v6830 = vpop.f32.mrf.mxu0
        %v6831 = vadd.f32 %v6638, %v6830
        %v6832 = vpop.f32.mrf.mxu0
        %v6833 = vadd.f32 %v6640, %v6832
        %6834 = vdwg.mxu0
        %6835 = vmatprep.subr.bf16.mxu0 %v6206
        %6836 = vmatpush1.bf16.msra.mxu0 %v6205
        %6837 = vmatprep.subr.bf16.mxu0 %v6200
        %6838 = vmatpush1.bf16.msra.mxu0 %v6199
        %6839 = vmatprep.subr.bf16.mxu0 %v6194
        %6840 = vmatpush1.bf16.msra.mxu0 %v6193
        %6841 = vmatprep.subr.bf16.mxu0 %v6188
        %6842 = vmatpush1.bf16.msra.mxu0 %v6187
        %6843 = vmatprep.subr.bf16.mxu0 %v6182
        %6844 = vmatpush1.bf16.msra.mxu0 %v6181
        %6845 = vmatprep.subr.bf16.mxu0 %v6176
        %6846 = vmatpush1.bf16.msra.mxu0 %v6175
        %6847 = vmatprep.subr.bf16.mxu0 %v6170
        %6848 = vmatpush1.bf16.msra.mxu0 %v6169
        %6849 = vmatprep.subr.bf16.mxu0 %v6164
        %6850 = vmatpush1.bf16.msra.mxu0 %v6163
        %6851 = vmatprep.subr.bf16.mxu0 %v6254
        %6852 = vmatpush2.bf16.msra.mxu0 %v6253
        %6853 = vmatprep.subr.bf16.mxu0 %v6248
        %6854 = vmatpush2.bf16.msra.mxu0 %v6247
        %6855 = vmatprep.subr.bf16.mxu0 %v6242
        %6856 = vmatpush2.bf16.msra.mxu0 %v6241
        %6857 = vmatprep.subr.bf16.mxu0 %v6236
        %6858 = vmatpush2.bf16.msra.mxu0 %v6235
        %6859 = vmatprep.subr.bf16.mxu0 %v6230
        %6860 = vmatpush2.bf16.msra.mxu0 %v6229
        %6861 = vmatprep.subr.bf16.mxu0 %v6224
        %6862 = vmatpush2.bf16.msra.mxu0 %v6223
        %6863 = vmatprep.subr.bf16.mxu0 %v6218
        %6864 = vmatpush2.bf16.msra.mxu0 %v6217
        %6865 = vmatprep.subr.bf16.mxu0 %v6212
        %6866 = vmatpush2.bf16.msra.mxu0 %v6211
        %6867 = vmatprep.mubr.bf16.mxu0 %v5634
        %6868 = vmatmul.mubr.bf16.gmra.mxu0 %v5633
        %v6869 = vpop.f32.mrf.mxu0
        %v6870 = vadd.f32 0.0, %v6869
        %v6871 = vpop.f32.mrf.mxu0
        %v6872 = vadd.f32 0.0, %v6871
        %v6873 = vpop.f32.mrf.mxu0
        %v6874 = vadd.f32 0.0, %v6873
        %v6875 = vpop.f32.mrf.mxu0
        %v6876 = vadd.f32 0.0, %v6875
        %6877 = vmatprep.mubr.bf16.mxu0 %v5637
        %6878 = vmatmul.mubr.bf16.gmra.mxu0 %v5636
        %v6879 = vpop.f32.mrf.mxu0
        %v6880 = vadd.f32 0.0, %v6879
        %v6881 = vpop.f32.mrf.mxu0
        %v6882 = vadd.f32 0.0, %v6881
        %v6883 = vpop.f32.mrf.mxu0
        %v6884 = vadd.f32 0.0, %v6883
        %v6885 = vpop.f32.mrf.mxu0
        %v6886 = vadd.f32 0.0, %v6885
        %6887 = vmatprep.mubr.bf16.mxu0 %v5640
        %6888 = vmatmul.mubr.bf16.gmra.mxu0 %v5639
        %v6889 = vpop.f32.mrf.mxu0
        %v6890 = vadd.f32 0.0, %v6889
        %v6891 = vpop.f32.mrf.mxu0
        %v6892 = vadd.f32 0.0, %v6891
        %v6893 = vpop.f32.mrf.mxu0
        %v6894 = vadd.f32 0.0, %v6893
        %v6895 = vpop.f32.mrf.mxu0
        %v6896 = vadd.f32 0.0, %v6895
        %6897 = vmatprep.mubr.bf16.mxu0 %v5643
        %6898 = vmatmul.mubr.bf16.gmra.mxu0 %v5642
        %v6899 = vpop.f32.mrf.mxu0
        %v6900 = vadd.f32 0.0, %v6899
        %v6901 = vpop.f32.mrf.mxu0
        %v6902 = vadd.f32 0.0, %v6901
        %v6903 = vpop.f32.mrf.mxu0
        %v6904 = vadd.f32 0.0, %v6903
        %v6905 = vpop.f32.mrf.mxu0
        %v6906 = vadd.f32 0.0, %v6905
        %6907 = vmatprep.mubr.bf16.mxu0 %v5646
        %6908 = vmatmul.mubr.bf16.gmra.mxu0 %v5645
        %v6909 = vpop.f32.mrf.mxu0
        %v6910 = vadd.f32 0.0, %v6909
        %v6911 = vpop.f32.mrf.mxu0
        %v6912 = vadd.f32 0.0, %v6911
        %v6913 = vpop.f32.mrf.mxu0
        %v6914 = vadd.f32 0.0, %v6913
        %v6915 = vpop.f32.mrf.mxu0
        %v6916 = vadd.f32 0.0, %v6915
        %6917 = vmatprep.mubr.bf16.mxu0 %v5649
        %6918 = vmatmul.mubr.bf16.gmra.mxu0 %v5648
        %v6919 = vpop.f32.mrf.mxu0
        %v6920 = vadd.f32 0.0, %v6919
        %v6921 = vpop.f32.mrf.mxu0
        %v6922 = vadd.f32 0.0, %v6921
        %v6923 = vpop.f32.mrf.mxu0
        %v6924 = vadd.f32 0.0, %v6923
        %v6925 = vpop.f32.mrf.mxu0
        %v6926 = vadd.f32 0.0, %v6925
        %6927 = vmatprep.mubr.bf16.mxu0 %v5652
        %6928 = vmatmul.mubr.bf16.gmra.mxu0 %v5651
        %v6929 = vpop.f32.mrf.mxu0
        %v6930 = vadd.f32 0.0, %v6929
        %v6931 = vpop.f32.mrf.mxu0
        %v6932 = vadd.f32 0.0, %v6931
        %v6933 = vpop.f32.mrf.mxu0
        %v6934 = vadd.f32 0.0, %v6933
        %v6935 = vpop.f32.mrf.mxu0
        %v6936 = vadd.f32 0.0, %v6935
        %6937 = vmatprep.mubr.bf16.mxu0 %v5655
        %6938 = vmatmul.mubr.bf16.gmra.mxu0 %v5654
        %v6939 = vpop.f32.mrf.mxu0
        %v6940 = vadd.f32 0.0, %v6939
        %v6941 = vpop.f32.mrf.mxu0
        %v6942 = vadd.f32 0.0, %v6941
        %v6943 = vpop.f32.mrf.mxu0
        %v6944 = vadd.f32 0.0, %v6943
        %v6945 = vpop.f32.mrf.mxu0
        %v6946 = vadd.f32 0.0, %v6945
        %6947 = vmatprep.mubr.bf16.mxu0 %v5658
        %6948 = vmatmul.mubr.bf16.gmra.mxu0 %v5657
        %v6949 = vpop.f32.mrf.mxu0
        %v6950 = vadd.f32 0.0, %v6949
        %v6951 = vpop.f32.mrf.mxu0
        %v6952 = vadd.f32 0.0, %v6951
        %v6953 = vpop.f32.mrf.mxu0
        %v6954 = vadd.f32 0.0, %v6953
        %v6955 = vpop.f32.mrf.mxu0
        %v6956 = vadd.f32 0.0, %v6955
        %6957 = vmatprep.mubr.bf16.mxu0 %v5661
        %6958 = vmatmul.mubr.bf16.gmra.mxu0 %v5660
        %v6959 = vpop.f32.mrf.mxu0
        %v6960 = vadd.f32 0.0, %v6959
        %v6961 = vpop.f32.mrf.mxu0
        %v6962 = vadd.f32 0.0, %v6961
        %v6963 = vpop.f32.mrf.mxu0
        %v6964 = vadd.f32 0.0, %v6963
        %v6965 = vpop.f32.mrf.mxu0
        %v6966 = vadd.f32 0.0, %v6965
        %6967 = vmatprep.mubr.bf16.mxu0 %v5664
        %6968 = vmatmul.mubr.bf16.gmra.mxu0 %v5663
        %v6969 = vpop.f32.mrf.mxu0
        %v6970 = vadd.f32 0.0, %v6969
        %v6971 = vpop.f32.mrf.mxu0
        %v6972 = vadd.f32 0.0, %v6971
        %v6973 = vpop.f32.mrf.mxu0
        %v6974 = vadd.f32 0.0, %v6973
        %v6975 = vpop.f32.mrf.mxu0
        %v6976 = vadd.f32 0.0, %v6975
        %6977 = vmatprep.mubr.bf16.mxu0 %v5667
        %6978 = vmatmul.mubr.bf16.gmra.mxu0 %v5666
        %v6979 = vpop.f32.mrf.mxu0
        %v6980 = vadd.f32 0.0, %v6979
        %v6981 = vpop.f32.mrf.mxu0
        %v6982 = vadd.f32 0.0, %v6981
        %v6983 = vpop.f32.mrf.mxu0
        %v6984 = vadd.f32 0.0, %v6983
        %v6985 = vpop.f32.mrf.mxu0
        %v6986 = vadd.f32 0.0, %v6985
        %6987 = vmatprep.mubr.bf16.mxu0 %v5670
        %6988 = vmatmul.mubr.bf16.gmra.mxu0 %v5669
        %v6989 = vpop.f32.mrf.mxu0
        %v6990 = vadd.f32 0.0, %v6989
        %v6991 = vpop.f32.mrf.mxu0
        %v6992 = vadd.f32 0.0, %v6991
        %v6993 = vpop.f32.mrf.mxu0
        %v6994 = vadd.f32 0.0, %v6993
        %v6995 = vpop.f32.mrf.mxu0
        %v6996 = vadd.f32 0.0, %v6995
        %6997 = vmatprep.mubr.bf16.mxu0 %v5673
        %6998 = vmatmul.mubr.bf16.gmra.mxu0 %v5672
        %v6999 = vpop.f32.mrf.mxu0
        %v7000 = vadd.f32 0.0, %v6999
        %v7001 = vpop.f32.mrf.mxu0
        %v7002 = vadd.f32 0.0, %v7001
        %v7003 = vpop.f32.mrf.mxu0
        %v7004 = vadd.f32 0.0, %v7003
        %v7005 = vpop.f32.mrf.mxu0
        %v7006 = vadd.f32 0.0, %v7005
        %7007 = vmatprep.mubr.bf16.mxu0 %v5676
        %7008 = vmatmul.mubr.bf16.gmra.mxu0 %v5675
        %v7009 = vpop.f32.mrf.mxu0
        %v7010 = vadd.f32 0.0, %v7009
        %v7011 = vpop.f32.mrf.mxu0
        %v7012 = vadd.f32 0.0, %v7011
        %v7013 = vpop.f32.mrf.mxu0
        %v7014 = vadd.f32 0.0, %v7013
        %v7015 = vpop.f32.mrf.mxu0
        %v7016 = vadd.f32 0.0, %v7015
        %7017 = vmatprep.mubr.bf16.mxu0 %v5679
        %7018 = vmatmul.mubr.bf16.gmra.mxu0 %v5678
        %v7019 = vpop.f32.mrf.mxu0
        %v7020 = vadd.f32 0.0, %v7019
        %v7021 = vpop.f32.mrf.mxu0
        %v7022 = vadd.f32 0.0, %v7021
        %v7023 = vpop.f32.mrf.mxu0
        %v7024 = vadd.f32 0.0, %v7023
        %v7025 = vpop.f32.mrf.mxu0
        %v7026 = vadd.f32 0.0, %v7025
        %7027 = vdwg.mxu0
        %7028 = vmatprep.subr.bf16.mxu0 %v6302
        %7029 = vmatpush1.bf16.msra.mxu0 %v6301
        %7030 = vmatprep.subr.bf16.mxu0 %v6296
        %7031 = vmatpush1.bf16.msra.mxu0 %v6295
        %7032 = vmatprep.subr.bf16.mxu0 %v6290
        %7033 = vmatpush1.bf16.msra.mxu0 %v6289
        %7034 = vmatprep.subr.bf16.mxu0 %v6284
        %7035 = vmatpush1.bf16.msra.mxu0 %v6283
        %7036 = vmatprep.subr.bf16.mxu0 %v6278
        %7037 = vmatpush1.bf16.msra.mxu0 %v6277
        %7038 = vmatprep.subr.bf16.mxu0 %v6272
        %7039 = vmatpush1.bf16.msra.mxu0 %v6271
        %7040 = vmatprep.subr.bf16.mxu0 %v6266
        %7041 = vmatpush1.bf16.msra.mxu0 %v6265
        %7042 = vmatprep.subr.bf16.mxu0 %v6260
        %7043 = vmatpush1.bf16.msra.mxu0 %v6259
        %7044 = vmatprep.subr.bf16.mxu0 0
        %7045 = vmatpush2.bf16.msra.mxu0 0
        %7046 = vmatprep.subr.bf16.mxu0 0
        %7047 = vmatpush2.bf16.msra.mxu0 0
        %7048 = vmatprep.subr.bf16.mxu0 0
        %7049 = vmatpush2.bf16.msra.mxu0 0
        %7050 = vmatprep.subr.bf16.mxu0 0
        %7051 = vmatpush2.bf16.msra.mxu0 0
        %7052 = vmatprep.subr.bf16.mxu0 0
        %7053 = vmatpush2.bf16.msra.mxu0 0
        %7054 = vmatprep.subr.bf16.mxu0 0
        %7055 = vmatpush2.bf16.msra.mxu0 0
        %7056 = vmatprep.subr.bf16.mxu0 0
        %7057 = vmatpush2.bf16.msra.mxu0 0
        %7058 = vmatprep.subr.bf16.mxu0 0
        %7059 = vmatpush2.bf16.msra.mxu0 0
        %7060 = vmatprep.mubr.bf16.mxu0 0
        %7061 = vmatmul.mubr.bf16.gmra.mxu0 %v5635
        %v7062 = vpop.f32.mrf.mxu0
        %v7063 = vadd.f32 %v6870, %v7062
        %v7064 = vpop.f32.mrf.mxu0
        %v7065 = vadd.f32 %v6872, %v7064
        %v7066 = vpop.f32.mrf.mxu0
        %v7067 = vadd.f32 %v6874, %v7066
        %v7068 = vpop.f32.mrf.mxu0
        %v7069 = vadd.f32 %v6876, %v7068
        %7070 = vmatprep.mubr.bf16.mxu0 0
        %7071 = vmatmul.mubr.bf16.gmra.mxu0 %v5638
        %v7072 = vpop.f32.mrf.mxu0
        %v7073 = vadd.f32 %v6880, %v7072
        %v7074 = vpop.f32.mrf.mxu0
        %v7075 = vadd.f32 %v6882, %v7074
        %v7076 = vpop.f32.mrf.mxu0
        %v7077 = vadd.f32 %v6884, %v7076
        %v7078 = vpop.f32.mrf.mxu0
        %v7079 = vadd.f32 %v6886, %v7078
        %7080 = vmatprep.mubr.bf16.mxu0 0
        %7081 = vmatmul.mubr.bf16.gmra.mxu0 %v5641
        %v7082 = vpop.f32.mrf.mxu0
        %v7083 = vadd.f32 %v6890, %v7082
        %v7084 = vpop.f32.mrf.mxu0
        %v7085 = vadd.f32 %v6892, %v7084
        %v7086 = vpop.f32.mrf.mxu0
        %v7087 = vadd.f32 %v6894, %v7086
        %v7088 = vpop.f32.mrf.mxu0
        %v7089 = vadd.f32 %v6896, %v7088
        %7090 = vmatprep.mubr.bf16.mxu0 0
        %7091 = vmatmul.mubr.bf16.gmra.mxu0 %v5644
        %v7092 = vpop.f32.mrf.mxu0
        %v7093 = vadd.f32 %v6900, %v7092
        %v7094 = vpop.f32.mrf.mxu0
        %v7095 = vadd.f32 %v6902, %v7094
        %v7096 = vpop.f32.mrf.mxu0
        %v7097 = vadd.f32 %v6904, %v7096
        %v7098 = vpop.f32.mrf.mxu0
        %v7099 = vadd.f32 %v6906, %v7098
        %7100 = vmatprep.mubr.bf16.mxu0 0
        %7101 = vmatmul.mubr.bf16.gmra.mxu0 %v5647
        %v7102 = vpop.f32.mrf.mxu0
        %v7103 = vadd.f32 %v6910, %v7102
        %v7104 = vpop.f32.mrf.mxu0
        %v7105 = vadd.f32 %v6912, %v7104
        %v7106 = vpop.f32.mrf.mxu0
        %v7107 = vadd.f32 %v6914, %v7106
        %v7108 = vpop.f32.mrf.mxu0
        %v7109 = vadd.f32 %v6916, %v7108
        %7110 = vmatprep.mubr.bf16.mxu0 0
        %7111 = vmatmul.mubr.bf16.gmra.mxu0 %v5650
        %v7112 = vpop.f32.mrf.mxu0
        %v7113 = vadd.f32 %v6920, %v7112
        %v7114 = vpop.f32.mrf.mxu0
        %v7115 = vadd.f32 %v6922, %v7114
        %v7116 = vpop.f32.mrf.mxu0
        %v7117 = vadd.f32 %v6924, %v7116
        %v7118 = vpop.f32.mrf.mxu0
        %v7119 = vadd.f32 %v6926, %v7118
        %7120 = vmatprep.mubr.bf16.mxu0 0
        %7121 = vmatmul.mubr.bf16.gmra.mxu0 %v5653
        %v7122 = vpop.f32.mrf.mxu0
        %v7123 = vadd.f32 %v6930, %v7122
        %v7124 = vpop.f32.mrf.mxu0
        %v7125 = vadd.f32 %v6932, %v7124
        %v7126 = vpop.f32.mrf.mxu0
        %v7127 = vadd.f32 %v6934, %v7126
        %v7128 = vpop.f32.mrf.mxu0
        %v7129 = vadd.f32 %v6936, %v7128
        %7130 = vmatprep.mubr.bf16.mxu0 0
        %7131 = vmatmul.mubr.bf16.gmra.mxu0 %v5656
        %v7132 = vpop.f32.mrf.mxu0
        %v7133 = vadd.f32 %v6940, %v7132
        %v7134 = vpop.f32.mrf.mxu0
        %v7135 = vadd.f32 %v6942, %v7134
        %v7136 = vpop.f32.mrf.mxu0
        %v7137 = vadd.f32 %v6944, %v7136
        %v7138 = vpop.f32.mrf.mxu0
        %v7139 = vadd.f32 %v6946, %v7138
        %7140 = vmatprep.mubr.bf16.mxu0 0
        %7141 = vmatmul.mubr.bf16.gmra.mxu0 %v5659
        %v7142 = vpop.f32.mrf.mxu0
        %v7143 = vadd.f32 %v6950, %v7142
        %v7144 = vpop.f32.mrf.mxu0
        %v7145 = vadd.f32 %v6952, %v7144
        %v7146 = vpop.f32.mrf.mxu0
        %v7147 = vadd.f32 %v6954, %v7146
        %v7148 = vpop.f32.mrf.mxu0
        %v7149 = vadd.f32 %v6956, %v7148
        %7150 = vmatprep.mubr.bf16.mxu0 0
        %7151 = vmatmul.mubr.bf16.gmra.mxu0 %v5662
        %v7152 = vpop.f32.mrf.mxu0
        %v7153 = vadd.f32 %v6960, %v7152
        %v7154 = vpop.f32.mrf.mxu0
        %v7155 = vadd.f32 %v6962, %v7154
        %v7156 = vpop.f32.mrf.mxu0
        %v7157 = vadd.f32 %v6964, %v7156
        %v7158 = vpop.f32.mrf.mxu0
        %v7159 = vadd.f32 %v6966, %v7158
        %7160 = vmatprep.mubr.bf16.mxu0 0
        %7161 = vmatmul.mubr.bf16.gmra.mxu0 %v5665
        %v7162 = vpop.f32.mrf.mxu0
        %v7163 = vadd.f32 %v6970, %v7162
        %v7164 = vpop.f32.mrf.mxu0
        %v7165 = vadd.f32 %v6972, %v7164
        %v7166 = vpop.f32.mrf.mxu0
        %v7167 = vadd.f32 %v6974, %v7166
        %v7168 = vpop.f32.mrf.mxu0
        %v7169 = vadd.f32 %v6976, %v7168
        %7170 = vmatprep.mubr.bf16.mxu0 0
        %7171 = vmatmul.mubr.bf16.gmra.mxu0 %v5668
        %v7172 = vpop.f32.mrf.mxu0
        %v7173 = vadd.f32 %v6980, %v7172
        %v7174 = vpop.f32.mrf.mxu0
        %v7175 = vadd.f32 %v6982, %v7174
        %v7176 = vpop.f32.mrf.mxu0
        %v7177 = vadd.f32 %v6984, %v7176
        %v7178 = vpop.f32.mrf.mxu0
        %v7179 = vadd.f32 %v6986, %v7178
        %7180 = vmatprep.mubr.bf16.mxu0 0
        %7181 = vmatmul.mubr.bf16.gmra.mxu0 %v5671
        %v7182 = vpop.f32.mrf.mxu0
        %v7183 = vadd.f32 %v6990, %v7182
        %v7184 = vpop.f32.mrf.mxu0
        %v7185 = vadd.f32 %v6992, %v7184
        %v7186 = vpop.f32.mrf.mxu0
        %v7187 = vadd.f32 %v6994, %v7186
        %v7188 = vpop.f32.mrf.mxu0
        %v7189 = vadd.f32 %v6996, %v7188
        %7190 = vmatprep.mubr.bf16.mxu0 0
        %7191 = vmatmul.mubr.bf16.gmra.mxu0 %v5674
        %v7192 = vpop.f32.mrf.mxu0
        %v7193 = vadd.f32 %v7000, %v7192
        %v7194 = vpop.f32.mrf.mxu0
        %v7195 = vadd.f32 %v7002, %v7194
        %v7196 = vpop.f32.mrf.mxu0
        %v7197 = vadd.f32 %v7004, %v7196
        %v7198 = vpop.f32.mrf.mxu0
        %v7199 = vadd.f32 %v7006, %v7198
        %7200 = vmatprep.mubr.bf16.mxu0 0
        %7201 = vmatmul.mubr.bf16.gmra.mxu0 %v5677
        %v7202 = vpop.f32.mrf.mxu0
        %v7203 = vadd.f32 %v7010, %v7202
        %v7204 = vpop.f32.mrf.mxu0
        %v7205 = vadd.f32 %v7012, %v7204
        %v7206 = vpop.f32.mrf.mxu0
        %v7207 = vadd.f32 %v7014, %v7206
        %v7208 = vpop.f32.mrf.mxu0
        %v7209 = vadd.f32 %v7016, %v7208
        %7210 = vmatprep.mubr.bf16.mxu0 0
        %7211 = vmatmul.mubr.bf16.gmra.mxu0 %v5680
        %v7212 = vpop.f32.mrf.mxu0
        %v7213 = vadd.f32 %v7020, %v7212
        %v7214 = vpop.f32.mrf.mxu0
        %v7215 = vadd.f32 %v7022, %v7214
        %v7216 = vpop.f32.mrf.mxu0
        %v7217 = vadd.f32 %v7024, %v7216
        %v7218 = vpop.f32.mrf.mxu0
        %v7219 = vadd.f32 %v7026, %v7218
        %7220 = vdwg.mxu0
        %7221 = vmatprep.subr.bf16.mxu0 %v6208
        %7222 = vmatpush1.bf16.msra.mxu0 %v6207
        %7223 = vmatprep.subr.bf16.mxu0 %v6202
        %7224 = vmatpush1.bf16.msra.mxu0 %v6201
        %7225 = vmatprep.subr.bf16.mxu0 %v6196
        %7226 = vmatpush1.bf16.msra.mxu0 %v6195
        %7227 = vmatprep.subr.bf16.mxu0 %v6190
        %7228 = vmatpush1.bf16.msra.mxu0 %v6189
        %7229 = vmatprep.subr.bf16.mxu0 %v6184
        %7230 = vmatpush1.bf16.msra.mxu0 %v6183
        %7231 = vmatprep.subr.bf16.mxu0 %v6178
        %7232 = vmatpush1.bf16.msra.mxu0 %v6177
        %7233 = vmatprep.subr.bf16.mxu0 %v6172
        %7234 = vmatpush1.bf16.msra.mxu0 %v6171
        %7235 = vmatprep.subr.bf16.mxu0 %v6166
        %7236 = vmatpush1.bf16.msra.mxu0 %v6165
        %7237 = vmatprep.subr.bf16.mxu0 %v6256
        %7238 = vmatpush2.bf16.msra.mxu0 %v6255
        %7239 = vmatprep.subr.bf16.mxu0 %v6250
        %7240 = vmatpush2.bf16.msra.mxu0 %v6249
        %7241 = vmatprep.subr.bf16.mxu0 %v6244
        %7242 = vmatpush2.bf16.msra.mxu0 %v6243
        %7243 = vmatprep.subr.bf16.mxu0 %v6238
        %7244 = vmatpush2.bf16.msra.mxu0 %v6237
        %7245 = vmatprep.subr.bf16.mxu0 %v6232
        %7246 = vmatpush2.bf16.msra.mxu0 %v6231
        %7247 = vmatprep.subr.bf16.mxu0 %v6226
        %7248 = vmatpush2.bf16.msra.mxu0 %v6225
        %7249 = vmatprep.subr.bf16.mxu0 %v6220
        %7250 = vmatpush2.bf16.msra.mxu0 %v6219
        %7251 = vmatprep.subr.bf16.mxu0 %v6214
        %7252 = vmatpush2.bf16.msra.mxu0 %v6213
        %7253 = vmatprep.mubr.bf16.mxu0 %v5634
        %7254 = vmatmul.mubr.bf16.gmra.mxu0 %v5633
        %v7255 = vpop.f32.mrf.mxu0
        %v7256 = vadd.f32 0.0, %v7255
        %v7257 = vpop.f32.mrf.mxu0
        %v7258 = vadd.f32 0.0, %v7257
        %v7259 = vpop.f32.mrf.mxu0
        %v7260 = vadd.f32 0.0, %v7259
        %v7261 = vpop.f32.mrf.mxu0
        %v7262 = vadd.f32 0.0, %v7261
        %7263 = vmatprep.mubr.bf16.mxu0 %v5637
        %7264 = vmatmul.mubr.bf16.gmra.mxu0 %v5636
        %v7265 = vpop.f32.mrf.mxu0
        %v7266 = vadd.f32 0.0, %v7265
        %v7267 = vpop.f32.mrf.mxu0
        %v7268 = vadd.f32 0.0, %v7267
        %v7269 = vpop.f32.mrf.mxu0
        %v7270 = vadd.f32 0.0, %v7269
        %v7271 = vpop.f32.mrf.mxu0
        %v7272 = vadd.f32 0.0, %v7271
        %7273 = vmatprep.mubr.bf16.mxu0 %v5640
        %7274 = vmatmul.mubr.bf16.gmra.mxu0 %v5639
        %v7275 = vpop.f32.mrf.mxu0
        %v7276 = vadd.f32 0.0, %v7275
        %v7277 = vpop.f32.mrf.mxu0
        %v7278 = vadd.f32 0.0, %v7277
        %v7279 = vpop.f32.mrf.mxu0
        %v7280 = vadd.f32 0.0, %v7279
        %v7281 = vpop.f32.mrf.mxu0
        %v7282 = vadd.f32 0.0, %v7281
        %7283 = vmatprep.mubr.bf16.mxu0 %v5643
        %7284 = vmatmul.mubr.bf16.gmra.mxu0 %v5642
        %v7285 = vpop.f32.mrf.mxu0
        %v7286 = vadd.f32 0.0, %v7285
        %v7287 = vpop.f32.mrf.mxu0
        %v7288 = vadd.f32 0.0, %v7287
        %v7289 = vpop.f32.mrf.mxu0
        %v7290 = vadd.f32 0.0, %v7289
        %v7291 = vpop.f32.mrf.mxu0
        %v7292 = vadd.f32 0.0, %v7291
        %7293 = vmatprep.mubr.bf16.mxu0 %v5646
        %7294 = vmatmul.mubr.bf16.gmra.mxu0 %v5645
        %v7295 = vpop.f32.mrf.mxu0
        %v7296 = vadd.f32 0.0, %v7295
        %v7297 = vpop.f32.mrf.mxu0
        %v7298 = vadd.f32 0.0, %v7297
        %v7299 = vpop.f32.mrf.mxu0
        %v7300 = vadd.f32 0.0, %v7299
        %v7301 = vpop.f32.mrf.mxu0
        %v7302 = vadd.f32 0.0, %v7301
        %7303 = vmatprep.mubr.bf16.mxu0 %v5649
        %7304 = vmatmul.mubr.bf16.gmra.mxu0 %v5648
        %v7305 = vpop.f32.mrf.mxu0
        %v7306 = vadd.f32 0.0, %v7305
        %v7307 = vpop.f32.mrf.mxu0
        %v7308 = vadd.f32 0.0, %v7307
        %v7309 = vpop.f32.mrf.mxu0
        %v7310 = vadd.f32 0.0, %v7309
        %v7311 = vpop.f32.mrf.mxu0
        %v7312 = vadd.f32 0.0, %v7311
        %7313 = vmatprep.mubr.bf16.mxu0 %v5652
        %7314 = vmatmul.mubr.bf16.gmra.mxu0 %v5651
        %v7315 = vpop.f32.mrf.mxu0
        %v7316 = vadd.f32 0.0, %v7315
        %v7317 = vpop.f32.mrf.mxu0
        %v7318 = vadd.f32 0.0, %v7317
        %v7319 = vpop.f32.mrf.mxu0
        %v7320 = vadd.f32 0.0, %v7319
        %v7321 = vpop.f32.mrf.mxu0
        %v7322 = vadd.f32 0.0, %v7321
        %7323 = vmatprep.mubr.bf16.mxu0 %v5655
        %7324 = vmatmul.mubr.bf16.gmra.mxu0 %v5654
        %v7325 = vpop.f32.mrf.mxu0
        %v7326 = vadd.f32 0.0, %v7325
        %v7327 = vpop.f32.mrf.mxu0
        %v7328 = vadd.f32 0.0, %v7327
        %v7329 = vpop.f32.mrf.mxu0
        %v7330 = vadd.f32 0.0, %v7329
        %v7331 = vpop.f32.mrf.mxu0
        %v7332 = vadd.f32 0.0, %v7331
        %7333 = vmatprep.mubr.bf16.mxu0 %v5658
        %7334 = vmatmul.mubr.bf16.gmra.mxu0 %v5657
        %v7335 = vpop.f32.mrf.mxu0
        %v7336 = vadd.f32 0.0, %v7335
        %v7337 = vpop.f32.mrf.mxu0
        %v7338 = vadd.f32 0.0, %v7337
        %v7339 = vpop.f32.mrf.mxu0
        %v7340 = vadd.f32 0.0, %v7339
        %v7341 = vpop.f32.mrf.mxu0
        %v7342 = vadd.f32 0.0, %v7341
        %7343 = vmatprep.mubr.bf16.mxu0 %v5661
        %7344 = vmatmul.mubr.bf16.gmra.mxu0 %v5660
        %v7345 = vpop.f32.mrf.mxu0
        %v7346 = vadd.f32 0.0, %v7345
        %v7347 = vpop.f32.mrf.mxu0
        %v7348 = vadd.f32 0.0, %v7347
        %v7349 = vpop.f32.mrf.mxu0
        %v7350 = vadd.f32 0.0, %v7349
        %v7351 = vpop.f32.mrf.mxu0
        %v7352 = vadd.f32 0.0, %v7351
        %7353 = vmatprep.mubr.bf16.mxu0 %v5664
        %7354 = vmatmul.mubr.bf16.gmra.mxu0 %v5663
        %v7355 = vpop.f32.mrf.mxu0
        %v7356 = vadd.f32 0.0, %v7355
        %v7357 = vpop.f32.mrf.mxu0
        %v7358 = vadd.f32 0.0, %v7357
        %v7359 = vpop.f32.mrf.mxu0
        %v7360 = vadd.f32 0.0, %v7359
        %v7361 = vpop.f32.mrf.mxu0
        %v7362 = vadd.f32 0.0, %v7361
        %7363 = vmatprep.mubr.bf16.mxu0 %v5667
        %7364 = vmatmul.mubr.bf16.gmra.mxu0 %v5666
        %v7365 = vpop.f32.mrf.mxu0
        %v7366 = vadd.f32 0.0, %v7365
        %v7367 = vpop.f32.mrf.mxu0
        %v7368 = vadd.f32 0.0, %v7367
        %v7369 = vpop.f32.mrf.mxu0
        %v7370 = vadd.f32 0.0, %v7369
        %v7371 = vpop.f32.mrf.mxu0
        %v7372 = vadd.f32 0.0, %v7371
        %7373 = vmatprep.mubr.bf16.mxu0 %v5670
        %7374 = vmatmul.mubr.bf16.gmra.mxu0 %v5669
        %v7375 = vpop.f32.mrf.mxu0
        %v7376 = vadd.f32 0.0, %v7375
        %v7377 = vpop.f32.mrf.mxu0
        %v7378 = vadd.f32 0.0, %v7377
        %v7379 = vpop.f32.mrf.mxu0
        %v7380 = vadd.f32 0.0, %v7379
        %v7381 = vpop.f32.mrf.mxu0
        %v7382 = vadd.f32 0.0, %v7381
        %7383 = vmatprep.mubr.bf16.mxu0 %v5673
        %7384 = vmatmul.mubr.bf16.gmra.mxu0 %v5672
        %v7385 = vpop.f32.mrf.mxu0
        %v7386 = vadd.f32 0.0, %v7385
        %v7387 = vpop.f32.mrf.mxu0
        %v7388 = vadd.f32 0.0, %v7387
        %v7389 = vpop.f32.mrf.mxu0
        %v7390 = vadd.f32 0.0, %v7389
        %v7391 = vpop.f32.mrf.mxu0
        %v7392 = vadd.f32 0.0, %v7391
        %7393 = vmatprep.mubr.bf16.mxu0 %v5676
        %7394 = vmatmul.mubr.bf16.gmra.mxu0 %v5675
        %v7395 = vpop.f32.mrf.mxu0
        %v7396 = vadd.f32 0.0, %v7395
        %v7397 = vpop.f32.mrf.mxu0
        %v7398 = vadd.f32 0.0, %v7397
        %v7399 = vpop.f32.mrf.mxu0
        %v7400 = vadd.f32 0.0, %v7399
        %v7401 = vpop.f32.mrf.mxu0
        %v7402 = vadd.f32 0.0, %v7401
        %7403 = vmatprep.mubr.bf16.mxu0 %v5679
        %7404 = vmatmul.mubr.bf16.gmra.mxu0 %v5678
        %v7405 = vpop.f32.mrf.mxu0
        %v7406 = vadd.f32 0.0, %v7405
        %v7407 = vpop.f32.mrf.mxu0
        %v7408 = vadd.f32 0.0, %v7407
        %v7409 = vpop.f32.mrf.mxu0
        %v7410 = vadd.f32 0.0, %v7409
        %v7411 = vpop.f32.mrf.mxu0
        %v7412 = vadd.f32 0.0, %v7411
        %7413 = vdwg.mxu0
        %7414 = vmatprep.subr.bf16.mxu0 %v6304
        %7415 = vmatpush1.bf16.msra.mxu0 %v6303
        %7416 = vmatprep.subr.bf16.mxu0 %v6298
        %7417 = vmatpush1.bf16.msra.mxu0 %v6297
        %7418 = vmatprep.subr.bf16.mxu0 %v6292
        %7419 = vmatpush1.bf16.msra.mxu0 %v6291
        %7420 = vmatprep.subr.bf16.mxu0 %v6286
        %7421 = vmatpush1.bf16.msra.mxu0 %v6285
        %7422 = vmatprep.subr.bf16.mxu0 %v6280
        %7423 = vmatpush1.bf16.msra.mxu0 %v6279
        %7424 = vmatprep.subr.bf16.mxu0 %v6274
        %7425 = vmatpush1.bf16.msra.mxu0 %v6273
        %7426 = vmatprep.subr.bf16.mxu0 %v6268
        %7427 = vmatpush1.bf16.msra.mxu0 %v6267
        %7428 = vmatprep.subr.bf16.mxu0 %v6262
        %7429 = vmatpush1.bf16.msra.mxu0 %v6261
        %7430 = vmatprep.subr.bf16.mxu0 0
        %7431 = vmatpush2.bf16.msra.mxu0 0
        %7432 = vmatprep.subr.bf16.mxu0 0
        %7433 = vmatpush2.bf16.msra.mxu0 0
        %7434 = vmatprep.subr.bf16.mxu0 0
        %7435 = vmatpush2.bf16.msra.mxu0 0
        %7436 = vmatprep.subr.bf16.mxu0 0
        %7437 = vmatpush2.bf16.msra.mxu0 0
        %7438 = vmatprep.subr.bf16.mxu0 0
        %7439 = vmatpush2.bf16.msra.mxu0 0
        %7440 = vmatprep.subr.bf16.mxu0 0
        %7441 = vmatpush2.bf16.msra.mxu0 0
        %7442 = vmatprep.subr.bf16.mxu0 0
        %7443 = vmatpush2.bf16.msra.mxu0 0
        %7444 = vmatprep.subr.bf16.mxu0 0
        %7445 = vmatpush2.bf16.msra.mxu0 0
        %7446 = vmatprep.mubr.bf16.mxu0 0
        %7447 = vmatmul.mubr.bf16.gmra.mxu0 %v5635
        %v7448 = vpop.f32.mrf.mxu0
        %v7449 = vadd.f32 %v7256, %v7448
        %v7450 = vpop.f32.mrf.mxu0
        %v7451 = vadd.f32 %v7258, %v7450
        %v7452 = vpop.f32.mrf.mxu0
        %v7453 = vadd.f32 %v7260, %v7452
        %v7454 = vpop.f32.mrf.mxu0
        %v7455 = vadd.f32 %v7262, %v7454
        %7456 = vmatprep.mubr.bf16.mxu0 0
        %7457 = vmatmul.mubr.bf16.gmra.mxu0 %v5638
        %v7458 = vpop.f32.mrf.mxu0
        %v7459 = vadd.f32 %v7266, %v7458
        %v7460 = vpop.f32.mrf.mxu0
        %v7461 = vadd.f32 %v7268, %v7460
        %v7462 = vpop.f32.mrf.mxu0
        %v7463 = vadd.f32 %v7270, %v7462
        %v7464 = vpop.f32.mrf.mxu0
        %v7465 = vadd.f32 %v7272, %v7464
        %7466 = vmatprep.mubr.bf16.mxu0 0
        %7467 = vmatmul.mubr.bf16.gmra.mxu0 %v5641
        %v7468 = vpop.f32.mrf.mxu0
        %v7469 = vadd.f32 %v7276, %v7468
        %v7470 = vpop.f32.mrf.mxu0
        %v7471 = vadd.f32 %v7278, %v7470
        %v7472 = vpop.f32.mrf.mxu0
        %v7473 = vadd.f32 %v7280, %v7472
        %v7474 = vpop.f32.mrf.mxu0
        %v7475 = vadd.f32 %v7282, %v7474
        %7476 = vmatprep.mubr.bf16.mxu0 0
        %7477 = vmatmul.mubr.bf16.gmra.mxu0 %v5644
        %v7478 = vpop.f32.mrf.mxu0
        %v7479 = vadd.f32 %v7286, %v7478
        %v7480 = vpop.f32.mrf.mxu0
        %v7481 = vadd.f32 %v7288, %v7480
        %v7482 = vpop.f32.mrf.mxu0
        %v7483 = vadd.f32 %v7290, %v7482
        %v7484 = vpop.f32.mrf.mxu0
        %v7485 = vadd.f32 %v7292, %v7484
        %7486 = vmatprep.mubr.bf16.mxu0 0
        %7487 = vmatmul.mubr.bf16.gmra.mxu0 %v5647
        %v7488 = vpop.f32.mrf.mxu0
        %v7489 = vadd.f32 %v7296, %v7488
        %v7490 = vpop.f32.mrf.mxu0
        %v7491 = vadd.f32 %v7298, %v7490
        %v7492 = vpop.f32.mrf.mxu0
        %v7493 = vadd.f32 %v7300, %v7492
        %v7494 = vpop.f32.mrf.mxu0
        %v7495 = vadd.f32 %v7302, %v7494
        %7496 = vmatprep.mubr.bf16.mxu0 0
        %7497 = vmatmul.mubr.bf16.gmra.mxu0 %v5650
        %v7498 = vpop.f32.mrf.mxu0
        %v7499 = vadd.f32 %v7306, %v7498
        %v7500 = vpop.f32.mrf.mxu0
        %v7501 = vadd.f32 %v7308, %v7500
        %v7502 = vpop.f32.mrf.mxu0
        %v7503 = vadd.f32 %v7310, %v7502
        %v7504 = vpop.f32.mrf.mxu0
        %v7505 = vadd.f32 %v7312, %v7504
        %7506 = vmatprep.mubr.bf16.mxu0 0
        %7507 = vmatmul.mubr.bf16.gmra.mxu0 %v5653
        %v7508 = vpop.f32.mrf.mxu0
        %v7509 = vadd.f32 %v7316, %v7508
        %v7510 = vpop.f32.mrf.mxu0
        %v7511 = vadd.f32 %v7318, %v7510
        %v7512 = vpop.f32.mrf.mxu0
        %v7513 = vadd.f32 %v7320, %v7512
        %v7514 = vpop.f32.mrf.mxu0
        %v7515 = vadd.f32 %v7322, %v7514
        %7516 = vmatprep.mubr.bf16.mxu0 0
        %7517 = vmatmul.mubr.bf16.gmra.mxu0 %v5656
        %v7518 = vpop.f32.mrf.mxu0
        %v7519 = vadd.f32 %v7326, %v7518
        %v7520 = vpop.f32.mrf.mxu0
        %v7521 = vadd.f32 %v7328, %v7520
        %v7522 = vpop.f32.mrf.mxu0
        %v7523 = vadd.f32 %v7330, %v7522
        %v7524 = vpop.f32.mrf.mxu0
        %v7525 = vadd.f32 %v7332, %v7524
        %7526 = vmatprep.mubr.bf16.mxu0 0
        %7527 = vmatmul.mubr.bf16.gmra.mxu0 %v5659
        %v7528 = vpop.f32.mrf.mxu0
        %v7529 = vadd.f32 %v7336, %v7528
        %v7530 = vpop.f32.mrf.mxu0
        %v7531 = vadd.f32 %v7338, %v7530
        %v7532 = vpop.f32.mrf.mxu0
        %v7533 = vadd.f32 %v7340, %v7532
        %v7534 = vpop.f32.mrf.mxu0
        %v7535 = vadd.f32 %v7342, %v7534
        %7536 = vmatprep.mubr.bf16.mxu0 0
        %7537 = vmatmul.mubr.bf16.gmra.mxu0 %v5662
        %v7538 = vpop.f32.mrf.mxu0
        %v7539 = vadd.f32 %v7346, %v7538
        %v7540 = vpop.f32.mrf.mxu0
        %v7541 = vadd.f32 %v7348, %v7540
        %v7542 = vpop.f32.mrf.mxu0
        %v7543 = vadd.f32 %v7350, %v7542
        %v7544 = vpop.f32.mrf.mxu0
        %v7545 = vadd.f32 %v7352, %v7544
        %7546 = vmatprep.mubr.bf16.mxu0 0
        %7547 = vmatmul.mubr.bf16.gmra.mxu0 %v5665
        %v7548 = vpop.f32.mrf.mxu0
        %v7549 = vadd.f32 %v7356, %v7548
        %v7550 = vpop.f32.mrf.mxu0
        %v7551 = vadd.f32 %v7358, %v7550
        %v7552 = vpop.f32.mrf.mxu0
        %v7553 = vadd.f32 %v7360, %v7552
        %v7554 = vpop.f32.mrf.mxu0
        %v7555 = vadd.f32 %v7362, %v7554
        %7556 = vmatprep.mubr.bf16.mxu0 0
        %7557 = vmatmul.mubr.bf16.gmra.mxu0 %v5668
        %v7558 = vpop.f32.mrf.mxu0
        %v7559 = vadd.f32 %v7366, %v7558
        %v7560 = vpop.f32.mrf.mxu0
        %v7561 = vadd.f32 %v7368, %v7560
        %v7562 = vpop.f32.mrf.mxu0
        %v7563 = vadd.f32 %v7370, %v7562
        %v7564 = vpop.f32.mrf.mxu0
        %v7565 = vadd.f32 %v7372, %v7564
        %7566 = vmatprep.mubr.bf16.mxu0 0
        %7567 = vmatmul.mubr.bf16.gmra.mxu0 %v5671
        %v7568 = vpop.f32.mrf.mxu0
        %v7569 = vadd.f32 %v7376, %v7568
        %v7570 = vpop.f32.mrf.mxu0
        %v7571 = vadd.f32 %v7378, %v7570
        %v7572 = vpop.f32.mrf.mxu0
        %v7573 = vadd.f32 %v7380, %v7572
        %v7574 = vpop.f32.mrf.mxu0
        %v7575 = vadd.f32 %v7382, %v7574
        %7576 = vmatprep.mubr.bf16.mxu0 0
        %7577 = vmatmul.mubr.bf16.gmra.mxu0 %v5674
        %v7578 = vpop.f32.mrf.mxu0
        %v7579 = vadd.f32 %v7386, %v7578
        %v7580 = vpop.f32.mrf.mxu0
        %v7581 = vadd.f32 %v7388, %v7580
        %v7582 = vpop.f32.mrf.mxu0
        %v7583 = vadd.f32 %v7390, %v7582
        %v7584 = vpop.f32.mrf.mxu0
        %v7585 = vadd.f32 %v7392, %v7584
        %7586 = vmatprep.mubr.bf16.mxu0 0
        %7587 = vmatmul.mubr.bf16.gmra.mxu0 %v5677
        %v7588 = vpop.f32.mrf.mxu0
        %v7589 = vadd.f32 %v7396, %v7588
        %v7590 = vpop.f32.mrf.mxu0
        %v7591 = vadd.f32 %v7398, %v7590
        %v7592 = vpop.f32.mrf.mxu0
        %v7593 = vadd.f32 %v7400, %v7592
        %v7594 = vpop.f32.mrf.mxu0
        %v7595 = vadd.f32 %v7402, %v7594
        %7596 = vmatprep.mubr.bf16.mxu0 0
        %7597 = vmatmul.mubr.bf16.gmra.mxu0 %v5680
        %v7598 = vpop.f32.mrf.mxu0
        %v7599 = vadd.f32 %v7406, %v7598
        %v7600 = vpop.f32.mrf.mxu0
        %v7601 = vadd.f32 %v7408, %v7600
        %v7602 = vpop.f32.mrf.mxu0
        %v7603 = vadd.f32 %v7410, %v7602
        %v7604 = vpop.f32.mrf.mxu0
        %v7605 = vadd.f32 %v7412, %v7604
        %7606 = vdwg.mxu0
        %v7607 = vadd.f32 %v4335, %v6677
        %v7608 = vadd.f32 %v4337, %v6679
        %v7609 = vadd.f32 %v4721, %v7063
        %v7610 = vadd.f32 %v4723, %v7065
        %v7611 = vadd.f32 %v5107, %v7449
        %v7612 = vadd.f32 %v5109, %v7451
        %v7613 = vadd.f32 %v4339, %v6681
        %v7614 = vadd.f32 %v4341, %v6683
        %v7615 = vadd.f32 %v4725, %v7067
        %v7616 = vadd.f32 %v4727, %v7069
        %v7617 = vadd.f32 %v5111, %v7453
        %v7618 = vadd.f32 %v5113, %v7455
        %v7619 = vadd.f32 %v4345, %v6687
        %v7620 = vadd.f32 %v4347, %v6689
        %v7621 = vadd.f32 %v4731, %v7073
        %v7622 = vadd.f32 %v4733, %v7075
        %v7623 = vadd.f32 %v5117, %v7459
        %v7624 = vadd.f32 %v5119, %v7461
        %v7625 = vadd.f32 %v4349, %v6691
        %v7626 = vadd.f32 %v4351, %v6693
        %v7627 = vadd.f32 %v4735, %v7077
        %v7628 = vadd.f32 %v4737, %v7079
        %v7629 = vadd.f32 %v5121, %v7463
        %v7630 = vadd.f32 %v5123, %v7465
        %v7631 = vadd.f32 %v4355, %v6697
        %v7632 = vadd.f32 %v4357, %v6699
        %v7633 = vadd.f32 %v4741, %v7083
        %v7634 = vadd.f32 %v4743, %v7085
        %v7635 = vadd.f32 %v5127, %v7469
        %v7636 = vadd.f32 %v5129, %v7471
        %v7637 = vadd.f32 %v4359, %v6701
        %v7638 = vadd.f32 %v4361, %v6703
        %v7639 = vadd.f32 %v4745, %v7087
        %v7640 = vadd.f32 %v4747, %v7089
        %v7641 = vadd.f32 %v5131, %v7473
        %v7642 = vadd.f32 %v5133, %v7475
        %v7643 = vadd.f32 %v4365, %v6707
        %v7644 = vadd.f32 %v4367, %v6709
        %v7645 = vadd.f32 %v4751, %v7093
        %v7646 = vadd.f32 %v4753, %v7095
        %v7647 = vadd.f32 %v5137, %v7479
        %v7648 = vadd.f32 %v5139, %v7481
        %v7649 = vadd.f32 %v4369, %v6711
        %v7650 = vadd.f32 %v4371, %v6713
        %v7651 = vadd.f32 %v4755, %v7097
        %v7652 = vadd.f32 %v4757, %v7099
        %v7653 = vadd.f32 %v5141, %v7483
        %v7654 = vadd.f32 %v5143, %v7485
        %v7655 = vadd.f32 %v4375, %v6717
        %v7656 = vadd.f32 %v4377, %v6719
        %v7657 = vadd.f32 %v4761, %v7103
        %v7658 = vadd.f32 %v4763, %v7105
        %v7659 = vadd.f32 %v5147, %v7489
        %v7660 = vadd.f32 %v5149, %v7491
        %v7661 = vadd.f32 %v4379, %v6721
        %v7662 = vadd.f32 %v4381, %v6723
        %v7663 = vadd.f32 %v4765, %v7107
        %v7664 = vadd.f32 %v4767, %v7109
        %v7665 = vadd.f32 %v5151, %v7493
        %v7666 = vadd.f32 %v5153, %v7495
        %v7667 = vadd.f32 %v4385, %v6727
        %v7668 = vadd.f32 %v4387, %v6729
        %v7669 = vadd.f32 %v4771, %v7113
        %v7670 = vadd.f32 %v4773, %v7115
        %v7671 = vadd.f32 %v5157, %v7499
        %v7672 = vadd.f32 %v5159, %v7501
        %v7673 = vadd.f32 %v4389, %v6731
        %v7674 = vadd.f32 %v4391, %v6733
        %v7675 = vadd.f32 %v4775, %v7117
        %v7676 = vadd.f32 %v4777, %v7119
        %v7677 = vadd.f32 %v5161, %v7503
        %v7678 = vadd.f32 %v5163, %v7505
        %v7679 = vadd.f32 %v4395, %v6737
        %v7680 = vadd.f32 %v4397, %v6739
        %v7681 = vadd.f32 %v4781, %v7123
        %v7682 = vadd.f32 %v4783, %v7125
        %v7683 = vadd.f32 %v5167, %v7509
        %v7684 = vadd.f32 %v5169, %v7511
        %v7685 = vadd.f32 %v4399, %v6741
        %v7686 = vadd.f32 %v4401, %v6743
        %v7687 = vadd.f32 %v4785, %v7127
        %v7688 = vadd.f32 %v4787, %v7129
        %v7689 = vadd.f32 %v5171, %v7513
        %v7690 = vadd.f32 %v5173, %v7515
        %v7691 = vadd.f32 %v4405, %v6747
        %v7692 = vadd.f32 %v4407, %v6749
        %v7693 = vadd.f32 %v4791, %v7133
        %v7694 = vadd.f32 %v4793, %v7135
        %v7695 = vadd.f32 %v5177, %v7519
        %v7696 = vadd.f32 %v5179, %v7521
        %v7697 = vadd.f32 %v4409, %v6751
        %v7698 = vadd.f32 %v4411, %v6753
        %v7699 = vadd.f32 %v4795, %v7137
        %v7700 = vadd.f32 %v4797, %v7139
        %v7701 = vadd.f32 %v5181, %v7523
        %v7702 = vadd.f32 %v5183, %v7525
        %v7703 = vadd.f32 %v4415, %v6757
        %v7704 = vadd.f32 %v4417, %v6759
        %v7705 = vadd.f32 %v4801, %v7143
        %v7706 = vadd.f32 %v4803, %v7145
        %v7707 = vadd.f32 %v5187, %v7529
        %v7708 = vadd.f32 %v5189, %v7531
        %v7709 = vadd.f32 %v4419, %v6761
        %v7710 = vadd.f32 %v4421, %v6763
        %v7711 = vadd.f32 %v4805, %v7147
        %v7712 = vadd.f32 %v4807, %v7149
        %v7713 = vadd.f32 %v5191, %v7533
        %v7714 = vadd.f32 %v5193, %v7535
        %v7715 = vadd.f32 %v4425, %v6767
        %v7716 = vadd.f32 %v4427, %v6769
        %v7717 = vadd.f32 %v4811, %v7153
        %v7718 = vadd.f32 %v4813, %v7155
        %v7719 = vadd.f32 %v5197, %v7539
        %v7720 = vadd.f32 %v5199, %v7541
        %v7721 = vadd.f32 %v4429, %v6771
        %v7722 = vadd.f32 %v4431, %v6773
        %v7723 = vadd.f32 %v4815, %v7157
        %v7724 = vadd.f32 %v4817, %v7159
        %v7725 = vadd.f32 %v5201, %v7543
        %v7726 = vadd.f32 %v5203, %v7545
        %v7727 = vadd.f32 %v4435, %v6777
        %v7728 = vadd.f32 %v4437, %v6779
        %v7729 = vadd.f32 %v4821, %v7163
        %v7730 = vadd.f32 %v4823, %v7165
        %v7731 = vadd.f32 %v5207, %v7549
        %v7732 = vadd.f32 %v5209, %v7551
        %v7733 = vadd.f32 %v4439, %v6781
        %v7734 = vadd.f32 %v4441, %v6783
        %v7735 = vadd.f32 %v4825, %v7167
        %v7736 = vadd.f32 %v4827, %v7169
        %v7737 = vadd.f32 %v5211, %v7553
        %v7738 = vadd.f32 %v5213, %v7555
        %v7739 = vadd.f32 %v4445, %v6787
        %v7740 = vadd.f32 %v4447, %v6789
        %v7741 = vadd.f32 %v4831, %v7173
        %v7742 = vadd.f32 %v4833, %v7175
        %v7743 = vadd.f32 %v5217, %v7559
        %v7744 = vadd.f32 %v5219, %v7561
        %v7745 = vadd.f32 %v4449, %v6791
        %v7746 = vadd.f32 %v4451, %v6793
        %v7747 = vadd.f32 %v4835, %v7177
        %v7748 = vadd.f32 %v4837, %v7179
        %v7749 = vadd.f32 %v5221, %v7563
        %v7750 = vadd.f32 %v5223, %v7565
        %v7751 = vadd.f32 %v4455, %v6797
        %v7752 = vadd.f32 %v4457, %v6799
        %v7753 = vadd.f32 %v4841, %v7183
        %v7754 = vadd.f32 %v4843, %v7185
        %v7755 = vadd.f32 %v5227, %v7569
        %v7756 = vadd.f32 %v5229, %v7571
        %v7757 = vadd.f32 %v4459, %v6801
        %v7758 = vadd.f32 %v4461, %v6803
        %v7759 = vadd.f32 %v4845, %v7187
        %v7760 = vadd.f32 %v4847, %v7189
        %v7761 = vadd.f32 %v5231, %v7573
        %v7762 = vadd.f32 %v5233, %v7575
        %v7763 = vadd.f32 %v4465, %v6807
        %v7764 = vadd.f32 %v4467, %v6809
        %v7765 = vadd.f32 %v4851, %v7193
        %v7766 = vadd.f32 %v4853, %v7195
        %v7767 = vadd.f32 %v5237, %v7579
        %v7768 = vadd.f32 %v5239, %v7581
        %v7769 = vadd.f32 %v4469, %v6811
        %v7770 = vadd.f32 %v4471, %v6813
        %v7771 = vadd.f32 %v4855, %v7197
        %v7772 = vadd.f32 %v4857, %v7199
        %v7773 = vadd.f32 %v5241, %v7583
        %v7774 = vadd.f32 %v5243, %v7585
        %v7775 = vadd.f32 %v4475, %v6817
        %v7776 = vadd.f32 %v4477, %v6819
        %v7777 = vadd.f32 %v4861, %v7203
        %v7778 = vadd.f32 %v4863, %v7205
        %v7779 = vadd.f32 %v5247, %v7589
        %v7780 = vadd.f32 %v5249, %v7591
        %v7781 = vadd.f32 %v4479, %v6821
        %v7782 = vadd.f32 %v4481, %v6823
        %v7783 = vadd.f32 %v4865, %v7207
        %v7784 = vadd.f32 %v4867, %v7209
        %v7785 = vadd.f32 %v5251, %v7593
        %v7786 = vadd.f32 %v5253, %v7595
        %v7787 = vadd.f32 %v4485, %v6827
        %v7788 = vadd.f32 %v4487, %v6829
        %v7789 = vadd.f32 %v4871, %v7213
        %v7790 = vadd.f32 %v4873, %v7215
        %v7791 = vadd.f32 %v5257, %v7599
        %v7792 = vadd.f32 %v5259, %v7601
        %v7793 = vadd.f32 %v4489, %v6831
        %v7794 = vadd.f32 %v4491, %v6833
        %v7795 = vadd.f32 %v4875, %v7217
        %v7796 = vadd.f32 %v4877, %v7219
        %v7797 = vadd.f32 %v5261, %v7603
        %v7798 = vadd.f32 %v5263, %v7605
        %v7799 = vld [vmem:[%s483] sm:$0xff]
        %v7800 = vld [vmem:[%s483 + $0x8] sm:$0xf]
        %v7801 = vld [vmem:[%s483 + $0xc] sm:$0xff]
        %v7802 = vld [vmem:[%s483 + $0x14] sm:$0xf]
        %v7803 = vld [vmem:[%s483 + $0x18] sm:$0xff]
        %v7804 = vld [vmem:[%s483 + $0x20] sm:$0xf]
        %v7805 = vld [vmem:[%s483 + $0x24] sm:$0xff]
        %v7806 = vld [vmem:[%s483 + $0x2c] sm:$0xf]
        %v7807 = vld [vmem:[%s483 + $0x30] sm:$0xff]
        %v7808 = vld [vmem:[%s483 + $0x38] sm:$0xf]
        %v7809 = vld [vmem:[%s483 + $0x3c] sm:$0xff]
        %v7810 = vld [vmem:[%s483 + $0x44] sm:$0xf]
        %v7811 = vld [vmem:[%s483 + $0x48] sm:$0xff]
        %v7812 = vld [vmem:[%s483 + $0x50] sm:$0xf]
        %v7813 = vld [vmem:[%s483 + $0x54] sm:$0xff]
        %v7814 = vld [vmem:[%s483 + $0x5c] sm:$0xf]
        %v7815 = vld [vmem:[%s483 + $0x60] sm:$0xff]
        %v7816 = vld [vmem:[%s483 + $0x68] sm:$0xf]
        %v7817 = vld [vmem:[%s483 + $0x6c] sm:$0xff]
        %v7818 = vld [vmem:[%s483 + $0x74] sm:$0xf]
        %v7819 = vld [vmem:[%s483 + $0x78] sm:$0xff]
        %v7820 = vld [vmem:[%s483 + $0x80] sm:$0xf]
        %v7821 = vld [vmem:[%s483 + $0x84] sm:$0xff]
        %v7822 = vld [vmem:[%s483 + $0x8c] sm:$0xf]
        %v7823 = vld [vmem:[%s483 + $0x90] sm:$0xff]
        %v7824 = vld [vmem:[%s483 + $0x98] sm:$0xf]
        %v7825 = vld [vmem:[%s483 + $0x9c] sm:$0xff]
        %v7826 = vld [vmem:[%s483 + $0xa4] sm:$0xf]
        %v7827 = vld [vmem:[%s483 + $0xa8] sm:$0xff]
        %v7828 = vld [vmem:[%s483 + $0xb0] sm:$0xf]
        %v7829 = vld [vmem:[%s483 + $0xb4] sm:$0xff]
        %v7830 = vld [vmem:[%s483 + $0xbc] sm:$0xf]
        %v7831 = vld [vmem:[%s483 + $0xc0] sm:$0xff]
        %v7832 = vld [vmem:[%s483 + $0xc8] sm:$0xf]
        %v7833 = vld [vmem:[%s483 + $0xcc] sm:$0xff]
        %v7834 = vld [vmem:[%s483 + $0xd4] sm:$0xf]
        %v7835 = vld [vmem:[%s483 + $0xd8] sm:$0xff]
        %v7836 = vld [vmem:[%s483 + $0xe0] sm:$0xf]
        %v7837 = vld [vmem:[%s483 + $0xe4] sm:$0xff]
        %v7838 = vld [vmem:[%s483 + $0xec] sm:$0xf]
        %v7839 = vld [vmem:[%s483 + $0xf0] sm:$0xff]
        %v7840 = vld [vmem:[%s483 + $0xf8] sm:$0xf]
        %v7841 = vld [vmem:[%s483 + $0xfc] sm:$0xff]
        %v7842 = vld [vmem:[%s483 + $0x104] sm:$0xf]
        %v7843 = vld [vmem:[%s483 + $0x108] sm:$0xff]
        %v7844 = vld [vmem:[%s483 + $0x110] sm:$0xf]
        %v7845 = vld [vmem:[%s483 + $0x114] sm:$0xff]
        %v7846 = vld [vmem:[%s483 + $0x11c] sm:$0xf]
        %v7847 = vld [vmem:[%s483 + $0x120] sm:$0xff]
        %v7848 = vld [vmem:[%s483 + $0x128] sm:$0xf]
        %v7849 = vld [vmem:[%s483 + $0x12c] sm:$0xff]
        %v7850 = vld [vmem:[%s483 + $0x134] sm:$0xf]
        %v7851 = vld [vmem:[%s483 + $0x138] sm:$0xff]
        %v7852 = vld [vmem:[%s483 + $0x140] sm:$0xf]
        %v7853 = vld [vmem:[%s483 + $0x144] sm:$0xff]
        %v7854 = vld [vmem:[%s483 + $0x14c] sm:$0xf]
        %v7855 = vld [vmem:[%s483 + $0x150] sm:$0xff]
        %v7856 = vld [vmem:[%s483 + $0x158] sm:$0xf]
        %v7857 = vld [vmem:[%s483 + $0x15c] sm:$0xff]
        %v7858 = vld [vmem:[%s483 + $0x164] sm:$0xf]
        %v7859 = vld [vmem:[%s483 + $0x168] sm:$0xff]
        %v7860 = vld [vmem:[%s483 + $0x170] sm:$0xf]
        %v7861 = vld [vmem:[%s483 + $0x174] sm:$0xff]
        %v7862 = vld [vmem:[%s483 + $0x17c] sm:$0xf]
        %v7863 = vld [vmem:[%s492 + $0xd80] sm:$0xff]
        %v7864 = vld [vmem:[%s492 + $0xd88] sm:$0xff]
        %v7865 = vld [vmem:[%s492 + $0xd90] sm:$0xff]
        %v7866 = vld [vmem:[%s492 + $0xd98] sm:$0xff]
        %v7867 = vld [vmem:[%s492 + $0xda0] sm:$0xff]
        %v7868 = vld [vmem:[%s492 + $0xda8] sm:$0xff]
        %v7869 = vld [vmem:[%s492 + $0xdb0] sm:$0xff]
        %v7870 = vld [vmem:[%s492 + $0xdb8] sm:$0xff]
        %v7871 = vld [vmem:[%s492 + $0xdc0] sm:$0xff]
        %v7872 = vld [vmem:[%s492 + $0xdc8] sm:$0xff]
        %v7873 = vld [vmem:[%s492 + $0xdd0] sm:$0xff]
        %v7874 = vld [vmem:[%s492 + $0xdd8] sm:$0xff]
        %v7875 = vld [vmem:[%s492 + $0xde0] sm:$0xff]
        %v7876 = vld [vmem:[%s492 + $0xde8] sm:$0xff]
        %v7877 = vld [vmem:[%s492 + $0xdf0] sm:$0xff]
        %v7878 = vld [vmem:[%s492 + $0xdf8] sm:$0xff]
        %v7879 = vld [vmem:[%s492 + $0xe00] sm:$0xff]
        %v7880 = vld [vmem:[%s492 + $0xe08] sm:$0xff]
        %v7881 = vld [vmem:[%s492 + $0xe10] sm:$0xff]
        %v7882 = vld [vmem:[%s492 + $0xe18] sm:$0xff]
        %v7883 = vld [vmem:[%s492 + $0xe20] sm:$0xff]
        %v7884 = vld [vmem:[%s492 + $0xe28] sm:$0xff]
        %v7885 = vld [vmem:[%s492 + $0xe30] sm:$0xff]
        %v7886 = vld [vmem:[%s492 + $0xe38] sm:$0xff]
        %v7887 = vld [vmem:[%s492 + $0xe40] sm:$0xff]
        %v7888 = vld [vmem:[%s492 + $0xe48] sm:$0xff]
        %v7889 = vld [vmem:[%s492 + $0xe50] sm:$0xff]
        %v7890 = vld [vmem:[%s492 + $0xe58] sm:$0xff]
        %v7891 = vld [vmem:[%s492 + $0xe60] sm:$0xff]
        %v7892 = vld [vmem:[%s492 + $0xe68] sm:$0xff]
        %v7893 = vld [vmem:[%s492 + $0xe70] sm:$0xff]
        %v7894 = vld [vmem:[%s492 + $0xe78] sm:$0xff]
        %v7895 = vld [vmem:[%s492 + $0xe80] sm:$0xff]
        %v7896 = vld [vmem:[%s492 + $0xe88] sm:$0xff]
        %v7897 = vld [vmem:[%s492 + $0xe90] sm:$0xff]
        %v7898 = vld [vmem:[%s492 + $0xe98] sm:$0xff]
        %v7899 = vld [vmem:[%s492 + $0xea0] sm:$0xff]
        %v7900 = vld [vmem:[%s492 + $0xea8] sm:$0xff]
        %v7901 = vld [vmem:[%s492 + $0xeb0] sm:$0xff]
        %v7902 = vld [vmem:[%s492 + $0xeb8] sm:$0xff]
        %v7903 = vld [vmem:[%s492 + $0xec0] sm:$0xff]
        %v7904 = vld [vmem:[%s492 + $0xec8] sm:$0xff]
        %v7905 = vld [vmem:[%s492 + $0xed0] sm:$0xff]
        %v7906 = vld [vmem:[%s492 + $0xed8] sm:$0xff]
        %v7907 = vld [vmem:[%s492 + $0xee0] sm:$0xff]
        %v7908 = vld [vmem:[%s492 + $0xee8] sm:$0xff]
        %v7909 = vld [vmem:[%s492 + $0xef0] sm:$0xff]
        %v7910 = vld [vmem:[%s492 + $0xef8] sm:$0xff]
        %v7911 = vld [vmem:[%s492 + $0xf00] sm:$0xff]
        %v7912 = vld [vmem:[%s492 + $0xf08] sm:$0xff]
        %v7913 = vld [vmem:[%s492 + $0xf10] sm:$0xff]
        %v7914 = vld [vmem:[%s492 + $0xf18] sm:$0xff]
        %v7915 = vld [vmem:[%s492 + $0xf20] sm:$0xff]
        %v7916 = vld [vmem:[%s492 + $0xf28] sm:$0xff]
        %v7917 = vld [vmem:[%s492 + $0xf30] sm:$0xff]
        %v7918 = vld [vmem:[%s492 + $0xf38] sm:$0xff]
        %v7919 = vld [vmem:[%s492 + $0xf40] sm:$0xff]
        %v7920 = vld [vmem:[%s492 + $0xf48] sm:$0xff]
        %v7921 = vld [vmem:[%s492 + $0xf50] sm:$0xff]
        %v7922 = vld [vmem:[%s492 + $0xf58] sm:$0xff]
        %v7923 = vld [vmem:[%s492 + $0xf60] sm:$0xff]
        %v7924 = vld [vmem:[%s492 + $0xf68] sm:$0xff]
        %v7925 = vld [vmem:[%s492 + $0xf70] sm:$0xff]
        %v7926 = vld [vmem:[%s492 + $0xf78] sm:$0xff]
        %v7927 = vld [vmem:[%s492 + $0xf80] sm:$0xff]
        %v7928 = vld [vmem:[%s492 + $0xf88] sm:$0xff]
        %v7929 = vld [vmem:[%s492 + $0xf90] sm:$0xff]
        %v7930 = vld [vmem:[%s492 + $0xf98] sm:$0xff]
        %v7931 = vld [vmem:[%s492 + $0xfa0] sm:$0xff]
        %v7932 = vld [vmem:[%s492 + $0xfa8] sm:$0xff]
        %v7933 = vld [vmem:[%s492 + $0xfb0] sm:$0xff]
        %v7934 = vld [vmem:[%s492 + $0xfb8] sm:$0xff]
        %v7935 = vld [vmem:[%s492 + $0xfc0] sm:$0xff]
        %v7936 = vld [vmem:[%s492 + $0xfc8] sm:$0xff]
        %v7937 = vld [vmem:[%s492 + $0xfd0] sm:$0xff]
        %v7938 = vld [vmem:[%s492 + $0xfd8] sm:$0xff]
        %v7939 = vld [vmem:[%s492 + $0xfe0] sm:$0xff]
        %v7940 = vld [vmem:[%s492 + $0xfe8] sm:$0xff]
        %v7941 = vld [vmem:[%s492 + $0xff0] sm:$0xff]
        %v7942 = vld [vmem:[%s492 + $0xff8] sm:$0xff]
        %v7943 = vld [vmem:[%s492 + $0x1000] sm:$0xff]
        %v7944 = vld [vmem:[%s492 + $0x1008] sm:$0xff]
        %v7945 = vld [vmem:[%s492 + $0x1010] sm:$0xff]
        %v7946 = vld [vmem:[%s492 + $0x1018] sm:$0xff]
        %v7947 = vld [vmem:[%s492 + $0x1020] sm:$0xff]
        %v7948 = vld [vmem:[%s492 + $0x1028] sm:$0xff]
        %v7949 = vld [vmem:[%s492 + $0x1030] sm:$0xff]
        %v7950 = vld [vmem:[%s492 + $0x1038] sm:$0xff]
        %v7951 = vld [vmem:[%s492 + $0x1040] sm:$0xff]
        %v7952 = vld [vmem:[%s492 + $0x1048] sm:$0xff]
        %v7953 = vld [vmem:[%s492 + $0x1050] sm:$0xff]
        %v7954 = vld [vmem:[%s492 + $0x1058] sm:$0xff]
        %v7955 = vld [vmem:[%s492 + $0x1060] sm:$0xff]
        %v7956 = vld [vmem:[%s492 + $0x1068] sm:$0xff]
        %v7957 = vld [vmem:[%s492 + $0x1070] sm:$0xff]
        %v7958 = vld [vmem:[%s492 + $0x1078] sm:$0xff]
        %v7959 = vld [vmem:[%s492 + $0x1080] sm:$0xff]
        %v7960 = vld [vmem:[%s492 + $0x1088] sm:$0xff]
        %v7961 = vld [vmem:[%s492 + $0x1090] sm:$0xff]
        %v7962 = vld [vmem:[%s492 + $0x1098] sm:$0xff]
        %v7963 = vld [vmem:[%s492 + $0x10a0] sm:$0xff]
        %v7964 = vld [vmem:[%s492 + $0x10a8] sm:$0xff]
        %v7965 = vld [vmem:[%s492 + $0x10b0] sm:$0xff]
        %v7966 = vld [vmem:[%s492 + $0x10b8] sm:$0xff]
        %v7967 = vld [vmem:[%s492 + $0x10c0] sm:$0xff]
        %v7968 = vld [vmem:[%s492 + $0x10c8] sm:$0xff]
        %v7969 = vld [vmem:[%s492 + $0x10d0] sm:$0xff]
        %v7970 = vld [vmem:[%s492 + $0x10d8] sm:$0xff]
        %v7971 = vld [vmem:[%s492 + $0x10e0] sm:$0xff]
        %v7972 = vld [vmem:[%s492 + $0x10e8] sm:$0xff]
        %v7973 = vld [vmem:[%s492 + $0x10f0] sm:$0xff]
        %v7974 = vld [vmem:[%s492 + $0x10f8] sm:$0xff]
        %v7975 = vld [vmem:[%s492 + $0x1100] sm:$0xff]
        %v7976 = vld [vmem:[%s492 + $0x1108] sm:$0xff]
        %v7977 = vld [vmem:[%s492 + $0x1110] sm:$0xff]
        %v7978 = vld [vmem:[%s492 + $0x1118] sm:$0xff]
        %v7979 = vld [vmem:[%s492 + $0x1120] sm:$0xff]
        %v7980 = vld [vmem:[%s492 + $0x1128] sm:$0xff]
        %v7981 = vld [vmem:[%s492 + $0x1130] sm:$0xff]
        %v7982 = vld [vmem:[%s492 + $0x1138] sm:$0xff]
        %v7983 = vld [vmem:[%s492 + $0x1140] sm:$0xff]
        %v7984 = vld [vmem:[%s492 + $0x1148] sm:$0xff]
        %v7985 = vld [vmem:[%s492 + $0x1150] sm:$0xff]
        %v7986 = vld [vmem:[%s492 + $0x1158] sm:$0xff]
        %v7987 = vld [vmem:[%s492 + $0x1160] sm:$0xff]
        %v7988 = vld [vmem:[%s492 + $0x1168] sm:$0xff]
        %v7989 = vld [vmem:[%s492 + $0x1170] sm:$0xff]
        %v7990 = vld [vmem:[%s492 + $0x1178] sm:$0xff]
        %v7991 = vld [vmem:[%s492 + $0x1180] sm:$0xff]
        %v7992 = vld [vmem:[%s492 + $0x1188] sm:$0xff]
        %v7993 = vld [vmem:[%s492 + $0x1190] sm:$0xff]
        %v7994 = vld [vmem:[%s492 + $0x1198] sm:$0xff]
        %v7995 = vld [vmem:[%s492 + $0x11a0] sm:$0xff]
        %v7996 = vld [vmem:[%s492 + $0x11a8] sm:$0xff]
        %v7997 = vld [vmem:[%s492 + $0x11b0] sm:$0xff]
        %v7998 = vld [vmem:[%s492 + $0x11b8] sm:$0xff]
        %v7999 = vld [vmem:[%s492 + $0x11c0] sm:$0xff]
        %v8000 = vld [vmem:[%s492 + $0x11c8] sm:$0xff]
        %v8001 = vld [vmem:[%s492 + $0x11d0] sm:$0xff]
        %v8002 = vld [vmem:[%s492 + $0x11d8] sm:$0xff]
        %v8003 = vld [vmem:[%s492 + $0x11e0] sm:$0xff]
        %v8004 = vld [vmem:[%s492 + $0x11e8] sm:$0xff]
        %v8005 = vld [vmem:[%s492 + $0x11f0] sm:$0xff]
        %v8006 = vld [vmem:[%s492 + $0x11f8] sm:$0xff]
        %v8071 = vunpack.c.l.b16 %v7799
        %v8072 = vunpack.c.h.b16 %v7799
        %v8073 = vunpack.c.l.b16 %v7800
        %v8074 = vunpack.c.l.b16 %v7801
        %v8075 = vunpack.c.h.b16 %v7801
        %v8076 = vunpack.c.l.b16 %v7802
        %v8077 = vunpack.c.l.b16 %v7803
        %v8078 = vunpack.c.h.b16 %v7803
        %v8079 = vunpack.c.l.b16 %v7804
        %v8080 = vunpack.c.l.b16 %v7805
        %v8081 = vunpack.c.h.b16 %v7805
        %v8082 = vunpack.c.l.b16 %v7806
        %v8083 = vunpack.c.l.b16 %v7807
        %v8084 = vunpack.c.h.b16 %v7807
        %v8085 = vunpack.c.l.b16 %v7808
        %v8086 = vunpack.c.l.b16 %v7809
        %v8087 = vunpack.c.h.b16 %v7809
        %v8088 = vunpack.c.l.b16 %v7810
        %v8089 = vunpack.c.l.b16 %v7811
        %v8090 = vunpack.c.h.b16 %v7811
        %v8091 = vunpack.c.l.b16 %v7812
        %v8092 = vunpack.c.l.b16 %v7813
        %v8093 = vunpack.c.h.b16 %v7813
        %v8094 = vunpack.c.l.b16 %v7814
        %v8095 = vunpack.c.l.b16 %v7815
        %v8096 = vunpack.c.h.b16 %v7815
        %v8097 = vunpack.c.l.b16 %v7816
        %v8098 = vunpack.c.l.b16 %v7817
        %v8099 = vunpack.c.h.b16 %v7817
        %v8100 = vunpack.c.l.b16 %v7818
        %v8101 = vunpack.c.l.b16 %v7819
        %v8102 = vunpack.c.h.b16 %v7819
        %v8103 = vunpack.c.l.b16 %v7820
        %v8104 = vunpack.c.l.b16 %v7821
        %v8105 = vunpack.c.h.b16 %v7821
        %v8106 = vunpack.c.l.b16 %v7822
        %v8107 = vunpack.c.l.b16 %v7823
        %v8108 = vunpack.c.h.b16 %v7823
        %v8109 = vunpack.c.l.b16 %v7824
        %v8110 = vunpack.c.l.b16 %v7825
        %v8111 = vunpack.c.h.b16 %v7825
        %v8112 = vunpack.c.l.b16 %v7826
        %v8113 = vunpack.c.l.b16 %v7827
        %v8114 = vunpack.c.h.b16 %v7827
        %v8115 = vunpack.c.l.b16 %v7828
        %v8116 = vunpack.c.l.b16 %v7829
        %v8117 = vunpack.c.h.b16 %v7829
        %v8118 = vunpack.c.l.b16 %v7830
        %v8119 = vunpack.c.l.b16 %v7831
        %v8120 = vunpack.c.h.b16 %v7831
        %v8121 = vunpack.c.l.b16 %v7832
        %v8122 = vunpack.c.l.b16 %v7833
        %v8123 = vunpack.c.h.b16 %v7833
        %v8124 = vunpack.c.l.b16 %v7834
        %v8125 = vunpack.c.l.b16 %v7835
        %v8126 = vunpack.c.h.b16 %v7835
        %v8127 = vunpack.c.l.b16 %v7836
        %v8128 = vunpack.c.l.b16 %v7837
        %v8129 = vunpack.c.h.b16 %v7837
        %v8130 = vunpack.c.l.b16 %v7838
        %v8131 = vunpack.c.l.b16 %v7839
        %v8132 = vunpack.c.h.b16 %v7839
        %v8133 = vunpack.c.l.b16 %v7840
        %v8134 = vunpack.c.l.b16 %v7841
        %v8135 = vunpack.c.h.b16 %v7841
        %v8136 = vunpack.c.l.b16 %v7842
        %v8137 = vunpack.c.l.b16 %v7843
        %v8138 = vunpack.c.h.b16 %v7843
        %v8139 = vunpack.c.l.b16 %v7844
        %v8140 = vunpack.c.l.b16 %v7845
        %v8141 = vunpack.c.h.b16 %v7845
        %v8142 = vunpack.c.l.b16 %v7846
        %v8143 = vunpack.c.l.b16 %v7847
        %v8144 = vunpack.c.h.b16 %v7847
        %v8145 = vunpack.c.l.b16 %v7848
        %v8146 = vunpack.c.l.b16 %v7849
        %v8147 = vunpack.c.h.b16 %v7849
        %v8148 = vunpack.c.l.b16 %v7850
        %v8149 = vunpack.c.l.b16 %v7851
        %v8150 = vunpack.c.h.b16 %v7851
        %v8151 = vunpack.c.l.b16 %v7852
        %v8152 = vunpack.c.l.b16 %v7853
        %v8153 = vunpack.c.h.b16 %v7853
        %v8154 = vunpack.c.l.b16 %v7854
        %v8155 = vunpack.c.l.b16 %v7855
        %v8156 = vunpack.c.h.b16 %v7855
        %v8157 = vunpack.c.l.b16 %v7856
        %v8158 = vunpack.c.l.b16 %v7857
        %v8159 = vunpack.c.h.b16 %v7857
        %v8160 = vunpack.c.l.b16 %v7858
        %v8161 = vunpack.c.l.b16 %v7859
        %v8162 = vunpack.c.h.b16 %v7859
        %v8163 = vunpack.c.l.b16 %v7860
        %v8164 = vunpack.c.l.b16 %v7861
        %v8165 = vunpack.c.h.b16 %v7861
        %v8166 = vunpack.c.l.b16 %v7862
        %v8167 = vpack.c.b16 %v8074, %v8071
        %v8168 = vpack.c.b16 %v8075, %v8072
        %v8169 = vpack.c.b16 %v8076, %v8073
        %v8170 = vpack.c.b16 %v8080, %v8077
        %v8171 = vpack.c.b16 %v8081, %v8078
        %v8172 = vpack.c.b16 %v8082, %v8079
        %v8173 = vpack.c.b16 %v8086, %v8083
        %v8174 = vpack.c.b16 %v8087, %v8084
        %v8175 = vpack.c.b16 %v8088, %v8085
        %v8176 = vpack.c.b16 %v8092, %v8089
        %v8177 = vpack.c.b16 %v8093, %v8090
        %v8178 = vpack.c.b16 %v8094, %v8091
        %v8179 = vpack.c.b16 %v8098, %v8095
        %v8180 = vpack.c.b16 %v8099, %v8096
        %v8181 = vpack.c.b16 %v8100, %v8097
        %v8182 = vpack.c.b16 %v8104, %v8101
        %v8183 = vpack.c.b16 %v8105, %v8102
        %v8184 = vpack.c.b16 %v8106, %v8103
        %v8185 = vpack.c.b16 %v8110, %v8107
        %v8186 = vpack.c.b16 %v8111, %v8108
        %v8187 = vpack.c.b16 %v8112, %v8109
        %v8188 = vpack.c.b16 %v8116, %v8113
        %v8189 = vpack.c.b16 %v8117, %v8114
        %v8190 = vpack.c.b16 %v8118, %v8115
        %v8191 = vpack.c.b16 %v8122, %v8119
        %v8192 = vpack.c.b16 %v8123, %v8120
        %v8193 = vpack.c.b16 %v8124, %v8121
        %v8194 = vpack.c.b16 %v8128, %v8125
        %v8195 = vpack.c.b16 %v8129, %v8126
        %v8196 = vpack.c.b16 %v8130, %v8127
        %v8197 = vpack.c.b16 %v8134, %v8131
        %v8198 = vpack.c.b16 %v8135, %v8132
        %v8199 = vpack.c.b16 %v8136, %v8133
        %v8200 = vpack.c.b16 %v8140, %v8137
        %v8201 = vpack.c.b16 %v8141, %v8138
        %v8202 = vpack.c.b16 %v8142, %v8139
        %v8203 = vpack.c.b16 %v8146, %v8143
        %v8204 = vpack.c.b16 %v8147, %v8144
        %v8205 = vpack.c.b16 %v8148, %v8145
        %v8206 = vpack.c.b16 %v8152, %v8149
        %v8207 = vpack.c.b16 %v8153, %v8150
        %v8208 = vpack.c.b16 %v8154, %v8151
        %v8209 = vpack.c.b16 %v8158, %v8155
        %v8210 = vpack.c.b16 %v8159, %v8156
        %v8211 = vpack.c.b16 %v8160, %v8157
        %v8212 = vpack.c.b16 %v8164, %v8161
        %v8213 = vpack.c.b16 %v8165, %v8162
        %v8214 = vpack.c.b16 %v8166, %v8163
        %v8407 = vunpack.c.l.b16 %v7863
        %v8408 = vunpack.c.h.b16 %v7863
        %v8409 = vunpack.c.l.b16 %v7864
        %v8410 = vunpack.c.h.b16 %v7864
        %v8411 = vunpack.c.l.b16 %v7865
        %v8412 = vunpack.c.h.b16 %v7865
        %v8413 = vunpack.c.l.b16 %v7866
        %v8414 = vunpack.c.h.b16 %v7866
        %v8415 = vunpack.c.l.b16 %v7867
        %v8416 = vunpack.c.h.b16 %v7867
        %v8417 = vunpack.c.l.b16 %v7868
        %v8418 = vunpack.c.h.b16 %v7868
        %v8419 = vunpack.c.l.b16 %v7869
        %v8420 = vunpack.c.h.b16 %v7869
        %v8421 = vunpack.c.l.b16 %v7870
        %v8422 = vunpack.c.h.b16 %v7870
        %v8423 = vunpack.c.l.b16 %v7871
        %v8424 = vunpack.c.h.b16 %v7871
        %v8425 = vunpack.c.l.b16 %v7872
        %v8426 = vunpack.c.h.b16 %v7872
        %v8427 = vunpack.c.l.b16 %v7873
        %v8428 = vunpack.c.h.b16 %v7873
        %v8429 = vunpack.c.l.b16 %v7874
        %v8430 = vunpack.c.h.b16 %v7874
        %v8431 = vunpack.c.l.b16 %v7875
        %v8432 = vunpack.c.h.b16 %v7875
        %v8433 = vunpack.c.l.b16 %v7876
        %v8434 = vunpack.c.h.b16 %v7876
        %v8435 = vunpack.c.l.b16 %v7877
        %v8436 = vunpack.c.h.b16 %v7877
        %v8437 = vunpack.c.l.b16 %v7878
        %v8438 = vunpack.c.h.b16 %v7878
        %v8439 = vunpack.c.l.b16 %v7879
        %v8440 = vunpack.c.h.b16 %v7879
        %v8441 = vunpack.c.l.b16 %v7880
        %v8442 = vunpack.c.h.b16 %v7880
        %v8443 = vunpack.c.l.b16 %v7881
        %v8444 = vunpack.c.h.b16 %v7881
        %v8445 = vunpack.c.l.b16 %v7882
        %v8446 = vunpack.c.h.b16 %v7882
        %v8447 = vunpack.c.l.b16 %v7883
        %v8448 = vunpack.c.h.b16 %v7883
        %v8449 = vunpack.c.l.b16 %v7884
        %v8450 = vunpack.c.h.b16 %v7884
        %v8451 = vunpack.c.l.b16 %v7885
        %v8452 = vunpack.c.h.b16 %v7885
        %v8453 = vunpack.c.l.b16 %v7886
        %v8454 = vunpack.c.h.b16 %v7886
        %v8455 = vunpack.c.l.b16 %v7887
        %v8456 = vunpack.c.h.b16 %v7887
        %v8457 = vunpack.c.l.b16 %v7888
        %v8458 = vunpack.c.h.b16 %v7888
        %v8459 = vunpack.c.l.b16 %v7889
        %v8460 = vunpack.c.h.b16 %v7889
        %v8461 = vunpack.c.l.b16 %v7890
        %v8462 = vunpack.c.h.b16 %v7890
        %v8463 = vunpack.c.l.b16 %v7891
        %v8464 = vunpack.c.h.b16 %v7891
        %v8465 = vunpack.c.l.b16 %v7892
        %v8466 = vunpack.c.h.b16 %v7892
        %v8467 = vunpack.c.l.b16 %v7893
        %v8468 = vunpack.c.h.b16 %v7893
        %v8469 = vunpack.c.l.b16 %v7894
        %v8470 = vunpack.c.h.b16 %v7894
        %v8471 = vunpack.c.l.b16 %v7895
        %v8472 = vunpack.c.h.b16 %v7895
        %v8473 = vunpack.c.l.b16 %v7896
        %v8474 = vunpack.c.h.b16 %v7896
        %v8475 = vunpack.c.l.b16 %v7897
        %v8476 = vunpack.c.h.b16 %v7897
        %v8477 = vunpack.c.l.b16 %v7898
        %v8478 = vunpack.c.h.b16 %v7898
        %v8479 = vunpack.c.l.b16 %v7899
        %v8480 = vunpack.c.h.b16 %v7899
        %v8481 = vunpack.c.l.b16 %v7900
        %v8482 = vunpack.c.h.b16 %v7900
        %v8483 = vunpack.c.l.b16 %v7901
        %v8484 = vunpack.c.h.b16 %v7901
        %v8485 = vunpack.c.l.b16 %v7902
        %v8486 = vunpack.c.h.b16 %v7902
        %v8487 = vunpack.c.l.b16 %v7903
        %v8488 = vunpack.c.h.b16 %v7903
        %v8489 = vunpack.c.l.b16 %v7904
        %v8490 = vunpack.c.h.b16 %v7904
        %v8491 = vunpack.c.l.b16 %v7905
        %v8492 = vunpack.c.h.b16 %v7905
        %v8493 = vunpack.c.l.b16 %v7906
        %v8494 = vunpack.c.h.b16 %v7906
        %v8495 = vunpack.c.l.b16 %v7907
        %v8496 = vunpack.c.h.b16 %v7907
        %v8497 = vunpack.c.l.b16 %v7908
        %v8498 = vunpack.c.h.b16 %v7908
        %v8499 = vunpack.c.l.b16 %v7909
        %v8500 = vunpack.c.h.b16 %v7909
        %v8501 = vunpack.c.l.b16 %v7910
        %v8502 = vunpack.c.h.b16 %v7910
        %v8503 = vunpack.c.l.b16 %v7911
        %v8504 = vunpack.c.h.b16 %v7911
        %v8505 = vunpack.c.l.b16 %v7912
        %v8506 = vunpack.c.h.b16 %v7912
        %v8507 = vunpack.c.l.b16 %v7913
        %v8508 = vunpack.c.h.b16 %v7913
        %v8509 = vunpack.c.l.b16 %v7914
        %v8510 = vunpack.c.h.b16 %v7914
        %v8511 = vunpack.c.l.b16 %v7915
        %v8512 = vunpack.c.h.b16 %v7915
        %v8513 = vunpack.c.l.b16 %v7916
        %v8514 = vunpack.c.h.b16 %v7916
        %v8515 = vunpack.c.l.b16 %v7917
        %v8516 = vunpack.c.h.b16 %v7917
        %v8517 = vunpack.c.l.b16 %v7918
        %v8518 = vunpack.c.h.b16 %v7918
        %v8519 = vunpack.c.l.b16 %v7919
        %v8520 = vunpack.c.h.b16 %v7919
        %v8521 = vunpack.c.l.b16 %v7920
        %v8522 = vunpack.c.h.b16 %v7920
        %v8523 = vunpack.c.l.b16 %v7921
        %v8524 = vunpack.c.h.b16 %v7921
        %v8525 = vunpack.c.l.b16 %v7922
        %v8526 = vunpack.c.h.b16 %v7922
        %v8527 = vunpack.c.l.b16 %v7923
        %v8528 = vunpack.c.h.b16 %v7923
        %v8529 = vunpack.c.l.b16 %v7924
        %v8530 = vunpack.c.h.b16 %v7924
        %v8531 = vunpack.c.l.b16 %v7925
        %v8532 = vunpack.c.h.b16 %v7925
        %v8533 = vunpack.c.l.b16 %v7926
        %v8534 = vunpack.c.h.b16 %v7926
        %v8535 = vunpack.c.l.b16 %v7927
        %v8536 = vunpack.c.h.b16 %v7927
        %v8537 = vunpack.c.l.b16 %v7928
        %v8538 = vunpack.c.h.b16 %v7928
        %v8539 = vunpack.c.l.b16 %v7929
        %v8540 = vunpack.c.h.b16 %v7929
        %v8541 = vunpack.c.l.b16 %v7930
        %v8542 = vunpack.c.h.b16 %v7930
        %v8543 = vunpack.c.l.b16 %v7931
        %v8544 = vunpack.c.h.b16 %v7931
        %v8545 = vunpack.c.l.b16 %v7932
        %v8546 = vunpack.c.h.b16 %v7932
        %v8547 = vunpack.c.l.b16 %v7933
        %v8548 = vunpack.c.h.b16 %v7933
        %v8549 = vunpack.c.l.b16 %v7934
        %v8550 = vunpack.c.h.b16 %v7934
        %v8551 = vunpack.c.l.b16 %v7935
        %v8552 = vunpack.c.h.b16 %v7935
        %v8553 = vunpack.c.l.b16 %v7936
        %v8554 = vunpack.c.h.b16 %v7936
        %v8555 = vunpack.c.l.b16 %v7937
        %v8556 = vunpack.c.h.b16 %v7937
        %v8557 = vunpack.c.l.b16 %v7938
        %v8558 = vunpack.c.h.b16 %v7938
        %v8559 = vunpack.c.l.b16 %v7939
        %v8560 = vunpack.c.h.b16 %v7939
        %v8561 = vunpack.c.l.b16 %v7940
        %v8562 = vunpack.c.h.b16 %v7940
        %v8563 = vunpack.c.l.b16 %v7941
        %v8564 = vunpack.c.h.b16 %v7941
        %v8565 = vunpack.c.l.b16 %v7942
        %v8566 = vunpack.c.h.b16 %v7942
        %v8567 = vunpack.c.l.b16 %v7943
        %v8568 = vunpack.c.h.b16 %v7943
        %v8569 = vunpack.c.l.b16 %v7944
        %v8570 = vunpack.c.h.b16 %v7944
        %v8571 = vunpack.c.l.b16 %v7945
        %v8572 = vunpack.c.h.b16 %v7945
        %v8573 = vunpack.c.l.b16 %v7946
        %v8574 = vunpack.c.h.b16 %v7946
        %v8575 = vunpack.c.l.b16 %v7947
        %v8576 = vunpack.c.h.b16 %v7947
        %v8577 = vunpack.c.l.b16 %v7948
        %v8578 = vunpack.c.h.b16 %v7948
        %v8579 = vunpack.c.l.b16 %v7949
        %v8580 = vunpack.c.h.b16 %v7949
        %v8581 = vunpack.c.l.b16 %v7950
        %v8582 = vunpack.c.h.b16 %v7950
        %v8583 = vunpack.c.l.b16 %v7951
        %v8584 = vunpack.c.h.b16 %v7951
        %v8585 = vunpack.c.l.b16 %v7952
        %v8586 = vunpack.c.h.b16 %v7952
        %v8587 = vunpack.c.l.b16 %v7953
        %v8588 = vunpack.c.h.b16 %v7953
        %v8589 = vunpack.c.l.b16 %v7954
        %v8590 = vunpack.c.h.b16 %v7954
        %v8591 = vunpack.c.l.b16 %v7955
        %v8592 = vunpack.c.h.b16 %v7955
        %v8593 = vunpack.c.l.b16 %v7956
        %v8594 = vunpack.c.h.b16 %v7956
        %v8595 = vunpack.c.l.b16 %v7957
        %v8596 = vunpack.c.h.b16 %v7957
        %v8597 = vunpack.c.l.b16 %v7958
        %v8598 = vunpack.c.h.b16 %v7958
        %v8599 = vunpack.c.l.b16 %v7959
        %v8600 = vunpack.c.h.b16 %v7959
        %v8601 = vunpack.c.l.b16 %v7960
        %v8602 = vunpack.c.h.b16 %v7960
        %v8603 = vunpack.c.l.b16 %v7961
        %v8604 = vunpack.c.h.b16 %v7961
        %v8605 = vunpack.c.l.b16 %v7962
        %v8606 = vunpack.c.h.b16 %v7962
        %v8607 = vunpack.c.l.b16 %v7963
        %v8608 = vunpack.c.h.b16 %v7963
        %v8609 = vunpack.c.l.b16 %v7964
        %v8610 = vunpack.c.h.b16 %v7964
        %v8611 = vunpack.c.l.b16 %v7965
        %v8612 = vunpack.c.h.b16 %v7965
        %v8613 = vunpack.c.l.b16 %v7966
        %v8614 = vunpack.c.h.b16 %v7966
        %v8615 = vunpack.c.l.b16 %v7967
        %v8616 = vunpack.c.h.b16 %v7967
        %v8617 = vunpack.c.l.b16 %v7968
        %v8618 = vunpack.c.h.b16 %v7968
        %v8619 = vunpack.c.l.b16 %v7969
        %v8620 = vunpack.c.h.b16 %v7969
        %v8621 = vunpack.c.l.b16 %v7970
        %v8622 = vunpack.c.h.b16 %v7970
        %v8623 = vunpack.c.l.b16 %v7971
        %v8624 = vunpack.c.h.b16 %v7971
        %v8625 = vunpack.c.l.b16 %v7972
        %v8626 = vunpack.c.h.b16 %v7972
        %v8627 = vunpack.c.l.b16 %v7973
        %v8628 = vunpack.c.h.b16 %v7973
        %v8629 = vunpack.c.l.b16 %v7974
        %v8630 = vunpack.c.h.b16 %v7974
        %v8631 = vunpack.c.l.b16 %v7975
        %v8632 = vunpack.c.h.b16 %v7975
        %v8633 = vunpack.c.l.b16 %v7976
        %v8634 = vunpack.c.h.b16 %v7976
        %v8635 = vunpack.c.l.b16 %v7977
        %v8636 = vunpack.c.h.b16 %v7977
        %v8637 = vunpack.c.l.b16 %v7978
        %v8638 = vunpack.c.h.b16 %v7978
        %v8639 = vunpack.c.l.b16 %v7979
        %v8640 = vunpack.c.h.b16 %v7979
        %v8641 = vunpack.c.l.b16 %v7980
        %v8642 = vunpack.c.h.b16 %v7980
        %v8643 = vunpack.c.l.b16 %v7981
        %v8644 = vunpack.c.h.b16 %v7981
        %v8645 = vunpack.c.l.b16 %v7982
        %v8646 = vunpack.c.h.b16 %v7982
        %v8647 = vunpack.c.l.b16 %v7983
        %v8648 = vunpack.c.h.b16 %v7983
        %v8649 = vunpack.c.l.b16 %v7984
        %v8650 = vunpack.c.h.b16 %v7984
        %v8651 = vunpack.c.l.b16 %v7985
        %v8652 = vunpack.c.h.b16 %v7985
        %v8653 = vunpack.c.l.b16 %v7986
        %v8654 = vunpack.c.h.b16 %v7986
        %v8655 = vunpack.c.l.b16 %v7987
        %v8656 = vunpack.c.h.b16 %v7987
        %v8657 = vunpack.c.l.b16 %v7988
        %v8658 = vunpack.c.h.b16 %v7988
        %v8659 = vunpack.c.l.b16 %v7989
        %v8660 = vunpack.c.h.b16 %v7989
        %v8661 = vunpack.c.l.b16 %v7990
        %v8662 = vunpack.c.h.b16 %v7990
        %v8663 = vunpack.c.l.b16 %v7991
        %v8664 = vunpack.c.h.b16 %v7991
        %v8665 = vunpack.c.l.b16 %v7992
        %v8666 = vunpack.c.h.b16 %v7992
        %v8667 = vunpack.c.l.b16 %v7993
        %v8668 = vunpack.c.h.b16 %v7993
        %v8669 = vunpack.c.l.b16 %v7994
        %v8670 = vunpack.c.h.b16 %v7994
        %v8671 = vunpack.c.l.b16 %v7995
        %v8672 = vunpack.c.h.b16 %v7995
        %v8673 = vunpack.c.l.b16 %v7996
        %v8674 = vunpack.c.h.b16 %v7996
        %v8675 = vunpack.c.l.b16 %v7997
        %v8676 = vunpack.c.h.b16 %v7997
        %v8677 = vunpack.c.l.b16 %v7998
        %v8678 = vunpack.c.h.b16 %v7998
        %v8679 = vunpack.c.l.b16 %v7999
        %v8680 = vunpack.c.h.b16 %v7999
        %v8681 = vunpack.c.l.b16 %v8000
        %v8682 = vunpack.c.h.b16 %v8000
        %v8683 = vunpack.c.l.b16 %v8001
        %v8684 = vunpack.c.h.b16 %v8001
        %v8685 = vunpack.c.l.b16 %v8002
        %v8686 = vunpack.c.h.b16 %v8002
        %v8687 = vunpack.c.l.b16 %v8003
        %v8688 = vunpack.c.h.b16 %v8003
        %v8689 = vunpack.c.l.b16 %v8004
        %v8690 = vunpack.c.h.b16 %v8004
        %v8691 = vunpack.c.l.b16 %v8005
        %v8692 = vunpack.c.h.b16 %v8005
        %v8693 = vunpack.c.l.b16 %v8006
        %v8694 = vunpack.c.h.b16 %v8006
        %v8695 = vpack.c.b16 %v8413, %v8407
        %v8696 = vpack.c.b16 %v8414, %v8408
        %v8697 = vpack.c.b16 %v8415, %v8409
        %v8698 = vpack.c.b16 %v8416, %v8410
        %v8699 = vpack.c.b16 %v8417, %v8411
        %v8700 = vpack.c.b16 %v8418, %v8412
        %v8701 = vpack.c.b16 %v8425, %v8419
        %v8702 = vpack.c.b16 %v8426, %v8420
        %v8703 = vpack.c.b16 %v8427, %v8421
        %v8704 = vpack.c.b16 %v8428, %v8422
        %v8705 = vpack.c.b16 %v8429, %v8423
        %v8706 = vpack.c.b16 %v8430, %v8424
        %v8707 = vpack.c.b16 %v8437, %v8431
        %v8708 = vpack.c.b16 %v8438, %v8432
        %v8709 = vpack.c.b16 %v8439, %v8433
        %v8710 = vpack.c.b16 %v8440, %v8434
        %v8711 = vpack.c.b16 %v8441, %v8435
        %v8712 = vpack.c.b16 %v8442, %v8436
        %v8713 = vpack.c.b16 %v8449, %v8443
        %v8714 = vpack.c.b16 %v8450, %v8444
        %v8715 = vpack.c.b16 %v8451, %v8445
        %v8716 = vpack.c.b16 %v8452, %v8446
        %v8717 = vpack.c.b16 %v8453, %v8447
        %v8718 = vpack.c.b16 %v8454, %v8448
        %v8719 = vpack.c.b16 %v8461, %v8455
        %v8720 = vpack.c.b16 %v8462, %v8456
        %v8721 = vpack.c.b16 %v8463, %v8457
        %v8722 = vpack.c.b16 %v8464, %v8458
        %v8723 = vpack.c.b16 %v8465, %v8459
        %v8724 = vpack.c.b16 %v8466, %v8460
        %v8725 = vpack.c.b16 %v8473, %v8467
        %v8726 = vpack.c.b16 %v8474, %v8468
        %v8727 = vpack.c.b16 %v8475, %v8469
        %v8728 = vpack.c.b16 %v8476, %v8470
        %v8729 = vpack.c.b16 %v8477, %v8471
        %v8730 = vpack.c.b16 %v8478, %v8472
        %v8731 = vpack.c.b16 %v8485, %v8479
        %v8732 = vpack.c.b16 %v8486, %v8480
        %v8733 = vpack.c.b16 %v8487, %v8481
        %v8734 = vpack.c.b16 %v8488, %v8482
        %v8735 = vpack.c.b16 %v8489, %v8483
        %v8736 = vpack.c.b16 %v8490, %v8484
        %v8737 = vpack.c.b16 %v8497, %v8491
        %v8738 = vpack.c.b16 %v8498, %v8492
        %v8739 = vpack.c.b16 %v8499, %v8493
        %v8740 = vpack.c.b16 %v8500, %v8494
        %v8741 = vpack.c.b16 %v8501, %v8495
        %v8742 = vpack.c.b16 %v8502, %v8496
        %v8743 = vpack.c.b16 %v8509, %v8503
        %v8744 = vpack.c.b16 %v8510, %v8504
        %v8745 = vpack.c.b16 %v8511, %v8505
        %v8746 = vpack.c.b16 %v8512, %v8506
        %v8747 = vpack.c.b16 %v8513, %v8507
        %v8748 = vpack.c.b16 %v8514, %v8508
        %v8749 = vpack.c.b16 %v8521, %v8515
        %v8750 = vpack.c.b16 %v8522, %v8516
        %v8751 = vpack.c.b16 %v8523, %v8517
        %v8752 = vpack.c.b16 %v8524, %v8518
        %v8753 = vpack.c.b16 %v8525, %v8519
        %v8754 = vpack.c.b16 %v8526, %v8520
        %v8755 = vpack.c.b16 %v8533, %v8527
        %v8756 = vpack.c.b16 %v8534, %v8528
        %v8757 = vpack.c.b16 %v8535, %v8529
        %v8758 = vpack.c.b16 %v8536, %v8530
        %v8759 = vpack.c.b16 %v8537, %v8531
        %v8760 = vpack.c.b16 %v8538, %v8532
        %v8761 = vpack.c.b16 %v8545, %v8539
        %v8762 = vpack.c.b16 %v8546, %v8540
        %v8763 = vpack.c.b16 %v8547, %v8541
        %v8764 = vpack.c.b16 %v8548, %v8542
        %v8765 = vpack.c.b16 %v8549, %v8543
        %v8766 = vpack.c.b16 %v8550, %v8544
        %v8767 = vpack.c.b16 %v8557, %v8551
        %v8768 = vpack.c.b16 %v8558, %v8552
        %v8769 = vpack.c.b16 %v8559, %v8553
        %v8770 = vpack.c.b16 %v8560, %v8554
        %v8771 = vpack.c.b16 %v8561, %v8555
        %v8772 = vpack.c.b16 %v8562, %v8556
        %v8773 = vpack.c.b16 %v8569, %v8563
        %v8774 = vpack.c.b16 %v8570, %v8564
        %v8775 = vpack.c.b16 %v8571, %v8565
        %v8776 = vpack.c.b16 %v8572, %v8566
        %v8777 = vpack.c.b16 %v8573, %v8567
        %v8778 = vpack.c.b16 %v8574, %v8568
        %v8779 = vpack.c.b16 %v8581, %v8575
        %v8780 = vpack.c.b16 %v8582, %v8576
        %v8781 = vpack.c.b16 %v8583, %v8577
        %v8782 = vpack.c.b16 %v8584, %v8578
        %v8783 = vpack.c.b16 %v8585, %v8579
        %v8784 = vpack.c.b16 %v8586, %v8580
        %v8785 = vpack.c.b16 %v8593, %v8587
        %v8786 = vpack.c.b16 %v8594, %v8588
        %v8787 = vpack.c.b16 %v8595, %v8589
        %v8788 = vpack.c.b16 %v8596, %v8590
        %v8789 = vpack.c.b16 %v8597, %v8591
        %v8790 = vpack.c.b16 %v8598, %v8592
        %v8791 = vpack.c.b16 %v8605, %v8599
        %v8792 = vpack.c.b16 %v8606, %v8600
        %v8793 = vpack.c.b16 %v8607, %v8601
        %v8794 = vpack.c.b16 %v8608, %v8602
        %v8795 = vpack.c.b16 %v8609, %v8603
        %v8796 = vpack.c.b16 %v8610, %v8604
        %v8797 = vpack.c.b16 %v8617, %v8611
        %v8798 = vpack.c.b16 %v8618, %v8612
        %v8799 = vpack.c.b16 %v8619, %v8613
        %v8800 = vpack.c.b16 %v8620, %v8614
        %v8801 = vpack.c.b16 %v8621, %v8615
        %v8802 = vpack.c.b16 %v8622, %v8616
        %v8803 = vpack.c.b16 %v8629, %v8623
        %v8804 = vpack.c.b16 %v8630, %v8624
        %v8805 = vpack.c.b16 %v8631, %v8625
        %v8806 = vpack.c.b16 %v8632, %v8626
        %v8807 = vpack.c.b16 %v8633, %v8627
        %v8808 = vpack.c.b16 %v8634, %v8628
        %v8809 = vpack.c.b16 %v8641, %v8635
        %v8810 = vpack.c.b16 %v8642, %v8636
        %v8811 = vpack.c.b16 %v8643, %v8637
        %v8812 = vpack.c.b16 %v8644, %v8638
        %v8813 = vpack.c.b16 %v8645, %v8639
        %v8814 = vpack.c.b16 %v8646, %v8640
        %v8815 = vpack.c.b16 %v8653, %v8647
        %v8816 = vpack.c.b16 %v8654, %v8648
        %v8817 = vpack.c.b16 %v8655, %v8649
        %v8818 = vpack.c.b16 %v8656, %v8650
        %v8819 = vpack.c.b16 %v8657, %v8651
        %v8820 = vpack.c.b16 %v8658, %v8652
        %v8821 = vpack.c.b16 %v8665, %v8659
        %v8822 = vpack.c.b16 %v8666, %v8660
        %v8823 = vpack.c.b16 %v8667, %v8661
        %v8824 = vpack.c.b16 %v8668, %v8662
        %v8825 = vpack.c.b16 %v8669, %v8663
        %v8826 = vpack.c.b16 %v8670, %v8664
        %v8827 = vpack.c.b16 %v8677, %v8671
        %v8828 = vpack.c.b16 %v8678, %v8672
        %v8829 = vpack.c.b16 %v8679, %v8673
        %v8830 = vpack.c.b16 %v8680, %v8674
        %v8831 = vpack.c.b16 %v8681, %v8675
        %v8832 = vpack.c.b16 %v8682, %v8676
        %v8833 = vpack.c.b16 %v8689, %v8683
        %v8834 = vpack.c.b16 %v8690, %v8684
        %v8835 = vpack.c.b16 %v8691, %v8685
        %v8836 = vpack.c.b16 %v8692, %v8686
        %v8837 = vpack.c.b16 %v8693, %v8687
        %v8838 = vpack.c.b16 %v8694, %v8688
        %8983 = vmatprep.subr.bf16.mxu0 %v8738
        %8984 = vmatpush1.bf16.msra.mxu0 %v8737
        %8985 = vmatprep.subr.bf16.mxu0 %v8732
        %8986 = vmatpush1.bf16.msra.mxu0 %v8731
        %8987 = vmatprep.subr.bf16.mxu0 %v8726
        %8988 = vmatpush1.bf16.msra.mxu0 %v8725
        %8989 = vmatprep.subr.bf16.mxu0 %v8720
        %8990 = vmatpush1.bf16.msra.mxu0 %v8719
        %8991 = vmatprep.subr.bf16.mxu0 %v8714
        %8992 = vmatpush1.bf16.msra.mxu0 %v8713
        %8993 = vmatprep.subr.bf16.mxu0 %v8708
        %8994 = vmatpush1.bf16.msra.mxu0 %v8707
        %8995 = vmatprep.subr.bf16.mxu0 %v8702
        %8996 = vmatpush1.bf16.msra.mxu0 %v8701
        %8997 = vmatprep.subr.bf16.mxu0 %v8696
        %8998 = vmatpush1.bf16.msra.mxu0 %v8695
        %8999 = vmatprep.subr.bf16.mxu0 %v8786
        %9000 = vmatpush2.bf16.msra.mxu0 %v8785
        %9001 = vmatprep.subr.bf16.mxu0 %v8780
        %9002 = vmatpush2.bf16.msra.mxu0 %v8779
        %9003 = vmatprep.subr.bf16.mxu0 %v8774
        %9004 = vmatpush2.bf16.msra.mxu0 %v8773
        %9005 = vmatprep.subr.bf16.mxu0 %v8768
        %9006 = vmatpush2.bf16.msra.mxu0 %v8767
        %9007 = vmatprep.subr.bf16.mxu0 %v8762
        %9008 = vmatpush2.bf16.msra.mxu0 %v8761
        %9009 = vmatprep.subr.bf16.mxu0 %v8756
        %9010 = vmatpush2.bf16.msra.mxu0 %v8755
        %9011 = vmatprep.subr.bf16.mxu0 %v8750
        %9012 = vmatpush2.bf16.msra.mxu0 %v8749
        %9013 = vmatprep.subr.bf16.mxu0 %v8744
        %9014 = vmatpush2.bf16.msra.mxu0 %v8743
        %9015 = vmatprep.mubr.bf16.mxu0 %v8168
        %9016 = vmatmul.mubr.bf16.gmra.mxu0 %v8167
        %v9017 = vpop.f32.mrf.mxu0
        %v9018 = vadd.f32 0.0, %v9017
        %v9019 = vpop.f32.mrf.mxu0
        %v9020 = vadd.f32 0.0, %v9019
        %v9021 = vpop.f32.mrf.mxu0
        %v9022 = vadd.f32 0.0, %v9021
        %v9023 = vpop.f32.mrf.mxu0
        %v9024 = vadd.f32 0.0, %v9023
        %9025 = vmatprep.mubr.bf16.mxu0 %v8171
        %9026 = vmatmul.mubr.bf16.gmra.mxu0 %v8170
        %v9027 = vpop.f32.mrf.mxu0
        %v9028 = vadd.f32 0.0, %v9027
        %v9029 = vpop.f32.mrf.mxu0
        %v9030 = vadd.f32 0.0, %v9029
        %v9031 = vpop.f32.mrf.mxu0
        %v9032 = vadd.f32 0.0, %v9031
        %v9033 = vpop.f32.mrf.mxu0
        %v9034 = vadd.f32 0.0, %v9033
        %9035 = vmatprep.mubr.bf16.mxu0 %v8174
        %9036 = vmatmul.mubr.bf16.gmra.mxu0 %v8173
        %v9037 = vpop.f32.mrf.mxu0
        %v9038 = vadd.f32 0.0, %v9037
        %v9039 = vpop.f32.mrf.mxu0
        %v9040 = vadd.f32 0.0, %v9039
        %v9041 = vpop.f32.mrf.mxu0
        %v9042 = vadd.f32 0.0, %v9041
        %v9043 = vpop.f32.mrf.mxu0
        %v9044 = vadd.f32 0.0, %v9043
        %9045 = vmatprep.mubr.bf16.mxu0 %v8177
        %9046 = vmatmul.mubr.bf16.gmra.mxu0 %v8176
        %v9047 = vpop.f32.mrf.mxu0
        %v9048 = vadd.f32 0.0, %v9047
        %v9049 = vpop.f32.mrf.mxu0
        %v9050 = vadd.f32 0.0, %v9049
        %v9051 = vpop.f32.mrf.mxu0
        %v9052 = vadd.f32 0.0, %v9051
        %v9053 = vpop.f32.mrf.mxu0
        %v9054 = vadd.f32 0.0, %v9053
        %9055 = vmatprep.mubr.bf16.mxu0 %v8180
        %9056 = vmatmul.mubr.bf16.gmra.mxu0 %v8179
        %v9057 = vpop.f32.mrf.mxu0
        %v9058 = vadd.f32 0.0, %v9057
        %v9059 = vpop.f32.mrf.mxu0
        %v9060 = vadd.f32 0.0, %v9059
        %v9061 = vpop.f32.mrf.mxu0
        %v9062 = vadd.f32 0.0, %v9061
        %v9063 = vpop.f32.mrf.mxu0
        %v9064 = vadd.f32 0.0, %v9063
        %9065 = vmatprep.mubr.bf16.mxu0 %v8183
        %9066 = vmatmul.mubr.bf16.gmra.mxu0 %v8182
        %v9067 = vpop.f32.mrf.mxu0
        %v9068 = vadd.f32 0.0, %v9067
        %v9069 = vpop.f32.mrf.mxu0
        %v9070 = vadd.f32 0.0, %v9069
        %v9071 = vpop.f32.mrf.mxu0
        %v9072 = vadd.f32 0.0, %v9071
        %v9073 = vpop.f32.mrf.mxu0
        %v9074 = vadd.f32 0.0, %v9073
        %9075 = vmatprep.mubr.bf16.mxu0 %v8186
        %9076 = vmatmul.mubr.bf16.gmra.mxu0 %v8185
        %v9077 = vpop.f32.mrf.mxu0
        %v9078 = vadd.f32 0.0, %v9077
        %v9079 = vpop.f32.mrf.mxu0
        %v9080 = vadd.f32 0.0, %v9079
        %v9081 = vpop.f32.mrf.mxu0
        %v9082 = vadd.f32 0.0, %v9081
        %v9083 = vpop.f32.mrf.mxu0
        %v9084 = vadd.f32 0.0, %v9083
        %9085 = vmatprep.mubr.bf16.mxu0 %v8189
        %9086 = vmatmul.mubr.bf16.gmra.mxu0 %v8188
        %v9087 = vpop.f32.mrf.mxu0
        %v9088 = vadd.f32 0.0, %v9087
        %v9089 = vpop.f32.mrf.mxu0
        %v9090 = vadd.f32 0.0, %v9089
        %v9091 = vpop.f32.mrf.mxu0
        %v9092 = vadd.f32 0.0, %v9091
        %v9093 = vpop.f32.mrf.mxu0
        %v9094 = vadd.f32 0.0, %v9093
        %9095 = vmatprep.mubr.bf16.mxu0 %v8192
        %9096 = vmatmul.mubr.bf16.gmra.mxu0 %v8191
        %v9097 = vpop.f32.mrf.mxu0
        %v9098 = vadd.f32 0.0, %v9097
        %v9099 = vpop.f32.mrf.mxu0
        %v9100 = vadd.f32 0.0, %v9099
        %v9101 = vpop.f32.mrf.mxu0
        %v9102 = vadd.f32 0.0, %v9101
        %v9103 = vpop.f32.mrf.mxu0
        %v9104 = vadd.f32 0.0, %v9103
        %9105 = vmatprep.mubr.bf16.mxu0 %v8195
        %9106 = vmatmul.mubr.bf16.gmra.mxu0 %v8194
        %v9107 = vpop.f32.mrf.mxu0
        %v9108 = vadd.f32 0.0, %v9107
        %v9109 = vpop.f32.mrf.mxu0
        %v9110 = vadd.f32 0.0, %v9109
        %v9111 = vpop.f32.mrf.mxu0
        %v9112 = vadd.f32 0.0, %v9111
        %v9113 = vpop.f32.mrf.mxu0
        %v9114 = vadd.f32 0.0, %v9113
        %9115 = vmatprep.mubr.bf16.mxu0 %v8198
        %9116 = vmatmul.mubr.bf16.gmra.mxu0 %v8197
        %v9117 = vpop.f32.mrf.mxu0
        %v9118 = vadd.f32 0.0, %v9117
        %v9119 = vpop.f32.mrf.mxu0
        %v9120 = vadd.f32 0.0, %v9119
        %v9121 = vpop.f32.mrf.mxu0
        %v9122 = vadd.f32 0.0, %v9121
        %v9123 = vpop.f32.mrf.mxu0
        %v9124 = vadd.f32 0.0, %v9123
        %9125 = vmatprep.mubr.bf16.mxu0 %v8201
        %9126 = vmatmul.mubr.bf16.gmra.mxu0 %v8200
        %v9127 = vpop.f32.mrf.mxu0
        %v9128 = vadd.f32 0.0, %v9127
        %v9129 = vpop.f32.mrf.mxu0
        %v9130 = vadd.f32 0.0, %v9129
        %v9131 = vpop.f32.mrf.mxu0
        %v9132 = vadd.f32 0.0, %v9131
        %v9133 = vpop.f32.mrf.mxu0
        %v9134 = vadd.f32 0.0, %v9133
        %9135 = vmatprep.mubr.bf16.mxu0 %v8204
        %9136 = vmatmul.mubr.bf16.gmra.mxu0 %v8203
        %v9137 = vpop.f32.mrf.mxu0
        %v9138 = vadd.f32 0.0, %v9137
        %v9139 = vpop.f32.mrf.mxu0
        %v9140 = vadd.f32 0.0, %v9139
        %v9141 = vpop.f32.mrf.mxu0
        %v9142 = vadd.f32 0.0, %v9141
        %v9143 = vpop.f32.mrf.mxu0
        %v9144 = vadd.f32 0.0, %v9143
        %9145 = vmatprep.mubr.bf16.mxu0 %v8207
        %9146 = vmatmul.mubr.bf16.gmra.mxu0 %v8206
        %v9147 = vpop.f32.mrf.mxu0
        %v9148 = vadd.f32 0.0, %v9147
        %v9149 = vpop.f32.mrf.mxu0
        %v9150 = vadd.f32 0.0, %v9149
        %v9151 = vpop.f32.mrf.mxu0
        %v9152 = vadd.f32 0.0, %v9151
        %v9153 = vpop.f32.mrf.mxu0
        %v9154 = vadd.f32 0.0, %v9153
        %9155 = vmatprep.mubr.bf16.mxu0 %v8210
        %9156 = vmatmul.mubr.bf16.gmra.mxu0 %v8209
        %v9157 = vpop.f32.mrf.mxu0
        %v9158 = vadd.f32 0.0, %v9157
        %v9159 = vpop.f32.mrf.mxu0
        %v9160 = vadd.f32 0.0, %v9159
        %v9161 = vpop.f32.mrf.mxu0
        %v9162 = vadd.f32 0.0, %v9161
        %v9163 = vpop.f32.mrf.mxu0
        %v9164 = vadd.f32 0.0, %v9163
        %9165 = vmatprep.mubr.bf16.mxu0 %v8213
        %9166 = vmatmul.mubr.bf16.gmra.mxu0 %v8212
        %v9167 = vpop.f32.mrf.mxu0
        %v9168 = vadd.f32 0.0, %v9167
        %v9169 = vpop.f32.mrf.mxu0
        %v9170 = vadd.f32 0.0, %v9169
        %v9171 = vpop.f32.mrf.mxu0
        %v9172 = vadd.f32 0.0, %v9171
        %v9173 = vpop.f32.mrf.mxu0
        %v9174 = vadd.f32 0.0, %v9173
        %9175 = vdwg.mxu0
        %9176 = vmatprep.subr.bf16.mxu0 %v8834
        %9177 = vmatpush1.bf16.msra.mxu0 %v8833
        %9178 = vmatprep.subr.bf16.mxu0 %v8828
        %9179 = vmatpush1.bf16.msra.mxu0 %v8827
        %9180 = vmatprep.subr.bf16.mxu0 %v8822
        %9181 = vmatpush1.bf16.msra.mxu0 %v8821
        %9182 = vmatprep.subr.bf16.mxu0 %v8816
        %9183 = vmatpush1.bf16.msra.mxu0 %v8815
        %9184 = vmatprep.subr.bf16.mxu0 %v8810
        %9185 = vmatpush1.bf16.msra.mxu0 %v8809
        %9186 = vmatprep.subr.bf16.mxu0 %v8804
        %9187 = vmatpush1.bf16.msra.mxu0 %v8803
        %9188 = vmatprep.subr.bf16.mxu0 %v8798
        %9189 = vmatpush1.bf16.msra.mxu0 %v8797
        %9190 = vmatprep.subr.bf16.mxu0 %v8792
        %9191 = vmatpush1.bf16.msra.mxu0 %v8791
        %9192 = vmatprep.subr.bf16.mxu0 0
        %9193 = vmatpush2.bf16.msra.mxu0 0
        %9194 = vmatprep.subr.bf16.mxu0 0
        %9195 = vmatpush2.bf16.msra.mxu0 0
        %9196 = vmatprep.subr.bf16.mxu0 0
        %9197 = vmatpush2.bf16.msra.mxu0 0
        %9198 = vmatprep.subr.bf16.mxu0 0
        %9199 = vmatpush2.bf16.msra.mxu0 0
        %9200 = vmatprep.subr.bf16.mxu0 0
        %9201 = vmatpush2.bf16.msra.mxu0 0
        %9202 = vmatprep.subr.bf16.mxu0 0
        %9203 = vmatpush2.bf16.msra.mxu0 0
        %9204 = vmatprep.subr.bf16.mxu0 0
        %9205 = vmatpush2.bf16.msra.mxu0 0
        %9206 = vmatprep.subr.bf16.mxu0 0
        %9207 = vmatpush2.bf16.msra.mxu0 0
        %9208 = vmatprep.mubr.bf16.mxu0 0
        %9209 = vmatmul.mubr.bf16.gmra.mxu0 %v8169
        %v9210 = vpop.f32.mrf.mxu0
        %v9211 = vadd.f32 %v9018, %v9210
        %v9212 = vpop.f32.mrf.mxu0
        %v9213 = vadd.f32 %v9020, %v9212
        %v9214 = vpop.f32.mrf.mxu0
        %v9215 = vadd.f32 %v9022, %v9214
        %v9216 = vpop.f32.mrf.mxu0
        %v9217 = vadd.f32 %v9024, %v9216
        %9218 = vmatprep.mubr.bf16.mxu0 0
        %9219 = vmatmul.mubr.bf16.gmra.mxu0 %v8172
        %v9220 = vpop.f32.mrf.mxu0
        %v9221 = vadd.f32 %v9028, %v9220
        %v9222 = vpop.f32.mrf.mxu0
        %v9223 = vadd.f32 %v9030, %v9222
        %v9224 = vpop.f32.mrf.mxu0
        %v9225 = vadd.f32 %v9032, %v9224
        %v9226 = vpop.f32.mrf.mxu0
        %v9227 = vadd.f32 %v9034, %v9226
        %9228 = vmatprep.mubr.bf16.mxu0 0
        %9229 = vmatmul.mubr.bf16.gmra.mxu0 %v8175
        %v9230 = vpop.f32.mrf.mxu0
        %v9231 = vadd.f32 %v9038, %v9230
        %v9232 = vpop.f32.mrf.mxu0
        %v9233 = vadd.f32 %v9040, %v9232
        %v9234 = vpop.f32.mrf.mxu0
        %v9235 = vadd.f32 %v9042, %v9234
        %v9236 = vpop.f32.mrf.mxu0
        %v9237 = vadd.f32 %v9044, %v9236
        %9238 = vmatprep.mubr.bf16.mxu0 0
        %9239 = vmatmul.mubr.bf16.gmra.mxu0 %v8178
        %v9240 = vpop.f32.mrf.mxu0
        %v9241 = vadd.f32 %v9048, %v9240
        %v9242 = vpop.f32.mrf.mxu0
        %v9243 = vadd.f32 %v9050, %v9242
        %v9244 = vpop.f32.mrf.mxu0
        %v9245 = vadd.f32 %v9052, %v9244
        %v9246 = vpop.f32.mrf.mxu0
        %v9247 = vadd.f32 %v9054, %v9246
        %9248 = vmatprep.mubr.bf16.mxu0 0
        %9249 = vmatmul.mubr.bf16.gmra.mxu0 %v8181
        %v9250 = vpop.f32.mrf.mxu0
        %v9251 = vadd.f32 %v9058, %v9250
        %v9252 = vpop.f32.mrf.mxu0
        %v9253 = vadd.f32 %v9060, %v9252
        %v9254 = vpop.f32.mrf.mxu0
        %v9255 = vadd.f32 %v9062, %v9254
        %v9256 = vpop.f32.mrf.mxu0
        %v9257 = vadd.f32 %v9064, %v9256
        %9258 = vmatprep.mubr.bf16.mxu0 0
        %9259 = vmatmul.mubr.bf16.gmra.mxu0 %v8184
        %v9260 = vpop.f32.mrf.mxu0
        %v9261 = vadd.f32 %v9068, %v9260
        %v9262 = vpop.f32.mrf.mxu0
        %v9263 = vadd.f32 %v9070, %v9262
        %v9264 = vpop.f32.mrf.mxu0
        %v9265 = vadd.f32 %v9072, %v9264
        %v9266 = vpop.f32.mrf.mxu0
        %v9267 = vadd.f32 %v9074, %v9266
        %9268 = vmatprep.mubr.bf16.mxu0 0
        %9269 = vmatmul.mubr.bf16.gmra.mxu0 %v8187
        %v9270 = vpop.f32.mrf.mxu0
        %v9271 = vadd.f32 %v9078, %v9270
        %v9272 = vpop.f32.mrf.mxu0
        %v9273 = vadd.f32 %v9080, %v9272
        %v9274 = vpop.f32.mrf.mxu0
        %v9275 = vadd.f32 %v9082, %v9274
        %v9276 = vpop.f32.mrf.mxu0
        %v9277 = vadd.f32 %v9084, %v9276
        %9278 = vmatprep.mubr.bf16.mxu0 0
        %9279 = vmatmul.mubr.bf16.gmra.mxu0 %v8190
        %v9280 = vpop.f32.mrf.mxu0
        %v9281 = vadd.f32 %v9088, %v9280
        %v9282 = vpop.f32.mrf.mxu0
        %v9283 = vadd.f32 %v9090, %v9282
        %v9284 = vpop.f32.mrf.mxu0
        %v9285 = vadd.f32 %v9092, %v9284
        %v9286 = vpop.f32.mrf.mxu0
        %v9287 = vadd.f32 %v9094, %v9286
        %9288 = vmatprep.mubr.bf16.mxu0 0
        %9289 = vmatmul.mubr.bf16.gmra.mxu0 %v8193
        %v9290 = vpop.f32.mrf.mxu0
        %v9291 = vadd.f32 %v9098, %v9290
        %v9292 = vpop.f32.mrf.mxu0
        %v9293 = vadd.f32 %v9100, %v9292
        %v9294 = vpop.f32.mrf.mxu0
        %v9295 = vadd.f32 %v9102, %v9294
        %v9296 = vpop.f32.mrf.mxu0
        %v9297 = vadd.f32 %v9104, %v9296
        %9298 = vmatprep.mubr.bf16.mxu0 0
        %9299 = vmatmul.mubr.bf16.gmra.mxu0 %v8196
        %v9300 = vpop.f32.mrf.mxu0
        %v9301 = vadd.f32 %v9108, %v9300
        %v9302 = vpop.f32.mrf.mxu0
        %v9303 = vadd.f32 %v9110, %v9302
        %v9304 = vpop.f32.mrf.mxu0
        %v9305 = vadd.f32 %v9112, %v9304
        %v9306 = vpop.f32.mrf.mxu0
        %v9307 = vadd.f32 %v9114, %v9306
        %9308 = vmatprep.mubr.bf16.mxu0 0
        %9309 = vmatmul.mubr.bf16.gmra.mxu0 %v8199
        %v9310 = vpop.f32.mrf.mxu0
        %v9311 = vadd.f32 %v9118, %v9310
        %v9312 = vpop.f32.mrf.mxu0
        %v9313 = vadd.f32 %v9120, %v9312
        %v9314 = vpop.f32.mrf.mxu0
        %v9315 = vadd.f32 %v9122, %v9314
        %v9316 = vpop.f32.mrf.mxu0
        %v9317 = vadd.f32 %v9124, %v9316
        %9318 = vmatprep.mubr.bf16.mxu0 0
        %9319 = vmatmul.mubr.bf16.gmra.mxu0 %v8202
        %v9320 = vpop.f32.mrf.mxu0
        %v9321 = vadd.f32 %v9128, %v9320
        %v9322 = vpop.f32.mrf.mxu0
        %v9323 = vadd.f32 %v9130, %v9322
        %v9324 = vpop.f32.mrf.mxu0
        %v9325 = vadd.f32 %v9132, %v9324
        %v9326 = vpop.f32.mrf.mxu0
        %v9327 = vadd.f32 %v9134, %v9326
        %9328 = vmatprep.mubr.bf16.mxu0 0
        %9329 = vmatmul.mubr.bf16.gmra.mxu0 %v8205
        %v9330 = vpop.f32.mrf.mxu0
        %v9331 = vadd.f32 %v9138, %v9330
        %v9332 = vpop.f32.mrf.mxu0
        %v9333 = vadd.f32 %v9140, %v9332
        %v9334 = vpop.f32.mrf.mxu0
        %v9335 = vadd.f32 %v9142, %v9334
        %v9336 = vpop.f32.mrf.mxu0
        %v9337 = vadd.f32 %v9144, %v9336
        %9338 = vmatprep.mubr.bf16.mxu0 0
        %9339 = vmatmul.mubr.bf16.gmra.mxu0 %v8208
        %v9340 = vpop.f32.mrf.mxu0
        %v9341 = vadd.f32 %v9148, %v9340
        %v9342 = vpop.f32.mrf.mxu0
        %v9343 = vadd.f32 %v9150, %v9342
        %v9344 = vpop.f32.mrf.mxu0
        %v9345 = vadd.f32 %v9152, %v9344
        %v9346 = vpop.f32.mrf.mxu0
        %v9347 = vadd.f32 %v9154, %v9346
        %9348 = vmatprep.mubr.bf16.mxu0 0
        %9349 = vmatmul.mubr.bf16.gmra.mxu0 %v8211
        %v9350 = vpop.f32.mrf.mxu0
        %v9351 = vadd.f32 %v9158, %v9350
        %v9352 = vpop.f32.mrf.mxu0
        %v9353 = vadd.f32 %v9160, %v9352
        %v9354 = vpop.f32.mrf.mxu0
        %v9355 = vadd.f32 %v9162, %v9354
        %v9356 = vpop.f32.mrf.mxu0
        %v9357 = vadd.f32 %v9164, %v9356
        %9358 = vmatprep.mubr.bf16.mxu0 0
        %9359 = vmatmul.mubr.bf16.gmra.mxu0 %v8214
        %v9360 = vpop.f32.mrf.mxu0
        %v9361 = vadd.f32 %v9168, %v9360
        %v9362 = vpop.f32.mrf.mxu0
        %v9363 = vadd.f32 %v9170, %v9362
        %v9364 = vpop.f32.mrf.mxu0
        %v9365 = vadd.f32 %v9172, %v9364
        %v9366 = vpop.f32.mrf.mxu0
        %v9367 = vadd.f32 %v9174, %v9366
        %9368 = vdwg.mxu0
        %9369 = vmatprep.subr.bf16.mxu0 %v8740
        %9370 = vmatpush1.bf16.msra.mxu0 %v8739
        %9371 = vmatprep.subr.bf16.mxu0 %v8734
        %9372 = vmatpush1.bf16.msra.mxu0 %v8733
        %9373 = vmatprep.subr.bf16.mxu0 %v8728
        %9374 = vmatpush1.bf16.msra.mxu0 %v8727
        %9375 = vmatprep.subr.bf16.mxu0 %v8722
        %9376 = vmatpush1.bf16.msra.mxu0 %v8721
        %9377 = vmatprep.subr.bf16.mxu0 %v8716
        %9378 = vmatpush1.bf16.msra.mxu0 %v8715
        %9379 = vmatprep.subr.bf16.mxu0 %v8710
        %9380 = vmatpush1.bf16.msra.mxu0 %v8709
        %9381 = vmatprep.subr.bf16.mxu0 %v8704
        %9382 = vmatpush1.bf16.msra.mxu0 %v8703
        %9383 = vmatprep.subr.bf16.mxu0 %v8698
        %9384 = vmatpush1.bf16.msra.mxu0 %v8697
        %9385 = vmatprep.subr.bf16.mxu0 %v8788
        %9386 = vmatpush2.bf16.msra.mxu0 %v8787
        %9387 = vmatprep.subr.bf16.mxu0 %v8782
        %9388 = vmatpush2.bf16.msra.mxu0 %v8781
        %9389 = vmatprep.subr.bf16.mxu0 %v8776
        %9390 = vmatpush2.bf16.msra.mxu0 %v8775
        %9391 = vmatprep.subr.bf16.mxu0 %v8770
        %9392 = vmatpush2.bf16.msra.mxu0 %v8769
        %9393 = vmatprep.subr.bf16.mxu0 %v8764
        %9394 = vmatpush2.bf16.msra.mxu0 %v8763
        %9395 = vmatprep.subr.bf16.mxu0 %v8758
        %9396 = vmatpush2.bf16.msra.mxu0 %v8757
        %9397 = vmatprep.subr.bf16.mxu0 %v8752
        %9398 = vmatpush2.bf16.msra.mxu0 %v8751
        %9399 = vmatprep.subr.bf16.mxu0 %v8746
        %9400 = vmatpush2.bf16.msra.mxu0 %v8745
        %9401 = vmatprep.mubr.bf16.mxu0 %v8168
        %9402 = vmatmul.mubr.bf16.gmra.mxu0 %v8167
        %v9403 = vpop.f32.mrf.mxu0
        %v9404 = vadd.f32 0.0, %v9403
        %v9405 = vpop.f32.mrf.mxu0
        %v9406 = vadd.f32 0.0, %v9405
        %v9407 = vpop.f32.mrf.mxu0
        %v9408 = vadd.f32 0.0, %v9407
        %v9409 = vpop.f32.mrf.mxu0
        %v9410 = vadd.f32 0.0, %v9409
        %9411 = vmatprep.mubr.bf16.mxu0 %v8171
        %9412 = vmatmul.mubr.bf16.gmra.mxu0 %v8170
        %v9413 = vpop.f32.mrf.mxu0
        %v9414 = vadd.f32 0.0, %v9413
        %v9415 = vpop.f32.mrf.mxu0
        %v9416 = vadd.f32 0.0, %v9415
        %v9417 = vpop.f32.mrf.mxu0
        %v9418 = vadd.f32 0.0, %v9417
        %v9419 = vpop.f32.mrf.mxu0
        %v9420 = vadd.f32 0.0, %v9419
        %9421 = vmatprep.mubr.bf16.mxu0 %v8174
        %9422 = vmatmul.mubr.bf16.gmra.mxu0 %v8173
        %v9423 = vpop.f32.mrf.mxu0
        %v9424 = vadd.f32 0.0, %v9423
        %v9425 = vpop.f32.mrf.mxu0
        %v9426 = vadd.f32 0.0, %v9425
        %v9427 = vpop.f32.mrf.mxu0
        %v9428 = vadd.f32 0.0, %v9427
        %v9429 = vpop.f32.mrf.mxu0
        %v9430 = vadd.f32 0.0, %v9429
        %9431 = vmatprep.mubr.bf16.mxu0 %v8177
        %9432 = vmatmul.mubr.bf16.gmra.mxu0 %v8176
        %v9433 = vpop.f32.mrf.mxu0
        %v9434 = vadd.f32 0.0, %v9433
        %v9435 = vpop.f32.mrf.mxu0
        %v9436 = vadd.f32 0.0, %v9435
        %v9437 = vpop.f32.mrf.mxu0
        %v9438 = vadd.f32 0.0, %v9437
        %v9439 = vpop.f32.mrf.mxu0
        %v9440 = vadd.f32 0.0, %v9439
        %9441 = vmatprep.mubr.bf16.mxu0 %v8180
        %9442 = vmatmul.mubr.bf16.gmra.mxu0 %v8179
        %v9443 = vpop.f32.mrf.mxu0
        %v9444 = vadd.f32 0.0, %v9443
        %v9445 = vpop.f32.mrf.mxu0
        %v9446 = vadd.f32 0.0, %v9445
        %v9447 = vpop.f32.mrf.mxu0
        %v9448 = vadd.f32 0.0, %v9447
        %v9449 = vpop.f32.mrf.mxu0
        %v9450 = vadd.f32 0.0, %v9449
        %9451 = vmatprep.mubr.bf16.mxu0 %v8183
        %9452 = vmatmul.mubr.bf16.gmra.mxu0 %v8182
        %v9453 = vpop.f32.mrf.mxu0
        %v9454 = vadd.f32 0.0, %v9453
        %v9455 = vpop.f32.mrf.mxu0
        %v9456 = vadd.f32 0.0, %v9455
        %v9457 = vpop.f32.mrf.mxu0
        %v9458 = vadd.f32 0.0, %v9457
        %v9459 = vpop.f32.mrf.mxu0
        %v9460 = vadd.f32 0.0, %v9459
        %9461 = vmatprep.mubr.bf16.mxu0 %v8186
        %9462 = vmatmul.mubr.bf16.gmra.mxu0 %v8185
        %v9463 = vpop.f32.mrf.mxu0
        %v9464 = vadd.f32 0.0, %v9463
        %v9465 = vpop.f32.mrf.mxu0
        %v9466 = vadd.f32 0.0, %v9465
        %v9467 = vpop.f32.mrf.mxu0
        %v9468 = vadd.f32 0.0, %v9467
        %v9469 = vpop.f32.mrf.mxu0
        %v9470 = vadd.f32 0.0, %v9469
        %9471 = vmatprep.mubr.bf16.mxu0 %v8189
        %9472 = vmatmul.mubr.bf16.gmra.mxu0 %v8188
        %v9473 = vpop.f32.mrf.mxu0
        %v9474 = vadd.f32 0.0, %v9473
        %v9475 = vpop.f32.mrf.mxu0
        %v9476 = vadd.f32 0.0, %v9475
        %v9477 = vpop.f32.mrf.mxu0
        %v9478 = vadd.f32 0.0, %v9477
        %v9479 = vpop.f32.mrf.mxu0
        %v9480 = vadd.f32 0.0, %v9479
        %9481 = vmatprep.mubr.bf16.mxu0 %v8192
        %9482 = vmatmul.mubr.bf16.gmra.mxu0 %v8191
        %v9483 = vpop.f32.mrf.mxu0
        %v9484 = vadd.f32 0.0, %v9483
        %v9485 = vpop.f32.mrf.mxu0
        %v9486 = vadd.f32 0.0, %v9485
        %v9487 = vpop.f32.mrf.mxu0
        %v9488 = vadd.f32 0.0, %v9487
        %v9489 = vpop.f32.mrf.mxu0
        %v9490 = vadd.f32 0.0, %v9489
        %9491 = vmatprep.mubr.bf16.mxu0 %v8195
        %9492 = vmatmul.mubr.bf16.gmra.mxu0 %v8194
        %v9493 = vpop.f32.mrf.mxu0
        %v9494 = vadd.f32 0.0, %v9493
        %v9495 = vpop.f32.mrf.mxu0
        %v9496 = vadd.f32 0.0, %v9495
        %v9497 = vpop.f32.mrf.mxu0
        %v9498 = vadd.f32 0.0, %v9497
        %v9499 = vpop.f32.mrf.mxu0
        %v9500 = vadd.f32 0.0, %v9499
        %9501 = vmatprep.mubr.bf16.mxu0 %v8198
        %9502 = vmatmul.mubr.bf16.gmra.mxu0 %v8197
        %v9503 = vpop.f32.mrf.mxu0
        %v9504 = vadd.f32 0.0, %v9503
        %v9505 = vpop.f32.mrf.mxu0
        %v9506 = vadd.f32 0.0, %v9505
        %v9507 = vpop.f32.mrf.mxu0
        %v9508 = vadd.f32 0.0, %v9507
        %v9509 = vpop.f32.mrf.mxu0
        %v9510 = vadd.f32 0.0, %v9509
        %9511 = vmatprep.mubr.bf16.mxu0 %v8201
        %9512 = vmatmul.mubr.bf16.gmra.mxu0 %v8200
        %v9513 = vpop.f32.mrf.mxu0
        %v9514 = vadd.f32 0.0, %v9513
        %v9515 = vpop.f32.mrf.mxu0
        %v9516 = vadd.f32 0.0, %v9515
        %v9517 = vpop.f32.mrf.mxu0
        %v9518 = vadd.f32 0.0, %v9517
        %v9519 = vpop.f32.mrf.mxu0
        %v9520 = vadd.f32 0.0, %v9519
        %9521 = vmatprep.mubr.bf16.mxu0 %v8204
        %9522 = vmatmul.mubr.bf16.gmra.mxu0 %v8203
        %v9523 = vpop.f32.mrf.mxu0
        %v9524 = vadd.f32 0.0, %v9523
        %v9525 = vpop.f32.mrf.mxu0
        %v9526 = vadd.f32 0.0, %v9525
        %v9527 = vpop.f32.mrf.mxu0
        %v9528 = vadd.f32 0.0, %v9527
        %v9529 = vpop.f32.mrf.mxu0
        %v9530 = vadd.f32 0.0, %v9529
        %9531 = vmatprep.mubr.bf16.mxu0 %v8207
        %9532 = vmatmul.mubr.bf16.gmra.mxu0 %v8206
        %v9533 = vpop.f32.mrf.mxu0
        %v9534 = vadd.f32 0.0, %v9533
        %v9535 = vpop.f32.mrf.mxu0
        %v9536 = vadd.f32 0.0, %v9535
        %v9537 = vpop.f32.mrf.mxu0
        %v9538 = vadd.f32 0.0, %v9537
        %v9539 = vpop.f32.mrf.mxu0
        %v9540 = vadd.f32 0.0, %v9539
        %9541 = vmatprep.mubr.bf16.mxu0 %v8210
        %9542 = vmatmul.mubr.bf16.gmra.mxu0 %v8209
        %v9543 = vpop.f32.mrf.mxu0
        %v9544 = vadd.f32 0.0, %v9543
        %v9545 = vpop.f32.mrf.mxu0
        %v9546 = vadd.f32 0.0, %v9545
        %v9547 = vpop.f32.mrf.mxu0
        %v9548 = vadd.f32 0.0, %v9547
        %v9549 = vpop.f32.mrf.mxu0
        %v9550 = vadd.f32 0.0, %v9549
        %9551 = vmatprep.mubr.bf16.mxu0 %v8213
        %9552 = vmatmul.mubr.bf16.gmra.mxu0 %v8212
        %v9553 = vpop.f32.mrf.mxu0
        %v9554 = vadd.f32 0.0, %v9553
        %v9555 = vpop.f32.mrf.mxu0
        %v9556 = vadd.f32 0.0, %v9555
        %v9557 = vpop.f32.mrf.mxu0
        %v9558 = vadd.f32 0.0, %v9557
        %v9559 = vpop.f32.mrf.mxu0
        %v9560 = vadd.f32 0.0, %v9559
        %9561 = vdwg.mxu0
        %9562 = vmatprep.subr.bf16.mxu0 %v8836
        %9563 = vmatpush1.bf16.msra.mxu0 %v8835
        %9564 = vmatprep.subr.bf16.mxu0 %v8830
        %9565 = vmatpush1.bf16.msra.mxu0 %v8829
        %9566 = vmatprep.subr.bf16.mxu0 %v8824
        %9567 = vmatpush1.bf16.msra.mxu0 %v8823
        %9568 = vmatprep.subr.bf16.mxu0 %v8818
        %9569 = vmatpush1.bf16.msra.mxu0 %v8817
        %9570 = vmatprep.subr.bf16.mxu0 %v8812
        %9571 = vmatpush1.bf16.msra.mxu0 %v8811
        %9572 = vmatprep.subr.bf16.mxu0 %v8806
        %9573 = vmatpush1.bf16.msra.mxu0 %v8805
        %9574 = vmatprep.subr.bf16.mxu0 %v8800
        %9575 = vmatpush1.bf16.msra.mxu0 %v8799
        %9576 = vmatprep.subr.bf16.mxu0 %v8794
        %9577 = vmatpush1.bf16.msra.mxu0 %v8793
        %9578 = vmatprep.subr.bf16.mxu0 0
        %9579 = vmatpush2.bf16.msra.mxu0 0
        %9580 = vmatprep.subr.bf16.mxu0 0
        %9581 = vmatpush2.bf16.msra.mxu0 0
        %9582 = vmatprep.subr.bf16.mxu0 0
        %9583 = vmatpush2.bf16.msra.mxu0 0
        %9584 = vmatprep.subr.bf16.mxu0 0
        %9585 = vmatpush2.bf16.msra.mxu0 0
        %9586 = vmatprep.subr.bf16.mxu0 0
        %9587 = vmatpush2.bf16.msra.mxu0 0
        %9588 = vmatprep.subr.bf16.mxu0 0
        %9589 = vmatpush2.bf16.msra.mxu0 0
        %9590 = vmatprep.subr.bf16.mxu0 0
        %9591 = vmatpush2.bf16.msra.mxu0 0
        %9592 = vmatprep.subr.bf16.mxu0 0
        %9593 = vmatpush2.bf16.msra.mxu0 0
        %9594 = vmatprep.mubr.bf16.mxu0 0
        %9595 = vmatmul.mubr.bf16.gmra.mxu0 %v8169
        %v9596 = vpop.f32.mrf.mxu0
        %v9597 = vadd.f32 %v9404, %v9596
        %v9598 = vpop.f32.mrf.mxu0
        %v9599 = vadd.f32 %v9406, %v9598
        %v9600 = vpop.f32.mrf.mxu0
        %v9601 = vadd.f32 %v9408, %v9600
        %v9602 = vpop.f32.mrf.mxu0
        %v9603 = vadd.f32 %v9410, %v9602
        %9604 = vmatprep.mubr.bf16.mxu0 0
        %9605 = vmatmul.mubr.bf16.gmra.mxu0 %v8172
        %v9606 = vpop.f32.mrf.mxu0
        %v9607 = vadd.f32 %v9414, %v9606
        %v9608 = vpop.f32.mrf.mxu0
        %v9609 = vadd.f32 %v9416, %v9608
        %v9610 = vpop.f32.mrf.mxu0
        %v9611 = vadd.f32 %v9418, %v9610
        %v9612 = vpop.f32.mrf.mxu0
        %v9613 = vadd.f32 %v9420, %v9612
        %9614 = vmatprep.mubr.bf16.mxu0 0
        %9615 = vmatmul.mubr.bf16.gmra.mxu0 %v8175
        %v9616 = vpop.f32.mrf.mxu0
        %v9617 = vadd.f32 %v9424, %v9616
        %v9618 = vpop.f32.mrf.mxu0
        %v9619 = vadd.f32 %v9426, %v9618
        %v9620 = vpop.f32.mrf.mxu0
        %v9621 = vadd.f32 %v9428, %v9620
        %v9622 = vpop.f32.mrf.mxu0
        %v9623 = vadd.f32 %v9430, %v9622
        %9624 = vmatprep.mubr.bf16.mxu0 0
        %9625 = vmatmul.mubr.bf16.gmra.mxu0 %v8178
        %v9626 = vpop.f32.mrf.mxu0
        %v9627 = vadd.f32 %v9434, %v9626
        %v9628 = vpop.f32.mrf.mxu0
        %v9629 = vadd.f32 %v9436, %v9628
        %v9630 = vpop.f32.mrf.mxu0
        %v9631 = vadd.f32 %v9438, %v9630
        %v9632 = vpop.f32.mrf.mxu0
        %v9633 = vadd.f32 %v9440, %v9632
        %9634 = vmatprep.mubr.bf16.mxu0 0
        %9635 = vmatmul.mubr.bf16.gmra.mxu0 %v8181
        %v9636 = vpop.f32.mrf.mxu0
        %v9637 = vadd.f32 %v9444, %v9636
        %v9638 = vpop.f32.mrf.mxu0
        %v9639 = vadd.f32 %v9446, %v9638
        %v9640 = vpop.f32.mrf.mxu0
        %v9641 = vadd.f32 %v9448, %v9640
        %v9642 = vpop.f32.mrf.mxu0
        %v9643 = vadd.f32 %v9450, %v9642
        %9644 = vmatprep.mubr.bf16.mxu0 0
        %9645 = vmatmul.mubr.bf16.gmra.mxu0 %v8184
        %v9646 = vpop.f32.mrf.mxu0
        %v9647 = vadd.f32 %v9454, %v9646
        %v9648 = vpop.f32.mrf.mxu0
        %v9649 = vadd.f32 %v9456, %v9648
        %v9650 = vpop.f32.mrf.mxu0
        %v9651 = vadd.f32 %v9458, %v9650
        %v9652 = vpop.f32.mrf.mxu0
        %v9653 = vadd.f32 %v9460, %v9652
        %9654 = vmatprep.mubr.bf16.mxu0 0
        %9655 = vmatmul.mubr.bf16.gmra.mxu0 %v8187
        %v9656 = vpop.f32.mrf.mxu0
        %v9657 = vadd.f32 %v9464, %v9656
        %v9658 = vpop.f32.mrf.mxu0
        %v9659 = vadd.f32 %v9466, %v9658
        %v9660 = vpop.f32.mrf.mxu0
        %v9661 = vadd.f32 %v9468, %v9660
        %v9662 = vpop.f32.mrf.mxu0
        %v9663 = vadd.f32 %v9470, %v9662
        %9664 = vmatprep.mubr.bf16.mxu0 0
        %9665 = vmatmul.mubr.bf16.gmra.mxu0 %v8190
        %v9666 = vpop.f32.mrf.mxu0
        %v9667 = vadd.f32 %v9474, %v9666
        %v9668 = vpop.f32.mrf.mxu0
        %v9669 = vadd.f32 %v9476, %v9668
        %v9670 = vpop.f32.mrf.mxu0
        %v9671 = vadd.f32 %v9478, %v9670
        %v9672 = vpop.f32.mrf.mxu0
        %v9673 = vadd.f32 %v9480, %v9672
        %9674 = vmatprep.mubr.bf16.mxu0 0
        %9675 = vmatmul.mubr.bf16.gmra.mxu0 %v8193
        %v9676 = vpop.f32.mrf.mxu0
        %v9677 = vadd.f32 %v9484, %v9676
        %v9678 = vpop.f32.mrf.mxu0
        %v9679 = vadd.f32 %v9486, %v9678
        %v9680 = vpop.f32.mrf.mxu0
        %v9681 = vadd.f32 %v9488, %v9680
        %v9682 = vpop.f32.mrf.mxu0
        %v9683 = vadd.f32 %v9490, %v9682
        %9684 = vmatprep.mubr.bf16.mxu0 0
        %9685 = vmatmul.mubr.bf16.gmra.mxu0 %v8196
        %v9686 = vpop.f32.mrf.mxu0
        %v9687 = vadd.f32 %v9494, %v9686
        %v9688 = vpop.f32.mrf.mxu0
        %v9689 = vadd.f32 %v9496, %v9688
        %v9690 = vpop.f32.mrf.mxu0
        %v9691 = vadd.f32 %v9498, %v9690
        %v9692 = vpop.f32.mrf.mxu0
        %v9693 = vadd.f32 %v9500, %v9692
        %9694 = vmatprep.mubr.bf16.mxu0 0
        %9695 = vmatmul.mubr.bf16.gmra.mxu0 %v8199
        %v9696 = vpop.f32.mrf.mxu0
        %v9697 = vadd.f32 %v9504, %v9696
        %v9698 = vpop.f32.mrf.mxu0
        %v9699 = vadd.f32 %v9506, %v9698
        %v9700 = vpop.f32.mrf.mxu0
        %v9701 = vadd.f32 %v9508, %v9700
        %v9702 = vpop.f32.mrf.mxu0
        %v9703 = vadd.f32 %v9510, %v9702
        %9704 = vmatprep.mubr.bf16.mxu0 0
        %9705 = vmatmul.mubr.bf16.gmra.mxu0 %v8202
        %v9706 = vpop.f32.mrf.mxu0
        %v9707 = vadd.f32 %v9514, %v9706
        %v9708 = vpop.f32.mrf.mxu0
        %v9709 = vadd.f32 %v9516, %v9708
        %v9710 = vpop.f32.mrf.mxu0
        %v9711 = vadd.f32 %v9518, %v9710
        %v9712 = vpop.f32.mrf.mxu0
        %v9713 = vadd.f32 %v9520, %v9712
        %9714 = vmatprep.mubr.bf16.mxu0 0
        %9715 = vmatmul.mubr.bf16.gmra.mxu0 %v8205
        %v9716 = vpop.f32.mrf.mxu0
        %v9717 = vadd.f32 %v9524, %v9716
        %v9718 = vpop.f32.mrf.mxu0
        %v9719 = vadd.f32 %v9526, %v9718
        %v9720 = vpop.f32.mrf.mxu0
        %v9721 = vadd.f32 %v9528, %v9720
        %v9722 = vpop.f32.mrf.mxu0
        %v9723 = vadd.f32 %v9530, %v9722
        %9724 = vmatprep.mubr.bf16.mxu0 0
        %9725 = vmatmul.mubr.bf16.gmra.mxu0 %v8208
        %v9726 = vpop.f32.mrf.mxu0
        %v9727 = vadd.f32 %v9534, %v9726
        %v9728 = vpop.f32.mrf.mxu0
        %v9729 = vadd.f32 %v9536, %v9728
        %v9730 = vpop.f32.mrf.mxu0
        %v9731 = vadd.f32 %v9538, %v9730
        %v9732 = vpop.f32.mrf.mxu0
        %v9733 = vadd.f32 %v9540, %v9732
        %9734 = vmatprep.mubr.bf16.mxu0 0
        %9735 = vmatmul.mubr.bf16.gmra.mxu0 %v8211
        %v9736 = vpop.f32.mrf.mxu0
        %v9737 = vadd.f32 %v9544, %v9736
        %v9738 = vpop.f32.mrf.mxu0
        %v9739 = vadd.f32 %v9546, %v9738
        %v9740 = vpop.f32.mrf.mxu0
        %v9741 = vadd.f32 %v9548, %v9740
        %v9742 = vpop.f32.mrf.mxu0
        %v9743 = vadd.f32 %v9550, %v9742
        %9744 = vmatprep.mubr.bf16.mxu0 0
        %9745 = vmatmul.mubr.bf16.gmra.mxu0 %v8214
        %v9746 = vpop.f32.mrf.mxu0
        %v9747 = vadd.f32 %v9554, %v9746
        %v9748 = vpop.f32.mrf.mxu0
        %v9749 = vadd.f32 %v9556, %v9748
        %v9750 = vpop.f32.mrf.mxu0
        %v9751 = vadd.f32 %v9558, %v9750
        %v9752 = vpop.f32.mrf.mxu0
        %v9753 = vadd.f32 %v9560, %v9752
        %9754 = vdwg.mxu0
        %9755 = vmatprep.subr.bf16.mxu0 %v8742
        %9756 = vmatpush1.bf16.msra.mxu0 %v8741
        %9757 = vmatprep.subr.bf16.mxu0 %v8736
        %9758 = vmatpush1.bf16.msra.mxu0 %v8735
        %9759 = vmatprep.subr.bf16.mxu0 %v8730
        %9760 = vmatpush1.bf16.msra.mxu0 %v8729
        %9761 = vmatprep.subr.bf16.mxu0 %v8724
        %9762 = vmatpush1.bf16.msra.mxu0 %v8723
        %9763 = vmatprep.subr.bf16.mxu0 %v8718
        %9764 = vmatpush1.bf16.msra.mxu0 %v8717
        %9765 = vmatprep.subr.bf16.mxu0 %v8712
        %9766 = vmatpush1.bf16.msra.mxu0 %v8711
        %9767 = vmatprep.subr.bf16.mxu0 %v8706
        %9768 = vmatpush1.bf16.msra.mxu0 %v8705
        %9769 = vmatprep.subr.bf16.mxu0 %v8700
        %9770 = vmatpush1.bf16.msra.mxu0 %v8699
        %9771 = vmatprep.subr.bf16.mxu0 %v8790
        %9772 = vmatpush2.bf16.msra.mxu0 %v8789
        %9773 = vmatprep.subr.bf16.mxu0 %v8784
        %9774 = vmatpush2.bf16.msra.mxu0 %v8783
        %9775 = vmatprep.subr.bf16.mxu0 %v8778
        %9776 = vmatpush2.bf16.msra.mxu0 %v8777
        %9777 = vmatprep.subr.bf16.mxu0 %v8772
        %9778 = vmatpush2.bf16.msra.mxu0 %v8771
        %9779 = vmatprep.subr.bf16.mxu0 %v8766
        %9780 = vmatpush2.bf16.msra.mxu0 %v8765
        %9781 = vmatprep.subr.bf16.mxu0 %v8760
        %9782 = vmatpush2.bf16.msra.mxu0 %v8759
        %9783 = vmatprep.subr.bf16.mxu0 %v8754
        %9784 = vmatpush2.bf16.msra.mxu0 %v8753
        %9785 = vmatprep.subr.bf16.mxu0 %v8748
        %9786 = vmatpush2.bf16.msra.mxu0 %v8747
        %9787 = vmatprep.mubr.bf16.mxu0 %v8168
        %9788 = vmatmul.mubr.bf16.gmra.mxu0 %v8167
        %v9789 = vpop.f32.mrf.mxu0
        %v9790 = vadd.f32 0.0, %v9789
        %v9791 = vpop.f32.mrf.mxu0
        %v9792 = vadd.f32 0.0, %v9791
        %v9793 = vpop.f32.mrf.mxu0
        %v9794 = vadd.f32 0.0, %v9793
        %v9795 = vpop.f32.mrf.mxu0
        %v9796 = vadd.f32 0.0, %v9795
        %9797 = vmatprep.mubr.bf16.mxu0 %v8171
        %9798 = vmatmul.mubr.bf16.gmra.mxu0 %v8170
        %v9799 = vpop.f32.mrf.mxu0
        %v9800 = vadd.f32 0.0, %v9799
        %v9801 = vpop.f32.mrf.mxu0
        %v9802 = vadd.f32 0.0, %v9801
        %v9803 = vpop.f32.mrf.mxu0
        %v9804 = vadd.f32 0.0, %v9803
        %v9805 = vpop.f32.mrf.mxu0
        %v9806 = vadd.f32 0.0, %v9805
        %9807 = vmatprep.mubr.bf16.mxu0 %v8174
        %9808 = vmatmul.mubr.bf16.gmra.mxu0 %v8173
        %v9809 = vpop.f32.mrf.mxu0
        %v9810 = vadd.f32 0.0, %v9809
        %v9811 = vpop.f32.mrf.mxu0
        %v9812 = vadd.f32 0.0, %v9811
        %v9813 = vpop.f32.mrf.mxu0
        %v9814 = vadd.f32 0.0, %v9813
        %v9815 = vpop.f32.mrf.mxu0
        %v9816 = vadd.f32 0.0, %v9815
        %9817 = vmatprep.mubr.bf16.mxu0 %v8177
        %9818 = vmatmul.mubr.bf16.gmra.mxu0 %v8176
        %v9819 = vpop.f32.mrf.mxu0
        %v9820 = vadd.f32 0.0, %v9819
        %v9821 = vpop.f32.mrf.mxu0
        %v9822 = vadd.f32 0.0, %v9821
        %v9823 = vpop.f32.mrf.mxu0
        %v9824 = vadd.f32 0.0, %v9823
        %v9825 = vpop.f32.mrf.mxu0
        %v9826 = vadd.f32 0.0, %v9825
        %9827 = vmatprep.mubr.bf16.mxu0 %v8180
        %9828 = vmatmul.mubr.bf16.gmra.mxu0 %v8179
        %v9829 = vpop.f32.mrf.mxu0
        %v9830 = vadd.f32 0.0, %v9829
        %v9831 = vpop.f32.mrf.mxu0
        %v9832 = vadd.f32 0.0, %v9831
        %v9833 = vpop.f32.mrf.mxu0
        %v9834 = vadd.f32 0.0, %v9833
        %v9835 = vpop.f32.mrf.mxu0
        %v9836 = vadd.f32 0.0, %v9835
        %9837 = vmatprep.mubr.bf16.mxu0 %v8183
        %9838 = vmatmul.mubr.bf16.gmra.mxu0 %v8182
        %v9839 = vpop.f32.mrf.mxu0
        %v9840 = vadd.f32 0.0, %v9839
        %v9841 = vpop.f32.mrf.mxu0
        %v9842 = vadd.f32 0.0, %v9841
        %v9843 = vpop.f32.mrf.mxu0
        %v9844 = vadd.f32 0.0, %v9843
        %v9845 = vpop.f32.mrf.mxu0
        %v9846 = vadd.f32 0.0, %v9845
        %9847 = vmatprep.mubr.bf16.mxu0 %v8186
        %9848 = vmatmul.mubr.bf16.gmra.mxu0 %v8185
        %v9849 = vpop.f32.mrf.mxu0
        %v9850 = vadd.f32 0.0, %v9849
        %v9851 = vpop.f32.mrf.mxu0
        %v9852 = vadd.f32 0.0, %v9851
        %v9853 = vpop.f32.mrf.mxu0
        %v9854 = vadd.f32 0.0, %v9853
        %v9855 = vpop.f32.mrf.mxu0
        %v9856 = vadd.f32 0.0, %v9855
        %9857 = vmatprep.mubr.bf16.mxu0 %v8189
        %9858 = vmatmul.mubr.bf16.gmra.mxu0 %v8188
        %v9859 = vpop.f32.mrf.mxu0
        %v9860 = vadd.f32 0.0, %v9859
        %v9861 = vpop.f32.mrf.mxu0
        %v9862 = vadd.f32 0.0, %v9861
        %v9863 = vpop.f32.mrf.mxu0
        %v9864 = vadd.f32 0.0, %v9863
        %v9865 = vpop.f32.mrf.mxu0
        %v9866 = vadd.f32 0.0, %v9865
        %9867 = vmatprep.mubr.bf16.mxu0 %v8192
        %9868 = vmatmul.mubr.bf16.gmra.mxu0 %v8191
        %v9869 = vpop.f32.mrf.mxu0
        %v9870 = vadd.f32 0.0, %v9869
        %v9871 = vpop.f32.mrf.mxu0
        %v9872 = vadd.f32 0.0, %v9871
        %v9873 = vpop.f32.mrf.mxu0
        %v9874 = vadd.f32 0.0, %v9873
        %v9875 = vpop.f32.mrf.mxu0
        %v9876 = vadd.f32 0.0, %v9875
        %9877 = vmatprep.mubr.bf16.mxu0 %v8195
        %9878 = vmatmul.mubr.bf16.gmra.mxu0 %v8194
        %v9879 = vpop.f32.mrf.mxu0
        %v9880 = vadd.f32 0.0, %v9879
        %v9881 = vpop.f32.mrf.mxu0
        %v9882 = vadd.f32 0.0, %v9881
        %v9883 = vpop.f32.mrf.mxu0
        %v9884 = vadd.f32 0.0, %v9883
        %v9885 = vpop.f32.mrf.mxu0
        %v9886 = vadd.f32 0.0, %v9885
        %9887 = vmatprep.mubr.bf16.mxu0 %v8198
        %9888 = vmatmul.mubr.bf16.gmra.mxu0 %v8197
        %v9889 = vpop.f32.mrf.mxu0
        %v9890 = vadd.f32 0.0, %v9889
        %v9891 = vpop.f32.mrf.mxu0
        %v9892 = vadd.f32 0.0, %v9891
        %v9893 = vpop.f32.mrf.mxu0
        %v9894 = vadd.f32 0.0, %v9893
        %v9895 = vpop.f32.mrf.mxu0
        %v9896 = vadd.f32 0.0, %v9895
        %9897 = vmatprep.mubr.bf16.mxu0 %v8201
        %9898 = vmatmul.mubr.bf16.gmra.mxu0 %v8200
        %v9899 = vpop.f32.mrf.mxu0
        %v9900 = vadd.f32 0.0, %v9899
        %v9901 = vpop.f32.mrf.mxu0
        %v9902 = vadd.f32 0.0, %v9901
        %v9903 = vpop.f32.mrf.mxu0
        %v9904 = vadd.f32 0.0, %v9903
        %v9905 = vpop.f32.mrf.mxu0
        %v9906 = vadd.f32 0.0, %v9905
        %9907 = vmatprep.mubr.bf16.mxu0 %v8204
        %9908 = vmatmul.mubr.bf16.gmra.mxu0 %v8203
        %v9909 = vpop.f32.mrf.mxu0
        %v9910 = vadd.f32 0.0, %v9909
        %v9911 = vpop.f32.mrf.mxu0
        %v9912 = vadd.f32 0.0, %v9911
        %v9913 = vpop.f32.mrf.mxu0
        %v9914 = vadd.f32 0.0, %v9913
        %v9915 = vpop.f32.mrf.mxu0
        %v9916 = vadd.f32 0.0, %v9915
        %9917 = vmatprep.mubr.bf16.mxu0 %v8207
        %9918 = vmatmul.mubr.bf16.gmra.mxu0 %v8206
        %v9919 = vpop.f32.mrf.mxu0
        %v9920 = vadd.f32 0.0, %v9919
        %v9921 = vpop.f32.mrf.mxu0
        %v9922 = vadd.f32 0.0, %v9921
        %v9923 = vpop.f32.mrf.mxu0
        %v9924 = vadd.f32 0.0, %v9923
        %v9925 = vpop.f32.mrf.mxu0
        %v9926 = vadd.f32 0.0, %v9925
        %9927 = vmatprep.mubr.bf16.mxu0 %v8210
        %9928 = vmatmul.mubr.bf16.gmra.mxu0 %v8209
        %v9929 = vpop.f32.mrf.mxu0
        %v9930 = vadd.f32 0.0, %v9929
        %v9931 = vpop.f32.mrf.mxu0
        %v9932 = vadd.f32 0.0, %v9931
        %v9933 = vpop.f32.mrf.mxu0
        %v9934 = vadd.f32 0.0, %v9933
        %v9935 = vpop.f32.mrf.mxu0
        %v9936 = vadd.f32 0.0, %v9935
        %9937 = vmatprep.mubr.bf16.mxu0 %v8213
        %9938 = vmatmul.mubr.bf16.gmra.mxu0 %v8212
        %v9939 = vpop.f32.mrf.mxu0
        %v9940 = vadd.f32 0.0, %v9939
        %v9941 = vpop.f32.mrf.mxu0
        %v9942 = vadd.f32 0.0, %v9941
        %v9943 = vpop.f32.mrf.mxu0
        %v9944 = vadd.f32 0.0, %v9943
        %v9945 = vpop.f32.mrf.mxu0
        %v9946 = vadd.f32 0.0, %v9945
        %9947 = vdwg.mxu0
        %9948 = vmatprep.subr.bf16.mxu0 %v8838
        %9949 = vmatpush1.bf16.msra.mxu0 %v8837
        %9950 = vmatprep.subr.bf16.mxu0 %v8832
        %9951 = vmatpush1.bf16.msra.mxu0 %v8831
        %9952 = vmatprep.subr.bf16.mxu0 %v8826
        %9953 = vmatpush1.bf16.msra.mxu0 %v8825
        %9954 = vmatprep.subr.bf16.mxu0 %v8820
        %9955 = vmatpush1.bf16.msra.mxu0 %v8819
        %9956 = vmatprep.subr.bf16.mxu0 %v8814
        %9957 = vmatpush1.bf16.msra.mxu0 %v8813
        %9958 = vmatprep.subr.bf16.mxu0 %v8808
        %9959 = vmatpush1.bf16.msra.mxu0 %v8807
        %9960 = vmatprep.subr.bf16.mxu0 %v8802
        %9961 = vmatpush1.bf16.msra.mxu0 %v8801
        %9962 = vmatprep.subr.bf16.mxu0 %v8796
        %9963 = vmatpush1.bf16.msra.mxu0 %v8795
        %9964 = vmatprep.subr.bf16.mxu0 0
        %9965 = vmatpush2.bf16.msra.mxu0 0
        %9966 = vmatprep.subr.bf16.mxu0 0
        %9967 = vmatpush2.bf16.msra.mxu0 0
        %9968 = vmatprep.subr.bf16.mxu0 0
        %9969 = vmatpush2.bf16.msra.mxu0 0
        %9970 = vmatprep.subr.bf16.mxu0 0
        %9971 = vmatpush2.bf16.msra.mxu0 0
        %9972 = vmatprep.subr.bf16.mxu0 0
        %9973 = vmatpush2.bf16.msra.mxu0 0
        %9974 = vmatprep.subr.bf16.mxu0 0
        %9975 = vmatpush2.bf16.msra.mxu0 0
        %9976 = vmatprep.subr.bf16.mxu0 0
        %9977 = vmatpush2.bf16.msra.mxu0 0
        %9978 = vmatprep.subr.bf16.mxu0 0
        %9979 = vmatpush2.bf16.msra.mxu0 0
        %9980 = vmatprep.mubr.bf16.mxu0 0
        %9981 = vmatmul.mubr.bf16.gmra.mxu0 %v8169
        %v9982 = vpop.f32.mrf.mxu0
        %v9983 = vadd.f32 %v9790, %v9982
        %v9984 = vpop.f32.mrf.mxu0
        %v9985 = vadd.f32 %v9792, %v9984
        %v9986 = vpop.f32.mrf.mxu0
        %v9987 = vadd.f32 %v9794, %v9986
        %v9988 = vpop.f32.mrf.mxu0
        %v9989 = vadd.f32 %v9796, %v9988
        %9990 = vmatprep.mubr.bf16.mxu0 0
        %9991 = vmatmul.mubr.bf16.gmra.mxu0 %v8172
        %v9992 = vpop.f32.mrf.mxu0
        %v9993 = vadd.f32 %v9800, %v9992
        %v9994 = vpop.f32.mrf.mxu0
        %v9995 = vadd.f32 %v9802, %v9994
        %v9996 = vpop.f32.mrf.mxu0
        %v9997 = vadd.f32 %v9804, %v9996
        %v9998 = vpop.f32.mrf.mxu0
        %v9999 = vadd.f32 %v9806, %v9998
        %10000 = vmatprep.mubr.bf16.mxu0 0
        %10001 = vmatmul.mubr.bf16.gmra.mxu0 %v8175
        %v10002 = vpop.f32.mrf.mxu0
        %v10003 = vadd.f32 %v9810, %v10002
        %v10004 = vpop.f32.mrf.mxu0
        %v10005 = vadd.f32 %v9812, %v10004
        %v10006 = vpop.f32.mrf.mxu0
        %v10007 = vadd.f32 %v9814, %v10006
        %v10008 = vpop.f32.mrf.mxu0
        %v10009 = vadd.f32 %v9816, %v10008
        %10010 = vmatprep.mubr.bf16.mxu0 0
        %10011 = vmatmul.mubr.bf16.gmra.mxu0 %v8178
        %v10012 = vpop.f32.mrf.mxu0
        %v10013 = vadd.f32 %v9820, %v10012
        %v10014 = vpop.f32.mrf.mxu0
        %v10015 = vadd.f32 %v9822, %v10014
        %v10016 = vpop.f32.mrf.mxu0
        %v10017 = vadd.f32 %v9824, %v10016
        %v10018 = vpop.f32.mrf.mxu0
        %v10019 = vadd.f32 %v9826, %v10018
        %10020 = vmatprep.mubr.bf16.mxu0 0
        %10021 = vmatmul.mubr.bf16.gmra.mxu0 %v8181
        %v10022 = vpop.f32.mrf.mxu0
        %v10023 = vadd.f32 %v9830, %v10022
        %v10024 = vpop.f32.mrf.mxu0
        %v10025 = vadd.f32 %v9832, %v10024
        %v10026 = vpop.f32.mrf.mxu0
        %v10027 = vadd.f32 %v9834, %v10026
        %v10028 = vpop.f32.mrf.mxu0
        %v10029 = vadd.f32 %v9836, %v10028
        %10030 = vmatprep.mubr.bf16.mxu0 0
        %10031 = vmatmul.mubr.bf16.gmra.mxu0 %v8184
        %v10032 = vpop.f32.mrf.mxu0
        %v10033 = vadd.f32 %v9840, %v10032
        %v10034 = vpop.f32.mrf.mxu0
        %v10035 = vadd.f32 %v9842, %v10034
        %v10036 = vpop.f32.mrf.mxu0
        %v10037 = vadd.f32 %v9844, %v10036
        %v10038 = vpop.f32.mrf.mxu0
        %v10039 = vadd.f32 %v9846, %v10038
        %10040 = vmatprep.mubr.bf16.mxu0 0
        %10041 = vmatmul.mubr.bf16.gmra.mxu0 %v8187
        %v10042 = vpop.f32.mrf.mxu0
        %v10043 = vadd.f32 %v9850, %v10042
        %v10044 = vpop.f32.mrf.mxu0
        %v10045 = vadd.f32 %v9852, %v10044
        %v10046 = vpop.f32.mrf.mxu0
        %v10047 = vadd.f32 %v9854, %v10046
        %v10048 = vpop.f32.mrf.mxu0
        %v10049 = vadd.f32 %v9856, %v10048
        %10050 = vmatprep.mubr.bf16.mxu0 0
        %10051 = vmatmul.mubr.bf16.gmra.mxu0 %v8190
        %v10052 = vpop.f32.mrf.mxu0
        %v10053 = vadd.f32 %v9860, %v10052
        %v10054 = vpop.f32.mrf.mxu0
        %v10055 = vadd.f32 %v9862, %v10054
        %v10056 = vpop.f32.mrf.mxu0
        %v10057 = vadd.f32 %v9864, %v10056
        %v10058 = vpop.f32.mrf.mxu0
        %v10059 = vadd.f32 %v9866, %v10058
        %10060 = vmatprep.mubr.bf16.mxu0 0
        %10061 = vmatmul.mubr.bf16.gmra.mxu0 %v8193
        %v10062 = vpop.f32.mrf.mxu0
        %v10063 = vadd.f32 %v9870, %v10062
        %v10064 = vpop.f32.mrf.mxu0
        %v10065 = vadd.f32 %v9872, %v10064
        %v10066 = vpop.f32.mrf.mxu0
        %v10067 = vadd.f32 %v9874, %v10066
        %v10068 = vpop.f32.mrf.mxu0
        %v10069 = vadd.f32 %v9876, %v10068
        %10070 = vmatprep.mubr.bf16.mxu0 0
        %10071 = vmatmul.mubr.bf16.gmra.mxu0 %v8196
        %v10072 = vpop.f32.mrf.mxu0
        %v10073 = vadd.f32 %v9880, %v10072
        %v10074 = vpop.f32.mrf.mxu0
        %v10075 = vadd.f32 %v9882, %v10074
        %v10076 = vpop.f32.mrf.mxu0
        %v10077 = vadd.f32 %v9884, %v10076
        %v10078 = vpop.f32.mrf.mxu0
        %v10079 = vadd.f32 %v9886, %v10078
        %10080 = vmatprep.mubr.bf16.mxu0 0
        %10081 = vmatmul.mubr.bf16.gmra.mxu0 %v8199
        %v10082 = vpop.f32.mrf.mxu0
        %v10083 = vadd.f32 %v9890, %v10082
        %v10084 = vpop.f32.mrf.mxu0
        %v10085 = vadd.f32 %v9892, %v10084
        %v10086 = vpop.f32.mrf.mxu0
        %v10087 = vadd.f32 %v9894, %v10086
        %v10088 = vpop.f32.mrf.mxu0
        %v10089 = vadd.f32 %v9896, %v10088
        %10090 = vmatprep.mubr.bf16.mxu0 0
        %10091 = vmatmul.mubr.bf16.gmra.mxu0 %v8202
        %v10092 = vpop.f32.mrf.mxu0
        %v10093 = vadd.f32 %v9900, %v10092
        %v10094 = vpop.f32.mrf.mxu0
        %v10095 = vadd.f32 %v9902, %v10094
        %v10096 = vpop.f32.mrf.mxu0
        %v10097 = vadd.f32 %v9904, %v10096
        %v10098 = vpop.f32.mrf.mxu0
        %v10099 = vadd.f32 %v9906, %v10098
        %10100 = vmatprep.mubr.bf16.mxu0 0
        %10101 = vmatmul.mubr.bf16.gmra.mxu0 %v8205
        %v10102 = vpop.f32.mrf.mxu0
        %v10103 = vadd.f32 %v9910, %v10102
        %v10104 = vpop.f32.mrf.mxu0
        %v10105 = vadd.f32 %v9912, %v10104
        %v10106 = vpop.f32.mrf.mxu0
        %v10107 = vadd.f32 %v9914, %v10106
        %v10108 = vpop.f32.mrf.mxu0
        %v10109 = vadd.f32 %v9916, %v10108
        %10110 = vmatprep.mubr.bf16.mxu0 0
        %10111 = vmatmul.mubr.bf16.gmra.mxu0 %v8208
        %v10112 = vpop.f32.mrf.mxu0
        %v10113 = vadd.f32 %v9920, %v10112
        %v10114 = vpop.f32.mrf.mxu0
        %v10115 = vadd.f32 %v9922, %v10114
        %v10116 = vpop.f32.mrf.mxu0
        %v10117 = vadd.f32 %v9924, %v10116
        %v10118 = vpop.f32.mrf.mxu0
        %v10119 = vadd.f32 %v9926, %v10118
        %10120 = vmatprep.mubr.bf16.mxu0 0
        %10121 = vmatmul.mubr.bf16.gmra.mxu0 %v8211
        %v10122 = vpop.f32.mrf.mxu0
        %v10123 = vadd.f32 %v9930, %v10122
        %v10124 = vpop.f32.mrf.mxu0
        %v10125 = vadd.f32 %v9932, %v10124
        %v10126 = vpop.f32.mrf.mxu0
        %v10127 = vadd.f32 %v9934, %v10126
        %v10128 = vpop.f32.mrf.mxu0
        %v10129 = vadd.f32 %v9936, %v10128
        %10130 = vmatprep.mubr.bf16.mxu0 0
        %10131 = vmatmul.mubr.bf16.gmra.mxu0 %v8214
        %v10132 = vpop.f32.mrf.mxu0
        %v10133 = vadd.f32 %v9940, %v10132
        %v10134 = vpop.f32.mrf.mxu0
        %v10135 = vadd.f32 %v9942, %v10134
        %v10136 = vpop.f32.mrf.mxu0
        %v10137 = vadd.f32 %v9944, %v10136
        %v10138 = vpop.f32.mrf.mxu0
        %v10139 = vadd.f32 %v9946, %v10138
        %10140 = vdwg.mxu0
        %v10141 = vadd.f32 %v7607, %v9211
        %v10142 = vadd.f32 %v7608, %v9213
        %v10143 = vadd.f32 %v7609, %v9597
        %v10144 = vadd.f32 %v7610, %v9599
        %v10145 = vadd.f32 %v7611, %v9983
        %v10146 = vadd.f32 %v7612, %v9985
        %v10147 = vadd.f32 %v7613, %v9215
        %v10148 = vadd.f32 %v7614, %v9217
        %v10149 = vadd.f32 %v7615, %v9601
        %v10150 = vadd.f32 %v7616, %v9603
        %v10151 = vadd.f32 %v7617, %v9987
        %v10152 = vadd.f32 %v7618, %v9989
        %v10153 = vadd.f32 %v7619, %v9221
        %v10154 = vadd.f32 %v7620, %v9223
        %v10155 = vadd.f32 %v7621, %v9607
        %v10156 = vadd.f32 %v7622, %v9609
        %v10157 = vadd.f32 %v7623, %v9993
        %v10158 = vadd.f32 %v7624, %v9995
        %v10159 = vadd.f32 %v7625, %v9225
        %v10160 = vadd.f32 %v7626, %v9227
        %v10161 = vadd.f32 %v7627, %v9611
        %v10162 = vadd.f32 %v7628, %v9613
        %v10163 = vadd.f32 %v7629, %v9997
        %v10164 = vadd.f32 %v7630, %v9999
        %v10165 = vadd.f32 %v7631, %v9231
        %v10166 = vadd.f32 %v7632, %v9233
        %v10167 = vadd.f32 %v7633, %v9617
        %v10168 = vadd.f32 %v7634, %v9619
        %v10169 = vadd.f32 %v7635, %v10003
        %v10170 = vadd.f32 %v7636, %v10005
        %v10171 = vadd.f32 %v7637, %v9235
        %v10172 = vadd.f32 %v7638, %v9237
        %v10173 = vadd.f32 %v7639, %v9621
        %v10174 = vadd.f32 %v7640, %v9623
        %v10175 = vadd.f32 %v7641, %v10007
        %v10176 = vadd.f32 %v7642, %v10009
        %v10177 = vadd.f32 %v7643, %v9241
        %v10178 = vadd.f32 %v7644, %v9243
        %v10179 = vadd.f32 %v7645, %v9627
        %v10180 = vadd.f32 %v7646, %v9629
        %v10181 = vadd.f32 %v7647, %v10013
        %v10182 = vadd.f32 %v7648, %v10015
        %v10183 = vadd.f32 %v7649, %v9245
        %v10184 = vadd.f32 %v7650, %v9247
        %v10185 = vadd.f32 %v7651, %v9631
        %v10186 = vadd.f32 %v7652, %v9633
        %v10187 = vadd.f32 %v7653, %v10017
        %v10188 = vadd.f32 %v7654, %v10019
        %v10189 = vadd.f32 %v7655, %v9251
        %v10190 = vadd.f32 %v7656, %v9253
        %v10191 = vadd.f32 %v7657, %v9637
        %v10192 = vadd.f32 %v7658, %v9639
        %v10193 = vadd.f32 %v7659, %v10023
        %v10194 = vadd.f32 %v7660, %v10025
        %v10195 = vadd.f32 %v7661, %v9255
        %v10196 = vadd.f32 %v7662, %v9257
        %v10197 = vadd.f32 %v7663, %v9641
        %v10198 = vadd.f32 %v7664, %v9643
        %v10199 = vadd.f32 %v7665, %v10027
        %v10200 = vadd.f32 %v7666, %v10029
        %v10201 = vadd.f32 %v7667, %v9261
        %v10202 = vadd.f32 %v7668, %v9263
        %v10203 = vadd.f32 %v7669, %v9647
        %v10204 = vadd.f32 %v7670, %v9649
        %v10205 = vadd.f32 %v7671, %v10033
        %v10206 = vadd.f32 %v7672, %v10035
        %v10207 = vadd.f32 %v7673, %v9265
        %v10208 = vadd.f32 %v7674, %v9267
        %v10209 = vadd.f32 %v7675, %v9651
        %v10210 = vadd.f32 %v7676, %v9653
        %v10211 = vadd.f32 %v7677, %v10037
        %v10212 = vadd.f32 %v7678, %v10039
        %v10213 = vadd.f32 %v7679, %v9271
        %v10214 = vadd.f32 %v7680, %v9273
        %v10215 = vadd.f32 %v7681, %v9657
        %v10216 = vadd.f32 %v7682, %v9659
        %v10217 = vadd.f32 %v7683, %v10043
        %v10218 = vadd.f32 %v7684, %v10045
        %v10219 = vadd.f32 %v7685, %v9275
        %v10220 = vadd.f32 %v7686, %v9277
        %v10221 = vadd.f32 %v7687, %v9661
        %v10222 = vadd.f32 %v7688, %v9663
        %v10223 = vadd.f32 %v7689, %v10047
        %v10224 = vadd.f32 %v7690, %v10049
        %v10225 = vadd.f32 %v7691, %v9281
        %v10226 = vadd.f32 %v7692, %v9283
        %v10227 = vadd.f32 %v7693, %v9667
        %v10228 = vadd.f32 %v7694, %v9669
        %v10229 = vadd.f32 %v7695, %v10053
        %v10230 = vadd.f32 %v7696, %v10055
        %v10231 = vadd.f32 %v7697, %v9285
        %v10232 = vadd.f32 %v7698, %v9287
        %v10233 = vadd.f32 %v7699, %v9671
        %v10234 = vadd.f32 %v7700, %v9673
        %v10235 = vadd.f32 %v7701, %v10057
        %v10236 = vadd.f32 %v7702, %v10059
        %v10237 = vadd.f32 %v7703, %v9291
        %v10238 = vadd.f32 %v7704, %v9293
        %v10239 = vadd.f32 %v7705, %v9677
        %v10240 = vadd.f32 %v7706, %v9679
        %v10241 = vadd.f32 %v7707, %v10063
        %v10242 = vadd.f32 %v7708, %v10065
        %v10243 = vadd.f32 %v7709, %v9295
        %v10244 = vadd.f32 %v7710, %v9297
        %v10245 = vadd.f32 %v7711, %v9681
        %v10246 = vadd.f32 %v7712, %v9683
        %v10247 = vadd.f32 %v7713, %v10067
        %v10248 = vadd.f32 %v7714, %v10069
        %v10249 = vadd.f32 %v7715, %v9301
        %v10250 = vadd.f32 %v7716, %v9303
        %v10251 = vadd.f32 %v7717, %v9687
        %v10252 = vadd.f32 %v7718, %v9689
        %v10253 = vadd.f32 %v7719, %v10073
        %v10254 = vadd.f32 %v7720, %v10075
        %v10255 = vadd.f32 %v7721, %v9305
        %v10256 = vadd.f32 %v7722, %v9307
        %v10257 = vadd.f32 %v7723, %v9691
        %v10258 = vadd.f32 %v7724, %v9693
        %v10259 = vadd.f32 %v7725, %v10077
        %v10260 = vadd.f32 %v7726, %v10079
        %v10261 = vadd.f32 %v7727, %v9311
        %v10262 = vadd.f32 %v7728, %v9313
        %v10263 = vadd.f32 %v7729, %v9697
        %v10264 = vadd.f32 %v7730, %v9699
        %v10265 = vadd.f32 %v7731, %v10083
        %v10266 = vadd.f32 %v7732, %v10085
        %v10267 = vadd.f32 %v7733, %v9315
        %v10268 = vadd.f32 %v7734, %v9317
        %v10269 = vadd.f32 %v7735, %v9701
        %v10270 = vadd.f32 %v7736, %v9703
        %v10271 = vadd.f32 %v7737, %v10087
        %v10272 = vadd.f32 %v7738, %v10089
        %v10273 = vadd.f32 %v7739, %v9321
        %v10274 = vadd.f32 %v7740, %v9323
        %v10275 = vadd.f32 %v7741, %v9707
        %v10276 = vadd.f32 %v7742, %v9709
        %v10277 = vadd.f32 %v7743, %v10093
        %v10278 = vadd.f32 %v7744, %v10095
        %v10279 = vadd.f32 %v7745, %v9325
        %v10280 = vadd.f32 %v7746, %v9327
        %v10281 = vadd.f32 %v7747, %v9711
        %v10282 = vadd.f32 %v7748, %v9713
        %v10283 = vadd.f32 %v7749, %v10097
        %v10284 = vadd.f32 %v7750, %v10099
        %v10285 = vadd.f32 %v7751, %v9331
        %v10286 = vadd.f32 %v7752, %v9333
        %v10287 = vadd.f32 %v7753, %v9717
        %v10288 = vadd.f32 %v7754, %v9719
        %v10289 = vadd.f32 %v7755, %v10103
        %v10290 = vadd.f32 %v7756, %v10105
        %v10291 = vadd.f32 %v7757, %v9335
        %v10292 = vadd.f32 %v7758, %v9337
        %v10293 = vadd.f32 %v7759, %v9721
        %v10294 = vadd.f32 %v7760, %v9723
        %v10295 = vadd.f32 %v7761, %v10107
        %v10296 = vadd.f32 %v7762, %v10109
        %v10297 = vadd.f32 %v7763, %v9341
        %v10298 = vadd.f32 %v7764, %v9343
        %v10299 = vadd.f32 %v7765, %v9727
        %v10300 = vadd.f32 %v7766, %v9729
        %v10301 = vadd.f32 %v7767, %v10113
        %v10302 = vadd.f32 %v7768, %v10115
        %v10303 = vadd.f32 %v7769, %v9345
        %v10304 = vadd.f32 %v7770, %v9347
        %v10305 = vadd.f32 %v7771, %v9731
        %v10306 = vadd.f32 %v7772, %v9733
        %v10307 = vadd.f32 %v7773, %v10117
        %v10308 = vadd.f32 %v7774, %v10119
        %v10309 = vadd.f32 %v7775, %v9351
        %v10310 = vadd.f32 %v7776, %v9353
        %v10311 = vadd.f32 %v7777, %v9737
        %v10312 = vadd.f32 %v7778, %v9739
        %v10313 = vadd.f32 %v7779, %v10123
        %v10314 = vadd.f32 %v7780, %v10125
        %v10315 = vadd.f32 %v7781, %v9355
        %v10316 = vadd.f32 %v7782, %v9357
        %v10317 = vadd.f32 %v7783, %v9741
        %v10318 = vadd.f32 %v7784, %v9743
        %v10319 = vadd.f32 %v7785, %v10127
        %v10320 = vadd.f32 %v7786, %v10129
        %v10321 = vadd.f32 %v7787, %v9361
        %v10322 = vadd.f32 %v7788, %v9363
        %v10323 = vadd.f32 %v7789, %v9747
        %v10324 = vadd.f32 %v7790, %v9749
        %v10325 = vadd.f32 %v7791, %v10133
        %v10326 = vadd.f32 %v7792, %v10135
        %v10327 = vadd.f32 %v7793, %v9365
        %v10328 = vadd.f32 %v7794, %v9367
        %v10329 = vadd.f32 %v7795, %v9751
        %v10330 = vadd.f32 %v7796, %v9753
        %v10331 = vadd.f32 %v7797, %v10137
        %v10332 = vadd.f32 %v7798, %v10139
        %v10333 = vld [vmem:[%s501] sm:$0x3f]
        %v10335 = vlaneseq
        %v10336 = vshrl.u32 %v10335, 7
        %v10337 = vsub.s32 0, %v10336
        %v10338 = vrot.slane %v10333, %v10337
        %v10339 = vlaneseq
        %v10340 = vshrl.u32 %v10339, 7
        %v10341 = vsub.s32 1, %v10340
        %v10342 = vrot.slane %v10333, %v10341
        %v10343 = vlaneseq
        %v10344 = vshrl.u32 %v10343, 7
        %v10345 = vsub.s32 2, %v10344
        %v10346 = vrot.slane %v10333, %v10345
        %v10347 = vlaneseq
        %v10348 = vshrl.u32 %v10347, 7
        %v10349 = vsub.s32 3, %v10348
        %v10350 = vrot.slane %v10333, %v10349
        %v10351 = vlaneseq
        %v10352 = vshrl.u32 %v10351, 7
        %v10353 = vsub.s32 4, %v10352
        %v10354 = vrot.slane %v10333, %v10353
        %v10355 = vlaneseq
        %v10356 = vshrl.u32 %v10355, 7
        %v10357 = vsub.s32 5, %v10356
        %v10358 = vrot.slane %v10333, %v10357
        %v10365 = vmul.f32 %v10141, %v10338
        %v10366 = vmul.f32 %v10142, %v10342
        %v10367 = vmul.f32 %v10143, %v10346
        %v10368 = vmul.f32 %v10144, %v10350
        %v10369 = vmul.f32 %v10145, %v10354
        %v10370 = vmul.f32 %v10146, %v10358
        %v10371 = vmul.f32 %v10147, %v10338
        %v10372 = vmul.f32 %v10148, %v10342
        %v10373 = vmul.f32 %v10149, %v10346
        %v10374 = vmul.f32 %v10150, %v10350
        %v10375 = vmul.f32 %v10151, %v10354
        %v10376 = vmul.f32 %v10152, %v10358
        %v10377 = vmul.f32 %v10153, %v10338
        %v10378 = vmul.f32 %v10154, %v10342
        %v10379 = vmul.f32 %v10155, %v10346
        %v10380 = vmul.f32 %v10156, %v10350
        %v10381 = vmul.f32 %v10157, %v10354
        %v10382 = vmul.f32 %v10158, %v10358
        %v10383 = vmul.f32 %v10159, %v10338
        %v10384 = vmul.f32 %v10160, %v10342
        %v10385 = vmul.f32 %v10161, %v10346
        %v10386 = vmul.f32 %v10162, %v10350
        %v10387 = vmul.f32 %v10163, %v10354
        %v10388 = vmul.f32 %v10164, %v10358
        %v10389 = vmul.f32 %v10165, %v10338
        %v10390 = vmul.f32 %v10166, %v10342
        %v10391 = vmul.f32 %v10167, %v10346
        %v10392 = vmul.f32 %v10168, %v10350
        %v10393 = vmul.f32 %v10169, %v10354
        %v10394 = vmul.f32 %v10170, %v10358
        %v10395 = vmul.f32 %v10171, %v10338
        %v10396 = vmul.f32 %v10172, %v10342
        %v10397 = vmul.f32 %v10173, %v10346
        %v10398 = vmul.f32 %v10174, %v10350
        %v10399 = vmul.f32 %v10175, %v10354
        %v10400 = vmul.f32 %v10176, %v10358
        %v10401 = vmul.f32 %v10177, %v10338
        %v10402 = vmul.f32 %v10178, %v10342
        %v10403 = vmul.f32 %v10179, %v10346
        %v10404 = vmul.f32 %v10180, %v10350
        %v10405 = vmul.f32 %v10181, %v10354
        %v10406 = vmul.f32 %v10182, %v10358
        %v10407 = vmul.f32 %v10183, %v10338
        %v10408 = vmul.f32 %v10184, %v10342
        %v10409 = vmul.f32 %v10185, %v10346
        %v10410 = vmul.f32 %v10186, %v10350
        %v10411 = vmul.f32 %v10187, %v10354
        %v10412 = vmul.f32 %v10188, %v10358
        %v10413 = vmul.f32 %v10189, %v10338
        %v10414 = vmul.f32 %v10190, %v10342
        %v10415 = vmul.f32 %v10191, %v10346
        %v10416 = vmul.f32 %v10192, %v10350
        %v10417 = vmul.f32 %v10193, %v10354
        %v10418 = vmul.f32 %v10194, %v10358
        %v10419 = vmul.f32 %v10195, %v10338
        %v10420 = vmul.f32 %v10196, %v10342
        %v10421 = vmul.f32 %v10197, %v10346
        %v10422 = vmul.f32 %v10198, %v10350
        %v10423 = vmul.f32 %v10199, %v10354
        %v10424 = vmul.f32 %v10200, %v10358
        %v10425 = vmul.f32 %v10201, %v10338
        %v10426 = vmul.f32 %v10202, %v10342
        %v10427 = vmul.f32 %v10203, %v10346
        %v10428 = vmul.f32 %v10204, %v10350
        %v10429 = vmul.f32 %v10205, %v10354
        %v10430 = vmul.f32 %v10206, %v10358
        %v10431 = vmul.f32 %v10207, %v10338
        %v10432 = vmul.f32 %v10208, %v10342
        %v10433 = vmul.f32 %v10209, %v10346
        %v10434 = vmul.f32 %v10210, %v10350
        %v10435 = vmul.f32 %v10211, %v10354
        %v10436 = vmul.f32 %v10212, %v10358
        %v10437 = vmul.f32 %v10213, %v10338
        %v10438 = vmul.f32 %v10214, %v10342
        %v10439 = vmul.f32 %v10215, %v10346
        %v10440 = vmul.f32 %v10216, %v10350
        %v10441 = vmul.f32 %v10217, %v10354
        %v10442 = vmul.f32 %v10218, %v10358
        %v10443 = vmul.f32 %v10219, %v10338
        %v10444 = vmul.f32 %v10220, %v10342
        %v10445 = vmul.f32 %v10221, %v10346
        %v10446 = vmul.f32 %v10222, %v10350
        %v10447 = vmul.f32 %v10223, %v10354
        %v10448 = vmul.f32 %v10224, %v10358
        %v10449 = vmul.f32 %v10225, %v10338
        %v10450 = vmul.f32 %v10226, %v10342
        %v10451 = vmul.f32 %v10227, %v10346
        %v10452 = vmul.f32 %v10228, %v10350
        %v10453 = vmul.f32 %v10229, %v10354
        %v10454 = vmul.f32 %v10230, %v10358
        %v10455 = vmul.f32 %v10231, %v10338
        %v10456 = vmul.f32 %v10232, %v10342
        %v10457 = vmul.f32 %v10233, %v10346
        %v10458 = vmul.f32 %v10234, %v10350
        %v10459 = vmul.f32 %v10235, %v10354
        %v10460 = vmul.f32 %v10236, %v10358
        %v10461 = vmul.f32 %v10237, %v10338
        %v10462 = vmul.f32 %v10238, %v10342
        %v10463 = vmul.f32 %v10239, %v10346
        %v10464 = vmul.f32 %v10240, %v10350
        %v10465 = vmul.f32 %v10241, %v10354
        %v10466 = vmul.f32 %v10242, %v10358
        %v10467 = vmul.f32 %v10243, %v10338
        %v10468 = vmul.f32 %v10244, %v10342
        %v10469 = vmul.f32 %v10245, %v10346
        %v10470 = vmul.f32 %v10246, %v10350
        %v10471 = vmul.f32 %v10247, %v10354
        %v10472 = vmul.f32 %v10248, %v10358
        %v10473 = vmul.f32 %v10249, %v10338
        %v10474 = vmul.f32 %v10250, %v10342
        %v10475 = vmul.f32 %v10251, %v10346
        %v10476 = vmul.f32 %v10252, %v10350
        %v10477 = vmul.f32 %v10253, %v10354
        %v10478 = vmul.f32 %v10254, %v10358
        %v10479 = vmul.f32 %v10255, %v10338
        %v10480 = vmul.f32 %v10256, %v10342
        %v10481 = vmul.f32 %v10257, %v10346
        %v10482 = vmul.f32 %v10258, %v10350
        %v10483 = vmul.f32 %v10259, %v10354
        %v10484 = vmul.f32 %v10260, %v10358
        %v10485 = vmul.f32 %v10261, %v10338
        %v10486 = vmul.f32 %v10262, %v10342
        %v10487 = vmul.f32 %v10263, %v10346
        %v10488 = vmul.f32 %v10264, %v10350
        %v10489 = vmul.f32 %v10265, %v10354
        %v10490 = vmul.f32 %v10266, %v10358
        %v10491 = vmul.f32 %v10267, %v10338
        %v10492 = vmul.f32 %v10268, %v10342
        %v10493 = vmul.f32 %v10269, %v10346
        %v10494 = vmul.f32 %v10270, %v10350
        %v10495 = vmul.f32 %v10271, %v10354
        %v10496 = vmul.f32 %v10272, %v10358
        %v10497 = vmul.f32 %v10273, %v10338
        %v10498 = vmul.f32 %v10274, %v10342
        %v10499 = vmul.f32 %v10275, %v10346
        %v10500 = vmul.f32 %v10276, %v10350
        %v10501 = vmul.f32 %v10277, %v10354
        %v10502 = vmul.f32 %v10278, %v10358
        %v10503 = vmul.f32 %v10279, %v10338
        %v10504 = vmul.f32 %v10280, %v10342
        %v10505 = vmul.f32 %v10281, %v10346
        %v10506 = vmul.f32 %v10282, %v10350
        %v10507 = vmul.f32 %v10283, %v10354
        %v10508 = vmul.f32 %v10284, %v10358
        %v10509 = vmul.f32 %v10285, %v10338
        %v10510 = vmul.f32 %v10286, %v10342
        %v10511 = vmul.f32 %v10287, %v10346
        %v10512 = vmul.f32 %v10288, %v10350
        %v10513 = vmul.f32 %v10289, %v10354
        %v10514 = vmul.f32 %v10290, %v10358
        %v10515 = vmul.f32 %v10291, %v10338
        %v10516 = vmul.f32 %v10292, %v10342
        %v10517 = vmul.f32 %v10293, %v10346
        %v10518 = vmul.f32 %v10294, %v10350
        %v10519 = vmul.f32 %v10295, %v10354
        %v10520 = vmul.f32 %v10296, %v10358
        %v10521 = vmul.f32 %v10297, %v10338
        %v10522 = vmul.f32 %v10298, %v10342
        %v10523 = vmul.f32 %v10299, %v10346
        %v10524 = vmul.f32 %v10300, %v10350
        %v10525 = vmul.f32 %v10301, %v10354
        %v10526 = vmul.f32 %v10302, %v10358
        %v10527 = vmul.f32 %v10303, %v10338
        %v10528 = vmul.f32 %v10304, %v10342
        %v10529 = vmul.f32 %v10305, %v10346
        %v10530 = vmul.f32 %v10306, %v10350
        %v10531 = vmul.f32 %v10307, %v10354
        %v10532 = vmul.f32 %v10308, %v10358
        %v10533 = vmul.f32 %v10309, %v10338
        %v10534 = vmul.f32 %v10310, %v10342
        %v10535 = vmul.f32 %v10311, %v10346
        %v10536 = vmul.f32 %v10312, %v10350
        %v10537 = vmul.f32 %v10313, %v10354
        %v10538 = vmul.f32 %v10314, %v10358
        %v10539 = vmul.f32 %v10315, %v10338
        %v10540 = vmul.f32 %v10316, %v10342
        %v10541 = vmul.f32 %v10317, %v10346
        %v10542 = vmul.f32 %v10318, %v10350
        %v10543 = vmul.f32 %v10319, %v10354
        %v10544 = vmul.f32 %v10320, %v10358
        %v10545 = vmul.f32 %v10321, %v10338
        %v10546 = vmul.f32 %v10322, %v10342
        %v10547 = vmul.f32 %v10323, %v10346
        %v10548 = vmul.f32 %v10324, %v10350
        %v10549 = vmul.f32 %v10325, %v10354
        %v10550 = vmul.f32 %v10326, %v10358
        %v10551 = vmul.f32 %v10327, %v10338
        %v10552 = vmul.f32 %v10328, %v10342
        %v10553 = vmul.f32 %v10329, %v10346
        %v10554 = vmul.f32 %v10330, %v10350
        %v10555 = vmul.f32 %v10331, %v10354
        %v10556 = vmul.f32 %v10332, %v10358
        %v10557 = vld [vmem:[%s510] sm:$0x3f]
        %v10559 = vlaneseq
        %v10560 = vshrl.u32 %v10559, 7
        %v10561 = vsub.s32 0, %v10560
        %v10562 = vrot.slane %v10557, %v10561
        %v10563 = vlaneseq
        %v10564 = vshrl.u32 %v10563, 7
        %v10565 = vsub.s32 1, %v10564
        %v10566 = vrot.slane %v10557, %v10565
        %v10567 = vlaneseq
        %v10568 = vshrl.u32 %v10567, 7
        %v10569 = vsub.s32 2, %v10568
        %v10570 = vrot.slane %v10557, %v10569
        %v10571 = vlaneseq
        %v10572 = vshrl.u32 %v10571, 7
        %v10573 = vsub.s32 3, %v10572
        %v10574 = vrot.slane %v10557, %v10573
        %v10575 = vlaneseq
        %v10576 = vshrl.u32 %v10575, 7
        %v10577 = vsub.s32 4, %v10576
        %v10578 = vrot.slane %v10557, %v10577
        %v10579 = vlaneseq
        %v10580 = vshrl.u32 %v10579, 7
        %v10581 = vsub.s32 5, %v10580
        %v10582 = vrot.slane %v10557, %v10581
        %v10589 = vadd.f32 %v10365, %v10562
        %v10590 = vadd.f32 %v10366, %v10566
        %v10591 = vadd.f32 %v10367, %v10570
        %v10592 = vadd.f32 %v10368, %v10574
        %v10593 = vadd.f32 %v10369, %v10578
        %v10594 = vadd.f32 %v10370, %v10582
        %v10595 = vadd.f32 %v10371, %v10562
        %v10596 = vadd.f32 %v10372, %v10566
        %v10597 = vadd.f32 %v10373, %v10570
        %v10598 = vadd.f32 %v10374, %v10574
        %v10599 = vadd.f32 %v10375, %v10578
        %v10600 = vadd.f32 %v10376, %v10582
        %v10601 = vadd.f32 %v10377, %v10562
        %v10602 = vadd.f32 %v10378, %v10566
        %v10603 = vadd.f32 %v10379, %v10570
        %v10604 = vadd.f32 %v10380, %v10574
        %v10605 = vadd.f32 %v10381, %v10578
        %v10606 = vadd.f32 %v10382, %v10582
        %v10607 = vadd.f32 %v10383, %v10562
        %v10608 = vadd.f32 %v10384, %v10566
        %v10609 = vadd.f32 %v10385, %v10570
        %v10610 = vadd.f32 %v10386, %v10574
        %v10611 = vadd.f32 %v10387, %v10578
        %v10612 = vadd.f32 %v10388, %v10582
        %v10613 = vadd.f32 %v10389, %v10562
        %v10614 = vadd.f32 %v10390, %v10566
        %v10615 = vadd.f32 %v10391, %v10570
        %v10616 = vadd.f32 %v10392, %v10574
        %v10617 = vadd.f32 %v10393, %v10578
        %v10618 = vadd.f32 %v10394, %v10582
        %v10619 = vadd.f32 %v10395, %v10562
        %v10620 = vadd.f32 %v10396, %v10566
        %v10621 = vadd.f32 %v10397, %v10570
        %v10622 = vadd.f32 %v10398, %v10574
        %v10623 = vadd.f32 %v10399, %v10578
        %v10624 = vadd.f32 %v10400, %v10582
        %v10625 = vadd.f32 %v10401, %v10562
        %v10626 = vadd.f32 %v10402, %v10566
        %v10627 = vadd.f32 %v10403, %v10570
        %v10628 = vadd.f32 %v10404, %v10574
        %v10629 = vadd.f32 %v10405, %v10578
        %v10630 = vadd.f32 %v10406, %v10582
        %v10631 = vadd.f32 %v10407, %v10562
        %v10632 = vadd.f32 %v10408, %v10566
        %v10633 = vadd.f32 %v10409, %v10570
        %v10634 = vadd.f32 %v10410, %v10574
        %v10635 = vadd.f32 %v10411, %v10578
        %v10636 = vadd.f32 %v10412, %v10582
        %v10637 = vadd.f32 %v10413, %v10562
        %v10638 = vadd.f32 %v10414, %v10566
        %v10639 = vadd.f32 %v10415, %v10570
        %v10640 = vadd.f32 %v10416, %v10574
        %v10641 = vadd.f32 %v10417, %v10578
        %v10642 = vadd.f32 %v10418, %v10582
        %v10643 = vadd.f32 %v10419, %v10562
        %v10644 = vadd.f32 %v10420, %v10566
        %v10645 = vadd.f32 %v10421, %v10570
        %v10646 = vadd.f32 %v10422, %v10574
        %v10647 = vadd.f32 %v10423, %v10578
        %v10648 = vadd.f32 %v10424, %v10582
        %v10649 = vadd.f32 %v10425, %v10562
        %v10650 = vadd.f32 %v10426, %v10566
        %v10651 = vadd.f32 %v10427, %v10570
        %v10652 = vadd.f32 %v10428, %v10574
        %v10653 = vadd.f32 %v10429, %v10578
        %v10654 = vadd.f32 %v10430, %v10582
        %v10655 = vadd.f32 %v10431, %v10562
        %v10656 = vadd.f32 %v10432, %v10566
        %v10657 = vadd.f32 %v10433, %v10570
        %v10658 = vadd.f32 %v10434, %v10574
        %v10659 = vadd.f32 %v10435, %v10578
        %v10660 = vadd.f32 %v10436, %v10582
        %v10661 = vadd.f32 %v10437, %v10562
        %v10662 = vadd.f32 %v10438, %v10566
        %v10663 = vadd.f32 %v10439, %v10570
        %v10664 = vadd.f32 %v10440, %v10574
        %v10665 = vadd.f32 %v10441, %v10578
        %v10666 = vadd.f32 %v10442, %v10582
        %v10667 = vadd.f32 %v10443, %v10562
        %v10668 = vadd.f32 %v10444, %v10566
        %v10669 = vadd.f32 %v10445, %v10570
        %v10670 = vadd.f32 %v10446, %v10574
        %v10671 = vadd.f32 %v10447, %v10578
        %v10672 = vadd.f32 %v10448, %v10582
        %v10673 = vadd.f32 %v10449, %v10562
        %v10674 = vadd.f32 %v10450, %v10566
        %v10675 = vadd.f32 %v10451, %v10570
        %v10676 = vadd.f32 %v10452, %v10574
        %v10677 = vadd.f32 %v10453, %v10578
        %v10678 = vadd.f32 %v10454, %v10582
        %v10679 = vadd.f32 %v10455, %v10562
        %v10680 = vadd.f32 %v10456, %v10566
        %v10681 = vadd.f32 %v10457, %v10570
        %v10682 = vadd.f32 %v10458, %v10574
        %v10683 = vadd.f32 %v10459, %v10578
        %v10684 = vadd.f32 %v10460, %v10582
        %v10685 = vadd.f32 %v10461, %v10562
        %v10686 = vadd.f32 %v10462, %v10566
        %v10687 = vadd.f32 %v10463, %v10570
        %v10688 = vadd.f32 %v10464, %v10574
        %v10689 = vadd.f32 %v10465, %v10578
        %v10690 = vadd.f32 %v10466, %v10582
        %v10691 = vadd.f32 %v10467, %v10562
        %v10692 = vadd.f32 %v10468, %v10566
        %v10693 = vadd.f32 %v10469, %v10570
        %v10694 = vadd.f32 %v10470, %v10574
        %v10695 = vadd.f32 %v10471, %v10578
        %v10696 = vadd.f32 %v10472, %v10582
        %v10697 = vadd.f32 %v10473, %v10562
        %v10698 = vadd.f32 %v10474, %v10566
        %v10699 = vadd.f32 %v10475, %v10570
        %v10700 = vadd.f32 %v10476, %v10574
        %v10701 = vadd.f32 %v10477, %v10578
        %v10702 = vadd.f32 %v10478, %v10582
        %v10703 = vadd.f32 %v10479, %v10562
        %v10704 = vadd.f32 %v10480, %v10566
        %v10705 = vadd.f32 %v10481, %v10570
        %v10706 = vadd.f32 %v10482, %v10574
        %v10707 = vadd.f32 %v10483, %v10578
        %v10708 = vadd.f32 %v10484, %v10582
        %v10709 = vadd.f32 %v10485, %v10562
        %v10710 = vadd.f32 %v10486, %v10566
        %v10711 = vadd.f32 %v10487, %v10570
        %v10712 = vadd.f32 %v10488, %v10574
        %v10713 = vadd.f32 %v10489, %v10578
        %v10714 = vadd.f32 %v10490, %v10582
        %v10715 = vadd.f32 %v10491, %v10562
        %v10716 = vadd.f32 %v10492, %v10566
        %v10717 = vadd.f32 %v10493, %v10570
        %v10718 = vadd.f32 %v10494, %v10574
        %v10719 = vadd.f32 %v10495, %v10578
        %v10720 = vadd.f32 %v10496, %v10582
        %v10721 = vadd.f32 %v10497, %v10562
        %v10722 = vadd.f32 %v10498, %v10566
        %v10723 = vadd.f32 %v10499, %v10570
        %v10724 = vadd.f32 %v10500, %v10574
        %v10725 = vadd.f32 %v10501, %v10578
        %v10726 = vadd.f32 %v10502, %v10582
        %v10727 = vadd.f32 %v10503, %v10562
        %v10728 = vadd.f32 %v10504, %v10566
        %v10729 = vadd.f32 %v10505, %v10570
        %v10730 = vadd.f32 %v10506, %v10574
        %v10731 = vadd.f32 %v10507, %v10578
        %v10732 = vadd.f32 %v10508, %v10582
        %v10733 = vadd.f32 %v10509, %v10562
        %v10734 = vadd.f32 %v10510, %v10566
        %v10735 = vadd.f32 %v10511, %v10570
        %v10736 = vadd.f32 %v10512, %v10574
        %v10737 = vadd.f32 %v10513, %v10578
        %v10738 = vadd.f32 %v10514, %v10582
        %v10739 = vadd.f32 %v10515, %v10562
        %v10740 = vadd.f32 %v10516, %v10566
        %v10741 = vadd.f32 %v10517, %v10570
        %v10742 = vadd.f32 %v10518, %v10574
        %v10743 = vadd.f32 %v10519, %v10578
        %v10744 = vadd.f32 %v10520, %v10582
        %v10745 = vadd.f32 %v10521, %v10562
        %v10746 = vadd.f32 %v10522, %v10566
        %v10747 = vadd.f32 %v10523, %v10570
        %v10748 = vadd.f32 %v10524, %v10574
        %v10749 = vadd.f32 %v10525, %v10578
        %v10750 = vadd.f32 %v10526, %v10582
        %v10751 = vadd.f32 %v10527, %v10562
        %v10752 = vadd.f32 %v10528, %v10566
        %v10753 = vadd.f32 %v10529, %v10570
        %v10754 = vadd.f32 %v10530, %v10574
        %v10755 = vadd.f32 %v10531, %v10578
        %v10756 = vadd.f32 %v10532, %v10582
        %v10757 = vadd.f32 %v10533, %v10562
        %v10758 = vadd.f32 %v10534, %v10566
        %v10759 = vadd.f32 %v10535, %v10570
        %v10760 = vadd.f32 %v10536, %v10574
        %v10761 = vadd.f32 %v10537, %v10578
        %v10762 = vadd.f32 %v10538, %v10582
        %v10763 = vadd.f32 %v10539, %v10562
        %v10764 = vadd.f32 %v10540, %v10566
        %v10765 = vadd.f32 %v10541, %v10570
        %v10766 = vadd.f32 %v10542, %v10574
        %v10767 = vadd.f32 %v10543, %v10578
        %v10768 = vadd.f32 %v10544, %v10582
        %v10769 = vadd.f32 %v10545, %v10562
        %v10770 = vadd.f32 %v10546, %v10566
        %v10771 = vadd.f32 %v10547, %v10570
        %v10772 = vadd.f32 %v10548, %v10574
        %v10773 = vadd.f32 %v10549, %v10578
        %v10774 = vadd.f32 %v10550, %v10582
        %v10775 = vadd.f32 %v10551, %v10562
        %v10776 = vadd.f32 %v10552, %v10566
        %v10777 = vadd.f32 %v10553, %v10570
        %v10778 = vadd.f32 %v10554, %v10574
        %v10779 = vadd.f32 %v10555, %v10578
        %v10780 = vadd.f32 %v10556, %v10582
        %v10781 = vmax.f32 %v10589, 0.0
        %v10782 = vmax.f32 %v10590, 0.0
        %v10783 = vmax.f32 %v10591, 0.0
        %v10784 = vmax.f32 %v10592, 0.0
        %v10785 = vmax.f32 %v10593, 0.0
        %v10786 = vmax.f32 %v10594, 0.0
        %v10787 = vmax.f32 %v10595, 0.0
        %v10788 = vmax.f32 %v10596, 0.0
        %v10789 = vmax.f32 %v10597, 0.0
        %v10790 = vmax.f32 %v10598, 0.0
        %v10791 = vmax.f32 %v10599, 0.0
        %v10792 = vmax.f32 %v10600, 0.0
        %v10793 = vmax.f32 %v10601, 0.0
        %v10794 = vmax.f32 %v10602, 0.0
        %v10795 = vmax.f32 %v10603, 0.0
        %v10796 = vmax.f32 %v10604, 0.0
        %v10797 = vmax.f32 %v10605, 0.0
        %v10798 = vmax.f32 %v10606, 0.0
        %v10799 = vmax.f32 %v10607, 0.0
        %v10800 = vmax.f32 %v10608, 0.0
        %v10801 = vmax.f32 %v10609, 0.0
        %v10802 = vmax.f32 %v10610, 0.0
        %v10803 = vmax.f32 %v10611, 0.0
        %v10804 = vmax.f32 %v10612, 0.0
        %v10805 = vmax.f32 %v10613, 0.0
        %v10806 = vmax.f32 %v10614, 0.0
        %v10807 = vmax.f32 %v10615, 0.0
        %v10808 = vmax.f32 %v10616, 0.0
        %v10809 = vmax.f32 %v10617, 0.0
        %v10810 = vmax.f32 %v10618, 0.0
        %v10811 = vmax.f32 %v10619, 0.0
        %v10812 = vmax.f32 %v10620, 0.0
        %v10813 = vmax.f32 %v10621, 0.0
        %v10814 = vmax.f32 %v10622, 0.0
        %v10815 = vmax.f32 %v10623, 0.0
        %v10816 = vmax.f32 %v10624, 0.0
        %v10817 = vmax.f32 %v10625, 0.0
        %v10818 = vmax.f32 %v10626, 0.0
        %v10819 = vmax.f32 %v10627, 0.0
        %v10820 = vmax.f32 %v10628, 0.0
        %v10821 = vmax.f32 %v10629, 0.0
        %v10822 = vmax.f32 %v10630, 0.0
        %v10823 = vmax.f32 %v10631, 0.0
        %v10824 = vmax.f32 %v10632, 0.0
        %v10825 = vmax.f32 %v10633, 0.0
        %v10826 = vmax.f32 %v10634, 0.0
        %v10827 = vmax.f32 %v10635, 0.0
        %v10828 = vmax.f32 %v10636, 0.0
        %v10829 = vmax.f32 %v10637, 0.0
        %v10830 = vmax.f32 %v10638, 0.0
        %v10831 = vmax.f32 %v10639, 0.0
        %v10832 = vmax.f32 %v10640, 0.0
        %v10833 = vmax.f32 %v10641, 0.0
        %v10834 = vmax.f32 %v10642, 0.0
        %v10835 = vmax.f32 %v10643, 0.0
        %v10836 = vmax.f32 %v10644, 0.0
        %v10837 = vmax.f32 %v10645, 0.0
        %v10838 = vmax.f32 %v10646, 0.0
        %v10839 = vmax.f32 %v10647, 0.0
        %v10840 = vmax.f32 %v10648, 0.0
        %v10841 = vmax.f32 %v10649, 0.0
        %v10842 = vmax.f32 %v10650, 0.0
        %v10843 = vmax.f32 %v10651, 0.0
        %v10844 = vmax.f32 %v10652, 0.0
        %v10845 = vmax.f32 %v10653, 0.0
        %v10846 = vmax.f32 %v10654, 0.0
        %v10847 = vmax.f32 %v10655, 0.0
        %v10848 = vmax.f32 %v10656, 0.0
        %v10849 = vmax.f32 %v10657, 0.0
        %v10850 = vmax.f32 %v10658, 0.0
        %v10851 = vmax.f32 %v10659, 0.0
        %v10852 = vmax.f32 %v10660, 0.0
        %v10853 = vmax.f32 %v10661, 0.0
        %v10854 = vmax.f32 %v10662, 0.0
        %v10855 = vmax.f32 %v10663, 0.0
        %v10856 = vmax.f32 %v10664, 0.0
        %v10857 = vmax.f32 %v10665, 0.0
        %v10858 = vmax.f32 %v10666, 0.0
        %v10859 = vmax.f32 %v10667, 0.0
        %v10860 = vmax.f32 %v10668, 0.0
        %v10861 = vmax.f32 %v10669, 0.0
        %v10862 = vmax.f32 %v10670, 0.0
        %v10863 = vmax.f32 %v10671, 0.0
        %v10864 = vmax.f32 %v10672, 0.0
        %v10865 = vmax.f32 %v10673, 0.0
        %v10866 = vmax.f32 %v10674, 0.0
        %v10867 = vmax.f32 %v10675, 0.0
        %v10868 = vmax.f32 %v10676, 0.0
        %v10869 = vmax.f32 %v10677, 0.0
        %v10870 = vmax.f32 %v10678, 0.0
        %v10871 = vmax.f32 %v10679, 0.0
        %v10872 = vmax.f32 %v10680, 0.0
        %v10873 = vmax.f32 %v10681, 0.0
        %v10874 = vmax.f32 %v10682, 0.0
        %v10875 = vmax.f32 %v10683, 0.0
        %v10876 = vmax.f32 %v10684, 0.0
        %v10877 = vmax.f32 %v10685, 0.0
        %v10878 = vmax.f32 %v10686, 0.0
        %v10879 = vmax.f32 %v10687, 0.0
        %v10880 = vmax.f32 %v10688, 0.0
        %v10881 = vmax.f32 %v10689, 0.0
        %v10882 = vmax.f32 %v10690, 0.0
        %v10883 = vmax.f32 %v10691, 0.0
        %v10884 = vmax.f32 %v10692, 0.0
        %v10885 = vmax.f32 %v10693, 0.0
        %v10886 = vmax.f32 %v10694, 0.0
        %v10887 = vmax.f32 %v10695, 0.0
        %v10888 = vmax.f32 %v10696, 0.0
        %v10889 = vmax.f32 %v10697, 0.0
        %v10890 = vmax.f32 %v10698, 0.0
        %v10891 = vmax.f32 %v10699, 0.0
        %v10892 = vmax.f32 %v10700, 0.0
        %v10893 = vmax.f32 %v10701, 0.0
        %v10894 = vmax.f32 %v10702, 0.0
        %v10895 = vmax.f32 %v10703, 0.0
        %v10896 = vmax.f32 %v10704, 0.0
        %v10897 = vmax.f32 %v10705, 0.0
        %v10898 = vmax.f32 %v10706, 0.0
        %v10899 = vmax.f32 %v10707, 0.0
        %v10900 = vmax.f32 %v10708, 0.0
        %v10901 = vmax.f32 %v10709, 0.0
        %v10902 = vmax.f32 %v10710, 0.0
        %v10903 = vmax.f32 %v10711, 0.0
        %v10904 = vmax.f32 %v10712, 0.0
        %v10905 = vmax.f32 %v10713, 0.0
        %v10906 = vmax.f32 %v10714, 0.0
        %v10907 = vmax.f32 %v10715, 0.0
        %v10908 = vmax.f32 %v10716, 0.0
        %v10909 = vmax.f32 %v10717, 0.0
        %v10910 = vmax.f32 %v10718, 0.0
        %v10911 = vmax.f32 %v10719, 0.0
        %v10912 = vmax.f32 %v10720, 0.0
        %v10913 = vmax.f32 %v10721, 0.0
        %v10914 = vmax.f32 %v10722, 0.0
        %v10915 = vmax.f32 %v10723, 0.0
        %v10916 = vmax.f32 %v10724, 0.0
        %v10917 = vmax.f32 %v10725, 0.0
        %v10918 = vmax.f32 %v10726, 0.0
        %v10919 = vmax.f32 %v10727, 0.0
        %v10920 = vmax.f32 %v10728, 0.0
        %v10921 = vmax.f32 %v10729, 0.0
        %v10922 = vmax.f32 %v10730, 0.0
        %v10923 = vmax.f32 %v10731, 0.0
        %v10924 = vmax.f32 %v10732, 0.0
        %v10925 = vmax.f32 %v10733, 0.0
        %v10926 = vmax.f32 %v10734, 0.0
        %v10927 = vmax.f32 %v10735, 0.0
        %v10928 = vmax.f32 %v10736, 0.0
        %v10929 = vmax.f32 %v10737, 0.0
        %v10930 = vmax.f32 %v10738, 0.0
        %v10931 = vmax.f32 %v10739, 0.0
        %v10932 = vmax.f32 %v10740, 0.0
        %v10933 = vmax.f32 %v10741, 0.0
        %v10934 = vmax.f32 %v10742, 0.0
        %v10935 = vmax.f32 %v10743, 0.0
        %v10936 = vmax.f32 %v10744, 0.0
        %v10937 = vmax.f32 %v10745, 0.0
        %v10938 = vmax.f32 %v10746, 0.0
        %v10939 = vmax.f32 %v10747, 0.0
        %v10940 = vmax.f32 %v10748, 0.0
        %v10941 = vmax.f32 %v10749, 0.0
        %v10942 = vmax.f32 %v10750, 0.0
        %v10943 = vmax.f32 %v10751, 0.0
        %v10944 = vmax.f32 %v10752, 0.0
        %v10945 = vmax.f32 %v10753, 0.0
        %v10946 = vmax.f32 %v10754, 0.0
        %v10947 = vmax.f32 %v10755, 0.0
        %v10948 = vmax.f32 %v10756, 0.0
        %v10949 = vmax.f32 %v10757, 0.0
        %v10950 = vmax.f32 %v10758, 0.0
        %v10951 = vmax.f32 %v10759, 0.0
        %v10952 = vmax.f32 %v10760, 0.0
        %v10953 = vmax.f32 %v10761, 0.0
        %v10954 = vmax.f32 %v10762, 0.0
        %v10955 = vmax.f32 %v10763, 0.0
        %v10956 = vmax.f32 %v10764, 0.0
        %v10957 = vmax.f32 %v10765, 0.0
        %v10958 = vmax.f32 %v10766, 0.0
        %v10959 = vmax.f32 %v10767, 0.0
        %v10960 = vmax.f32 %v10768, 0.0
        %v10961 = vmax.f32 %v10769, 0.0
        %v10962 = vmax.f32 %v10770, 0.0
        %v10963 = vmax.f32 %v10771, 0.0
        %v10964 = vmax.f32 %v10772, 0.0
        %v10965 = vmax.f32 %v10773, 0.0
        %v10966 = vmax.f32 %v10774, 0.0
        %v10967 = vmax.f32 %v10775, 0.0
        %v10968 = vmax.f32 %v10776, 0.0
        %v10969 = vmax.f32 %v10777, 0.0
        %v10970 = vmax.f32 %v10778, 0.0
        %v10971 = vmax.f32 %v10779, 0.0
        %v10972 = vmax.f32 %v10780, 0.0
        %v10973 = vld [vmem:[#allocation13] sm:$0xff]
        %v10974 = vld [vmem:[#allocation13 + $0x8] sm:$0xff]
        %v10975 = vld [vmem:[#allocation13 + $0x10] sm:$0xff]
        %v10976 = vld [vmem:[#allocation13 + $0x18] sm:$0xff]
        %v10977 = vld [vmem:[#allocation13 + $0x20] sm:$0xff]
        %v10978 = vld [vmem:[#allocation13 + $0x28] sm:$0xff]
        %v10979 = vld [vmem:[#allocation13 + $0x30] sm:$0xff]
        %v10980 = vld [vmem:[#allocation13 + $0x38] sm:$0xff]
        %v10981 = vld [vmem:[#allocation13 + $0x40] sm:$0xff]
        %v10982 = vld [vmem:[#allocation13 + $0x48] sm:$0xff]
        %v10983 = vld [vmem:[#allocation13 + $0x50] sm:$0xff]
        %v10984 = vld [vmem:[#allocation13 + $0x58] sm:$0xff]
        %v10985 = vld [vmem:[#allocation13 + $0x60] sm:$0xff]
        %v10986 = vld [vmem:[#allocation13 + $0x68] sm:$0xff]
        %v10987 = vld [vmem:[#allocation13 + $0x70] sm:$0xff]
        %v10988 = vld [vmem:[#allocation13 + $0x78] sm:$0xff]
        %v10989 = vld [vmem:[#allocation13 + $0x80] sm:$0xff]
        %v10990 = vld [vmem:[#allocation13 + $0x88] sm:$0xff]
        %v10991 = vld [vmem:[#allocation13 + $0x90] sm:$0xff]
        %v10992 = vld [vmem:[#allocation13 + $0x98] sm:$0xff]
        %v10993 = vld [vmem:[#allocation13 + $0xa0] sm:$0xff]
        %v10994 = vld [vmem:[#allocation13 + $0xa8] sm:$0xff]
        %v10995 = vld [vmem:[#allocation13 + $0xb0] sm:$0xff]
        %v10996 = vld [vmem:[#allocation13 + $0xb8] sm:$0xff]
        %v10997 = vld [vmem:[#allocation13 + $0xc0] sm:$0x33]
        %v10998 = vpack.c.bf16 %v10787, %v10781
        %v10999 = vpack.c.bf16 %v10788, %v10782
        %v11000 = vpack.c.bf16 %v10789, %v10783
        %v11001 = vpack.c.bf16 %v10790, %v10784
        %v11002 = vpack.c.bf16 %v10791, %v10785
        %v11003 = vpack.c.bf16 %v10792, %v10786
        %v11004 = vpack.c.bf16 %v10799, %v10793
        %v11005 = vpack.c.bf16 %v10800, %v10794
        %v11006 = vpack.c.bf16 %v10801, %v10795
        %v11007 = vpack.c.bf16 %v10802, %v10796
        %v11008 = vpack.c.bf16 %v10803, %v10797
        %v11009 = vpack.c.bf16 %v10804, %v10798
        %v11010 = vpack.c.bf16 %v10811, %v10805
        %v11011 = vpack.c.bf16 %v10812, %v10806
        %v11012 = vpack.c.bf16 %v10813, %v10807
        %v11013 = vpack.c.bf16 %v10814, %v10808
        %v11014 = vpack.c.bf16 %v10815, %v10809
        %v11015 = vpack.c.bf16 %v10816, %v10810
        %v11016 = vpack.c.bf16 %v10823, %v10817
        %v11017 = vpack.c.bf16 %v10824, %v10818
        %v11018 = vpack.c.bf16 %v10825, %v10819
        %v11019 = vpack.c.bf16 %v10826, %v10820
        %v11020 = vpack.c.bf16 %v10827, %v10821
        %v11021 = vpack.c.bf16 %v10828, %v10822
        %v11022 = vpack.c.bf16 %v10835, %v10829
        %v11023 = vpack.c.bf16 %v10836, %v10830
        %v11024 = vpack.c.bf16 %v10837, %v10831
        %v11025 = vpack.c.bf16 %v10838, %v10832
        %v11026 = vpack.c.bf16 %v10839, %v10833
        %v11027 = vpack.c.bf16 %v10840, %v10834
        %v11028 = vpack.c.bf16 %v10847, %v10841
        %v11029 = vpack.c.bf16 %v10848, %v10842
        %v11030 = vpack.c.bf16 %v10849, %v10843
        %v11031 = vpack.c.bf16 %v10850, %v10844
        %v11032 = vpack.c.bf16 %v10851, %v10845
        %v11033 = vpack.c.bf16 %v10852, %v10846
        %v11034 = vpack.c.bf16 %v10859, %v10853
        %v11035 = vpack.c.bf16 %v10860, %v10854
        %v11036 = vpack.c.bf16 %v10861, %v10855
        %v11037 = vpack.c.bf16 %v10862, %v10856
        %v11038 = vpack.c.bf16 %v10863, %v10857
        %v11039 = vpack.c.bf16 %v10864, %v10858
        %v11040 = vpack.c.bf16 %v10871, %v10865
        %v11041 = vpack.c.bf16 %v10872, %v10866
        %v11042 = vpack.c.bf16 %v10873, %v10867
        %v11043 = vpack.c.bf16 %v10874, %v10868
        %v11044 = vpack.c.bf16 %v10875, %v10869
        %v11045 = vpack.c.bf16 %v10876, %v10870
        %v11046 = vpack.c.bf16 %v10883, %v10877
        %v11047 = vpack.c.bf16 %v10884, %v10878
        %v11048 = vpack.c.bf16 %v10885, %v10879
        %v11049 = vpack.c.bf16 %v10886, %v10880
        %v11050 = vpack.c.bf16 %v10887, %v10881
        %v11051 = vpack.c.bf16 %v10888, %v10882
        %v11052 = vpack.c.bf16 %v10895, %v10889
        %v11053 = vpack.c.bf16 %v10896, %v10890
        %v11054 = vpack.c.bf16 %v10897, %v10891
        %v11055 = vpack.c.bf16 %v10898, %v10892
        %v11056 = vpack.c.bf16 %v10899, %v10893
        %v11057 = vpack.c.bf16 %v10900, %v10894
        %v11058 = vpack.c.bf16 %v10907, %v10901
        %v11059 = vpack.c.bf16 %v10908, %v10902
        %v11060 = vpack.c.bf16 %v10909, %v10903
        %v11061 = vpack.c.bf16 %v10910, %v10904
        %v11062 = vpack.c.bf16 %v10911, %v10905
        %v11063 = vpack.c.bf16 %v10912, %v10906
        %v11064 = vpack.c.bf16 %v10919, %v10913
        %v11065 = vpack.c.bf16 %v10920, %v10914
        %v11066 = vpack.c.bf16 %v10921, %v10915
        %v11067 = vpack.c.bf16 %v10922, %v10916
        %v11068 = vpack.c.bf16 %v10923, %v10917
        %v11069 = vpack.c.bf16 %v10924, %v10918
        %v11070 = vpack.c.bf16 %v10931, %v10925
        %v11071 = vpack.c.bf16 %v10932, %v10926
        %v11072 = vpack.c.bf16 %v10933, %v10927
        %v11073 = vpack.c.bf16 %v10934, %v10928
        %v11074 = vpack.c.bf16 %v10935, %v10929
        %v11075 = vpack.c.bf16 %v10936, %v10930
        %v11076 = vpack.c.bf16 %v10943, %v10937
        %v11077 = vpack.c.bf16 %v10944, %v10938
        %v11078 = vpack.c.bf16 %v10945, %v10939
        %v11079 = vpack.c.bf16 %v10946, %v10940
        %v11080 = vpack.c.bf16 %v10947, %v10941
        %v11081 = vpack.c.bf16 %v10948, %v10942
        %v11082 = vpack.c.bf16 %v10955, %v10949
        %v11083 = vpack.c.bf16 %v10956, %v10950
        %v11084 = vpack.c.bf16 %v10957, %v10951
        %v11085 = vpack.c.bf16 %v10958, %v10952
        %v11086 = vpack.c.bf16 %v10959, %v10953
        %v11087 = vpack.c.bf16 %v10960, %v10954
        %v11088 = vpack.c.bf16 %v10967, %v10961
        %v11089 = vpack.c.bf16 %v10968, %v10962
        %v11090 = vpack.c.bf16 %v10969, %v10963
        %v11091 = vpack.c.bf16 %v10970, %v10964
        %v11092 = vpack.c.bf16 %v10971, %v10965
        %v11093 = vpack.c.bf16 %v10972, %v10966
        %v11119 = vunpack.c.l.b16 %v10973
        %v11120 = vunpack.c.h.b16 %v10973
        %v11121 = vunpack.c.l.b16 %v10974
        %v11122 = vunpack.c.h.b16 %v10974
        %v11123 = vunpack.c.l.b16 %v10975
        %v11124 = vunpack.c.h.b16 %v10975
        %v11125 = vunpack.c.l.b16 %v10976
        %v11126 = vunpack.c.h.b16 %v10976
        %v11127 = vunpack.c.l.b16 %v10977
        %v11128 = vunpack.c.h.b16 %v10977
        %v11129 = vunpack.c.l.b16 %v10978
        %v11130 = vunpack.c.h.b16 %v10978
        %v11131 = vunpack.c.l.b16 %v10979
        %v11132 = vunpack.c.h.b16 %v10979
        %v11133 = vunpack.c.l.b16 %v10980
        %v11134 = vunpack.c.h.b16 %v10980
        %v11135 = vunpack.c.l.b16 %v10981
        %v11136 = vunpack.c.h.b16 %v10981
        %v11137 = vunpack.c.l.b16 %v10982
        %v11138 = vunpack.c.h.b16 %v10982
        %v11139 = vunpack.c.l.b16 %v10983
        %v11140 = vunpack.c.h.b16 %v10983
        %v11141 = vunpack.c.l.b16 %v10984
        %v11142 = vunpack.c.h.b16 %v10984
        %v11143 = vunpack.c.l.b16 %v10985
        %v11144 = vunpack.c.h.b16 %v10985
        %v11145 = vunpack.c.l.b16 %v10986
        %v11146 = vunpack.c.h.b16 %v10986
        %v11147 = vunpack.c.l.b16 %v10987
        %v11148 = vunpack.c.h.b16 %v10987
        %v11149 = vunpack.c.l.b16 %v10988
        %v11150 = vunpack.c.h.b16 %v10988
        %v11151 = vunpack.c.l.b16 %v10989
        %v11152 = vunpack.c.h.b16 %v10989
        %v11153 = vunpack.c.l.b16 %v10990
        %v11154 = vunpack.c.h.b16 %v10990
        %v11155 = vunpack.c.l.b16 %v10991
        %v11156 = vunpack.c.h.b16 %v10991
        %v11157 = vunpack.c.l.b16 %v10992
        %v11158 = vunpack.c.h.b16 %v10992
        %v11159 = vunpack.c.l.b16 %v10993
        %v11160 = vunpack.c.h.b16 %v10993
        %v11161 = vunpack.c.l.b16 %v10994
        %v11162 = vunpack.c.h.b16 %v10994
        %v11163 = vunpack.c.l.b16 %v10995
        %v11164 = vunpack.c.h.b16 %v10995
        %v11165 = vunpack.c.l.b16 %v10996
        %v11166 = vunpack.c.h.b16 %v10996
        %v11167 = vunpack.c.l.b16 %v10997
        %v11168 = vunpack.c.h.b16 %v10997
        %v11169 = vpack.c.b16 %v11121, %v11119
        %v11170 = vpack.c.b16 %v11122, %v11120
        %v11171 = vpack.c.b16 %v11125, %v11123
        %v11172 = vpack.c.b16 %v11126, %v11124
        %v11173 = vpack.c.b16 %v11129, %v11127
        %v11174 = vpack.c.b16 %v11130, %v11128
        %v11175 = vpack.c.b16 %v11133, %v11131
        %v11176 = vpack.c.b16 %v11134, %v11132
        %v11177 = vpack.c.b16 %v11137, %v11135
        %v11178 = vpack.c.b16 %v11138, %v11136
        %v11179 = vpack.c.b16 %v11141, %v11139
        %v11180 = vpack.c.b16 %v11142, %v11140
        %v11181 = vpack.c.b16 %v11145, %v11143
        %v11182 = vpack.c.b16 %v11146, %v11144
        %v11183 = vpack.c.b16 %v11149, %v11147
        %v11184 = vpack.c.b16 %v11150, %v11148
        %v11185 = vpack.c.b16 %v11153, %v11151
        %v11186 = vpack.c.b16 %v11154, %v11152
        %v11187 = vpack.c.b16 %v11157, %v11155
        %v11188 = vpack.c.b16 %v11158, %v11156
        %v11189 = vpack.c.b16 %v11161, %v11159
        %v11190 = vpack.c.b16 %v11162, %v11160
        %v11191 = vpack.c.b16 %v11165, %v11163
        %v11192 = vpack.c.b16 %v11166, %v11164
        %v11193 = vpack.c.b16 %v11167, %v11167
        %v11194 = vpack.c.b16 %v11168, %v11168
        %11221 = vmatprep.subr.bf16.mxu0 %v11041
        %11222 = vmatpush1.bf16.msra.mxu0 %v11040
        %11223 = vmatprep.subr.bf16.mxu0 %v11035
        %11224 = vmatpush1.bf16.msra.mxu0 %v11034
        %11225 = vmatprep.subr.bf16.mxu0 %v11029
        %11226 = vmatpush1.bf16.msra.mxu0 %v11028
        %11227 = vmatprep.subr.bf16.mxu0 %v11023
        %11228 = vmatpush1.bf16.msra.mxu0 %v11022
        %11229 = vmatprep.subr.bf16.mxu0 %v11017
        %11230 = vmatpush1.bf16.msra.mxu0 %v11016
        %11231 = vmatprep.subr.bf16.mxu0 %v11011
        %11232 = vmatpush1.bf16.msra.mxu0 %v11010
        %11233 = vmatprep.subr.bf16.mxu0 %v11005
        %11234 = vmatpush1.bf16.msra.mxu0 %v11004
        %11235 = vmatprep.subr.bf16.mxu0 %v10999
        %11236 = vmatpush1.bf16.msra.mxu0 %v10998
        %11237 = vmatprep.subr.bf16.mxu0 %v11089
        %11238 = vmatpush2.bf16.msra.mxu0 %v11088
        %11239 = vmatprep.subr.bf16.mxu0 %v11083
        %11240 = vmatpush2.bf16.msra.mxu0 %v11082
        %11241 = vmatprep.subr.bf16.mxu0 %v11077
        %11242 = vmatpush2.bf16.msra.mxu0 %v11076
        %11243 = vmatprep.subr.bf16.mxu0 %v11071
        %11244 = vmatpush2.bf16.msra.mxu0 %v11070
        %11245 = vmatprep.subr.bf16.mxu0 %v11065
        %11246 = vmatpush2.bf16.msra.mxu0 %v11064
        %11247 = vmatprep.subr.bf16.mxu0 %v11059
        %11248 = vmatpush2.bf16.msra.mxu0 %v11058
        %11249 = vmatprep.subr.bf16.mxu0 %v11053
        %11250 = vmatpush2.bf16.msra.mxu0 %v11052
        %11251 = vmatprep.subr.bf16.mxu0 %v11047
        %11252 = vmatpush2.bf16.msra.mxu0 %v11046
        %11253 = vmatprep.mubr.bf16.mxu0 %v11170
        %11254 = vmatmul.mubr.bf16.gmra.mxu0 %v11169
        %v11255 = vpop.f32.mrf.mxu0
        %v11256 = vadd.f32 0.0, %v11255
        %v11257 = vpop.f32.mrf.mxu0
        %v11258 = vadd.f32 0.0, %v11257
        %v11259 = vpop.f32.mrf.mxu0
        %v11260 = vadd.f32 0.0, %v11259
        %v11261 = vpop.f32.mrf.mxu0
        %v11262 = vadd.f32 0.0, %v11261
        %11263 = vmatprep.mubr.bf16.mxu0 %v11172
        %11264 = vmatmul.mubr.bf16.gmra.mxu0 %v11171
        %v11265 = vpop.f32.mrf.mxu0
        %v11266 = vadd.f32 0.0, %v11265
        %v11267 = vpop.f32.mrf.mxu0
        %v11268 = vadd.f32 0.0, %v11267
        %v11269 = vpop.f32.mrf.mxu0
        %v11270 = vadd.f32 0.0, %v11269
        %v11271 = vpop.f32.mrf.mxu0
        %v11272 = vadd.f32 0.0, %v11271
        %11273 = vmatprep.mubr.bf16.mxu0 %v11174
        %11274 = vmatmul.mubr.bf16.gmra.mxu0 %v11173
        %v11275 = vpop.f32.mrf.mxu0
        %v11276 = vadd.f32 0.0, %v11275
        %v11277 = vpop.f32.mrf.mxu0
        %v11278 = vadd.f32 0.0, %v11277
        %v11279 = vpop.f32.mrf.mxu0
        %v11280 = vadd.f32 0.0, %v11279
        %v11281 = vpop.f32.mrf.mxu0
        %v11282 = vadd.f32 0.0, %v11281
        %11283 = vmatprep.mubr.bf16.mxu0 %v11176
        %11284 = vmatmul.mubr.bf16.gmra.mxu0 %v11175
        %v11285 = vpop.f32.mrf.mxu0
        %v11286 = vadd.f32 0.0, %v11285
        %v11287 = vpop.f32.mrf.mxu0
        %v11288 = vadd.f32 0.0, %v11287
        %v11289 = vpop.f32.mrf.mxu0
        %v11290 = vadd.f32 0.0, %v11289
        %v11291 = vpop.f32.mrf.mxu0
        %v11292 = vadd.f32 0.0, %v11291
        %11293 = vmatprep.mubr.bf16.mxu0 %v11178
        %11294 = vmatmul.mubr.bf16.gmra.mxu0 %v11177
        %v11295 = vpop.f32.mrf.mxu0
        %v11296 = vadd.f32 0.0, %v11295
        %v11297 = vpop.f32.mrf.mxu0
        %v11298 = vadd.f32 0.0, %v11297
        %v11299 = vpop.f32.mrf.mxu0
        %v11300 = vadd.f32 0.0, %v11299
        %v11301 = vpop.f32.mrf.mxu0
        %v11302 = vadd.f32 0.0, %v11301
        %11303 = vmatprep.mubr.bf16.mxu0 %v11180
        %11304 = vmatmul.mubr.bf16.gmra.mxu0 %v11179
        %v11305 = vpop.f32.mrf.mxu0
        %v11306 = vadd.f32 0.0, %v11305
        %v11307 = vpop.f32.mrf.mxu0
        %v11308 = vadd.f32 0.0, %v11307
        %v11309 = vpop.f32.mrf.mxu0
        %v11310 = vadd.f32 0.0, %v11309
        %v11311 = vpop.f32.mrf.mxu0
        %v11312 = vadd.f32 0.0, %v11311
        %11313 = vmatprep.mubr.bf16.mxu0 %v11182
        %11314 = vmatmul.mubr.bf16.gmra.mxu0 %v11181
        %v11315 = vpop.f32.mrf.mxu0
        %v11316 = vadd.f32 0.0, %v11315
        %v11317 = vpop.f32.mrf.mxu0
        %v11318 = vadd.f32 0.0, %v11317
        %v11319 = vpop.f32.mrf.mxu0
        %v11320 = vadd.f32 0.0, %v11319
        %v11321 = vpop.f32.mrf.mxu0
        %v11322 = vadd.f32 0.0, %v11321
        %11323 = vmatprep.mubr.bf16.mxu0 %v11184
        %11324 = vmatmul.mubr.bf16.gmra.mxu0 %v11183
        %v11325 = vpop.f32.mrf.mxu0
        %v11326 = vadd.f32 0.0, %v11325
        %v11327 = vpop.f32.mrf.mxu0
        %v11328 = vadd.f32 0.0, %v11327
        %v11329 = vpop.f32.mrf.mxu0
        %v11330 = vadd.f32 0.0, %v11329
        %v11331 = vpop.f32.mrf.mxu0
        %v11332 = vadd.f32 0.0, %v11331
        %11333 = vmatprep.mubr.bf16.mxu0 %v11186
        %11334 = vmatmul.mubr.bf16.gmra.mxu0 %v11185
        %v11335 = vpop.f32.mrf.mxu0
        %v11336 = vadd.f32 0.0, %v11335
        %v11337 = vpop.f32.mrf.mxu0
        %v11338 = vadd.f32 0.0, %v11337
        %v11339 = vpop.f32.mrf.mxu0
        %v11340 = vadd.f32 0.0, %v11339
        %v11341 = vpop.f32.mrf.mxu0
        %v11342 = vadd.f32 0.0, %v11341
        %11343 = vmatprep.mubr.bf16.mxu0 %v11188
        %11344 = vmatmul.mubr.bf16.gmra.mxu0 %v11187
        %v11345 = vpop.f32.mrf.mxu0
        %v11346 = vadd.f32 0.0, %v11345
        %v11347 = vpop.f32.mrf.mxu0
        %v11348 = vadd.f32 0.0, %v11347
        %v11349 = vpop.f32.mrf.mxu0
        %v11350 = vadd.f32 0.0, %v11349
        %v11351 = vpop.f32.mrf.mxu0
        %v11352 = vadd.f32 0.0, %v11351
        %11353 = vmatprep.mubr.bf16.mxu0 %v11190
        %11354 = vmatmul.mubr.bf16.gmra.mxu0 %v11189
        %v11355 = vpop.f32.mrf.mxu0
        %v11356 = vadd.f32 0.0, %v11355
        %v11357 = vpop.f32.mrf.mxu0
        %v11358 = vadd.f32 0.0, %v11357
        %v11359 = vpop.f32.mrf.mxu0
        %v11360 = vadd.f32 0.0, %v11359
        %v11361 = vpop.f32.mrf.mxu0
        %v11362 = vadd.f32 0.0, %v11361
        %11363 = vmatprep.mubr.bf16.mxu0 %v11192
        %11364 = vmatmul.mubr.bf16.gmra.mxu0 %v11191
        %v11365 = vpop.f32.mrf.mxu0
        %v11366 = vadd.f32 0.0, %v11365
        %v11367 = vpop.f32.mrf.mxu0
        %v11368 = vadd.f32 0.0, %v11367
        %v11369 = vpop.f32.mrf.mxu0
        %v11370 = vadd.f32 0.0, %v11369
        %v11371 = vpop.f32.mrf.mxu0
        %v11372 = vadd.f32 0.0, %v11371
        %11373 = vmatprep.mubr.bf16.mxu0 %v11194
        %11374 = vmatmul.mubr.bf16.gmra.mxu0 %v11193
        %v11375 = vpop.f32.mrf.mxu0
        %v11376 = vadd.f32 0.0, %v11375
        %v11377 = vpop.f32.mrf.mxu0
        %v11378 = vadd.f32 0.0, %v11377
        %v11379 = vpop.f32.mrf.mxu0
        %v11380 = vpop.f32.mrf.mxu0
        %11381 = vdwg.mxu0
        %11382 = vmatprep.subr.bf16.mxu0 %v11043
        %11383 = vmatpush1.bf16.msra.mxu0 %v11042
        %11384 = vmatprep.subr.bf16.mxu0 %v11037
        %11385 = vmatpush1.bf16.msra.mxu0 %v11036
        %11386 = vmatprep.subr.bf16.mxu0 %v11031
        %11387 = vmatpush1.bf16.msra.mxu0 %v11030
        %11388 = vmatprep.subr.bf16.mxu0 %v11025
        %11389 = vmatpush1.bf16.msra.mxu0 %v11024
        %11390 = vmatprep.subr.bf16.mxu0 %v11019
        %11391 = vmatpush1.bf16.msra.mxu0 %v11018
        %11392 = vmatprep.subr.bf16.mxu0 %v11013
        %11393 = vmatpush1.bf16.msra.mxu0 %v11012
        %11394 = vmatprep.subr.bf16.mxu0 %v11007
        %11395 = vmatpush1.bf16.msra.mxu0 %v11006
        %11396 = vmatprep.subr.bf16.mxu0 %v11001
        %11397 = vmatpush1.bf16.msra.mxu0 %v11000
        %11398 = vmatprep.subr.bf16.mxu0 %v11091
        %11399 = vmatpush2.bf16.msra.mxu0 %v11090
        %11400 = vmatprep.subr.bf16.mxu0 %v11085
        %11401 = vmatpush2.bf16.msra.mxu0 %v11084
        %11402 = vmatprep.subr.bf16.mxu0 %v11079
        %11403 = vmatpush2.bf16.msra.mxu0 %v11078
        %11404 = vmatprep.subr.bf16.mxu0 %v11073
        %11405 = vmatpush2.bf16.msra.mxu0 %v11072
        %11406 = vmatprep.subr.bf16.mxu0 %v11067
        %11407 = vmatpush2.bf16.msra.mxu0 %v11066
        %11408 = vmatprep.subr.bf16.mxu0 %v11061
        %11409 = vmatpush2.bf16.msra.mxu0 %v11060
        %11410 = vmatprep.subr.bf16.mxu0 %v11055
        %11411 = vmatpush2.bf16.msra.mxu0 %v11054
        %11412 = vmatprep.subr.bf16.mxu0 %v11049
        %11413 = vmatpush2.bf16.msra.mxu0 %v11048
        %11414 = vmatprep.mubr.bf16.mxu0 %v11170
        %11415 = vmatmul.mubr.bf16.gmra.mxu0 %v11169
        %v11416 = vpop.f32.mrf.mxu0
        %v11417 = vadd.f32 0.0, %v11416
        %v11418 = vpop.f32.mrf.mxu0
        %v11419 = vadd.f32 0.0, %v11418
        %v11420 = vpop.f32.mrf.mxu0
        %v11421 = vadd.f32 0.0, %v11420
        %v11422 = vpop.f32.mrf.mxu0
        %v11423 = vadd.f32 0.0, %v11422
        %11424 = vmatprep.mubr.bf16.mxu0 %v11172
        %11425 = vmatmul.mubr.bf16.gmra.mxu0 %v11171
        %v11426 = vpop.f32.mrf.mxu0
        %v11427 = vadd.f32 0.0, %v11426
        %v11428 = vpop.f32.mrf.mxu0
        %v11429 = vadd.f32 0.0, %v11428
        %v11430 = vpop.f32.mrf.mxu0
        %v11431 = vadd.f32 0.0, %v11430
        %v11432 = vpop.f32.mrf.mxu0
        %v11433 = vadd.f32 0.0, %v11432
        %11434 = vmatprep.mubr.bf16.mxu0 %v11174
        %11435 = vmatmul.mubr.bf16.gmra.mxu0 %v11173
        %v11436 = vpop.f32.mrf.mxu0
        %v11437 = vadd.f32 0.0, %v11436
        %v11438 = vpop.f32.mrf.mxu0
        %v11439 = vadd.f32 0.0, %v11438
        %v11440 = vpop.f32.mrf.mxu0
        %v11441 = vadd.f32 0.0, %v11440
        %v11442 = vpop.f32.mrf.mxu0
        %v11443 = vadd.f32 0.0, %v11442
        %11444 = vmatprep.mubr.bf16.mxu0 %v11176
        %11445 = vmatmul.mubr.bf16.gmra.mxu0 %v11175
        %v11446 = vpop.f32.mrf.mxu0
        %v11447 = vadd.f32 0.0, %v11446
        %v11448 = vpop.f32.mrf.mxu0
        %v11449 = vadd.f32 0.0, %v11448
        %v11450 = vpop.f32.mrf.mxu0
        %v11451 = vadd.f32 0.0, %v11450
        %v11452 = vpop.f32.mrf.mxu0
        %v11453 = vadd.f32 0.0, %v11452
        %11454 = vmatprep.mubr.bf16.mxu0 %v11178
        %11455 = vmatmul.mubr.bf16.gmra.mxu0 %v11177
        %v11456 = vpop.f32.mrf.mxu0
        %v11457 = vadd.f32 0.0, %v11456
        %v11458 = vpop.f32.mrf.mxu0
        %v11459 = vadd.f32 0.0, %v11458
        %v11460 = vpop.f32.mrf.mxu0
        %v11461 = vadd.f32 0.0, %v11460
        %v11462 = vpop.f32.mrf.mxu0
        %v11463 = vadd.f32 0.0, %v11462
        %11464 = vmatprep.mubr.bf16.mxu0 %v11180
        %11465 = vmatmul.mubr.bf16.gmra.mxu0 %v11179
        %v11466 = vpop.f32.mrf.mxu0
        %v11467 = vadd.f32 0.0, %v11466
        %v11468 = vpop.f32.mrf.mxu0
        %v11469 = vadd.f32 0.0, %v11468
        %v11470 = vpop.f32.mrf.mxu0
        %v11471 = vadd.f32 0.0, %v11470
        %v11472 = vpop.f32.mrf.mxu0
        %v11473 = vadd.f32 0.0, %v11472
        %11474 = vmatprep.mubr.bf16.mxu0 %v11182
        %11475 = vmatmul.mubr.bf16.gmra.mxu0 %v11181
        %v11476 = vpop.f32.mrf.mxu0
        %v11477 = vadd.f32 0.0, %v11476
        %v11478 = vpop.f32.mrf.mxu0
        %v11479 = vadd.f32 0.0, %v11478
        %v11480 = vpop.f32.mrf.mxu0
        %v11481 = vadd.f32 0.0, %v11480
        %v11482 = vpop.f32.mrf.mxu0
        %v11483 = vadd.f32 0.0, %v11482
        %11484 = vmatprep.mubr.bf16.mxu0 %v11184
        %11485 = vmatmul.mubr.bf16.gmra.mxu0 %v11183
        %v11486 = vpop.f32.mrf.mxu0
        %v11487 = vadd.f32 0.0, %v11486
        %v11488 = vpop.f32.mrf.mxu0
        %v11489 = vadd.f32 0.0, %v11488
        %v11490 = vpop.f32.mrf.mxu0
        %v11491 = vadd.f32 0.0, %v11490
        %v11492 = vpop.f32.mrf.mxu0
        %v11493 = vadd.f32 0.0, %v11492
        %11494 = vmatprep.mubr.bf16.mxu0 %v11186
        %11495 = vmatmul.mubr.bf16.gmra.mxu0 %v11185
        %v11496 = vpop.f32.mrf.mxu0
        %v11497 = vadd.f32 0.0, %v11496
        %v11498 = vpop.f32.mrf.mxu0
        %v11499 = vadd.f32 0.0, %v11498
        %v11500 = vpop.f32.mrf.mxu0
        %v11501 = vadd.f32 0.0, %v11500
        %v11502 = vpop.f32.mrf.mxu0
        %v11503 = vadd.f32 0.0, %v11502
        %11504 = vmatprep.mubr.bf16.mxu0 %v11188
        %11505 = vmatmul.mubr.bf16.gmra.mxu0 %v11187
        %v11506 = vpop.f32.mrf.mxu0
        %v11507 = vadd.f32 0.0, %v11506
        %v11508 = vpop.f32.mrf.mxu0
        %v11509 = vadd.f32 0.0, %v11508
        %v11510 = vpop.f32.mrf.mxu0
        %v11511 = vadd.f32 0.0, %v11510
        %v11512 = vpop.f32.mrf.mxu0
        %v11513 = vadd.f32 0.0, %v11512
        %11514 = vmatprep.mubr.bf16.mxu0 %v11190
        %11515 = vmatmul.mubr.bf16.gmra.mxu0 %v11189
        %v11516 = vpop.f32.mrf.mxu0
        %v11517 = vadd.f32 0.0, %v11516
        %v11518 = vpop.f32.mrf.mxu0
        %v11519 = vadd.f32 0.0, %v11518
        %v11520 = vpop.f32.mrf.mxu0
        %v11521 = vadd.f32 0.0, %v11520
        %v11522 = vpop.f32.mrf.mxu0
        %v11523 = vadd.f32 0.0, %v11522
        %11524 = vmatprep.mubr.bf16.mxu0 %v11192
        %11525 = vmatmul.mubr.bf16.gmra.mxu0 %v11191
        %v11526 = vpop.f32.mrf.mxu0
        %v11527 = vadd.f32 0.0, %v11526
        %v11528 = vpop.f32.mrf.mxu0
        %v11529 = vadd.f32 0.0, %v11528
        %v11530 = vpop.f32.mrf.mxu0
        %v11531 = vadd.f32 0.0, %v11530
        %v11532 = vpop.f32.mrf.mxu0
        %v11533 = vadd.f32 0.0, %v11532
        %11534 = vmatprep.mubr.bf16.mxu0 %v11194
        %11535 = vmatmul.mubr.bf16.gmra.mxu0 %v11193
        %v11536 = vpop.f32.mrf.mxu0
        %v11537 = vadd.f32 0.0, %v11536
        %v11538 = vpop.f32.mrf.mxu0
        %v11539 = vadd.f32 0.0, %v11538
        %v11540 = vpop.f32.mrf.mxu0
        %v11541 = vpop.f32.mrf.mxu0
        %11542 = vdwg.mxu0
        %11543 = vmatprep.subr.bf16.mxu0 %v11045
        %11544 = vmatpush1.bf16.msra.mxu0 %v11044
        %11545 = vmatprep.subr.bf16.mxu0 %v11039
        %11546 = vmatpush1.bf16.msra.mxu0 %v11038
        %11547 = vmatprep.subr.bf16.mxu0 %v11033
        %11548 = vmatpush1.bf16.msra.mxu0 %v11032
        %11549 = vmatprep.subr.bf16.mxu0 %v11027
        %11550 = vmatpush1.bf16.msra.mxu0 %v11026
        %11551 = vmatprep.subr.bf16.mxu0 %v11021
        %11552 = vmatpush1.bf16.msra.mxu0 %v11020
        %11553 = vmatprep.subr.bf16.mxu0 %v11015
        %11554 = vmatpush1.bf16.msra.mxu0 %v11014
        %11555 = vmatprep.subr.bf16.mxu0 %v11009
        %11556 = vmatpush1.bf16.msra.mxu0 %v11008
        %11557 = vmatprep.subr.bf16.mxu0 %v11003
        %11558 = vmatpush1.bf16.msra.mxu0 %v11002
        %11559 = vmatprep.subr.bf16.mxu0 %v11093
        %11560 = vmatpush2.bf16.msra.mxu0 %v11092
        %11561 = vmatprep.subr.bf16.mxu0 %v11087
        %11562 = vmatpush2.bf16.msra.mxu0 %v11086
        %11563 = vmatprep.subr.bf16.mxu0 %v11081
        %11564 = vmatpush2.bf16.msra.mxu0 %v11080
        %11565 = vmatprep.subr.bf16.mxu0 %v11075
        %11566 = vmatpush2.bf16.msra.mxu0 %v11074
        %11567 = vmatprep.subr.bf16.mxu0 %v11069
        %11568 = vmatpush2.bf16.msra.mxu0 %v11068
        %11569 = vmatprep.subr.bf16.mxu0 %v11063
        %11570 = vmatpush2.bf16.msra.mxu0 %v11062
        %11571 = vmatprep.subr.bf16.mxu0 %v11057
        %11572 = vmatpush2.bf16.msra.mxu0 %v11056
        %11573 = vmatprep.subr.bf16.mxu0 %v11051
        %11574 = vmatpush2.bf16.msra.mxu0 %v11050
        %11575 = vmatprep.mubr.bf16.mxu0 %v11170
        %11576 = vmatmul.mubr.bf16.gmra.mxu0 %v11169
        %v11577 = vpop.f32.mrf.mxu0
        %v11578 = vadd.f32 0.0, %v11577
        %v11579 = vpop.f32.mrf.mxu0
        %v11580 = vadd.f32 0.0, %v11579
        %v11581 = vpop.f32.mrf.mxu0
        %v11582 = vadd.f32 0.0, %v11581
        %v11583 = vpop.f32.mrf.mxu0
        %v11584 = vadd.f32 0.0, %v11583
        %11585 = vmatprep.mubr.bf16.mxu0 %v11172
        %11586 = vmatmul.mubr.bf16.gmra.mxu0 %v11171
        %v11587 = vpop.f32.mrf.mxu0
        %v11588 = vadd.f32 0.0, %v11587
        %v11589 = vpop.f32.mrf.mxu0
        %v11590 = vadd.f32 0.0, %v11589
        %v11591 = vpop.f32.mrf.mxu0
        %v11592 = vadd.f32 0.0, %v11591
        %v11593 = vpop.f32.mrf.mxu0
        %v11594 = vadd.f32 0.0, %v11593
        %11595 = vmatprep.mubr.bf16.mxu0 %v11174
        %11596 = vmatmul.mubr.bf16.gmra.mxu0 %v11173
        %v11597 = vpop.f32.mrf.mxu0
        %v11598 = vadd.f32 0.0, %v11597
        %v11599 = vpop.f32.mrf.mxu0
        %v11600 = vadd.f32 0.0, %v11599
        %v11601 = vpop.f32.mrf.mxu0
        %v11602 = vadd.f32 0.0, %v11601
        %v11603 = vpop.f32.mrf.mxu0
        %v11604 = vadd.f32 0.0, %v11603
        %11605 = vmatprep.mubr.bf16.mxu0 %v11176
        %11606 = vmatmul.mubr.bf16.gmra.mxu0 %v11175
        %v11607 = vpop.f32.mrf.mxu0
        %v11608 = vadd.f32 0.0, %v11607
        %v11609 = vpop.f32.mrf.mxu0
        %v11610 = vadd.f32 0.0, %v11609
        %v11611 = vpop.f32.mrf.mxu0
        %v11612 = vadd.f32 0.0, %v11611
        %v11613 = vpop.f32.mrf.mxu0
        %v11614 = vadd.f32 0.0, %v11613
        %11615 = vmatprep.mubr.bf16.mxu0 %v11178
        %11616 = vmatmul.mubr.bf16.gmra.mxu0 %v11177
        %v11617 = vpop.f32.mrf.mxu0
        %v11618 = vadd.f32 0.0, %v11617
        %v11619 = vpop.f32.mrf.mxu0
        %v11620 = vadd.f32 0.0, %v11619
        %v11621 = vpop.f32.mrf.mxu0
        %v11622 = vadd.f32 0.0, %v11621
        %v11623 = vpop.f32.mrf.mxu0
        %v11624 = vadd.f32 0.0, %v11623
        %11625 = vmatprep.mubr.bf16.mxu0 %v11180
        %11626 = vmatmul.mubr.bf16.gmra.mxu0 %v11179
        %v11627 = vpop.f32.mrf.mxu0
        %v11628 = vadd.f32 0.0, %v11627
        %v11629 = vpop.f32.mrf.mxu0
        %v11630 = vadd.f32 0.0, %v11629
        %v11631 = vpop.f32.mrf.mxu0
        %v11632 = vadd.f32 0.0, %v11631
        %v11633 = vpop.f32.mrf.mxu0
        %v11634 = vadd.f32 0.0, %v11633
        %11635 = vmatprep.mubr.bf16.mxu0 %v11182
        %11636 = vmatmul.mubr.bf16.gmra.mxu0 %v11181
        %v11637 = vpop.f32.mrf.mxu0
        %v11638 = vadd.f32 0.0, %v11637
        %v11639 = vpop.f32.mrf.mxu0
        %v11640 = vadd.f32 0.0, %v11639
        %v11641 = vpop.f32.mrf.mxu0
        %v11642 = vadd.f32 0.0, %v11641
        %v11643 = vpop.f32.mrf.mxu0
        %v11644 = vadd.f32 0.0, %v11643
        %11645 = vmatprep.mubr.bf16.mxu0 %v11184
        %11646 = vmatmul.mubr.bf16.gmra.mxu0 %v11183
        %v11647 = vpop.f32.mrf.mxu0
        %v11648 = vadd.f32 0.0, %v11647
        %v11649 = vpop.f32.mrf.mxu0
        %v11650 = vadd.f32 0.0, %v11649
        %v11651 = vpop.f32.mrf.mxu0
        %v11652 = vadd.f32 0.0, %v11651
        %v11653 = vpop.f32.mrf.mxu0
        %v11654 = vadd.f32 0.0, %v11653
        %11655 = vmatprep.mubr.bf16.mxu0 %v11186
        %11656 = vmatmul.mubr.bf16.gmra.mxu0 %v11185
        %v11657 = vpop.f32.mrf.mxu0
        %v11658 = vadd.f32 0.0, %v11657
        %v11659 = vpop.f32.mrf.mxu0
        %v11660 = vadd.f32 0.0, %v11659
        %v11661 = vpop.f32.mrf.mxu0
        %v11662 = vadd.f32 0.0, %v11661
        %v11663 = vpop.f32.mrf.mxu0
        %v11664 = vadd.f32 0.0, %v11663
        %11665 = vmatprep.mubr.bf16.mxu0 %v11188
        %11666 = vmatmul.mubr.bf16.gmra.mxu0 %v11187
        %v11667 = vpop.f32.mrf.mxu0
        %v11668 = vadd.f32 0.0, %v11667
        %v11669 = vpop.f32.mrf.mxu0
        %v11670 = vadd.f32 0.0, %v11669
        %v11671 = vpop.f32.mrf.mxu0
        %v11672 = vadd.f32 0.0, %v11671
        %v11673 = vpop.f32.mrf.mxu0
        %v11674 = vadd.f32 0.0, %v11673
        %11675 = vmatprep.mubr.bf16.mxu0 %v11190
        %11676 = vmatmul.mubr.bf16.gmra.mxu0 %v11189
        %v11677 = vpop.f32.mrf.mxu0
        %v11678 = vadd.f32 0.0, %v11677
        %v11679 = vpop.f32.mrf.mxu0
        %v11680 = vadd.f32 0.0, %v11679
        %v11681 = vpop.f32.mrf.mxu0
        %v11682 = vadd.f32 0.0, %v11681
        %v11683 = vpop.f32.mrf.mxu0
        %v11684 = vadd.f32 0.0, %v11683
        %11685 = vmatprep.mubr.bf16.mxu0 %v11192
        %11686 = vmatmul.mubr.bf16.gmra.mxu0 %v11191
        %v11687 = vpop.f32.mrf.mxu0
        %v11688 = vadd.f32 0.0, %v11687
        %v11689 = vpop.f32.mrf.mxu0
        %v11690 = vadd.f32 0.0, %v11689
        %v11691 = vpop.f32.mrf.mxu0
        %v11692 = vadd.f32 0.0, %v11691
        %v11693 = vpop.f32.mrf.mxu0
        %v11694 = vadd.f32 0.0, %v11693
        %11695 = vmatprep.mubr.bf16.mxu0 %v11194
        %11696 = vmatmul.mubr.bf16.gmra.mxu0 %v11193
        %v11697 = vpop.f32.mrf.mxu0
        %v11698 = vadd.f32 0.0, %v11697
        %v11699 = vpop.f32.mrf.mxu0
        %v11700 = vadd.f32 0.0, %v11699
        %v11701 = vpop.f32.mrf.mxu0
        %v11702 = vpop.f32.mrf.mxu0
        %11703 = vdwg.mxu0
        %v11704 = vpack.c.bf16 %v11260, %v11256
        %v11705 = vpack.c.bf16 %v11262, %v11258
        %v11706 = vpack.c.bf16 %v11421, %v11417
        %v11707 = vpack.c.bf16 %v11423, %v11419
        %v11708 = vpack.c.bf16 %v11582, %v11578
        %v11709 = vpack.c.bf16 %v11584, %v11580
        %v11710 = vpack.c.bf16 %v11270, %v11266
        %v11711 = vpack.c.bf16 %v11272, %v11268
        %v11712 = vpack.c.bf16 %v11431, %v11427
        %v11713 = vpack.c.bf16 %v11433, %v11429
        %v11714 = vpack.c.bf16 %v11592, %v11588
        %v11715 = vpack.c.bf16 %v11594, %v11590
        %v11716 = vpack.c.bf16 %v11280, %v11276
        %v11717 = vpack.c.bf16 %v11282, %v11278
        %v11718 = vpack.c.bf16 %v11441, %v11437
        %v11719 = vpack.c.bf16 %v11443, %v11439
        %v11720 = vpack.c.bf16 %v11602, %v11598
        %v11721 = vpack.c.bf16 %v11604, %v11600
        %v11722 = vpack.c.bf16 %v11290, %v11286
        %v11723 = vpack.c.bf16 %v11292, %v11288
        %v11724 = vpack.c.bf16 %v11451, %v11447
        %v11725 = vpack.c.bf16 %v11453, %v11449
        %v11726 = vpack.c.bf16 %v11612, %v11608
        %v11727 = vpack.c.bf16 %v11614, %v11610
        %v11728 = vpack.c.bf16 %v11300, %v11296
        %v11729 = vpack.c.bf16 %v11302, %v11298
        %v11730 = vpack.c.bf16 %v11461, %v11457
        %v11731 = vpack.c.bf16 %v11463, %v11459
        %v11732 = vpack.c.bf16 %v11622, %v11618
        %v11733 = vpack.c.bf16 %v11624, %v11620
        %v11734 = vpack.c.bf16 %v11310, %v11306
        %v11735 = vpack.c.bf16 %v11312, %v11308
        %v11736 = vpack.c.bf16 %v11471, %v11467
        %v11737 = vpack.c.bf16 %v11473, %v11469
        %v11738 = vpack.c.bf16 %v11632, %v11628
        %v11739 = vpack.c.bf16 %v11634, %v11630
        %v11740 = vpack.c.bf16 %v11320, %v11316
        %v11741 = vpack.c.bf16 %v11322, %v11318
        %v11742 = vpack.c.bf16 %v11481, %v11477
        %v11743 = vpack.c.bf16 %v11483, %v11479
        %v11744 = vpack.c.bf16 %v11642, %v11638
        %v11745 = vpack.c.bf16 %v11644, %v11640
        %v11746 = vpack.c.bf16 %v11330, %v11326
        %v11747 = vpack.c.bf16 %v11332, %v11328
        %v11748 = vpack.c.bf16 %v11491, %v11487
        %v11749 = vpack.c.bf16 %v11493, %v11489
        %v11750 = vpack.c.bf16 %v11652, %v11648
        %v11751 = vpack.c.bf16 %v11654, %v11650
        %v11752 = vpack.c.bf16 %v11340, %v11336
        %v11753 = vpack.c.bf16 %v11342, %v11338
        %v11754 = vpack.c.bf16 %v11501, %v11497
        %v11755 = vpack.c.bf16 %v11503, %v11499
        %v11756 = vpack.c.bf16 %v11662, %v11658
        %v11757 = vpack.c.bf16 %v11664, %v11660
        %v11758 = vpack.c.bf16 %v11350, %v11346
        %v11759 = vpack.c.bf16 %v11352, %v11348
        %v11760 = vpack.c.bf16 %v11511, %v11507
        %v11761 = vpack.c.bf16 %v11513, %v11509
        %v11762 = vpack.c.bf16 %v11672, %v11668
        %v11763 = vpack.c.bf16 %v11674, %v11670
        %v11764 = vpack.c.bf16 %v11360, %v11356
        %v11765 = vpack.c.bf16 %v11362, %v11358
        %v11766 = vpack.c.bf16 %v11521, %v11517
        %v11767 = vpack.c.bf16 %v11523, %v11519
        %v11768 = vpack.c.bf16 %v11682, %v11678
        %v11769 = vpack.c.bf16 %v11684, %v11680
        %v11770 = vpack.c.bf16 %v11370, %v11366
        %v11771 = vpack.c.bf16 %v11372, %v11368
        %v11772 = vpack.c.bf16 %v11531, %v11527
        %v11773 = vpack.c.bf16 %v11533, %v11529
        %v11774 = vpack.c.bf16 %v11692, %v11688
        %v11775 = vpack.c.bf16 %v11694, %v11690
        %v11776 = vpack.c.bf16 %v11376, %v11376
        %v11777 = vpack.c.bf16 %v11378, %v11378
        %v11778 = vpack.c.bf16 %v11537, %v11537
        %v11779 = vpack.c.bf16 %v11539, %v11539
        %v11780 = vpack.c.bf16 %v11698, %v11698
        %v11781 = vpack.c.bf16 %v11700, %v11700
        %v11860 = vunpack.c.l.b16 %v11704
        %v11861 = vunpack.c.l.b16 %v11705
        %v11862 = vunpack.c.l.b16 %v11706
        %v11863 = vunpack.c.l.b16 %v11707
        %v11864 = vunpack.c.l.b16 %v11708
        %v11865 = vunpack.c.l.b16 %v11709
        %v11866 = vunpack.c.h.b16 %v11704
        %v11867 = vunpack.c.h.b16 %v11705
        %v11868 = vunpack.c.h.b16 %v11706
        %v11869 = vunpack.c.h.b16 %v11707
        %v11870 = vunpack.c.h.b16 %v11708
        %v11871 = vunpack.c.h.b16 %v11709
        %v11872 = vunpack.c.l.b16 %v11710
        %v11873 = vunpack.c.l.b16 %v11711
        %v11874 = vunpack.c.l.b16 %v11712
        %v11875 = vunpack.c.l.b16 %v11713
        %v11876 = vunpack.c.l.b16 %v11714
        %v11877 = vunpack.c.l.b16 %v11715
        %v11878 = vunpack.c.h.b16 %v11710
        %v11879 = vunpack.c.h.b16 %v11711
        %v11880 = vunpack.c.h.b16 %v11712
        %v11881 = vunpack.c.h.b16 %v11713
        %v11882 = vunpack.c.h.b16 %v11714
        %v11883 = vunpack.c.h.b16 %v11715
        %v11884 = vunpack.c.l.b16 %v11716
        %v11885 = vunpack.c.l.b16 %v11717
        %v11886 = vunpack.c.l.b16 %v11718
        %v11887 = vunpack.c.l.b16 %v11719
        %v11888 = vunpack.c.l.b16 %v11720
        %v11889 = vunpack.c.l.b16 %v11721
        %v11890 = vunpack.c.h.b16 %v11716
        %v11891 = vunpack.c.h.b16 %v11717
        %v11892 = vunpack.c.h.b16 %v11718
        %v11893 = vunpack.c.h.b16 %v11719
        %v11894 = vunpack.c.h.b16 %v11720
        %v11895 = vunpack.c.h.b16 %v11721
        %v11896 = vunpack.c.l.b16 %v11722
        %v11897 = vunpack.c.l.b16 %v11723
        %v11898 = vunpack.c.l.b16 %v11724
        %v11899 = vunpack.c.l.b16 %v11725
        %v11900 = vunpack.c.l.b16 %v11726
        %v11901 = vunpack.c.l.b16 %v11727
        %v11902 = vunpack.c.h.b16 %v11722
        %v11903 = vunpack.c.h.b16 %v11723
        %v11904 = vunpack.c.h.b16 %v11724
        %v11905 = vunpack.c.h.b16 %v11725
        %v11906 = vunpack.c.h.b16 %v11726
        %v11907 = vunpack.c.h.b16 %v11727
        %v11908 = vunpack.c.l.b16 %v11728
        %v11909 = vunpack.c.l.b16 %v11729
        %v11910 = vunpack.c.l.b16 %v11730
        %v11911 = vunpack.c.l.b16 %v11731
        %v11912 = vunpack.c.l.b16 %v11732
        %v11913 = vunpack.c.l.b16 %v11733
        %v11914 = vunpack.c.h.b16 %v11728
        %v11915 = vunpack.c.h.b16 %v11729
        %v11916 = vunpack.c.h.b16 %v11730
        %v11917 = vunpack.c.h.b16 %v11731
        %v11918 = vunpack.c.h.b16 %v11732
        %v11919 = vunpack.c.h.b16 %v11733
        %v11920 = vunpack.c.l.b16 %v11734
        %v11921 = vunpack.c.l.b16 %v11735
        %v11922 = vunpack.c.l.b16 %v11736
        %v11923 = vunpack.c.l.b16 %v11737
        %v11924 = vunpack.c.l.b16 %v11738
        %v11925 = vunpack.c.l.b16 %v11739
        %v11926 = vunpack.c.h.b16 %v11734
        %v11927 = vunpack.c.h.b16 %v11735
        %v11928 = vunpack.c.h.b16 %v11736
        %v11929 = vunpack.c.h.b16 %v11737
        %v11930 = vunpack.c.h.b16 %v11738
        %v11931 = vunpack.c.h.b16 %v11739
        %v11932 = vunpack.c.l.b16 %v11740
        %v11933 = vunpack.c.l.b16 %v11741
        %v11934 = vunpack.c.l.b16 %v11742
        %v11935 = vunpack.c.l.b16 %v11743
        %v11936 = vunpack.c.l.b16 %v11744
        %v11937 = vunpack.c.l.b16 %v11745
        %v11938 = vunpack.c.h.b16 %v11740
        %v11939 = vunpack.c.h.b16 %v11741
        %v11940 = vunpack.c.h.b16 %v11742
        %v11941 = vunpack.c.h.b16 %v11743
        %v11942 = vunpack.c.h.b16 %v11744
        %v11943 = vunpack.c.h.b16 %v11745
        %v11944 = vunpack.c.l.b16 %v11746
        %v11945 = vunpack.c.l.b16 %v11747
        %v11946 = vunpack.c.l.b16 %v11748
        %v11947 = vunpack.c.l.b16 %v11749
        %v11948 = vunpack.c.l.b16 %v11750
        %v11949 = vunpack.c.l.b16 %v11751
        %v11950 = vunpack.c.h.b16 %v11746
        %v11951 = vunpack.c.h.b16 %v11747
        %v11952 = vunpack.c.h.b16 %v11748
        %v11953 = vunpack.c.h.b16 %v11749
        %v11954 = vunpack.c.h.b16 %v11750
        %v11955 = vunpack.c.h.b16 %v11751
        %v11956 = vunpack.c.l.b16 %v11752
        %v11957 = vunpack.c.l.b16 %v11753
        %v11958 = vunpack.c.l.b16 %v11754
        %v11959 = vunpack.c.l.b16 %v11755
        %v11960 = vunpack.c.l.b16 %v11756
        %v11961 = vunpack.c.l.b16 %v11757
        %v11962 = vunpack.c.h.b16 %v11752
        %v11963 = vunpack.c.h.b16 %v11753
        %v11964 = vunpack.c.h.b16 %v11754
        %v11965 = vunpack.c.h.b16 %v11755
        %v11966 = vunpack.c.h.b16 %v11756
        %v11967 = vunpack.c.h.b16 %v11757
        %v11968 = vunpack.c.l.b16 %v11758
        %v11969 = vunpack.c.l.b16 %v11759
        %v11970 = vunpack.c.l.b16 %v11760
        %v11971 = vunpack.c.l.b16 %v11761
        %v11972 = vunpack.c.l.b16 %v11762
        %v11973 = vunpack.c.l.b16 %v11763
        %v11974 = vunpack.c.h.b16 %v11758
        %v11975 = vunpack.c.h.b16 %v11759
        %v11976 = vunpack.c.h.b16 %v11760
        %v11977 = vunpack.c.h.b16 %v11761
        %v11978 = vunpack.c.h.b16 %v11762
        %v11979 = vunpack.c.h.b16 %v11763
        %v11980 = vunpack.c.l.b16 %v11764
        %v11981 = vunpack.c.l.b16 %v11765
        %v11982 = vunpack.c.l.b16 %v11766
        %v11983 = vunpack.c.l.b16 %v11767
        %v11984 = vunpack.c.l.b16 %v11768
        %v11985 = vunpack.c.l.b16 %v11769
        %v11986 = vunpack.c.h.b16 %v11764
        %v11987 = vunpack.c.h.b16 %v11765
        %v11988 = vunpack.c.h.b16 %v11766
        %v11989 = vunpack.c.h.b16 %v11767
        %v11990 = vunpack.c.h.b16 %v11768
        %v11991 = vunpack.c.h.b16 %v11769
        %v11992 = vunpack.c.l.b16 %v11770
        %v11993 = vunpack.c.l.b16 %v11771
        %v11994 = vunpack.c.l.b16 %v11772
        %v11995 = vunpack.c.l.b16 %v11773
        %v11996 = vunpack.c.l.b16 %v11774
        %v11997 = vunpack.c.l.b16 %v11775
        %v11998 = vunpack.c.h.b16 %v11770
        %v11999 = vunpack.c.h.b16 %v11771
        %v12000 = vunpack.c.h.b16 %v11772
        %v12001 = vunpack.c.h.b16 %v11773
        %v12002 = vunpack.c.h.b16 %v11774
        %v12003 = vunpack.c.h.b16 %v11775
        %v12004 = vunpack.c.l.b16 %v11776
        %v12005 = vunpack.c.l.b16 %v11777
        %v12006 = vunpack.c.l.b16 %v11778
        %v12007 = vunpack.c.l.b16 %v11779
        %v12008 = vunpack.c.l.b16 %v11780
        %v12009 = vunpack.c.l.b16 %v11781
        %v12010 = vpack.c.b16 %v11861, %v11860
        %v12011 = vpack.c.b16 %v11863, %v11862
        %v12012 = vpack.c.b16 %v11865, %v11864
        %v12013 = vpack.c.b16 %v11867, %v11866
        %v12014 = vpack.c.b16 %v11869, %v11868
        %v12015 = vpack.c.b16 %v11871, %v11870
        %v12016 = vpack.c.b16 %v11873, %v11872
        %v12017 = vpack.c.b16 %v11875, %v11874
        %v12018 = vpack.c.b16 %v11877, %v11876
        %v12019 = vpack.c.b16 %v11879, %v11878
        %v12020 = vpack.c.b16 %v11881, %v11880
        %v12021 = vpack.c.b16 %v11883, %v11882
        %v12022 = vpack.c.b16 %v11885, %v11884
        %v12023 = vpack.c.b16 %v11887, %v11886
        %v12024 = vpack.c.b16 %v11889, %v11888
        %v12025 = vpack.c.b16 %v11891, %v11890
        %v12026 = vpack.c.b16 %v11893, %v11892
        %v12027 = vpack.c.b16 %v11895, %v11894
        %v12028 = vpack.c.b16 %v11897, %v11896
        %v12029 = vpack.c.b16 %v11899, %v11898
        %v12030 = vpack.c.b16 %v11901, %v11900
        %v12031 = vpack.c.b16 %v11903, %v11902
        %v12032 = vpack.c.b16 %v11905, %v11904
        %v12033 = vpack.c.b16 %v11907, %v11906
        %v12034 = vpack.c.b16 %v11909, %v11908
        %v12035 = vpack.c.b16 %v11911, %v11910
        %v12036 = vpack.c.b16 %v11913, %v11912
        %v12037 = vpack.c.b16 %v11915, %v11914
        %v12038 = vpack.c.b16 %v11917, %v11916
        %v12039 = vpack.c.b16 %v11919, %v11918
        %v12040 = vpack.c.b16 %v11921, %v11920
        %v12041 = vpack.c.b16 %v11923, %v11922
        %v12042 = vpack.c.b16 %v11925, %v11924
        %v12043 = vpack.c.b16 %v11927, %v11926
        %v12044 = vpack.c.b16 %v11929, %v11928
        %v12045 = vpack.c.b16 %v11931, %v11930
        %v12046 = vpack.c.b16 %v11933, %v11932
        %v12047 = vpack.c.b16 %v11935, %v11934
        %v12048 = vpack.c.b16 %v11937, %v11936
        %v12049 = vpack.c.b16 %v11939, %v11938
        %v12050 = vpack.c.b16 %v11941, %v11940
        %v12051 = vpack.c.b16 %v11943, %v11942
        %v12052 = vpack.c.b16 %v11945, %v11944
        %v12053 = vpack.c.b16 %v11947, %v11946
        %v12054 = vpack.c.b16 %v11949, %v11948
        %v12055 = vpack.c.b16 %v11951, %v11950
        %v12056 = vpack.c.b16 %v11953, %v11952
        %v12057 = vpack.c.b16 %v11955, %v11954
        %v12058 = vpack.c.b16 %v11957, %v11956
        %v12059 = vpack.c.b16 %v11959, %v11958
        %v12060 = vpack.c.b16 %v11961, %v11960
        %v12061 = vpack.c.b16 %v11963, %v11962
        %v12062 = vpack.c.b16 %v11965, %v11964
        %v12063 = vpack.c.b16 %v11967, %v11966
        %v12064 = vpack.c.b16 %v11969, %v11968
        %v12065 = vpack.c.b16 %v11971, %v11970
        %v12066 = vpack.c.b16 %v11973, %v11972
        %v12067 = vpack.c.b16 %v11975, %v11974
        %v12068 = vpack.c.b16 %v11977, %v11976
        %v12069 = vpack.c.b16 %v11979, %v11978
        %v12070 = vpack.c.b16 %v11981, %v11980
        %v12071 = vpack.c.b16 %v11983, %v11982
        %v12072 = vpack.c.b16 %v11985, %v11984
        %v12073 = vpack.c.b16 %v11987, %v11986
        %v12074 = vpack.c.b16 %v11989, %v11988
        %v12075 = vpack.c.b16 %v11991, %v11990
        %v12076 = vpack.c.b16 %v11993, %v11992
        %v12077 = vpack.c.b16 %v11995, %v11994
        %v12078 = vpack.c.b16 %v11997, %v11996
        %v12079 = vpack.c.b16 %v11999, %v11998
        %v12080 = vpack.c.b16 %v12001, %v12000
        %v12081 = vpack.c.b16 %v12003, %v12002
        %v12082 = vpack.c.b16 %v12005, %v12004
        %v12083 = vpack.c.b16 %v12007, %v12006
        %v12084 = vpack.c.b16 %v12009, %v12008
        %12160 = vst [vmem:[%s575] sm:$0xff] %v12010
        %12161 = vst [vmem:[%s575 + $0x8] sm:$0xff] %v12011
        %12162 = vst [vmem:[%s575 + $0x10] sm:$0xff] %v12012
        %12163 = vst [vmem:[%s575 + $0x18] sm:$0xff] %v12013
        %12164 = vst [vmem:[%s575 + $0x20] sm:$0xff] %v12014
        %12165 = vst [vmem:[%s575 + $0x28] sm:$0xff] %v12015
        %12166 = vst [vmem:[%s575 + $0x30] sm:$0xff] %v12016
        %12167 = vst [vmem:[%s575 + $0x38] sm:$0xff] %v12017
        %12168 = vst [vmem:[%s575 + $0x40] sm:$0xff] %v12018
        %12169 = vst [vmem:[%s575 + $0x48] sm:$0xff] %v12019
        %12170 = vst [vmem:[%s575 + $0x50] sm:$0xff] %v12020
        %12171 = vst [vmem:[%s575 + $0x58] sm:$0xff] %v12021
        %12172 = vst [vmem:[%s575 + $0x60] sm:$0xff] %v12022
        %12173 = vst [vmem:[%s575 + $0x68] sm:$0xff] %v12023
        %12174 = vst [vmem:[%s575 + $0x70] sm:$0xff] %v12024
        %12175 = vst [vmem:[%s575 + $0x78] sm:$0xff] %v12025
        %12176 = vst [vmem:[%s575 + $0x80] sm:$0xff] %v12026
        %12177 = vst [vmem:[%s575 + $0x88] sm:$0xff] %v12027
        %12178 = vst [vmem:[%s575 + $0x90] sm:$0xff] %v12028
        %12179 = vst [vmem:[%s575 + $0x98] sm:$0xff] %v12029
        %12180 = vst [vmem:[%s575 + $0xa0] sm:$0xff] %v12030
        %12181 = vst [vmem:[%s575 + $0xa8] sm:$0xff] %v12031
        %12182 = vst [vmem:[%s575 + $0xb0] sm:$0xff] %v12032
        %12183 = vst [vmem:[%s575 + $0xb8] sm:$0xff] %v12033
        %12184 = vst [vmem:[%s575 + $0xc0] sm:$0xff] %v12034
        %12185 = vst [vmem:[%s575 + $0xc8] sm:$0xff] %v12035
        %12186 = vst [vmem:[%s575 + $0xd0] sm:$0xff] %v12036
        %12187 = vst [vmem:[%s575 + $0xd8] sm:$0xff] %v12037
        %12188 = vst [vmem:[%s575 + $0xe0] sm:$0xff] %v12038
        %12189 = vst [vmem:[%s575 + $0xe8] sm:$0xff] %v12039
        %12190 = vst [vmem:[%s575 + $0xf0] sm:$0xff] %v12040
        %12191 = vst [vmem:[%s575 + $0xf8] sm:$0xff] %v12041
        %12192 = vst [vmem:[%s575 + $0x100] sm:$0xff] %v12042
        %12193 = vst [vmem:[%s575 + $0x108] sm:$0xff] %v12043
        %12194 = vst [vmem:[%s575 + $0x110] sm:$0xff] %v12044
        %12195 = vst [vmem:[%s575 + $0x118] sm:$0xff] %v12045
        %12196 = vst [vmem:[%s575 + $0x120] sm:$0xff] %v12046
        %12197 = vst [vmem:[%s575 + $0x128] sm:$0xff] %v12047
        %12198 = vst [vmem:[%s575 + $0x130] sm:$0xff] %v12048
        %12199 = vst [vmem:[%s575 + $0x138] sm:$0xff] %v12049
        %12200 = vst [vmem:[%s575 + $0x140] sm:$0xff] %v12050
        %12201 = vst [vmem:[%s575 + $0x148] sm:$0xff] %v12051
        %12202 = vst [vmem:[%s575 + $0x150] sm:$0xff] %v12052
        %12203 = vst [vmem:[%s575 + $0x158] sm:$0xff] %v12053
        %12204 = vst [vmem:[%s575 + $0x160] sm:$0xff] %v12054
        %12205 = vst [vmem:[%s575 + $0x168] sm:$0xff] %v12055
        %12206 = vst [vmem:[%s575 + $0x170] sm:$0xff] %v12056
        %12207 = vst [vmem:[%s575 + $0x178] sm:$0xff] %v12057
        %12208 = vst [vmem:[%s575 + $0x180] sm:$0xff] %v12058
        %12209 = vst [vmem:[%s575 + $0x188] sm:$0xff] %v12059
        %12210 = vst [vmem:[%s575 + $0x190] sm:$0xff] %v12060
        %12211 = vst [vmem:[%s575 + $0x198] sm:$0xff] %v12061
        %12212 = vst [vmem:[%s575 + $0x1a0] sm:$0xff] %v12062
        %12213 = vst [vmem:[%s575 + $0x1a8] sm:$0xff] %v12063
        %12214 = vst [vmem:[%s575 + $0x1b0] sm:$0xff] %v12064
        %12215 = vst [vmem:[%s575 + $0x1b8] sm:$0xff] %v12065
        %12216 = vst [vmem:[%s575 + $0x1c0] sm:$0xff] %v12066
        %12217 = vst [vmem:[%s575 + $0x1c8] sm:$0xff] %v12067
        %12218 = vst [vmem:[%s575 + $0x1d0] sm:$0xff] %v12068
        %12219 = vst [vmem:[%s575 + $0x1d8] sm:$0xff] %v12069
        %12220 = vst [vmem:[%s575 + $0x1e0] sm:$0xff] %v12070
        %12221 = vst [vmem:[%s575 + $0x1e8] sm:$0xff] %v12071
        %12222 = vst [vmem:[%s575 + $0x1f0] sm:$0xff] %v12072
        %12223 = vst [vmem:[%s575 + $0x1f8] sm:$0xff] %v12073
        %12224 = vst [vmem:[%s575 + $0x200] sm:$0xff] %v12074
        %12225 = vst [vmem:[%s575 + $0x208] sm:$0xff] %v12075
        %12226 = vst [vmem:[%s575 + $0x210] sm:$0xff] %v12076
        %12227 = vst [vmem:[%s575 + $0x218] sm:$0xff] %v12077
        %12228 = vst [vmem:[%s575 + $0x220] sm:$0xff] %v12078
        %12229 = vst [vmem:[%s575 + $0x228] sm:$0xff] %v12079
        %12230 = vst [vmem:[%s575 + $0x230] sm:$0xff] %v12080
        %12231 = vst [vmem:[%s575 + $0x238] sm:$0xff] %v12081
        %12232 = vst [vmem:[%s575 + $0x240] sm:$0x33] %v12082
        %12233 = vst [vmem:[%s575 + $0x248] sm:$0x33] %v12083
        %12234 = vst [vmem:[%s575 + $0x250] sm:$0x33] %v12084
        %s12235 = sand.u32 %s257, 1
        %s12236 = sand.u32 %s257, 1
        %s12237 = smul.addr %s12236, 600
        %s12238 = scalar_lea.vmem [#allocation15], %s12237
        // Predicated region
        $region85: #{tpu_custom_call.1} parent=51 // pred_check
          %p12239 = pneg %p267
        $region86: #{tpu_custom_call.1} parent=51 // pred_check_branch
          %12241 = sbr.rel (%p12239) target = $region88
        $region87: #{tpu_custom_call.1} parent=51 // pred_region
          %s12242 = smul.u32 6, %s36
          %s12243 = smul.addr %s37, 300
          %s12244 = sadd.s32 %s12242, %s12243
          %s12245 = smul.addr %s12244, 4
          %s12246 = scalar_lea.vmem %s8, %s12245
          // Predicated region
          $region89: #{tpu_custom_call.1} parent=87 // pred_check
            _
          $region90: #{tpu_custom_call.1} parent=87 // pred_check_branch
            %12248 = sbr.rel (0) target = $region92
          $region91: #{tpu_custom_call.1} parent=87 // pred_region
            // Predicated region
            $region93: #{tpu_custom_call.1} parent=91 // pred_check
              _
            $region94: #{tpu_custom_call.1} parent=91 // pred_check_branch
              %12250 = sbr.rel (0) target = $region96
            $region95: #{tpu_custom_call.1} parent=91 // pred_region
              loop: start=0, step=1, limit=1
              $region97: #{tpu_custom_call.1} parent=95 // loop_pre_header
                _
              $region98: #{tpu_custom_call.1} parent=95 // loop_header
                %s12252 = sphi 0, %s12256
                %p12253 = scmp.ge.s32.totalorder %s12252, 1
                %s12257 = sphi %s12238, %s12238
                %s12258 = sphi %s12246, %s12246
              $region99: #{tpu_custom_call.1} parent=95 // loop_header_branch
                %12255 = sbr.rel (%p12253) target = $region103
              $region100: #{tpu_custom_call.1} parent=95 // loop_body
                %v12259 = vld [vmem:[%s12257] sm:$0xff]
                %12260 = vst [vmem:[%s12258] sm:$0xff] %v12259
                %v12261 = vld [vmem:[%s12257 + $0x8] sm:$0xff]
                %12262 = vst [vmem:[%s12258 + $0x8] sm:$0xff] %v12261
                %v12263 = vld [vmem:[%s12257 + $0x10] sm:$0xff]
                %12264 = vst [vmem:[%s12258 + $0x10] sm:$0xff] %v12263
                %v12265 = vld [vmem:[%s12257 + $0x18] sm:$0xff]
                %12266 = vst [vmem:[%s12258 + $0x30] sm:$0xff] %v12265
                %v12267 = vld [vmem:[%s12257 + $0x20] sm:$0xff]
                %12268 = vst [vmem:[%s12258 + $0x38] sm:$0xff] %v12267
                %v12269 = vld [vmem:[%s12257 + $0x28] sm:$0xff]
                %12270 = vst [vmem:[%s12258 + $0x40] sm:$0xff] %v12269
                %v12271 = vld [vmem:[%s12257 + $0x30] sm:$0xff]
                %12272 = vst [vmem:[%s12258 + $0x60] sm:$0xff] %v12271
                %v12273 = vld [vmem:[%s12257 + $0x38] sm:$0xff]
                %12274 = vst [vmem:[%s12258 + $0x68] sm:$0xff] %v12273
                %v12275 = vld [vmem:[%s12257 + $0x40] sm:$0xff]
                %12276 = vst [vmem:[%s12258 + $0x70] sm:$0xff] %v12275
                %v12277 = vld [vmem:[%s12257 + $0x48] sm:$0xff]
                %12278 = vst [vmem:[%s12258 + $0x90] sm:$0xff] %v12277
                %v12279 = vld [vmem:[%s12257 + $0x50] sm:$0xff]
                %12280 = vst [vmem:[%s12258 + $0x98] sm:$0xff] %v12279
                %v12281 = vld [vmem:[%s12257 + $0x58] sm:$0xff]
                %12282 = vst [vmem:[%s12258 + $0xa0] sm:$0xff] %v12281
                %v12283 = vld [vmem:[%s12257 + $0x60] sm:$0xff]
                %12284 = vst [vmem:[%s12258 + $0xc0] sm:$0xff] %v12283
                %v12285 = vld [vmem:[%s12257 + $0x68] sm:$0xff]
                %12286 = vst [vmem:[%s12258 + $0xc8] sm:$0xff] %v12285
                %v12287 = vld [vmem:[%s12257 + $0x70] sm:$0xff]
                %12288 = vst [vmem:[%s12258 + $0xd0] sm:$0xff] %v12287
                %v12289 = vld [vmem:[%s12257 + $0x78] sm:$0xff]
                %12290 = vst [vmem:[%s12258 + $0xf0] sm:$0xff] %v12289
                %v12291 = vld [vmem:[%s12257 + $0x80] sm:$0xff]
                %12292 = vst [vmem:[%s12258 + $0xf8] sm:$0xff] %v12291
                %v12293 = vld [vmem:[%s12257 + $0x88] sm:$0xff]
                %12294 = vst [vmem:[%s12258 + $0x100] sm:$0xff] %v12293
                %v12295 = vld [vmem:[%s12257 + $0x90] sm:$0xff]
                %12296 = vst [vmem:[%s12258 + $0x120] sm:$0xff] %v12295
                %v12297 = vld [vmem:[%s12257 + $0x98] sm:$0xff]
                %12298 = vst [vmem:[%s12258 + $0x128] sm:$0xff] %v12297
                %v12299 = vld [vmem:[%s12257 + $0xa0] sm:$0xff]
                %12300 = vst [vmem:[%s12258 + $0x130] sm:$0xff] %v12299
                %v12301 = vld [vmem:[%s12257 + $0xa8] sm:$0xff]
                %12302 = vst [vmem:[%s12258 + $0x150] sm:$0xff] %v12301
                %v12303 = vld [vmem:[%s12257 + $0xb0] sm:$0xff]
                %12304 = vst [vmem:[%s12258 + $0x158] sm:$0xff] %v12303
                %v12305 = vld [vmem:[%s12257 + $0xb8] sm:$0xff]
                %12306 = vst [vmem:[%s12258 + $0x160] sm:$0xff] %v12305
                %v12307 = vld [vmem:[%s12257 + $0xc0] sm:$0xff]
                %12308 = vst [vmem:[%s12258 + $0x180] sm:$0xff] %v12307
                %v12309 = vld [vmem:[%s12257 + $0xc8] sm:$0xff]
                %12310 = vst [vmem:[%s12258 + $0x188] sm:$0xff] %v12309
                %v12311 = vld [vmem:[%s12257 + $0xd0] sm:$0xff]
                %12312 = vst [vmem:[%s12258 + $0x190] sm:$0xff] %v12311
                %v12313 = vld [vmem:[%s12257 + $0xd8] sm:$0xff]
                %12314 = vst [vmem:[%s12258 + $0x1b0] sm:$0xff] %v12313
                %v12315 = vld [vmem:[%s12257 + $0xe0] sm:$0xff]
                %12316 = vst [vmem:[%s12258 + $0x1b8] sm:$0xff] %v12315
                %v12317 = vld [vmem:[%s12257 + $0xe8] sm:$0xff]
                %12318 = vst [vmem:[%s12258 + $0x1c0] sm:$0xff] %v12317
                %v12319 = vld [vmem:[%s12257 + $0xf0] sm:$0xff]
                %12320 = vst [vmem:[%s12258 + $0x1e0] sm:$0xff] %v12319
                %v12321 = vld [vmem:[%s12257 + $0xf8] sm:$0xff]
                %12322 = vst [vmem:[%s12258 + $0x1e8] sm:$0xff] %v12321
                %v12323 = vld [vmem:[%s12257 + $0x100] sm:$0xff]
                %12324 = vst [vmem:[%s12258 + $0x1f0] sm:$0xff] %v12323
                %v12325 = vld [vmem:[%s12257 + $0x108] sm:$0xff]
                %12326 = vst [vmem:[%s12258 + $0x210] sm:$0xff] %v12325
                %v12327 = vld [vmem:[%s12257 + $0x110] sm:$0xff]
                %12328 = vst [vmem:[%s12258 + $0x218] sm:$0xff] %v12327
                %v12329 = vld [vmem:[%s12257 + $0x118] sm:$0xff]
                %12330 = vst [vmem:[%s12258 + $0x220] sm:$0xff] %v12329
                %v12331 = vld [vmem:[%s12257 + $0x120] sm:$0xff]
                %12332 = vst [vmem:[%s12258 + $0x240] sm:$0xff] %v12331
                %v12333 = vld [vmem:[%s12257 + $0x128] sm:$0xff]
                %12334 = vst [vmem:[%s12258 + $0x248] sm:$0xff] %v12333
                %v12335 = vld [vmem:[%s12257 + $0x130] sm:$0xff]
                %12336 = vst [vmem:[%s12258 + $0x250] sm:$0xff] %v12335
                %v12337 = vld [vmem:[%s12257 + $0x138] sm:$0xff]
                %12338 = vst [vmem:[%s12258 + $0x270] sm:$0xff] %v12337
                %v12339 = vld [vmem:[%s12257 + $0x140] sm:$0xff]
                %12340 = vst [vmem:[%s12258 + $0x278] sm:$0xff] %v12339
                %v12341 = vld [vmem:[%s12257 + $0x148] sm:$0xff]
                %12342 = vst [vmem:[%s12258 + $0x280] sm:$0xff] %v12341
                %v12343 = vld [vmem:[%s12257 + $0x150] sm:$0xff]
                %12344 = vst [vmem:[%s12258 + $0x2a0] sm:$0xff] %v12343
                %v12345 = vld [vmem:[%s12257 + $0x158] sm:$0xff]
                %12346 = vst [vmem:[%s12258 + $0x2a8] sm:$0xff] %v12345
                %v12347 = vld [vmem:[%s12257 + $0x160] sm:$0xff]
                %12348 = vst [vmem:[%s12258 + $0x2b0] sm:$0xff] %v12347
                %v12349 = vld [vmem:[%s12257 + $0x168] sm:$0xff]
                %12350 = vst [vmem:[%s12258 + $0x2d0] sm:$0xff] %v12349
                %v12351 = vld [vmem:[%s12257 + $0x170] sm:$0xff]
                %12352 = vst [vmem:[%s12258 + $0x2d8] sm:$0xff] %v12351
                %v12353 = vld [vmem:[%s12257 + $0x178] sm:$0xff]
                %12354 = vst [vmem:[%s12258 + $0x2e0] sm:$0xff] %v12353
                %v12355 = vld [vmem:[%s12257 + $0x180] sm:$0xff]
                %12356 = vst [vmem:[%s12258 + $0x300] sm:$0xff] %v12355
                %v12357 = vld [vmem:[%s12257 + $0x188] sm:$0xff]
                %12358 = vst [vmem:[%s12258 + $0x308] sm:$0xff] %v12357
                %v12359 = vld [vmem:[%s12257 + $0x190] sm:$0xff]
                %12360 = vst [vmem:[%s12258 + $0x310] sm:$0xff] %v12359
                %v12361 = vld [vmem:[%s12257 + $0x198] sm:$0xff]
                %12362 = vst [vmem:[%s12258 + $0x330] sm:$0xff] %v12361
                %v12363 = vld [vmem:[%s12257 + $0x1a0] sm:$0xff]
                %12364 = vst [vmem:[%s12258 + $0x338] sm:$0xff] %v12363
                %v12365 = vld [vmem:[%s12257 + $0x1a8] sm:$0xff]
                %12366 = vst [vmem:[%s12258 + $0x340] sm:$0xff] %v12365
                %v12367 = vld [vmem:[%s12257 + $0x1b0] sm:$0xff]
                %12368 = vst [vmem:[%s12258 + $0x360] sm:$0xff] %v12367
                %v12369 = vld [vmem:[%s12257 + $0x1b8] sm:$0xff]
                %12370 = vst [vmem:[%s12258 + $0x368] sm:$0xff] %v12369
                %v12371 = vld [vmem:[%s12257 + $0x1c0] sm:$0xff]
                %12372 = vst [vmem:[%s12258 + $0x370] sm:$0xff] %v12371
                %v12373 = vld [vmem:[%s12257 + $0x1c8] sm:$0xff]
                %12374 = vst [vmem:[%s12258 + $0x390] sm:$0xff] %v12373
                %v12375 = vld [vmem:[%s12257 + $0x1d0] sm:$0xff]
                %12376 = vst [vmem:[%s12258 + $0x398] sm:$0xff] %v12375
                %v12377 = vld [vmem:[%s12257 + $0x1d8] sm:$0xff]
                %12378 = vst [vmem:[%s12258 + $0x3a0] sm:$0xff] %v12377
                %v12379 = vld [vmem:[%s12257 + $0x1e0] sm:$0xff]
                %12380 = vst [vmem:[%s12258 + $0x3c0] sm:$0xff] %v12379
                %v12381 = vld [vmem:[%s12257 + $0x1e8] sm:$0xff]
                %12382 = vst [vmem:[%s12258 + $0x3c8] sm:$0xff] %v12381
                %v12383 = vld [vmem:[%s12257 + $0x1f0] sm:$0xff]
                %12384 = vst [vmem:[%s12258 + $0x3d0] sm:$0xff] %v12383
                %v12385 = vld [vmem:[%s12257 + $0x1f8] sm:$0xff]
                %12386 = vst [vmem:[%s12258 + $0x3f0] sm:$0xff] %v12385
                %v12387 = vld [vmem:[%s12257 + $0x200] sm:$0xff]
                %12388 = vst [vmem:[%s12258 + $0x3f8] sm:$0xff] %v12387
                %v12389 = vld [vmem:[%s12257 + $0x208] sm:$0xff]
                %12390 = vst [vmem:[%s12258 + $0x400] sm:$0xff] %v12389
                %v12391 = vld [vmem:[%s12257 + $0x210] sm:$0xff]
                %12392 = vst [vmem:[%s12258 + $0x420] sm:$0xff] %v12391
                %v12393 = vld [vmem:[%s12257 + $0x218] sm:$0xff]
                %12394 = vst [vmem:[%s12258 + $0x428] sm:$0xff] %v12393
                %v12395 = vld [vmem:[%s12257 + $0x220] sm:$0xff]
                %12396 = vst [vmem:[%s12258 + $0x430] sm:$0xff] %v12395
                %v12397 = vld [vmem:[%s12257 + $0x228] sm:$0xff]
                %12398 = vst [vmem:[%s12258 + $0x450] sm:$0xff] %v12397
                %v12399 = vld [vmem:[%s12257 + $0x230] sm:$0xff]
                %12400 = vst [vmem:[%s12258 + $0x458] sm:$0xff] %v12399
                %v12401 = vld [vmem:[%s12257 + $0x238] sm:$0xff]
                %12402 = vst [vmem:[%s12258 + $0x460] sm:$0xff] %v12401
                %v12403 = vld [vmem:[%s12257 + $0x240] sm:$0xff]
                %12404 = vst [vmem:[%s12258 + $0x480] sm:$0xff] %v12403
                %v12405 = vld [vmem:[%s12257 + $0x248] sm:$0xff]
                %12406 = vst [vmem:[%s12258 + $0x488] sm:$0xff] %v12405
                %v12407 = vld [vmem:[%s12257 + $0x250] sm:$0xff]
                %12408 = vst [vmem:[%s12258 + $0x490] sm:$0xff] %v12407
              $region101: #{tpu_custom_call.1} parent=95 // loop_footer
                %s12256 = sadd.s32 1, %s12252
              $region102: #{tpu_custom_call.1} parent=95 // loop_footer_branch
                %12251 = sbr.rel target = $region98
              $region103: #{tpu_custom_call.1} parent=95 // loop_exit
                _
            $region96: #{tpu_custom_call.1} parent=91 // pred_fallthru
              _
            // Predicated region
            $region104: #{tpu_custom_call.1} parent=91 // pred_check
              _
            $region105: #{tpu_custom_call.1} parent=91 // pred_check_branch
              %12410 = sbr.rel target = $region107
            $region106: #{tpu_custom_call.1} parent=91 // pred_region
              _
            $region107: #{tpu_custom_call.1} parent=91 // pred_fallthru
              _
          $region92: #{tpu_custom_call.1} parent=87 // pred_fallthru
            _
          %12411 = vnop
        $region88: #{tpu_custom_call.1} parent=51 // pred_fallthru
          _
      $region52: #{tpu_custom_call.1} parent=5 // pred_fallthru
        _
      %p12412 = scmp.le.s32.totalorder 2, %s27
      // Predicated region
      $region108: #{tpu_custom_call.1} parent=5 // pred_check
        %p12413 = pneg %p12412
      $region109: #{tpu_custom_call.1} parent=5 // pred_check_branch
        %12415 = sbr.rel (%p12413) target = $region111
      $region110: #{tpu_custom_call.1} parent=5 // pred_region
        %s12416 = ssub.s32 %s27, 2
        // Predicated region
        $region112: #{tpu_custom_call.1} parent=110 // pred_check
          %p12417 = pneg %p273
        $region113: #{tpu_custom_call.1} parent=110 // pred_check_branch
          %12419 = sbr.rel (%p12417) target = $region115
        $region114: #{tpu_custom_call.1} parent=110 // pred_region
          %s12420 = sand.u32 %s258, 1
          %s12421 = sand.u32 %s258, 1
          %s12422 = smul.addr %s12421, 600
          %s12423 = scalar_lea.vmem [#allocation15], %s12422
        $region115: #{tpu_custom_call.1} parent=110 // pred_fallthru
          _
      $region111: #{tpu_custom_call.1} parent=5 // pred_fallthru
        _
    $region6: #{tpu_custom_call.1} parent=1 // loop_footer
      %s31 = sadd.s32 1, %s27
    $region7: #{tpu_custom_call.1} parent=1 // loop_footer_branch
      %26 = sbr.rel target = $region3
    $region8: #{tpu_custom_call.1} parent=1 // loop_exit
      _
    %12424 = vsyncpa [#allocation3], 1
    %s12425 = scalar_lea.sflag [#allocation3], 1
    %12426 = vsyncpa %s12425, 1
    %12427 = vsyncpa [#allocation5], 1
    %s12428 = scalar_lea.sflag [#allocation5], 1
    %12429 = vsyncpa %s12428, 1
    %12430 = vsyncpa [#allocation8], 1
    %s12431 = scalar_lea.sflag [#allocation8], 1
    %12432 = vsyncpa %s12431, 1
    %12433 = vsyncpa [#allocation11], 1
    %s12434 = scalar_lea.sflag [#allocation11], 1
    %12435 = vsyncpa %s12434, 1
    %12436 = vsyncpa [#allocation14], 1

</llo_original>
